<compile_context>
chip_gen: v7x
topology: tpu7x:2x2x1
jax: 0.10.0
libtpu: 0.0.40
codegen_flags: <defaults>
</compile_context>

<pallas_src>
import functools

import jax
import jax.numpy as jnp
from jax.experimental import pallas as pl
from jax.experimental.pallas import tpu as pltpu

EPS = 1e-5  # nn.BatchNorm2d default


# ------------------------------ Pallas kernel ------------------------------ #

def conv_bn_act_kernel(x_ref, w_ref, g_ref, b_ref, *rest,
                       stride, kh, n, ho, wo, relu, shortcut):
    """Fused conv + BN(batch stats) [+ shortcut] [+ ReLU] for one Cout tile.

    x_ref : (P*n, Hph, wo, kw*Cin) bf16  -- W-mini-im2col, H phase-decomposed.
    w_ref : (kh, kw*Cin, tn)       bf16
    g_ref, b_ref : (1, tn)         f32
    shortcut == "proj": rest = (xs_ref (M,Csp) bf16, ws_ref (Csp,tn) bf16,
                                gs_ref (1,tn) f32, bs_ref (1,tn) f32, o_ref)
    shortcut == "add" : rest = (res_ref (M,tn) f32, o_ref)
    shortcut == "none": rest = (o_ref,)
    """
    if shortcut == "proj":
        xs_ref, ws_ref, gs_ref, bs_ref, o_ref = rest
    elif shortcut == "add":
        res_ref, o_ref = rest
    else:
        (o_ref,) = rest

    kcin = x_ref.shape[-1]          # kw * Cin
    tn = o_ref.shape[-1]
    m = n * ho * wo
    inv_m = 1.0 / m

    # Main conv: kh MXU dots with K = kw*Cin.  Tap windows slice only the two
    # leading dims of the resident block (lane/sublane layout untouched).
    acc = jnp.zeros((m, tn), jnp.float32)
    for ki in range(kh):
        slab = x_ref[pl.ds((ki % stride) * n, n),
                     pl.ds(ki // stride, ho), :, :]          # (n, ho, wo, kcin)
        acc = acc + jnp.dot(slab.reshape(m, kcin), w_ref[ki],
                            preferred_element_type=jnp.float32)

    # One-pass BatchNorm (training-mode batch stats) -> single scale/shift.
    mean = jnp.sum(acc, axis=0, keepdims=True) * inv_m
    var = jnp.sum(acc * acc, axis=0, keepdims=True) * inv_m - mean * mean
    scale = jax.lax.rsqrt(var + EPS) * g_ref[...]
    shift = b_ref[...] - mean * scale
    y = acc * scale + shift

    if shortcut == "proj":
        # Fused 1x1 (stride already applied by the wrapper) projection
        # shortcut: one extra dot + its own one-pass BN, added in-register.
        sacc = jnp.dot(xs_ref[...], ws_ref[...],
                       preferred_element_type=jnp.float32)
        smean = jnp.sum(sacc, axis=0, keepdims=True) * inv_m
        svar = (jnp.sum(sacc * sacc, axis=0, keepdims=True) * inv_m
                - smean * smean)
        sscale = jax.lax.rsqrt(svar + EPS) * gs_ref[...]
        sshift = bs_ref[...] - smean * sscale
        y = y + sacc * sscale + sshift
    elif shortcut == "add":
        y = y + res_ref[...]

    if relu:
        y = jnp.maximum(y, 0.0)
    o_ref[...] = y.astype(o_ref.dtype)


# ------------------------------ JAX wrapper -------------------------------- #

def conv_bn_act(x, w, gamma, beta, *, stride, padding, relu,
                residual=None, proj=None, out_dtype=jnp.float32):
    """y = ReLU?( BN(conv(x, w)) + shortcut ), NHWC in / NHWC out.

    x: (N,H,W,Cin), w: (kh,kw,Cin,Cout) HWIO.
    residual: (N,Ho,Wo,Cout) added after BN (identity shortcut).
    proj: (x_sc (N,Ho,Wo,Cs), w_sc (1,1,Cs,Cout), g_sc, b_sc) -> fused
          1x1 projection conv + BN computed inside the same kernel.
    """
    N, H, W, Cin = x.shape
    kh, kw, _, Cout = w.shape
    Ho = (H + 2 * padding - kh) // stride + 1
    Wo = (W + 2 * padding - kw) // stride + 1
    M = N * Ho * Wo

    # ---- cheap wrapper glue, all in bf16 ----------------------------------
    xb = x.astype(jnp.bfloat16)
    if padding:
        xb = jnp.pad(xb, ((0, 0), (padding, padding), (padding, padding), (0, 0)))
    Hp = H + 2 * padding
    kcin = kw * Cin

    # mini-im2col along W only: (N, Hp, Wo, kw*Cin); also absorbs the W stride.
    if kw == 1 and stride == 1:
        xcol = xb
    else:
        cols = [xb[:, :, kj:kj + (Wo - 1) * stride + 1:stride, :]
                for kj in range(kw)]
        xcol = jnp.stack(cols, axis=3).reshape(N, Hp, Wo, kcin)

    # stride-phase decomposition along H (skipped entirely for stride == 1).
    if stride == 1:
        P, Hph, xph = 1, Hp, xcol
    else:
        Hp2 = pl.cdiv(Hp, stride) * stride
        if Hp2 != Hp:
            xcol = jnp.pad(xcol, ((0, 0), (0, Hp2 - Hp), (0, 0), (0, 0)))
        Hph = Hp2 // stride
        xph = xcol.reshape(N, Hph, stride, Wo, kcin)
        xph = jnp.transpose(xph, (2, 0, 1, 3, 4)).reshape(
            stride * N, Hph, Wo, kcin)
        P = stride

    # ---- lane-friendly channel padding; tn = 128 on every generation ------
    Cp = pl.cdiv(Cout, 128) * 128
    tn = 128
    wq = jnp.pad(w.reshape(kh, kcin, Cout),
                 ((0, 0), (0, 0), (0, Cp - Cout))).astype(jnp.bfloat16)
    g2 = jnp.pad(gamma, (0, Cp - Cout), constant_values=1.0)
    g2 = g2.reshape(1, Cp).astype(jnp.float32)
    b2 = jnp.pad(beta, (0, Cp - Cout)).reshape(1, Cp).astype(jnp.float32)

    # Guard the single-block-over-M design (see TODO at top for M tiling).
    assert (P * N * Hph * Wo * kcin * 2 + M * Cp * 4) < 24 * 1024 * 1024, \
        "activation too large for single-block-over-M fusion; add M tiling"

    args = [xph, wq, g2, b2]
    in_specs = [
        pl.BlockSpec((P * N, Hph, Wo, kcin), lambda j: (0, 0, 0, 0)),
        pl.BlockSpec((kh, kcin, tn), lambda j: (0, 0, j)),
        pl.BlockSpec((1, tn), lambda j: (0, j)),
        pl.BlockSpec((1, tn), lambda j: (0, j)),
    ]
    mode = "none"
    flops = 2 * M * kcin * Cp * kh
    bytes_accessed = (xph.size * 2 + wq.size * 2
                      + M * Cp * jnp.dtype(out_dtype).itemsize)

    if proj is not None:
        xs_full, wsc, gsc, bsc = proj
        assert xs_full.shape[:3] == (N, Ho, Wo)
        Cs = xs_full.shape[-1]
        Csp = pl.cdiv(Cs, 128) * 128
        xs2 = jnp.pad(xs_full.reshape(M, Cs),
                      ((0, 0), (0, Csp - Cs))).astype(jnp.bfloat16)
        ws2 = jnp.pad(wsc.reshape(Cs, Cout),
                      ((0, Csp - Cs), (0, Cp - Cout))).astype(jnp.bfloat16)
        gs2 = jnp.pad(gsc, (0, Cp - Cout), constant_values=1.0)
        gs2 = gs2.reshape(1, Cp).astype(jnp.float32)
        bs2 = jnp.pad(bsc, (0, Cp - Cout)).reshape(1, Cp).astype(jnp.float32)
        args += [xs2, ws2, gs2, bs2]
        in_specs += [
            pl.BlockSpec((M, Csp), lambda j: (0, 0)),
            pl.BlockSpec((Csp, tn), lambda j: (0, j)),
            pl.BlockSpec((1, tn), lambda j: (0, j)),
            pl.BlockSpec((1, tn), lambda j: (0, j)),
        ]
        mode = "proj"
        flops += 2 * M * Csp * Cp
        bytes_accessed += xs2.size * 2 + ws2.size * 2
    elif residual is not None:
        res2 = residual.astype(jnp.float32).reshape(M, Cout)
        res2 = jnp.pad(res2, ((0, 0), (0, Cp - Cout)))
        args.append(res2)
        in_specs.append(pl.BlockSpec((M, tn), lambda j: (0, j)))
        mode = "add"
        bytes_accessed += res2.size * 4

    kern = functools.partial(conv_bn_act_kernel, stride=stride, kh=kh,
                             n=N, ho=Ho, wo=Wo, relu=relu, shortcut=mode)
    out = pl.pallas_call(
        kern,
        out_shape=jax.ShapeDtypeStruct((M, Cp), out_dtype),
        grid=(Cp // tn,),
        in_specs=in_specs,
        out_specs=pl.BlockSpec((M, tn), lambda j: (0, j)),
        compiler_params=pltpu.CompilerParams(
            dimension_semantics=("parallel",)),
        cost_estimate=pl.CostEstimate(flops=int(flops),
                                      transcendentals=int(2 * Cp),
                                      bytes_accessed=int(bytes_accessed)),
    )(*args)
    return out[:, :Cout].reshape(N, Ho, Wo, Cout)


# ------------------------------ Brick module ------------------------------- #

def brick_forward(x_nhwc, p):
    """out = relu(bn1(conv1(x))); out = bn2(conv2(out)) + shortcut(x); relu."""
    stride = p["stride"]
    h = conv_bn_act(x_nhwc, p["w1"], p["g1"], p["b1"],
                    stride=stride, padding=1, relu=True,
                    out_dtype=jnp.bfloat16)          # bf16 intermediate
    if "wsc" in p:
        # 1x1 stride-s projection shortcut, fused into the conv2 kernel.
        x_sc = x_nhwc[:, ::stride, ::stride, :]
        return conv_bn_act(h, p["w2"], p["g2"], p["b2"],
                           stride=1, padding=1, relu=True,
                           proj=(x_sc, p["wsc"], p["gsc"], p["bsc"]))
    # identity shortcut
    return conv_bn_act(h, p["w2"], p["g2"], p["b2"],
                       stride=1, padding=1, relu=True, residual=x_nhwc)


def init_brick_params(key, inp, outp, stride):
    ks = jax.random.split(key, 10)

    def cw(k, kh, kw_, ci, co):
        return 0.05 * jax.random.normal(k, (kh, kw_, ci, co), jnp.float32)

    def bnp(kg, kb, c):
        return (1.0 + 0.1 * jax.random.normal(kg, (c,), jnp.float32),
                0.1 * jax.random.normal(kb, (c,), jnp.float32))

    p = {"stride": stride, "w1": cw(ks[0], 3, 3, inp, outp)}
    p["g1"], p["b1"] = bnp(ks[1], ks[2], outp)
    p["w2"] = cw(ks[3], 3, 3, outp, outp)
    p["g2"], p["b2"] = bnp(ks[4], ks[5], outp)
    if stride != 1 or inp != outp:        # Brick.oneexp == 1
        p["wsc"] = cw(ks[6], 1, 1, inp, outp)
        p["gsc"], p["bsc"] = bnp(ks[7], ks[8], outp)
    return p


# ---------------------------- pure-JAX reference --------------------------- #

def _conv_ref(x, w, stride, padding):
    return jax.lax.conv_general_dilated(
        x.astype(jnp.bfloat16), w.astype(jnp.bfloat16), (stride, stride),
        [(padding, padding), (padding, padding)],
        dimension_numbers=("NHWC", "HWIO", "NHWC"),
        preferred_element_type=jnp.float32)


def _bn_ref(x, g, b):
    mean = jnp.mean(x, axis=(0, 1, 2), keepdims=True)
    var = jnp.mean(jnp.square(x - mean), axis=(0, 1, 2), keepdims=True)
    return (x - mean) * jax.lax.rsqrt(var + EPS) * g + b


def brick_ref(x, p):
    stride = p["stride"]
    h = jax.nn.relu(_bn_ref(_conv_ref(x, p["w1"], stride, 1), p["g1"], p["b1"]))
    out = _bn_ref(_conv_ref(h, p["w2"], 1, 1), p["g2"], p["b2"])
    sc = (_bn_ref(_conv_ref(x, p["wsc"], stride, 0), p["gsc"], p["bsc"])
          if "wsc" in p else x)
    return jax.nn.relu(out + sc)


# ----------------------------------- main ----------------------------------- #

if __name__ == "__main__":
    kx, kp1, kp2 = jax.random.split(jax.random.PRNGKey(0), 3)

    # ResNet-style small shapes: projection brick Brick(64, 128, stride=2)
    # followed by an identity brick Brick(128, 128, stride=1).
    x_nchw = jax.random.normal(kx, (2, 64, 16, 16), jnp.float32)
    p_proj = init_brick_params(kp1, 64, 128, stride=2)
    p_id = init_brick_params(kp2, 128, 128, stride=1)

    x_nhwc = jnp.transpose(x_nchw, (0, 2, 3, 1))               # NCHW -> NHWC

    @jax.jit
    def fwd(x):
        y1 = brick_forward(x, p_proj)                          # (2, 8, 8, 128)
        y2 = brick_forward(y1, p_id)                           # (2, 8, 8, 128)
        return y1, y2

    y1, y2 = fwd(x_nhwc)
    y2 = jax.block_until_ready(y2)

    assert y1.shape == (2, 8, 8, 128) and y2.shape == (2, 8, 8, 128)
    assert y2.dtype == jnp.float32

    # Numerical check vs. pure-JAX reference with identical bf16 MXU casting.
    r1 = brick_ref(x_nhwc, p_proj)
    r2 = brick_ref(r1, p_id)
    err = max(float(jnp.max(jnp.abs(y1 - r1))),
              float(jnp.max(jnp.abs(y2 - r2))))
    assert err < 5e-2, f"mismatch vs reference: max abs err {err}"

    print("KERNEL_OK")
</pallas_src>

<mosaic_0001>
module attributes {stable_mosaic.version = 11 : i64} {
  func.func @conv_bn_act_kernel(%arg0: i32, %arg1: memref<4x9x8x192xbf16, #tpu.memory_space<vmem>>, %arg2: memref<3x192x128xbf16, #tpu.memory_space<vmem>>, %arg3: memref<1x128xf32, #tpu.memory_space<vmem>>, %arg4: memref<1x128xf32, #tpu.memory_space<vmem>>, %arg5: memref<128x128xbf16, #tpu.memory_space<vmem>>) attributes {dimension_semantics = [#tpu.dimension_semantics<parallel>], iteration_bounds = array<i64: 1>, scalar_prefetch = 0 : i64, scratch_operands = 0 : i64, tpu.core_type = #tpu.core_type<tc>, window_params = [{pipeline_mode = #tpu.pipeline_mode<synchronous>, transform_indices = @transform_0, window_bounds = array<i64: 4, 9, 8, 192>}, {transform_indices = @transform_1, window_bounds = array<i64: 3, 192, 128>}, {transform_indices = @transform_2, window_bounds = array<i64: 1, 128>}, {transform_indices = @transform_3, window_bounds = array<i64: 1, 128>}, {transform_indices = @transform_4, window_bounds = array<i64: 128, 128>}]} {
    %cst = arith.constant 0.000000e+00 : f32
    %0 = vector.broadcast %cst : f32 to vector<128x128xf32>
    %c0 = arith.constant 0 : index
    %c0_0 = arith.constant 0 : index
    %c0_1 = arith.constant 0 : index
    %c0_2 = arith.constant 0 : index
    %1 = vector.load %arg1[%c0, %c0_0, %c0_1, %c0_2] : memref<4x9x8x192xbf16, #tpu.memory_space<vmem>>, vector<2x8x8x192xbf16>
    %2 = vector.shape_cast %1 : vector<2x8x8x192xbf16> to vector<128x192xbf16>
    %c0_3 = arith.constant 0 : index
    %c0_4 = arith.constant 0 : index
    %c0_5 = arith.constant 0 : index
    %3 = vector.load %arg2[%c0_3, %c0_4, %c0_5] : memref<3x192x128xbf16, #tpu.memory_space<vmem>>, vector<1x192x128xbf16>
    %4 = vector.shape_cast %3 : vector<1x192x128xbf16> to vector<192x128xbf16>
    %cst_6 = arith.constant dense<0.000000e+00> : vector<128x128xf32>
    %5 = tpu.matmul %2, %4, %cst_6 {dimension_numbers = #tpu.dot_dimension_numbers<[1], [0], [0], [1], [0, 0, 1, 1], [], []>} : vector<128x192xbf16>, vector<192x128xbf16>, vector<128x128xf32> -> vector<128x128xf32>
    %6 = arith.addf %0, %5 : vector<128x128xf32>
    %c2 = arith.constant 2 : index
    %c0_7 = arith.constant 0 : index
    %c0_8 = arith.constant 0 : index
    %c0_9 = arith.constant 0 : index
    %7 = vector.load %arg1[%c2, %c0_7, %c0_8, %c0_9] : memref<4x9x8x192xbf16, #tpu.memory_space<vmem>>, vector<2x8x8x192xbf16>
    %8 = vector.shape_cast %7 : vector<2x8x8x192xbf16> to vector<128x192xbf16>
    %c1 = arith.constant 1 : index
    %c0_10 = arith.constant 0 : index
    %c0_11 = arith.constant 0 : index
    %9 = vector.load %arg2[%c1, %c0_10, %c0_11] : memref<3x192x128xbf16, #tpu.memory_space<vmem>>, vector<1x192x128xbf16>
    %10 = vector.shape_cast %9 : vector<1x192x128xbf16> to vector<192x128xbf16>
    %cst_12 = arith.constant dense<0.000000e+00> : vector<128x128xf32>
    %11 = tpu.matmul %8, %10, %cst_12 {dimension_numbers = #tpu.dot_dimension_numbers<[1], [0], [0], [1], [0, 0, 1, 1], [], []>} : vector<128x192xbf16>, vector<192x128xbf16>, vector<128x128xf32> -> vector<128x128xf32>
    %12 = arith.addf %6, %11 : vector<128x128xf32>
    %c0_13 = arith.constant 0 : index
    %c1_14 = arith.constant 1 : index
    %c0_15 = arith.constant 0 : index
    %c0_16 = arith.constant 0 : index
    %13 = vector.load %arg1[%c0_13, %c1_14, %c0_15, %c0_16] : memref<4x9x8x192xbf16, #tpu.memory_space<vmem>>, vector<2x8x8x192xbf16>
    %14 = vector.shape_cast %13 : vector<2x8x8x192xbf16> to vector<128x192xbf16>
    %c2_17 = arith.constant 2 : index
    %c0_18 = arith.constant 0 : index
    %c0_19 = arith.constant 0 : index
    %15 = vector.load %arg2[%c2_17, %c0_18, %c0_19] : memref<3x192x128xbf16, #tpu.memory_space<vmem>>, vector<1x192x128xbf16>
    %16 = vector.shape_cast %15 : vector<1x192x128xbf16> to vector<192x128xbf16>
    %cst_20 = arith.constant dense<0.000000e+00> : vector<128x128xf32>
    %17 = tpu.matmul %14, %16, %cst_20 {dimension_numbers = #tpu.dot_dimension_numbers<[1], [0], [0], [1], [0, 0, 1, 1], [], []>} : vector<128x192xbf16>, vector<192x128xbf16>, vector<128x128xf32> -> vector<128x128xf32>
    %18 = arith.addf %12, %17 : vector<128x128xf32>
    %cst_21 = arith.constant dense<0.000000e+00> : vector<128xf32>
    %19 = vector.multi_reduction <add>, %18, %cst_21 [0] : vector<128x128xf32> to vector<128xf32>
    %20 = vector.shape_cast %19 : vector<128xf32> to vector<1x128xf32>
    %cst_22 = arith.constant 7.812500e-03 : f32
    %21 = vector.broadcast %cst_22 : f32 to vector<1x128xf32>
    %22 = arith.mulf %20, %21 : vector<1x128xf32>
    %23 = arith.mulf %18, %18 : vector<128x128xf32>
    %cst_23 = arith.constant dense<0.000000e+00> : vector<128xf32>
    %24 = vector.multi_reduction <add>, %23, %cst_23 [0] : vector<128x128xf32> to vector<128xf32>
    %25 = vector.shape_cast %24 : vector<128xf32> to vector<1x128xf32>
    %cst_24 = arith.constant 7.812500e-03 : f32
    %26 = vector.broadcast %cst_24 : f32 to vector<1x128xf32>
    %27 = arith.mulf %25, %26 : vector<1x128xf32>
    %28 = arith.mulf %22, %22 : vector<1x128xf32>
    %29 = arith.subf %27, %28 : vector<1x128xf32>
    %cst_25 = arith.constant 9.99999974E-6 : f32
    %30 = vector.broadcast %cst_25 : f32 to vector<1x128xf32>
    %31 = arith.addf %29, %30 : vector<1x128xf32>
    %32 = math.rsqrt %31 : vector<1x128xf32>
    %c0_26 = arith.constant 0 : index
    %c0_27 = arith.constant 0 : index
    %33 = vector.load %arg3[%c0_26, %c0_27] : memref<1x128xf32, #tpu.memory_space<vmem>>, vector<1x128xf32>
    %34 = arith.mulf %32, %33 : vector<1x128xf32>
    %c0_28 = arith.constant 0 : index
    %c0_29 = arith.constant 0 : index
    %35 = vector.load %arg4[%c0_28, %c0_29] : memref<1x128xf32, #tpu.memory_space<vmem>>, vector<1x128xf32>
    %36 = arith.mulf %22, %34 : vector<1x128xf32>
    %37 = arith.subf %35, %36 : vector<1x128xf32>
    %38 = vector.broadcast %34 : vector<1x128xf32> to vector<128x128xf32>
    %39 = arith.mulf %18, %38 : vector<128x128xf32>
    %40 = vector.broadcast %37 : vector<1x128xf32> to vector<128x128xf32>
    %41 = arith.addf %39, %40 : vector<128x128xf32>
    %cst_30 = arith.constant 0.000000e+00 : f32
    %42 = vector.broadcast %cst_30 : f32 to vector<128x128xf32>
    %43 = arith.maximumf %41, %42 : vector<128x128xf32>
    %44 = arith.truncf %43 : vector<128x128xf32> to vector<128x128xbf16>
    %c0_31 = arith.constant 0 : index
    %c0_32 = arith.constant 0 : index
    %45 = vector.load %arg5[%c0_31, %c0_32] : memref<128x128xbf16, #tpu.memory_space<vmem>>, vector<128x128xbf16>
    tpu.vector_store %arg5[%c0_31, %c0_32], %44 {strides = array<i32>} : memref<128x128xbf16, #tpu.memory_space<vmem>>, vector<128x128xbf16>,
    return
  }
  func.func @transform_0(%arg0: i32) -> (i32, i32, i32, i32) {
    %c0_i32 = arith.constant 0 : i32
    %c0_i32_0 = arith.constant 0 : i32
    %c0_i32_1 = arith.constant 0 : i32
    %c0_i32_2 = arith.constant 0 : i32
    %c0_i32_3 = arith.constant 0 : i32
    return %c0_i32, %c0_i32_0, %c0_i32_1, %c0_i32_2 : i32, i32, i32, i32
  }
  func.func @transform_1(%arg0: i32) -> (i32, i32, i32) {
    %c0_i32 = arith.constant 0 : i32
    %c0_i32_0 = arith.constant 0 : i32
    %c0_i32_1 = arith.constant 0 : i32
    return %c0_i32, %c0_i32_0, %arg0 : i32, i32, i32
  }
  func.func @transform_2(%arg0: i32) -> (i32, i32) {
    %c0_i32 = arith.constant 0 : i32
    %c0_i32_0 = arith.constant 0 : i32
    return %c0_i32, %arg0 : i32, i32
  }
  func.func @transform_3(%arg0: i32) -> (i32, i32) {
    %c0_i32 = arith.constant 0 : i32
    %c0_i32_0 = arith.constant 0 : i32
    return %c0_i32, %arg0 : i32, i32
  }
  func.func @transform_4(%arg0: i32) -> (i32, i32) {
    %c0_i32 = arith.constant 0 : i32
    %c0_i32_0 = arith.constant 0 : i32
    return %c0_i32, %arg0 : i32, i32
  }
}

module attributes {stable_mosaic.version = 11 : i64} {
  func.func @conv_bn_act_kernel(%arg0: i32, %arg1: memref<2x10x8x384xbf16, #tpu.memory_space<vmem>>, %arg2: memref<3x384x128xbf16, #tpu.memory_space<vmem>>, %arg3: memref<1x128xf32, #tpu.memory_space<vmem>>, %arg4: memref<1x128xf32, #tpu.memory_space<vmem>>, %arg5: memref<128x128xbf16, #tpu.memory_space<vmem>>, %arg6: memref<128x128xbf16, #tpu.memory_space<vmem>>, %arg7: memref<1x128xf32, #tpu.memory_space<vmem>>, %arg8: memref<1x128xf32, #tpu.memory_space<vmem>>, %arg9: memref<128x128xf32, #tpu.memory_space<vmem>>) attributes {dimension_semantics = [#tpu.dimension_semantics<parallel>], iteration_bounds = array<i64: 1>, scalar_prefetch = 0 : i64, scratch_operands = 0 : i64, tpu.core_type = #tpu.core_type<tc>, window_params = [{pipeline_mode = #tpu.pipeline_mode<synchronous>, transform_indices = @transform_0, window_bounds = array<i64: 2, 10, 8, 384>}, {transform_indices = @transform_1, window_bounds = array<i64: 3, 384, 128>}, {transform_indices = @transform_2, window_bounds = array<i64: 1, 128>}, {transform_indices = @transform_3, window_bounds = array<i64: 1, 128>}, {pipeline_mode = #tpu.pipeline_mode<synchronous>, transform_indices = @transform_4, window_bounds = array<i64: 128, 128>}, {transform_indices = @transform_5, window_bounds = array<i64: 128, 128>}, {transform_indices = @transform_6, window_bounds = array<i64: 1, 128>}, {transform_indices = @transform_7, window_bounds = array<i64: 1, 128>}, {transform_indices = @transform_8, window_bounds = array<i64: 128, 128>}]} {
    %cst = arith.constant 0.000000e+00 : f32
    %0 = vector.broadcast %cst : f32 to vector<128x128xf32>
    %c0 = arith.constant 0 : index
    %c0_0 = arith.constant 0 : index
    %c0_1 = arith.constant 0 : index
    %c0_2 = arith.constant 0 : index
    %1 = vector.load %arg1[%c0, %c0_0, %c0_1, %c0_2] : memref<2x10x8x384xbf16, #tpu.memory_space<vmem>>, vector<2x8x8x384xbf16>
    %2 = vector.shape_cast %1 : vector<2x8x8x384xbf16> to vector<128x384xbf16>
    %c0_3 = arith.constant 0 : index
    %c0_4 = arith.constant 0 : index
    %c0_5 = arith.constant 0 : index
    %3 = vector.load %arg2[%c0_3, %c0_4, %c0_5] : memref<3x384x128xbf16, #tpu.memory_space<vmem>>, vector<1x384x128xbf16>
    %4 = vector.shape_cast %3 : vector<1x384x128xbf16> to vector<384x128xbf16>
    %cst_6 = arith.constant dense<0.000000e+00> : vector<128x128xf32>
    %5 = tpu.matmul %2, %4, %cst_6 {dimension_numbers = #tpu.dot_dimension_numbers<[1], [0], [0], [1], [0, 0, 1, 1], [], []>} : vector<128x384xbf16>, vector<384x128xbf16>, vector<128x128xf32> -> vector<128x128xf32>
    %6 = arith.addf %0, %5 : vector<128x128xf32>
    %c0_7 = arith.constant 0 : index
    %c1 = arith.constant 1 : index
    %c0_8 = arith.constant 0 : index
    %c0_9 = arith.constant 0 : index
    %7 = vector.load %arg1[%c0_7, %c1, %c0_8, %c0_9] : memref<2x10x8x384xbf16, #tpu.memory_space<vmem>>, vector<2x8x8x384xbf16>
    %8 = vector.shape_cast %7 : vector<2x8x8x384xbf16> to vector<128x384xbf16>
    %c1_10 = arith.constant 1 : index
    %c0_11 = arith.constant 0 : index
    %c0_12 = arith.constant 0 : index
    %9 = vector.load %arg2[%c1_10, %c0_11, %c0_12] : memref<3x384x128xbf16, #tpu.memory_space<vmem>>, vector<1x384x128xbf16>
    %10 = vector.shape_cast %9 : vector<1x384x128xbf16> to vector<384x128xbf16>
    %cst_13 = arith.constant dense<0.000000e+00> : vector<128x128xf32>
    %11 = tpu.matmul %8, %10, %cst_13 {dimension_numbers = #tpu.dot_dimension_numbers<[1], [0], [0], [1], [0, 0, 1, 1], [], []>} : vector<128x384xbf16>, vector<384x128xbf16>, vector<128x128xf32> -> vector<128x128xf32>
    %12 = arith.addf %6, %11 : vector<128x128xf32>
    %c0_14 = arith.constant 0 : index
    %c2 = arith.constant 2 : index
    %c0_15 = arith.constant 0 : index
    %c0_16 = arith.constant 0 : index
    %13 = vector.load %arg1[%c0_14, %c2, %c0_15, %c0_16] : memref<2x10x8x384xbf16, #tpu.memory_space<vmem>>, vector<2x8x8x384xbf16>
    %14 = vector.shape_cast %13 : vector<2x8x8x384xbf16> to vector<128x384xbf16>
    %c2_17 = arith.constant 2 : index
    %c0_18 = arith.constant 0 : index
    %c0_19 = arith.constant 0 : index
    %15 = vector.load %arg2[%c2_17, %c0_18, %c0_19] : memref<3x384x128xbf16, #tpu.memory_space<vmem>>, vector<1x384x128xbf16>
    %16 = vector.shape_cast %15 : vector<1x384x128xbf16> to vector<384x128xbf16>
    %cst_20 = arith.constant dense<0.000000e+00> : vector<128x128xf32>
    %17 = tpu.matmul %14, %16, %cst_20 {dimension_numbers = #tpu.dot_dimension_numbers<[1], [0], [0], [1], [0, 0, 1, 1], [], []>} : vector<128x384xbf16>, vector<384x128xbf16>, vector<128x128xf32> -> vector<128x128xf32>
    %18 = arith.addf %12, %17 : vector<128x128xf32>
    %cst_21 = arith.constant dense<0.000000e+00> : vector<128xf32>
    %19 = vector.multi_reduction <add>, %18, %cst_21 [0] : vector<128x128xf32> to vector<128xf32>
    %20 = vector.shape_cast %19 : vector<128xf32> to vector<1x128xf32>
    %cst_22 = arith.constant 7.812500e-03 : f32
    %21 = vector.broadcast %cst_22 : f32 to vector<1x128xf32>
    %22 = arith.mulf %20, %21 : vector<1x128xf32>
    %23 = arith.mulf %18, %18 : vector<128x128xf32>
    %cst_23 = arith.constant dense<0.000000e+00> : vector<128xf32>
    %24 = vector.multi_reduction <add>, %23, %cst_23 [0] : vector<128x128xf32> to vector<128xf32>
    %25 = vector.shape_cast %24 : vector<128xf32> to vector<1x128xf32>
    %cst_24 = arith.constant 7.812500e-03 : f32
    %26 = vector.broadcast %cst_24 : f32 to vector<1x128xf32>
    %27 = arith.mulf %25, %26 : vector<1x128xf32>
    %28 = arith.mulf %22, %22 : vector<1x128xf32>
    %29 = arith.subf %27, %28 : vector<1x128xf32>
    %cst_25 = arith.constant 9.99999974E-6 : f32
    %30 = vector.broadcast %cst_25 : f32 to vector<1x128xf32>
    %31 = arith.addf %29, %30 : vector<1x128xf32>
    %32 = math.rsqrt %31 : vector<1x128xf32>
    %c0_26 = arith.constant 0 : index
    %c0_27 = arith.constant 0 : index
    %33 = vector.load %arg3[%c0_26, %c0_27] : memref<1x128xf32, #tpu.memory_space<vmem>>, vector<1x128xf32>
    %34 = arith.mulf %32, %33 : vector<1x128xf32>
    %c0_28 = arith.constant 0 : index
    %c0_29 = arith.constant 0 : index
    %35 = vector.load %arg4[%c0_28, %c0_29] : memref<1x128xf32, #tpu.memory_space<vmem>>, vector<1x128xf32>
    %36 = arith.mulf %22, %34 : vector<1x128xf32>
    %37 = arith.subf %35, %36 : vector<1x128xf32>
    %38 = vector.broadcast %34 : vector<1x128xf32> to vector<128x128xf32>
    %39 = arith.mulf %18, %38 : vector<128x128xf32>
    %40 = vector.broadcast %37 : vector<1x128xf32> to vector<128x128xf32>
    %41 = arith.addf %39, %40 : vector<128x128xf32>
    %c0_30 = arith.constant 0 : index
    %c0_31 = arith.constant 0 : index
    %42 = vector.load %arg5[%c0_30, %c0_31] : memref<128x128xbf16, #tpu.memory_space<vmem>>, vector<128x128xbf16>
    %c0_32 = arith.constant 0 : index
    %c0_33 = arith.constant 0 : index
    %43 = vector.load %arg6[%c0_32, %c0_33] : memref<128x128xbf16, #tpu.memory_space<vmem>>, vector<128x128xbf16>
    %cst_34 = arith.constant dense<0.000000e+00> : vector<128x128xf32>
    %44 = tpu.matmul %42, %43, %cst_34 {dimension_numbers = #tpu.dot_dimension_numbers<[1], [0], [0], [1], [0, 0, 1, 1], [], []>} : vector<128x128xbf16>, vector<128x128xbf16>, vector<128x128xf32> -> vector<128x128xf32>
    %cst_35 = arith.constant dense<0.000000e+00> : vector<128xf32>
    %45 = vector.multi_reduction <add>, %44, %cst_35 [0] : vector<128x128xf32> to vector<128xf32>
    %46 = vector.shape_cast %45 : vector<128xf32> to vector<1x128xf32>
    %cst_36 = arith.constant 7.812500e-03 : f32
    %47 = vector.broadcast %cst_36 : f32 to vector<1x128xf32>
    %48 = arith.mulf %46, %47 : vector<1x128xf32>
    %49 = arith.mulf %44, %44 : vector<128x128xf32>
    %cst_37 = arith.constant dense<0.000000e+00> : vector<128xf32>
    %50 = vector.multi_reduction <add>, %49, %cst_37 [0] : vector<128x128xf32> to vector<128xf32>
    %51 = vector.shape_cast %50 : vector<128xf32> to vector<1x128xf32>
    %cst_38 = arith.constant 7.812500e-03 : f32
    %52 = vector.broadcast %cst_38 : f32 to vector<1x128xf32>
    %53 = arith.mulf %51, %52 : vector<1x128xf32>
    %54 = arith.mulf %48, %48 : vector<1x128xf32>
    %55 = arith.subf %53, %54 : vector<1x128xf32>
    %cst_39 = arith.constant 9.99999974E-6 : f32
    %56 = vector.broadcast %cst_39 : f32 to vector<1x128xf32>
    %57 = arith.addf %55, %56 : vector<1x128xf32>
    %58 = math.rsqrt %57 : vector<1x128xf32>
    %c0_40 = arith.constant 0 : index
    %c0_41 = arith.constant 0 : index
    %59 = vector.load %arg7[%c0_40, %c0_41] : memref<1x128xf32, #tpu.memory_space<vmem>>, vector<1x128xf32>
    %60 = arith.mulf %58, %59 : vector<1x128xf32>
    %c0_42 = arith.constant 0 : index
    %c0_43 = arith.constant 0 : index
    %61 = vector.load %arg8[%c0_42, %c0_43] : memref<1x128xf32, #tpu.memory_space<vmem>>, vector<1x128xf32>
    %62 = arith.mulf %48, %60 : vector<1x128xf32>
    %63 = arith.subf %61, %62 : vector<1x128xf32>
    %64 = vector.broadcast %60 : vector<1x128xf32> to vector<128x128xf32>
    %65 = arith.mulf %44, %64 : vector<128x128xf32>
    %66 = arith.addf %41, %65 : vector<128x128xf32>
    %67 = vector.broadcast %63 : vector<1x128xf32> to vector<128x128xf32>
    %68 = arith.addf %66, %67 : vector<128x128xf32>
    %cst_44 = arith.constant 0.000000e+00 : f32
    %69 = vector.broadcast %cst_44 : f32 to vector<128x128xf32>
    %70 = arith.maximumf %68, %69 : vector<128x128xf32>
    %c0_45 = arith.constant 0 : index
    %c0_46 = arith.constant 0 : index
    %71 = vector.load %arg9[%c0_45, %c0_46] : memref<128x128xf32, #tpu.memory_space<vmem>>, vector<128x128xf32>
    tpu.vector_store %arg9[%c0_45, %c0_46], %70 {strides = array<i32>} : memref<128x128xf32, #tpu.memory_space<vmem>>, vector<128x128xf32>,
    return
  }
  func.func @transform_0(%arg0: i32) -> (i32, i32, i32, i32) {
    %c0_i32 = arith.constant 0 : i32
    %c0_i32_0 = arith.constant 0 : i32
    %c0_i32_1 = arith.constant 0 : i32
    %c0_i32_2 = arith.constant 0 : i32
    %c0_i32_3 = arith.constant 0 : i32
    return %c0_i32, %c0_i32_0, %c0_i32_1, %c0_i32_2 : i32, i32, i32, i32
  }
  func.func @transform_1(%arg0: i32) -> (i32, i32, i32) {
    %c0_i32 = arith.constant 0 : i32
    %c0_i32_0 = arith.constant 0 : i32
    %c0_i32_1 = arith.constant 0 : i32
    return %c0_i32, %c0_i32_0, %arg0 : i32, i32, i32
  }
  func.func @transform_2(%arg0: i32) -> (i32, i32) {
    %c0_i32 = arith.constant 0 : i32
    %c0_i32_0 = arith.constant 0 : i32
    return %c0_i32, %arg0 : i32, i32
  }
  func.func @transform_3(%arg0: i32) -> (i32, i32) {
    %c0_i32 = arith.constant 0 : i32
    %c0_i32_0 = arith.constant 0 : i32
    return %c0_i32, %arg0 : i32, i32
  }
  func.func @transform_4(%arg0: i32) -> (i32, i32) {
    %c0_i32 = arith.constant 0 : i32
    %c0_i32_0 = arith.constant 0 : i32
    %c0_i32_1 = arith.constant 0 : i32
    return %c0_i32, %c0_i32_0 : i32, i32
  }
  func.func @transform_5(%arg0: i32) -> (i32, i32) {
    %c0_i32 = arith.constant 0 : i32
    %c0_i32_0 = arith.constant 0 : i32
    return %c0_i32, %arg0 : i32, i32
  }
  func.func @transform_6(%arg0: i32) -> (i32, i32) {
    %c0_i32 = arith.constant 0 : i32
    %c0_i32_0 = arith.constant 0 : i32
    return %c0_i32, %arg0 : i32, i32
  }
  func.func @transform_7(%arg0: i32) -> (i32, i32) {
    %c0_i32 = arith.constant 0 : i32
    %c0_i32_0 = arith.constant 0 : i32
    return %c0_i32, %arg0 : i32, i32
  }
  func.func @transform_8(%arg0: i32) -> (i32, i32) {
    %c0_i32 = arith.constant 0 : i32
    %c0_i32_0 = arith.constant 0 : i32
    return %c0_i32, %arg0 : i32, i32
  }
}

module attributes {stable_mosaic.version = 11 : i64} {
  func.func @conv_bn_act_kernel(%arg0: i32, %arg1: memref<2x10x8x384xbf16, #tpu.memory_space<vmem>>, %arg2: memref<3x384x128xbf16, #tpu.memory_space<vmem>>, %arg3: memref<1x128xf32, #tpu.memory_space<vmem>>, %arg4: memref<1x128xf32, #tpu.memory_space<vmem>>, %arg5: memref<128x128xbf16, #tpu.memory_space<vmem>>) attributes {dimension_semantics = [#tpu.dimension_semantics<parallel>], iteration_bounds = array<i64: 1>, scalar_prefetch = 0 : i64, scratch_operands = 0 : i64, tpu.core_type = #tpu.core_type<tc>, window_params = [{pipeline_mode = #tpu.pipeline_mode<synchronous>, transform_indices = @transform_0, window_bounds = array<i64: 2, 10, 8, 384>}, {transform_indices = @transform_1, window_bounds = array<i64: 3, 384, 128>}, {transform_indices = @transform_2, window_bounds = array<i64: 1, 128>}, {transform_indices = @transform_3, window_bounds = array<i64: 1, 128>}, {transform_indices = @transform_4, window_bounds = array<i64: 128, 128>}]} {
    %cst = arith.constant 0.000000e+00 : f32
    %0 = vector.broadcast %cst : f32 to vector<128x128xf32>
    %c0 = arith.constant 0 : index
    %c0_0 = arith.constant 0 : index
    %c0_1 = arith.constant 0 : index
    %c0_2 = arith.constant 0 : index
    %1 = vector.load %arg1[%c0, %c0_0, %c0_1, %c0_2] : memref<2x10x8x384xbf16, #tpu.memory_space<vmem>>, vector<2x8x8x384xbf16>
    %2 = vector.shape_cast %1 : vector<2x8x8x384xbf16> to vector<128x384xbf16>
    %c0_3 = arith.constant 0 : index
    %c0_4 = arith.constant 0 : index
    %c0_5 = arith.constant 0 : index
    %3 = vector.load %arg2[%c0_3, %c0_4, %c0_5] : memref<3x384x128xbf16, #tpu.memory_space<vmem>>, vector<1x384x128xbf16>
    %4 = vector.shape_cast %3 : vector<1x384x128xbf16> to vector<384x128xbf16>
    %cst_6 = arith.constant dense<0.000000e+00> : vector<128x128xf32>
    %5 = tpu.matmul %2, %4, %cst_6 {dimension_numbers = #tpu.dot_dimension_numbers<[1], [0], [0], [1], [0, 0, 1, 1], [], []>} : vector<128x384xbf16>, vector<384x128xbf16>, vector<128x128xf32> -> vector<128x128xf32>
    %6 = arith.addf %0, %5 : vector<128x128xf32>
    %c0_7 = arith.constant 0 : index
    %c1 = arith.constant 1 : index
    %c0_8 = arith.constant 0 : index
    %c0_9 = arith.constant 0 : index
    %7 = vector.load %arg1[%c0_7, %c1, %c0_8, %c0_9] : memref<2x10x8x384xbf16, #tpu.memory_space<vmem>>, vector<2x8x8x384xbf16>
    %8 = vector.shape_cast %7 : vector<2x8x8x384xbf16> to vector<128x384xbf16>
    %c1_10 = arith.constant 1 : index
    %c0_11 = arith.constant 0 : index
    %c0_12 = arith.constant 0 : index
    %9 = vector.load %arg2[%c1_10, %c0_11, %c0_12] : memref<3x384x128xbf16, #tpu.memory_space<vmem>>, vector<1x384x128xbf16>
    %10 = vector.shape_cast %9 : vector<1x384x128xbf16> to vector<384x128xbf16>
    %cst_13 = arith.constant dense<0.000000e+00> : vector<128x128xf32>
    %11 = tpu.matmul %8, %10, %cst_13 {dimension_numbers = #tpu.dot_dimension_numbers<[1], [0], [0], [1], [0, 0, 1, 1], [], []>} : vector<128x384xbf16>, vector<384x128xbf16>, vector<128x128xf32> -> vector<128x128xf32>
    %12 = arith.addf %6, %11 : vector<128x128xf32>
    %c0_14 = arith.constant 0 : index
    %c2 = arith.constant 2 : index
    %c0_15 = arith.constant 0 : index
    %c0_16 = arith.constant 0 : index
    %13 = vector.load %arg1[%c0_14, %c2, %c0_15, %c0_16] : memref<2x10x8x384xbf16, #tpu.memory_space<vmem>>, vector<2x8x8x384xbf16>
    %14 = vector.shape_cast %13 : vector<2x8x8x384xbf16> to vector<128x384xbf16>
    %c2_17 = arith.constant 2 : index
    %c0_18 = arith.constant 0 : index
    %c0_19 = arith.constant 0 : index
    %15 = vector.load %arg2[%c2_17, %c0_18, %c0_19] : memref<3x384x128xbf16, #tpu.memory_space<vmem>>, vector<1x384x128xbf16>
    %16 = vector.shape_cast %15 : vector<1x384x128xbf16> to vector<384x128xbf16>
    %cst_20 = arith.constant dense<0.000000e+00> : vector<128x128xf32>
    %17 = tpu.matmul %14, %16, %cst_20 {dimension_numbers = #tpu.dot_dimension_numbers<[1], [0], [0], [1], [0, 0, 1, 1], [], []>} : vector<128x384xbf16>, vector<384x128xbf16>, vector<128x128xf32> -> vector<128x128xf32>
    %18 = arith.addf %12, %17 : vector<128x128xf32>
    %cst_21 = arith.constant dense<0.000000e+00> : vector<128xf32>
    %19 = vector.multi_reduction <add>, %18, %cst_21 [0] : vector<128x128xf32> to vector<128xf32>
    %20 = vector.shape_cast %19 : vector<128xf32> to vector<1x128xf32>
    %cst_22 = arith.constant 7.812500e-03 : f32
    %21 = vector.broadcast %cst_22 : f32 to vector<1x128xf32>
    %22 = arith.mulf %20, %21 : vector<1x128xf32>
    %23 = arith.mulf %18, %18 : vector<128x128xf32>
    %cst_23 = arith.constant dense<0.000000e+00> : vector<128xf32>
    %24 = vector.multi_reduction <add>, %23, %cst_23 [0] : vector<128x128xf32> to vector<128xf32>
    %25 = vector.shape_cast %24 : vector<128xf32> to vector<1x128xf32>
    %cst_24 = arith.constant 7.812500e-03 : f32
    %26 = vector.broadcast %cst_24 : f32 to vector<1x128xf32>
    %27 = arith.mulf %25, %26 : vector<1x128xf32>
    %28 = arith.mulf %22, %22 : vector<1x128xf32>
    %29 = arith.subf %27, %28 : vector<1x128xf32>
    %cst_25 = arith.constant 9.99999974E-6 : f32
    %30 = vector.broadcast %cst_25 : f32 to vector<1x128xf32>
    %31 = arith.addf %29, %30 : vector<1x128xf32>
    %32 = math.rsqrt %31 : vector<1x128xf32>
    %c0_26 = arith.constant 0 : index
    %c0_27 = arith.constant 0 : index
    %33 = vector.load %arg3[%c0_26, %c0_27] : memref<1x128xf32, #tpu.memory_space<vmem>>, vector<1x128xf32>
    %34 = arith.mulf %32, %33 : vector<1x128xf32>
    %c0_28 = arith.constant 0 : index
    %c0_29 = arith.constant 0 : index
    %35 = vector.load %arg4[%c0_28, %c0_29] : memref<1x128xf32, #tpu.memory_space<vmem>>, vector<1x128xf32>
    %36 = arith.mulf %22, %34 : vector<1x128xf32>
    %37 = arith.subf %35, %36 : vector<1x128xf32>
    %38 = vector.broadcast %34 : vector<1x128xf32> to vector<128x128xf32>
    %39 = arith.mulf %18, %38 : vector<128x128xf32>
    %40 = vector.broadcast %37 : vector<1x128xf32> to vector<128x128xf32>
    %41 = arith.addf %39, %40 : vector<128x128xf32>
    %cst_30 = arith.constant 0.000000e+00 : f32
    %42 = vector.broadcast %cst_30 : f32 to vector<128x128xf32>
    %43 = arith.maximumf %41, %42 : vector<128x128xf32>
    %44 = arith.truncf %43 : vector<128x128xf32> to vector<128x128xbf16>
    %c0_31 = arith.constant 0 : index
    %c0_32 = arith.constant 0 : index
    %45 = vector.load %arg5[%c0_31, %c0_32] : memref<128x128xbf16, #tpu.memory_space<vmem>>, vector<128x128xbf16>
    tpu.vector_store %arg5[%c0_31, %c0_32], %44 {strides = array<i32>} : memref<128x128xbf16, #tpu.memory_space<vmem>>, vector<128x128xbf16>,
    return
  }
  func.func @transform_0(%arg0: i32) -> (i32, i32, i32, i32) {
    %c0_i32 = arith.constant 0 : i32
    %c0_i32_0 = arith.constant 0 : i32
    %c0_i32_1 = arith.constant 0 : i32
    %c0_i32_2 = arith.constant 0 : i32
    %c0_i32_3 = arith.constant 0 : i32
    return %c0_i32, %c0_i32_0, %c0_i32_1, %c0_i32_2 : i32, i32, i32, i32
  }
  func.func @transform_1(%arg0: i32) -> (i32, i32, i32) {
    %c0_i32 = arith.constant 0 : i32
    %c0_i32_0 = arith.constant 0 : i32
    %c0_i32_1 = arith.constant 0 : i32
    return %c0_i32, %c0_i32_0, %arg0 : i32, i32, i32
  }
  func.func @transform_2(%arg0: i32) -> (i32, i32) {
    %c0_i32 = arith.constant 0 : i32
    %c0_i32_0 = arith.constant 0 : i32
    return %c0_i32, %arg0 : i32, i32
  }
  func.func @transform_3(%arg0: i32) -> (i32, i32) {
    %c0_i32 = arith.constant 0 : i32
    %c0_i32_0 = arith.constant 0 : i32
    return %c0_i32, %arg0 : i32, i32
  }
  func.func @transform_4(%arg0: i32) -> (i32, i32) {
    %c0_i32 = arith.constant 0 : i32
    %c0_i32_0 = arith.constant 0 : i32
    return %c0_i32, %arg0 : i32, i32
  }
}

module attributes {stable_mosaic.version = 11 : i64} {
  func.func @conv_bn_act_kernel(%arg0: i32, %arg1: memref<2x10x8x384xbf16, #tpu.memory_space<vmem>>, %arg2: memref<3x384x128xbf16, #tpu.memory_space<vmem>>, %arg3: memref<1x128xf32, #tpu.memory_space<vmem>>, %arg4: memref<1x128xf32, #tpu.memory_space<vmem>>, %arg5: memref<128x128xf32, #tpu.memory_space<vmem>>, %arg6: memref<128x128xf32, #tpu.memory_space<vmem>>) attributes {dimension_semantics = [#tpu.dimension_semantics<parallel>], iteration_bounds = array<i64: 1>, scalar_prefetch = 0 : i64, scratch_operands = 0 : i64, tpu.core_type = #tpu.core_type<tc>, window_params = [{pipeline_mode = #tpu.pipeline_mode<synchronous>, transform_indices = @transform_0, window_bounds = array<i64: 2, 10, 8, 384>}, {transform_indices = @transform_1, window_bounds = array<i64: 3, 384, 128>}, {transform_indices = @transform_2, window_bounds = array<i64: 1, 128>}, {transform_indices = @transform_3, window_bounds = array<i64: 1, 128>}, {transform_indices = @transform_4, window_bounds = array<i64: 128, 128>}, {transform_indices = @transform_5, window_bounds = array<i64: 128, 128>}]} {
    %cst = arith.constant 0.000000e+00 : f32
    %0 = vector.broadcast %cst : f32 to vector<128x128xf32>
    %c0 = arith.constant 0 : index
    %c0_0 = arith.constant 0 : index
    %c0_1 = arith.constant 0 : index
    %c0_2 = arith.constant 0 : index
    %1 = vector.load %arg1[%c0, %c0_0, %c0_1, %c0_2] : memref<2x10x8x384xbf16, #tpu.memory_space<vmem>>, vector<2x8x8x384xbf16>
    %2 = vector.shape_cast %1 : vector<2x8x8x384xbf16> to vector<128x384xbf16>
    %c0_3 = arith.constant 0 : index
    %c0_4 = arith.constant 0 : index
    %c0_5 = arith.constant 0 : index
    %3 = vector.load %arg2[%c0_3, %c0_4, %c0_5] : memref<3x384x128xbf16, #tpu.memory_space<vmem>>, vector<1x384x128xbf16>
    %4 = vector.shape_cast %3 : vector<1x384x128xbf16> to vector<384x128xbf16>
    %cst_6 = arith.constant dense<0.000000e+00> : vector<128x128xf32>
    %5 = tpu.matmul %2, %4, %cst_6 {dimension_numbers = #tpu.dot_dimension_numbers<[1], [0], [0], [1], [0, 0, 1, 1], [], []>} : vector<128x384xbf16>, vector<384x128xbf16>, vector<128x128xf32> -> vector<128x128xf32>
    %6 = arith.addf %0, %5 : vector<128x128xf32>
    %c0_7 = arith.constant 0 : index
    %c1 = arith.constant 1 : index
    %c0_8 = arith.constant 0 : index
    %c0_9 = arith.constant 0 : index
    %7 = vector.load %arg1[%c0_7, %c1, %c0_8, %c0_9] : memref<2x10x8x384xbf16, #tpu.memory_space<vmem>>, vector<2x8x8x384xbf16>
    %8 = vector.shape_cast %7 : vector<2x8x8x384xbf16> to vector<128x384xbf16>
    %c1_10 = arith.constant 1 : index
    %c0_11 = arith.constant 0 : index
    %c0_12 = arith.constant 0 : index
    %9 = vector.load %arg2[%c1_10, %c0_11, %c0_12] : memref<3x384x128xbf16, #tpu.memory_space<vmem>>, vector<1x384x128xbf16>
    %10 = vector.shape_cast %9 : vector<1x384x128xbf16> to vector<384x128xbf16>
    %cst_13 = arith.constant dense<0.000000e+00> : vector<128x128xf32>
    %11 = tpu.matmul %8, %10, %cst_13 {dimension_numbers = #tpu.dot_dimension_numbers<[1], [0], [0], [1], [0, 0, 1, 1], [], []>} : vector<128x384xbf16>, vector<384x128xbf16>, vector<128x128xf32> -> vector<128x128xf32>
    %12 = arith.addf %6, %11 : vector<128x128xf32>
    %c0_14 = arith.constant 0 : index
    %c2 = arith.constant 2 : index
    %c0_15 = arith.constant 0 : index
    %c0_16 = arith.constant 0 : index
    %13 = vector.load %arg1[%c0_14, %c2, %c0_15, %c0_16] : memref<2x10x8x384xbf16, #tpu.memory_space<vmem>>, vector<2x8x8x384xbf16>
    %14 = vector.shape_cast %13 : vector<2x8x8x384xbf16> to vector<128x384xbf16>
    %c2_17 = arith.constant 2 : index
    %c0_18 = arith.constant 0 : index
    %c0_19 = arith.constant 0 : index
    %15 = vector.load %arg2[%c2_17, %c0_18, %c0_19] : memref<3x384x128xbf16, #tpu.memory_space<vmem>>, vector<1x384x128xbf16>
    %16 = vector.shape_cast %15 : vector<1x384x128xbf16> to vector<384x128xbf16>
    %cst_20 = arith.constant dense<0.000000e+00> : vector<128x128xf32>
    %17 = tpu.matmul %14, %16, %cst_20 {dimension_numbers = #tpu.dot_dimension_numbers<[1], [0], [0], [1], [0, 0, 1, 1], [], []>} : vector<128x384xbf16>, vector<384x128xbf16>, vector<128x128xf32> -> vector<128x128xf32>
    %18 = arith.addf %12, %17 : vector<128x128xf32>
    %cst_21 = arith.constant dense<0.000000e+00> : vector<128xf32>
    %19 = vector.multi_reduction <add>, %18, %cst_21 [0] : vector<128x128xf32> to vector<128xf32>
    %20 = vector.shape_cast %19 : vector<128xf32> to vector<1x128xf32>
    %cst_22 = arith.constant 7.812500e-03 : f32
    %21 = vector.broadcast %cst_22 : f32 to vector<1x128xf32>
    %22 = arith.mulf %20, %21 : vector<1x128xf32>
    %23 = arith.mulf %18, %18 : vector<128x128xf32>
    %cst_23 = arith.constant dense<0.000000e+00> : vector<128xf32>
    %24 = vector.multi_reduction <add>, %23, %cst_23 [0] : vector<128x128xf32> to vector<128xf32>
    %25 = vector.shape_cast %24 : vector<128xf32> to vector<1x128xf32>
    %cst_24 = arith.constant 7.812500e-03 : f32
    %26 = vector.broadcast %cst_24 : f32 to vector<1x128xf32>
    %27 = arith.mulf %25, %26 : vector<1x128xf32>
    %28 = arith.mulf %22, %22 : vector<1x128xf32>
    %29 = arith.subf %27, %28 : vector<1x128xf32>
    %cst_25 = arith.constant 9.99999974E-6 : f32
    %30 = vector.broadcast %cst_25 : f32 to vector<1x128xf32>
    %31 = arith.addf %29, %30 : vector<1x128xf32>
    %32 = math.rsqrt %31 : vector<1x128xf32>
    %c0_26 = arith.constant 0 : index
    %c0_27 = arith.constant 0 : index
    %33 = vector.load %arg3[%c0_26, %c0_27] : memref<1x128xf32, #tpu.memory_space<vmem>>, vector<1x128xf32>
    %34 = arith.mulf %32, %33 : vector<1x128xf32>
    %c0_28 = arith.constant 0 : index
    %c0_29 = arith.constant 0 : index
    %35 = vector.load %arg4[%c0_28, %c0_29] : memref<1x128xf32, #tpu.memory_space<vmem>>, vector<1x128xf32>
    %36 = arith.mulf %22, %34 : vector<1x128xf32>
    %37 = arith.subf %35, %36 : vector<1x128xf32>
    %38 = vector.broadcast %34 : vector<1x128xf32> to vector<128x128xf32>
    %39 = arith.mulf %18, %38 : vector<128x128xf32>
    %40 = vector.broadcast %37 : vector<1x128xf32> to vector<128x128xf32>
    %41 = arith.addf %39, %40 : vector<128x128xf32>
    %c0_30 = arith.constant 0 : index
    %c0_31 = arith.constant 0 : index
    %42 = vector.load %arg5[%c0_30, %c0_31] : memref<128x128xf32, #tpu.memory_space<vmem>>, vector<128x128xf32>
    %43 = arith.addf %41, %42 : vector<128x128xf32>
    %cst_32 = arith.constant 0.000000e+00 : f32
    %44 = vector.broadcast %cst_32 : f32 to vector<128x128xf32>
    %45 = arith.maximumf %43, %44 : vector<128x128xf32>
    %c0_33 = arith.constant 0 : index
    %c0_34 = arith.constant 0 : index
    %46 = vector.load %arg6[%c0_33, %c0_34] : memref<128x128xf32, #tpu.memory_space<vmem>>, vector<128x128xf32>
    tpu.vector_store %arg6[%c0_33, %c0_34], %45 {strides = array<i32>} : memref<128x128xf32, #tpu.memory_space<vmem>>, vector<128x128xf32>,
    return
  }
  func.func @transform_0(%arg0: i32) -> (i32, i32, i32, i32) {
    %c0_i32 = arith.constant 0 : i32
    %c0_i32_0 = arith.constant 0 : i32
    %c0_i32_1 = arith.constant 0 : i32
    %c0_i32_2 = arith.constant 0 : i32
    %c0_i32_3 = arith.constant 0 : i32
    return %c0_i32, %c0_i32_0, %c0_i32_1, %c0_i32_2 : i32, i32, i32, i32
  }
  func.func @transform_1(%arg0: i32) -> (i32, i32, i32) {
    %c0_i32 = arith.constant 0 : i32
    %c0_i32_0 = arith.constant 0 : i32
    %c0_i32_1 = arith.constant 0 : i32
    return %c0_i32, %c0_i32_0, %arg0 : i32, i32, i32
  }
  func.func @transform_2(%arg0: i32) -> (i32, i32) {
    %c0_i32 = arith.constant 0 : i32
    %c0_i32_0 = arith.constant 0 : i32
    return %c0_i32, %arg0 : i32, i32
  }
  func.func @transform_3(%arg0: i32) -> (i32, i32) {
    %c0_i32 = arith.constant 0 : i32
    %c0_i32_0 = arith.constant 0 : i32
    return %c0_i32, %arg0 : i32, i32
  }
  func.func @transform_4(%arg0: i32) -> (i32, i32) {
    %c0_i32 = arith.constant 0 : i32
    %c0_i32_0 = arith.constant 0 : i32
    return %c0_i32, %arg0 : i32, i32
  }
  func.func @transform_5(%arg0: i32) -> (i32, i32) {
    %c0_i32 = arith.constant 0 : i32
    %c0_i32_0 = arith.constant 0 : i32
    return %c0_i32, %arg0 : i32, i32
  }
}

</mosaic_0001>

<llo_original>
// kernel: fwd.4
$region0: #{fwd.4}
  #allocation0 [shape = 'u32[]', space=smem, size = 0x4, offset = 0x4, fixed_abs, tag = 'smem constant byte address 0x4 - core index']
  #allocation1 [shape = 'u32[144,128]{1,0:T(1,128)}', space=vmem, size = 0x12000, scoped, tag = 'internal scratch']
  %s0 = inlined_call_operand.vmem [shape: bf16[4,9,8,192], index: 0, kind: input, shape index: {}]
  %s1 = inlined_call_operand.vmem [shape: bf16[3,192,128], index: 1, kind: input, shape index: {}]
  %s2 = inlined_call_operand.vmem [shape: f32[1,128], index: 2, kind: input, shape index: {}]
  %s3 = inlined_call_operand.vmem [shape: f32[1,128], index: 3, kind: input, shape index: {}]
  %s4 = inlined_call_operand.vmem [shape: bf16[128,128], index: 4, kind: output, shape index: {}]
  %s5 = sld [smem:[#allocation0]]
  $region26: #{fwd.4} parent=0
    _
  %s7 = ssub.s32 1, %s5
  %s8 = scalar_select 0, %s7, %s5
  // Predicated region
  $region2: #{fwd.4} parent=0 // pred_check
    _
  $region3: #{fwd.4} parent=0 // pred_check_branch
    %10 = sbr.rel (0) target = $region5
  $region4: #{fwd.4} parent=0 // pred_region
    _
  $region5: #{fwd.4} parent=0 // pred_fallthru
    _
  // Predicated region
  $region6: #{fwd.4} parent=0 // pred_check
    _
  $region7: #{fwd.4} parent=0 // pred_check_branch
    %12 = sbr.rel (0) target = $region9
  $region8: #{fwd.4} parent=0 // pred_region
    _
  $region9: #{fwd.4} parent=0 // pred_fallthru
    _
  // Predicated region
  $region10: #{fwd.4} parent=0 // pred_check
    _
  $region11: #{fwd.4} parent=0 // pred_check_branch
    %14 = sbr.rel (0) target = $region13
  $region12: #{fwd.4} parent=0 // pred_region
    _
  $region13: #{fwd.4} parent=0 // pred_fallthru
    _
  // Predicated region
  $region14: #{fwd.4} parent=0 // pred_check
    _
  $region15: #{fwd.4} parent=0 // pred_check_branch
    %16 = sbr.rel (0) target = $region17
  $region16: #{fwd.4} parent=0 // pred_region
    _
  $region17: #{fwd.4} parent=0 // pred_fallthru
    _
  %v18 = vld [vmem:[%s0] sm:$0xff]
  %v19 = vld [vmem:[%s0 + $0x8] sm:$0xff]
  %v20 = vld [vmem:[%s0 + $0x10] sm:$0xff]
  %v21 = vld [vmem:[%s0 + $0x18] sm:$0xff]
  %v22 = vld [vmem:[%s0 + $0x20] sm:$0xff]
  %v23 = vld [vmem:[%s0 + $0x28] sm:$0xff]
  %v24 = vld [vmem:[%s0 + $0x30] sm:$0xff]
  %v25 = vld [vmem:[%s0 + $0x38] sm:$0xff]
  %v26 = vld [vmem:[%s0 + $0x48] sm:$0xff]
  %v27 = vld [vmem:[%s0 + $0x50] sm:$0xff]
  %v28 = vld [vmem:[%s0 + $0x58] sm:$0xff]
  %v29 = vld [vmem:[%s0 + $0x60] sm:$0xff]
  %v30 = vld [vmem:[%s0 + $0x68] sm:$0xff]
  %v31 = vld [vmem:[%s0 + $0x70] sm:$0xff]
  %v32 = vld [vmem:[%s0 + $0x78] sm:$0xff]
  %v33 = vld [vmem:[%s0 + $0x80] sm:$0xff]
  %v34 = vld [vmem:[%s1] sm:$0xf]
  %v35 = vld [vmem:[%s1 + $0x4] sm:$0xf]
  %v36 = vld [vmem:[%s1 + $0x8] sm:$0xf]
  %v37 = vld [vmem:[%s1 + $0xc] sm:$0xf]
  %v38 = vld [vmem:[%s1 + $0x10] sm:$0xf]
  %v39 = vld [vmem:[%s1 + $0x14] sm:$0xf]
  %v40 = vld [vmem:[%s1 + $0x18] sm:$0xf]
  %v41 = vld [vmem:[%s1 + $0x1c] sm:$0xf]
  %v42 = vld [vmem:[%s1 + $0x20] sm:$0xf]
  %v43 = vld [vmem:[%s1 + $0x24] sm:$0xf]
  %v44 = vld [vmem:[%s1 + $0x28] sm:$0xf]
  %v45 = vld [vmem:[%s1 + $0x2c] sm:$0xf]
  %v46 = vld [vmem:[%s1 + $0x30] sm:$0xf]
  %v47 = vld [vmem:[%s1 + $0x34] sm:$0xf]
  %v48 = vld [vmem:[%s1 + $0x38] sm:$0xf]
  %v49 = vld [vmem:[%s1 + $0x3c] sm:$0xf]
  %v50 = vld [vmem:[%s1 + $0x40] sm:$0xf]
  %v51 = vld [vmem:[%s1 + $0x44] sm:$0xf]
  %v52 = vld [vmem:[%s1 + $0x48] sm:$0xf]
  %v53 = vld [vmem:[%s1 + $0x4c] sm:$0xf]
  %v54 = vld [vmem:[%s1 + $0x50] sm:$0xf]
  %v55 = vld [vmem:[%s1 + $0x54] sm:$0xf]
  %v56 = vld [vmem:[%s1 + $0x58] sm:$0xf]
  %v57 = vld [vmem:[%s1 + $0x5c] sm:$0xf]
  %s58 = scalar_lea.vmem %s0, 144
  %v59 = vld [vmem:[%s58] sm:$0xff]
  %v60 = vld [vmem:[%s58 + $0x8] sm:$0xff]
  %v61 = vld [vmem:[%s58 + $0x10] sm:$0xff]
  %v62 = vld [vmem:[%s58 + $0x18] sm:$0xff]
  %v63 = vld [vmem:[%s58 + $0x20] sm:$0xff]
  %v64 = vld [vmem:[%s58 + $0x28] sm:$0xff]
  %v65 = vld [vmem:[%s58 + $0x30] sm:$0xff]
  %v66 = vld [vmem:[%s58 + $0x38] sm:$0xff]
  %v67 = vld [vmem:[%s58 + $0x48] sm:$0xff]
  %v68 = vld [vmem:[%s58 + $0x50] sm:$0xff]
  %v69 = vld [vmem:[%s58 + $0x58] sm:$0xff]
  %v70 = vld [vmem:[%s58 + $0x60] sm:$0xff]
  %v71 = vld [vmem:[%s58 + $0x68] sm:$0xff]
  %v72 = vld [vmem:[%s58 + $0x70] sm:$0xff]
  %v73 = vld [vmem:[%s58 + $0x78] sm:$0xff]
  %v74 = vld [vmem:[%s58 + $0x80] sm:$0xff]
  %s75 = scalar_lea.vmem %s1, 96
  %v76 = vld [vmem:[%s75] sm:$0xf]
  %v77 = vld [vmem:[%s75 + $0x4] sm:$0xf]
  %v78 = vld [vmem:[%s75 + $0x8] sm:$0xf]
  %v79 = vld [vmem:[%s75 + $0xc] sm:$0xf]
  %v80 = vld [vmem:[%s75 + $0x10] sm:$0xf]
  %v81 = vld [vmem:[%s75 + $0x14] sm:$0xf]
  %v82 = vld [vmem:[%s75 + $0x18] sm:$0xf]
  %v83 = vld [vmem:[%s75 + $0x1c] sm:$0xf]
  %v84 = vld [vmem:[%s75 + $0x20] sm:$0xf]
  %v85 = vld [vmem:[%s75 + $0x24] sm:$0xf]
  %v86 = vld [vmem:[%s75 + $0x28] sm:$0xf]
  %v87 = vld [vmem:[%s75 + $0x2c] sm:$0xf]
  %v88 = vld [vmem:[%s75 + $0x30] sm:$0xf]
  %v89 = vld [vmem:[%s75 + $0x34] sm:$0xf]
  %v90 = vld [vmem:[%s75 + $0x38] sm:$0xf]
  %v91 = vld [vmem:[%s75 + $0x3c] sm:$0xf]
  %v92 = vld [vmem:[%s75 + $0x40] sm:$0xf]
  %v93 = vld [vmem:[%s75 + $0x44] sm:$0xf]
  %v94 = vld [vmem:[%s75 + $0x48] sm:$0xf]
  %v95 = vld [vmem:[%s75 + $0x4c] sm:$0xf]
  %v96 = vld [vmem:[%s75 + $0x50] sm:$0xf]
  %v97 = vld [vmem:[%s75 + $0x54] sm:$0xf]
  %v98 = vld [vmem:[%s75 + $0x58] sm:$0xf]
  %v99 = vld [vmem:[%s75 + $0x5c] sm:$0xf]
  %v116 = vunpack.c.l.b16 %v59
  %v117 = vunpack.c.h.b16 %v59
  %v118 = vunpack.c.l.b16 %v60
  %v119 = vunpack.c.h.b16 %v60
  %v120 = vunpack.c.l.b16 %v61
  %v121 = vunpack.c.h.b16 %v61
  %v122 = vunpack.c.l.b16 %v62
  %v123 = vunpack.c.h.b16 %v62
  %v124 = vunpack.c.l.b16 %v63
  %v125 = vunpack.c.h.b16 %v63
  %v126 = vunpack.c.l.b16 %v64
  %v127 = vunpack.c.h.b16 %v64
  %v128 = vunpack.c.l.b16 %v65
  %v129 = vunpack.c.h.b16 %v65
  %v130 = vunpack.c.l.b16 %v66
  %v131 = vunpack.c.h.b16 %v66
  %v132 = vunpack.c.l.b16 %v67
  %v133 = vunpack.c.h.b16 %v67
  %v134 = vunpack.c.l.b16 %v68
  %v135 = vunpack.c.h.b16 %v68
  %v136 = vunpack.c.l.b16 %v69
  %v137 = vunpack.c.h.b16 %v69
  %v138 = vunpack.c.l.b16 %v70
  %v139 = vunpack.c.h.b16 %v70
  %v140 = vunpack.c.l.b16 %v71
  %v141 = vunpack.c.h.b16 %v71
  %v142 = vunpack.c.l.b16 %v72
  %v143 = vunpack.c.h.b16 %v72
  %v144 = vunpack.c.l.b16 %v73
  %v145 = vunpack.c.h.b16 %v73
  %v146 = vunpack.c.l.b16 %v74
  %v147 = vunpack.c.h.b16 %v74
  %v148 = vpack.c.b16 %v118, %v116
  %v149 = vpack.c.b16 %v119, %v117
  %v150 = vpack.c.b16 %v122, %v120
  %v151 = vpack.c.b16 %v123, %v121
  %v152 = vpack.c.b16 %v126, %v124
  %v153 = vpack.c.b16 %v127, %v125
  %v154 = vpack.c.b16 %v130, %v128
  %v155 = vpack.c.b16 %v131, %v129
  %v156 = vpack.c.b16 %v134, %v132
  %v157 = vpack.c.b16 %v135, %v133
  %v158 = vpack.c.b16 %v138, %v136
  %v159 = vpack.c.b16 %v139, %v137
  %v160 = vpack.c.b16 %v142, %v140
  %v161 = vpack.c.b16 %v143, %v141
  %v162 = vpack.c.b16 %v146, %v144
  %v163 = vpack.c.b16 %v147, %v145
  %v196 = vunpack.c.l.b16 %v76
  %v197 = vunpack.c.l.b16 %v77
  %v198 = vunpack.c.l.b16 %v78
  %v199 = vunpack.c.l.b16 %v79
  %v200 = vunpack.c.l.b16 %v80
  %v201 = vunpack.c.l.b16 %v81
  %v202 = vunpack.c.l.b16 %v82
  %v203 = vunpack.c.l.b16 %v83
  %v204 = vunpack.c.l.b16 %v84
  %v205 = vunpack.c.l.b16 %v85
  %v206 = vunpack.c.l.b16 %v86
  %v207 = vunpack.c.l.b16 %v87
  %v208 = vunpack.c.l.b16 %v88
  %v209 = vunpack.c.l.b16 %v89
  %v210 = vunpack.c.l.b16 %v90
  %v211 = vunpack.c.l.b16 %v91
  %v212 = vunpack.c.l.b16 %v92
  %v213 = vunpack.c.l.b16 %v93
  %v214 = vunpack.c.l.b16 %v94
  %v215 = vunpack.c.l.b16 %v95
  %v216 = vunpack.c.l.b16 %v96
  %v217 = vunpack.c.l.b16 %v97
  %v218 = vunpack.c.l.b16 %v98
  %v219 = vunpack.c.l.b16 %v99
  %v220 = vpack.c.b16 %v197, %v196
  %v221 = vpack.c.b16 %v199, %v198
  %v222 = vpack.c.b16 %v201, %v200
  %v223 = vpack.c.b16 %v203, %v202
  %v224 = vpack.c.b16 %v205, %v204
  %v225 = vpack.c.b16 %v207, %v206
  %v226 = vpack.c.b16 %v209, %v208
  %v227 = vpack.c.b16 %v211, %v210
  %v228 = vpack.c.b16 %v213, %v212
  %v229 = vpack.c.b16 %v215, %v214
  %v230 = vpack.c.b16 %v217, %v216
  %v231 = vpack.c.b16 %v219, %v218
  %vm244 = vcmask 523264
  %v246 = vsel %vm244, %v149, 0
  %v249 = vsel %vm244, %v151, 0
  %v252 = vsel %vm244, %v153, 0
  %v255 = vsel %vm244, %v155, 0
  %v258 = vsel %vm244, %v157, 0
  %v261 = vsel %vm244, %v159, 0
  %v264 = vsel %vm244, %v161, 0
  %v267 = vsel %vm244, %v163, 0
  %269 = vmatprep.subr.bf16.mxu0 0
  %270 = vmatpush1.bf16.msra.mxu0 %v220
  %271 = vmatprep.subr.bf16.mxu0 0
  %272 = vmatpush1.bf16.msra.mxu0 %v221
  %273 = vmatprep.subr.bf16.mxu0 0
  %274 = vmatpush1.bf16.msra.mxu0 %v222
  %275 = vmatprep.subr.bf16.mxu0 0
  %276 = vmatpush1.bf16.msra.mxu0 %v223
  %277 = vmatprep.subr.bf16.mxu0 0
  %278 = vmatpush1.bf16.msra.mxu0 %v224
  %279 = vmatprep.subr.bf16.mxu0 0
  %280 = vmatpush1.bf16.msra.mxu0 %v225
  %281 = vmatprep.subr.bf16.mxu0 0
  %282 = vmatpush1.bf16.msra.mxu0 %v226
  %283 = vmatprep.subr.bf16.mxu0 0
  %284 = vmatpush1.bf16.msra.mxu0 %v227
  %285 = vmatprep.subr.bf16.mxu0 0
  %286 = vmatpush1.bf16.msra.mxu0 %v228
  %287 = vmatprep.subr.bf16.mxu0 0
  %288 = vmatpush1.bf16.msra.mxu0 %v229
  %289 = vmatprep.subr.bf16.mxu0 0
  %290 = vmatpush1.bf16.msra.mxu0 %v230
  %291 = vmatprep.subr.bf16.mxu0 0
  %292 = vmatpush1.bf16.msra.mxu0 %v231
  %293 = vmatprep.subr.bf16.mxu0 0
  %294 = vmatpush1.bf16.msra.mxu0 0
  %295 = vmatprep.subr.bf16.mxu0 0
  %296 = vmatpush1.bf16.msra.mxu0 0
  %297 = vmatprep.subr.bf16.mxu0 0
  %298 = vmatpush1.bf16.msra.mxu0 0
  %299 = vmatprep.subr.bf16.mxu0 0
  %300 = vmatpush1.bf16.msra.mxu0 0
  %301 = vmatprep.mubr.bf16.mxu0 %v246
  %302 = vmatmul.mubr.bf16.gmra.mrb[0].mxu0 %v148
  %v303 = vpop.f32.mrb[0].mxu0
  %v304 = vadd.f32 0.0, %v303
  %v305 = vpop.f32.mrb[0].mxu0
  %v306 = vpop.f32.mrb[0].mxu0
  %v307 = vadd.f32 0.0, %v306
  %v308 = vpop.f32.mrb[0].mxu0
  %309 = vmatprep.mubr.bf16.mxu0 %v249
  %310 = vmatmul.mubr.bf16.gmra.mrb[0].mxu0 %v150
  %v311 = vpop.f32.mrb[0].mxu0
  %v312 = vadd.f32 0.0, %v311
  %v313 = vpop.f32.mrb[0].mxu0
  %v314 = vpop.f32.mrb[0].mxu0
  %v315 = vadd.f32 0.0, %v314
  %v316 = vpop.f32.mrb[0].mxu0
  %317 = vmatprep.mubr.bf16.mxu0 %v252
  %318 = vmatmul.mubr.bf16.gmra.mrb[0].mxu0 %v152
  %v319 = vpop.f32.mrb[0].mxu0
  %v320 = vadd.f32 0.0, %v319
  %v321 = vpop.f32.mrb[0].mxu0
  %v322 = vpop.f32.mrb[0].mxu0
  %v323 = vadd.f32 0.0, %v322
  %v324 = vpop.f32.mrb[0].mxu0
  %325 = vmatprep.mubr.bf16.mxu0 %v255
  %326 = vmatmul.mubr.bf16.gmra.mrb[0].mxu0 %v154
  %v327 = vpop.f32.mrb[0].mxu0
  %v328 = vadd.f32 0.0, %v327
  %v329 = vpop.f32.mrb[0].mxu0
  %v330 = vpop.f32.mrb[0].mxu0
  %v331 = vadd.f32 0.0, %v330
  %v332 = vpop.f32.mrb[0].mxu0
  %333 = vmatprep.mubr.bf16.mxu0 %v258
  %334 = vmatmul.mubr.bf16.gmra.mrb[0].mxu0 %v156
  %v335 = vpop.f32.mrb[0].mxu0
  %v336 = vadd.f32 0.0, %v335
  %v337 = vpop.f32.mrb[0].mxu0
  %v338 = vpop.f32.mrb[0].mxu0
  %v339 = vadd.f32 0.0, %v338
  %v340 = vpop.f32.mrb[0].mxu0
  %341 = vmatprep.mubr.bf16.mxu0 %v261
  %342 = vmatmul.mubr.bf16.gmra.mrb[0].mxu0 %v158
  %v343 = vpop.f32.mrb[0].mxu0
  %v344 = vadd.f32 0.0, %v343
  %v345 = vpop.f32.mrb[0].mxu0
  %v346 = vpop.f32.mrb[0].mxu0
  %v347 = vadd.f32 0.0, %v346
  %v348 = vpop.f32.mrb[0].mxu0
  %349 = vmatprep.mubr.bf16.mxu0 %v264
  %350 = vmatmul.mubr.bf16.gmra.mrb[0].mxu0 %v160
  %v351 = vpop.f32.mrb[0].mxu0
  %v352 = vadd.f32 0.0, %v351
  %v353 = vpop.f32.mrb[0].mxu0
  %v354 = vpop.f32.mrb[0].mxu0
  %v355 = vadd.f32 0.0, %v354
  %v356 = vpop.f32.mrb[0].mxu0
  %357 = vmatprep.mubr.bf16.mxu0 %v267
  %358 = vmatmul.mubr.bf16.gmra.mrb[0].mxu0 %v162
  %v359 = vpop.f32.mrb[0].mxu0
  %v360 = vadd.f32 0.0, %v359
  %v361 = vpop.f32.mrb[0].mxu0
  %v362 = vpop.f32.mrb[0].mxu0
  %v363 = vadd.f32 0.0, %v362
  %v364 = vpop.f32.mrb[0].mxu0
  %365 = vdwg.mxu0
  %v382 = vunpack.c.l.b16 %v18
  %v383 = vunpack.c.h.b16 %v18
  %v384 = vunpack.c.l.b16 %v19
  %v385 = vunpack.c.h.b16 %v19
  %v386 = vunpack.c.l.b16 %v20
  %v387 = vunpack.c.h.b16 %v20
  %v388 = vunpack.c.l.b16 %v21
  %v389 = vunpack.c.h.b16 %v21
  %v390 = vunpack.c.l.b16 %v22
  %v391 = vunpack.c.h.b16 %v22
  %v392 = vunpack.c.l.b16 %v23
  %v393 = vunpack.c.h.b16 %v23
  %v394 = vunpack.c.l.b16 %v24
  %v395 = vunpack.c.h.b16 %v24
  %v396 = vunpack.c.l.b16 %v25
  %v397 = vunpack.c.h.b16 %v25
  %v398 = vunpack.c.l.b16 %v26
  %v399 = vunpack.c.h.b16 %v26
  %v400 = vunpack.c.l.b16 %v27
  %v401 = vunpack.c.h.b16 %v27
  %v402 = vunpack.c.l.b16 %v28
  %v403 = vunpack.c.h.b16 %v28
  %v404 = vunpack.c.l.b16 %v29
  %v405 = vunpack.c.h.b16 %v29
  %v406 = vunpack.c.l.b16 %v30
  %v407 = vunpack.c.h.b16 %v30
  %v408 = vunpack.c.l.b16 %v31
  %v409 = vunpack.c.h.b16 %v31
  %v410 = vunpack.c.l.b16 %v32
  %v411 = vunpack.c.h.b16 %v32
  %v412 = vunpack.c.l.b16 %v33
  %v413 = vunpack.c.h.b16 %v33
  %v414 = vpack.c.b16 %v384, %v382
  %v415 = vpack.c.b16 %v385, %v383
  %v416 = vpack.c.b16 %v388, %v386
  %v417 = vpack.c.b16 %v389, %v387
  %v418 = vpack.c.b16 %v392, %v390
  %v419 = vpack.c.b16 %v393, %v391
  %v420 = vpack.c.b16 %v396, %v394
  %v421 = vpack.c.b16 %v397, %v395
  %v422 = vpack.c.b16 %v400, %v398
  %v423 = vpack.c.b16 %v401, %v399
  %v424 = vpack.c.b16 %v404, %v402
  %v425 = vpack.c.b16 %v405, %v403
  %v426 = vpack.c.b16 %v408, %v406
  %v427 = vpack.c.b16 %v409, %v407
  %v428 = vpack.c.b16 %v412, %v410
  %v429 = vpack.c.b16 %v413, %v411
  %v462 = vunpack.c.l.b16 %v34
  %v463 = vunpack.c.l.b16 %v35
  %v464 = vunpack.c.l.b16 %v36
  %v465 = vunpack.c.l.b16 %v37
  %v466 = vunpack.c.l.b16 %v38
  %v467 = vunpack.c.l.b16 %v39
  %v468 = vunpack.c.l.b16 %v40
  %v469 = vunpack.c.l.b16 %v41
  %v470 = vunpack.c.l.b16 %v42
  %v471 = vunpack.c.l.b16 %v43
  %v472 = vunpack.c.l.b16 %v44
  %v473 = vunpack.c.l.b16 %v45
  %v474 = vunpack.c.l.b16 %v46
  %v475 = vunpack.c.l.b16 %v47
  %v476 = vunpack.c.l.b16 %v48
  %v477 = vunpack.c.l.b16 %v49
  %v478 = vunpack.c.l.b16 %v50
  %v479 = vunpack.c.l.b16 %v51
  %v480 = vunpack.c.l.b16 %v52
  %v481 = vunpack.c.l.b16 %v53
  %v482 = vunpack.c.l.b16 %v54
  %v483 = vunpack.c.l.b16 %v55
  %v484 = vunpack.c.l.b16 %v56
  %v485 = vunpack.c.l.b16 %v57
  %v486 = vpack.c.b16 %v463, %v462
  %v487 = vpack.c.b16 %v465, %v464
  %v488 = vpack.c.b16 %v467, %v466
  %v489 = vpack.c.b16 %v469, %v468
  %v490 = vpack.c.b16 %v471, %v470
  %v491 = vpack.c.b16 %v473, %v472
  %v492 = vpack.c.b16 %v475, %v474
  %v493 = vpack.c.b16 %v477, %v476
  %v494 = vpack.c.b16 %v479, %v478
  %v495 = vpack.c.b16 %v481, %v480
  %v496 = vpack.c.b16 %v483, %v482
  %v497 = vpack.c.b16 %v485, %v484
  %v511 = vsel %vm244, %v415, 0
  %v514 = vsel %vm244, %v417, 0
  %v517 = vsel %vm244, %v419, 0
  %v520 = vsel %vm244, %v421, 0
  %v523 = vsel %vm244, %v423, 0
  %v526 = vsel %vm244, %v425, 0
  %v529 = vsel %vm244, %v427, 0
  %v532 = vsel %vm244, %v429, 0
  %534 = vmatprep.subr.bf16.mxu0 0
  %535 = vmatpush1.bf16.msra.mxu0 %v486
  %536 = vmatprep.subr.bf16.mxu0 0
  %537 = vmatpush1.bf16.msra.mxu0 %v487
  %538 = vmatprep.subr.bf16.mxu0 0
  %539 = vmatpush1.bf16.msra.mxu0 %v488
  %540 = vmatprep.subr.bf16.mxu0 0
  %541 = vmatpush1.bf16.msra.mxu0 %v489
  %542 = vmatprep.subr.bf16.mxu0 0
  %543 = vmatpush1.bf16.msra.mxu0 %v490
  %544 = vmatprep.subr.bf16.mxu0 0
  %545 = vmatpush1.bf16.msra.mxu0 %v491
  %546 = vmatprep.subr.bf16.mxu0 0
  %547 = vmatpush1.bf16.msra.mxu0 %v492
  %548 = vmatprep.subr.bf16.mxu0 0
  %549 = vmatpush1.bf16.msra.mxu0 %v493
  %550 = vmatprep.subr.bf16.mxu0 0
  %551 = vmatpush1.bf16.msra.mxu0 %v494
  %552 = vmatprep.subr.bf16.mxu0 0
  %553 = vmatpush1.bf16.msra.mxu0 %v495
  %554 = vmatprep.subr.bf16.mxu0 0
  %555 = vmatpush1.bf16.msra.mxu0 %v496
  %556 = vmatprep.subr.bf16.mxu0 0
  %557 = vmatpush1.bf16.msra.mxu0 %v497
  %558 = vmatprep.subr.bf16.mxu0 0
  %559 = vmatpush1.bf16.msra.mxu0 0
  %560 = vmatprep.subr.bf16.mxu0 0
  %561 = vmatpush1.bf16.msra.mxu0 0
  %562 = vmatprep.subr.bf16.mxu0 0
  %563 = vmatpush1.bf16.msra.mxu0 0
  %564 = vmatprep.subr.bf16.mxu0 0
  %565 = vmatpush1.bf16.msra.mxu0 0
  %566 = vmatprep.mubr.bf16.mxu0 %v511
  %567 = vmatmul.mubr.bf16.gmra.mrb[0].mxu0 %v414
  %v568 = vpop.f32.mrb[0].mxu0
  %v569 = vadd.f32 %v304, %v568
  %v570 = vpop.f32.mrb[0].mxu0
  %v571 = vpop.f32.mrb[0].mxu0
  %v572 = vadd.f32 %v307, %v571
  %v573 = vpop.f32.mrb[0].mxu0
  %574 = vmatprep.mubr.bf16.mxu0 %v514
  %575 = vmatmul.mubr.bf16.gmra.mrb[0].mxu0 %v416
  %v576 = vpop.f32.mrb[0].mxu0
  %v577 = vadd.f32 %v312, %v576
  %v578 = vpop.f32.mrb[0].mxu0
  %v579 = vpop.f32.mrb[0].mxu0
  %v580 = vadd.f32 %v315, %v579
  %v581 = vpop.f32.mrb[0].mxu0
  %582 = vmatprep.mubr.bf16.mxu0 %v517
  %583 = vmatmul.mubr.bf16.gmra.mrb[0].mxu0 %v418
  %v584 = vpop.f32.mrb[0].mxu0
  %v585 = vadd.f32 %v320, %v584
  %v586 = vpop.f32.mrb[0].mxu0
  %v587 = vpop.f32.mrb[0].mxu0
  %v588 = vadd.f32 %v323, %v587
  %v589 = vpop.f32.mrb[0].mxu0
  %590 = vmatprep.mubr.bf16.mxu0 %v520
  %591 = vmatmul.mubr.bf16.gmra.mrb[0].mxu0 %v420
  %v592 = vpop.f32.mrb[0].mxu0
  %v593 = vadd.f32 %v328, %v592
  %v594 = vpop.f32.mrb[0].mxu0
  %v595 = vpop.f32.mrb[0].mxu0
  %v596 = vadd.f32 %v331, %v595
  %v597 = vpop.f32.mrb[0].mxu0
  %598 = vmatprep.mubr.bf16.mxu0 %v523
  %599 = vmatmul.mubr.bf16.gmra.mrb[0].mxu0 %v422
  %v600 = vpop.f32.mrb[0].mxu0
  %v601 = vadd.f32 %v336, %v600
  %v602 = vpop.f32.mrb[0].mxu0
  %v603 = vpop.f32.mrb[0].mxu0
  %v604 = vadd.f32 %v339, %v603
  %v605 = vpop.f32.mrb[0].mxu0
  %606 = vmatprep.mubr.bf16.mxu0 %v526
  %607 = vmatmul.mubr.bf16.gmra.mrb[0].mxu0 %v424
  %v608 = vpop.f32.mrb[0].mxu0
  %v609 = vadd.f32 %v344, %v608
  %v610 = vpop.f32.mrb[0].mxu0
  %v611 = vpop.f32.mrb[0].mxu0
  %v612 = vadd.f32 %v347, %v611
  %v613 = vpop.f32.mrb[0].mxu0
  %614 = vmatprep.mubr.bf16.mxu0 %v529
  %615 = vmatmul.mubr.bf16.gmra.mrb[0].mxu0 %v426
  %v616 = vpop.f32.mrb[0].mxu0
  %v617 = vadd.f32 %v352, %v616
  %v618 = vpop.f32.mrb[0].mxu0
  %v619 = vpop.f32.mrb[0].mxu0
  %v620 = vadd.f32 %v355, %v619
  %v621 = vpop.f32.mrb[0].mxu0
  %622 = vmatprep.mubr.bf16.mxu0 %v532
  %623 = vmatmul.mubr.bf16.gmra.mrb[0].mxu0 %v428
  %v624 = vpop.f32.mrb[0].mxu0
  %v625 = vadd.f32 %v360, %v624
  %v626 = vpop.f32.mrb[0].mxu0
  %v627 = vpop.f32.mrb[0].mxu0
  %v628 = vadd.f32 %v363, %v627
  %v629 = vpop.f32.mrb[0].mxu0
  %630 = vdwg.mxu0
  %s631 = scalar_lea.vmem %s0, 8
  %v632 = vld [vmem:[%s631] sm:$0xff]
  %v633 = vld [vmem:[%s631 + $0x8] sm:$0xff]
  %v634 = vld [vmem:[%s631 + $0x10] sm:$0xff]
  %v635 = vld [vmem:[%s631 + $0x18] sm:$0xff]
  %v636 = vld [vmem:[%s631 + $0x20] sm:$0xff]
  %v637 = vld [vmem:[%s631 + $0x28] sm:$0xff]
  %v638 = vld [vmem:[%s631 + $0x30] sm:$0xff]
  %v639 = vld [vmem:[%s631 + $0x38] sm:$0xff]
  %v640 = vld [vmem:[%s631 + $0x48] sm:$0xff]
  %v641 = vld [vmem:[%s631 + $0x50] sm:$0xff]
  %v642 = vld [vmem:[%s631 + $0x58] sm:$0xff]
  %v643 = vld [vmem:[%s631 + $0x60] sm:$0xff]
  %v644 = vld [vmem:[%s631 + $0x68] sm:$0xff]
  %v645 = vld [vmem:[%s631 + $0x70] sm:$0xff]
  %v646 = vld [vmem:[%s631 + $0x78] sm:$0xff]
  %v647 = vld [vmem:[%s631 + $0x80] sm:$0xff]
  %s648 = scalar_lea.vmem %s1, 192
  %v649 = vld [vmem:[%s648] sm:$0xf]
  %v650 = vld [vmem:[%s648 + $0x4] sm:$0xf]
  %v651 = vld [vmem:[%s648 + $0x8] sm:$0xf]
  %v652 = vld [vmem:[%s648 + $0xc] sm:$0xf]
  %v653 = vld [vmem:[%s648 + $0x10] sm:$0xf]
  %v654 = vld [vmem:[%s648 + $0x14] sm:$0xf]
  %v655 = vld [vmem:[%s648 + $0x18] sm:$0xf]
  %v656 = vld [vmem:[%s648 + $0x1c] sm:$0xf]
  %v657 = vld [vmem:[%s648 + $0x20] sm:$0xf]
  %v658 = vld [vmem:[%s648 + $0x24] sm:$0xf]
  %v659 = vld [vmem:[%s648 + $0x28] sm:$0xf]
  %v660 = vld [vmem:[%s648 + $0x2c] sm:$0xf]
  %v661 = vld [vmem:[%s648 + $0x30] sm:$0xf]
  %v662 = vld [vmem:[%s648 + $0x34] sm:$0xf]
  %v663 = vld [vmem:[%s648 + $0x38] sm:$0xf]
  %v664 = vld [vmem:[%s648 + $0x3c] sm:$0xf]
  %v665 = vld [vmem:[%s648 + $0x40] sm:$0xf]
  %v666 = vld [vmem:[%s648 + $0x44] sm:$0xf]
  %v667 = vld [vmem:[%s648 + $0x48] sm:$0xf]
  %v668 = vld [vmem:[%s648 + $0x4c] sm:$0xf]
  %v669 = vld [vmem:[%s648 + $0x50] sm:$0xf]
  %v670 = vld [vmem:[%s648 + $0x54] sm:$0xf]
  %v671 = vld [vmem:[%s648 + $0x58] sm:$0xf]
  %v672 = vld [vmem:[%s648 + $0x5c] sm:$0xf]
  %v689 = vunpack.c.l.b16 %v632
  %v690 = vunpack.c.h.b16 %v632
  %v691 = vunpack.c.l.b16 %v633
  %v692 = vunpack.c.h.b16 %v633
  %v693 = vunpack.c.l.b16 %v634
  %v694 = vunpack.c.h.b16 %v634
  %v695 = vunpack.c.l.b16 %v635
  %v696 = vunpack.c.h.b16 %v635
  %v697 = vunpack.c.l.b16 %v636
  %v698 = vunpack.c.h.b16 %v636
  %v699 = vunpack.c.l.b16 %v637
  %v700 = vunpack.c.h.b16 %v637
  %v701 = vunpack.c.l.b16 %v638
  %v702 = vunpack.c.h.b16 %v638
  %v703 = vunpack.c.l.b16 %v639
  %v704 = vunpack.c.h.b16 %v639
  %v705 = vunpack.c.l.b16 %v640
  %v706 = vunpack.c.h.b16 %v640
  %v707 = vunpack.c.l.b16 %v641
  %v708 = vunpack.c.h.b16 %v641
  %v709 = vunpack.c.l.b16 %v642
  %v710 = vunpack.c.h.b16 %v642
  %v711 = vunpack.c.l.b16 %v643
  %v712 = vunpack.c.h.b16 %v643
  %v713 = vunpack.c.l.b16 %v644
  %v714 = vunpack.c.h.b16 %v644
  %v715 = vunpack.c.l.b16 %v645
  %v716 = vunpack.c.h.b16 %v645
  %v717 = vunpack.c.l.b16 %v646
  %v718 = vunpack.c.h.b16 %v646
  %v719 = vunpack.c.l.b16 %v647
  %v720 = vunpack.c.h.b16 %v647
  %v721 = vpack.c.b16 %v691, %v689
  %v722 = vpack.c.b16 %v692, %v690
  %v723 = vpack.c.b16 %v695, %v693
  %v724 = vpack.c.b16 %v696, %v694
  %v725 = vpack.c.b16 %v699, %v697
  %v726 = vpack.c.b16 %v700, %v698
  %v727 = vpack.c.b16 %v703, %v701
  %v728 = vpack.c.b16 %v704, %v702
  %v729 = vpack.c.b16 %v707, %v705
  %v730 = vpack.c.b16 %v708, %v706
  %v731 = vpack.c.b16 %v711, %v709
  %v732 = vpack.c.b16 %v712, %v710
  %v733 = vpack.c.b16 %v715, %v713
  %v734 = vpack.c.b16 %v716, %v714
  %v735 = vpack.c.b16 %v719, %v717
  %v736 = vpack.c.b16 %v720, %v718
  %v769 = vunpack.c.l.b16 %v649
  %v770 = vunpack.c.l.b16 %v650
  %v771 = vunpack.c.l.b16 %v651
  %v772 = vunpack.c.l.b16 %v652
  %v773 = vunpack.c.l.b16 %v653
  %v774 = vunpack.c.l.b16 %v654
  %v775 = vunpack.c.l.b16 %v655
  %v776 = vunpack.c.l.b16 %v656
  %v777 = vunpack.c.l.b16 %v657
  %v778 = vunpack.c.l.b16 %v658
  %v779 = vunpack.c.l.b16 %v659
  %v780 = vunpack.c.l.b16 %v660
  %v781 = vunpack.c.l.b16 %v661
  %v782 = vunpack.c.l.b16 %v662
  %v783 = vunpack.c.l.b16 %v663
  %v784 = vunpack.c.l.b16 %v664
  %v785 = vunpack.c.l.b16 %v665
  %v786 = vunpack.c.l.b16 %v666
  %v787 = vunpack.c.l.b16 %v667
  %v788 = vunpack.c.l.b16 %v668
  %v789 = vunpack.c.l.b16 %v669
  %v790 = vunpack.c.l.b16 %v670
  %v791 = vunpack.c.l.b16 %v671
  %v792 = vunpack.c.l.b16 %v672
  %v793 = vpack.c.b16 %v770, %v769
  %v794 = vpack.c.b16 %v772, %v771
  %v795 = vpack.c.b16 %v774, %v773
  %v796 = vpack.c.b16 %v776, %v775
  %v797 = vpack.c.b16 %v778, %v777
  %v798 = vpack.c.b16 %v780, %v779
  %v799 = vpack.c.b16 %v782, %v781
  %v800 = vpack.c.b16 %v784, %v783
  %v801 = vpack.c.b16 %v786, %v785
  %v802 = vpack.c.b16 %v788, %v787
  %v803 = vpack.c.b16 %v790, %v789
  %v804 = vpack.c.b16 %v792, %v791
  %v818 = vsel %vm244, %v722, 0
  %v821 = vsel %vm244, %v724, 0
  %v824 = vsel %vm244, %v726, 0
  %v827 = vsel %vm244, %v728, 0
  %v830 = vsel %vm244, %v730, 0
  %v833 = vsel %vm244, %v732, 0
  %v836 = vsel %vm244, %v734, 0
  %v839 = vsel %vm244, %v736, 0
  %841 = vmatprep.subr.bf16.mxu0 0
  %842 = vmatpush1.bf16.msra.mxu0 %v793
  %843 = vmatprep.subr.bf16.mxu0 0
  %844 = vmatpush1.bf16.msra.mxu0 %v794
  %845 = vmatprep.subr.bf16.mxu0 0
  %846 = vmatpush1.bf16.msra.mxu0 %v795
  %847 = vmatprep.subr.bf16.mxu0 0
  %848 = vmatpush1.bf16.msra.mxu0 %v796
  %849 = vmatprep.subr.bf16.mxu0 0
  %850 = vmatpush1.bf16.msra.mxu0 %v797
  %851 = vmatprep.subr.bf16.mxu0 0
  %852 = vmatpush1.bf16.msra.mxu0 %v798
  %853 = vmatprep.subr.bf16.mxu0 0
  %854 = vmatpush1.bf16.msra.mxu0 %v799
  %855 = vmatprep.subr.bf16.mxu0 0
  %856 = vmatpush1.bf16.msra.mxu0 %v800
  %857 = vmatprep.subr.bf16.mxu0 0
  %858 = vmatpush1.bf16.msra.mxu0 %v801
  %859 = vmatprep.subr.bf16.mxu0 0
  %860 = vmatpush1.bf16.msra.mxu0 %v802
  %861 = vmatprep.subr.bf16.mxu0 0
  %862 = vmatpush1.bf16.msra.mxu0 %v803
  %863 = vmatprep.subr.bf16.mxu0 0
  %864 = vmatpush1.bf16.msra.mxu0 %v804
  %865 = vmatprep.subr.bf16.mxu0 0
  %866 = vmatpush1.bf16.msra.mxu0 0
  %867 = vmatprep.subr.bf16.mxu0 0
  %868 = vmatpush1.bf16.msra.mxu0 0
  %869 = vmatprep.subr.bf16.mxu0 0
  %870 = vmatpush1.bf16.msra.mxu0 0
  %871 = vmatprep.subr.bf16.mxu0 0
  %872 = vmatpush1.bf16.msra.mxu0 0
  %873 = vmatprep.mubr.bf16.mxu0 %v818
  %874 = vmatmul.mubr.bf16.gmra.mrb[0].mxu0 %v721
  %v875 = vpop.f32.mrb[0].mxu0
  %v876 = vadd.f32 0.0, %v875
  %v877 = vpop.f32.mrb[0].mxu0
  %v878 = vpop.f32.mrb[0].mxu0
  %v879 = vadd.f32 0.0, %v878
  %v880 = vpop.f32.mrb[0].mxu0
  %881 = vmatprep.mubr.bf16.mxu0 %v821
  %882 = vmatmul.mubr.bf16.gmra.mrb[0].mxu0 %v723
  %v883 = vpop.f32.mrb[0].mxu0
  %v884 = vadd.f32 0.0, %v883
  %v885 = vpop.f32.mrb[0].mxu0
  %v886 = vpop.f32.mrb[0].mxu0
  %v887 = vadd.f32 0.0, %v886
  %v888 = vpop.f32.mrb[0].mxu0
  %889 = vmatprep.mubr.bf16.mxu0 %v824
  %890 = vmatmul.mubr.bf16.gmra.mrb[0].mxu0 %v725
  %v891 = vpop.f32.mrb[0].mxu0
  %v892 = vadd.f32 0.0, %v891
  %v893 = vpop.f32.mrb[0].mxu0
  %v894 = vpop.f32.mrb[0].mxu0
  %v895 = vadd.f32 0.0, %v894
  %v896 = vpop.f32.mrb[0].mxu0
  %897 = vmatprep.mubr.bf16.mxu0 %v827
  %898 = vmatmul.mubr.bf16.gmra.mrb[0].mxu0 %v727
  %v899 = vpop.f32.mrb[0].mxu0
  %v900 = vadd.f32 0.0, %v899
  %v901 = vpop.f32.mrb[0].mxu0
  %v902 = vpop.f32.mrb[0].mxu0
  %v903 = vadd.f32 0.0, %v902
  %v904 = vpop.f32.mrb[0].mxu0
  %905 = vmatprep.mubr.bf16.mxu0 %v830
  %906 = vmatmul.mubr.bf16.gmra.mrb[0].mxu0 %v729
  %v907 = vpop.f32.mrb[0].mxu0
  %v908 = vadd.f32 0.0, %v907
  %v909 = vpop.f32.mrb[0].mxu0
  %v910 = vpop.f32.mrb[0].mxu0
  %v911 = vadd.f32 0.0, %v910
  %v912 = vpop.f32.mrb[0].mxu0
  %913 = vmatprep.mubr.bf16.mxu0 %v833
  %914 = vmatmul.mubr.bf16.gmra.mrb[0].mxu0 %v731
  %v915 = vpop.f32.mrb[0].mxu0
  %v916 = vadd.f32 0.0, %v915
  %v917 = vpop.f32.mrb[0].mxu0
  %v918 = vpop.f32.mrb[0].mxu0
  %v919 = vadd.f32 0.0, %v918
  %v920 = vpop.f32.mrb[0].mxu0
  %921 = vmatprep.mubr.bf16.mxu0 %v836
  %922 = vmatmul.mubr.bf16.gmra.mrb[0].mxu0 %v733
  %v923 = vpop.f32.mrb[0].mxu0
  %v924 = vadd.f32 0.0, %v923
  %v925 = vpop.f32.mrb[0].mxu0
  %v926 = vpop.f32.mrb[0].mxu0
  %v927 = vadd.f32 0.0, %v926
  %v928 = vpop.f32.mrb[0].mxu0
  %929 = vmatprep.mubr.bf16.mxu0 %v839
  %930 = vmatmul.mubr.bf16.gmra.mrb[0].mxu0 %v735
  %v931 = vpop.f32.mrb[0].mxu0
  %v932 = vadd.f32 0.0, %v931
  %v933 = vpop.f32.mrb[0].mxu0
  %v934 = vpop.f32.mrb[0].mxu0
  %v935 = vadd.f32 0.0, %v934
  %v936 = vpop.f32.mrb[0].mxu0
  %937 = vdwg.mxu0
  %v938 = vadd.f32 %v569, %v876
  %v939 = vadd.f32 %v572, %v879
  %v940 = vadd.f32 %v577, %v884
  %v941 = vadd.f32 %v580, %v887
  %v942 = vadd.f32 %v585, %v892
  %v943 = vadd.f32 %v588, %v895
  %v944 = vadd.f32 %v593, %v900
  %v945 = vadd.f32 %v596, %v903
  %v946 = vadd.f32 %v601, %v908
  %v947 = vadd.f32 %v604, %v911
  %v948 = vadd.f32 %v609, %v916
  %v949 = vadd.f32 %v612, %v919
  %v950 = vadd.f32 %v617, %v924
  %v951 = vadd.f32 %v620, %v927
  %v952 = vadd.f32 %v625, %v932
  %v953 = vadd.f32 %v628, %v935
  %v954 = vadd.f32 %v938, %v939
  %v955 = vadd.f32 %v954, %v940
  %v956 = vadd.f32 %v955, %v941
  %v957 = vadd.f32 %v956, %v942
  %v958 = vadd.f32 %v957, %v943
  %v959 = vadd.f32 %v958, %v944
  %v960 = vadd.f32 %v959, %v945
  %v961 = vadd.f32 %v960, %v946
  %v962 = vadd.f32 %v961, %v947
  %v963 = vadd.f32 %v962, %v948
  %v964 = vadd.f32 %v963, %v949
  %v965 = vadd.f32 %v964, %v950
  %v966 = vadd.f32 %v965, %v951
  %v967 = vadd.f32 %v966, %v952
  %v968 = vadd.f32 %v967, %v953
  %v969 = vrot.slane %v968, 4
  %v970 = vadd.f32 %v968, %v969
  %v971 = vrot.slane %v970, 2
  %v972 = vadd.f32 %v970, %v971
  %v973 = vrot.slane %v972, 1
  %v974 = vadd.f32 %v972, %v973
  %v975 = vmul.f32 %v974, 0.0078125
  %v976 = vmul.f32 %v938, %v938
  %v977 = vmul.f32 %v939, %v939
  %v978 = vmul.f32 %v940, %v940
  %v979 = vmul.f32 %v941, %v941
  %v980 = vmul.f32 %v942, %v942
  %v981 = vmul.f32 %v943, %v943
  %v982 = vmul.f32 %v944, %v944
  %v983 = vmul.f32 %v945, %v945
  %v984 = vmul.f32 %v946, %v946
  %v985 = vmul.f32 %v947, %v947
  %v986 = vmul.f32 %v948, %v948
  %v987 = vmul.f32 %v949, %v949
  %v988 = vmul.f32 %v950, %v950
  %v989 = vmul.f32 %v951, %v951
  %v990 = vmul.f32 %v952, %v952
  %v991 = vmul.f32 %v953, %v953
  %v992 = vadd.f32 %v976, %v977
  %v993 = vadd.f32 %v992, %v978
  %v994 = vadd.f32 %v993, %v979
  %v995 = vadd.f32 %v994, %v980
  %v996 = vadd.f32 %v995, %v981
  %v997 = vadd.f32 %v996, %v982
  %v998 = vadd.f32 %v997, %v983
  %v999 = vadd.f32 %v998, %v984
  %v1000 = vadd.f32 %v999, %v985
  %v1001 = vadd.f32 %v1000, %v986
  %v1002 = vadd.f32 %v1001, %v987
  %v1003 = vadd.f32 %v1002, %v988
  %v1004 = vadd.f32 %v1003, %v989
  %v1005 = vadd.f32 %v1004, %v990
  %v1006 = vadd.f32 %v1005, %v991
  %v1007 = vrot.slane %v1006, 4
  %v1008 = vadd.f32 %v1006, %v1007
  %v1009 = vrot.slane %v1008, 2
  %v1010 = vadd.f32 %v1008, %v1009
  %v1011 = vrot.slane %v1010, 1
  %v1012 = vadd.f32 %v1010, %v1011
  %v1013 = vmul.f32 %v1012, 0.0078125
  %v1014 = vmul.f32 %v975, %v975
  %v1015 = vsub.f32 %v1013, %v1014
  %v1016 = vadd.f32 %v1015, 1e-05
  %v1017 = vrsqrt.pop %v1016
  %v1018 = vld [vmem:[%s2] sm:$0x1]
  %v1019 = vmul.f32 %v1017, %v1018
  %v1020 = vld [vmem:[%s3] sm:$0x1]
  %v1021 = vmul.f32 %v975, %v1019
  %v1022 = vsub.f32 %v1020, %v1021
  %v1023 = vlaneseq
  %v1024 = vshrl.u32 %v1023, 7
  %v1025 = vsub.s32 0, %v1024
  %v1026 = vrot.slane %v1019, %v1025
  %v1027 = vmul.f32 %v938, %v1026
  %v1028 = vmul.f32 %v939, %v1026
  %v1029 = vmul.f32 %v940, %v1026
  %v1030 = vmul.f32 %v941, %v1026
  %v1031 = vmul.f32 %v942, %v1026
  %v1032 = vmul.f32 %v943, %v1026
  %v1033 = vmul.f32 %v944, %v1026
  %v1034 = vmul.f32 %v945, %v1026
  %v1035 = vmul.f32 %v946, %v1026
  %v1036 = vmul.f32 %v947, %v1026
  %v1037 = vmul.f32 %v948, %v1026
  %v1038 = vmul.f32 %v949, %v1026
  %v1039 = vmul.f32 %v950, %v1026
  %v1040 = vmul.f32 %v951, %v1026
  %v1041 = vmul.f32 %v952, %v1026
  %v1042 = vmul.f32 %v953, %v1026
  %v1044 = vlaneseq
  %v1045 = vshrl.u32 %v1044, 7
  %v1046 = vsub.s32 0, %v1045
  %v1047 = vrot.slane %v1022, %v1046
  %v1049 = vadd.f32 %v1027, %v1047
  %v1050 = vadd.f32 %v1028, %v1047
  %v1051 = vadd.f32 %v1029, %v1047
  %v1052 = vadd.f32 %v1030, %v1047
  %v1053 = vadd.f32 %v1031, %v1047
  %v1054 = vadd.f32 %v1032, %v1047
  %v1055 = vadd.f32 %v1033, %v1047
  %v1056 = vadd.f32 %v1034, %v1047
  %v1057 = vadd.f32 %v1035, %v1047
  %v1058 = vadd.f32 %v1036, %v1047
  %v1059 = vadd.f32 %v1037, %v1047
  %v1060 = vadd.f32 %v1038, %v1047
  %v1061 = vadd.f32 %v1039, %v1047
  %v1062 = vadd.f32 %v1040, %v1047
  %v1063 = vadd.f32 %v1041, %v1047
  %v1064 = vadd.f32 %v1042, %v1047
  %v1065 = vmax.f32 %v1049, 0.0
  %v1066 = vmax.f32 %v1050, 0.0
  %v1067 = vmax.f32 %v1051, 0.0
  %v1068 = vmax.f32 %v1052, 0.0
  %v1069 = vmax.f32 %v1053, 0.0
  %v1070 = vmax.f32 %v1054, 0.0
  %v1071 = vmax.f32 %v1055, 0.0
  %v1072 = vmax.f32 %v1056, 0.0
  %v1073 = vmax.f32 %v1057, 0.0
  %v1074 = vmax.f32 %v1058, 0.0
  %v1075 = vmax.f32 %v1059, 0.0
  %v1076 = vmax.f32 %v1060, 0.0
  %v1077 = vmax.f32 %v1061, 0.0
  %v1078 = vmax.f32 %v1062, 0.0
  %v1079 = vmax.f32 %v1063, 0.0
  %v1080 = vmax.f32 %v1064, 0.0
  %v1081 = vpack.c.bf16 %v1066, %v1065
  %v1082 = vpack.c.bf16 %v1068, %v1067
  %v1083 = vpack.c.bf16 %v1070, %v1069
  %v1084 = vpack.c.bf16 %v1072, %v1071
  %v1085 = vpack.c.bf16 %v1074, %v1073
  %v1086 = vpack.c.bf16 %v1076, %v1075
  %v1087 = vpack.c.bf16 %v1078, %v1077
  %v1088 = vpack.c.bf16 %v1080, %v1079
  %v1097 = vunpack.c.l.b16 %v1081
  %v1098 = vunpack.c.h.b16 %v1081
  %v1099 = vunpack.c.l.b16 %v1082
  %v1100 = vunpack.c.h.b16 %v1082
  %v1101 = vunpack.c.l.b16 %v1083
  %v1102 = vunpack.c.h.b16 %v1083
  %v1103 = vunpack.c.l.b16 %v1084
  %v1104 = vunpack.c.h.b16 %v1084
  %v1105 = vunpack.c.l.b16 %v1085
  %v1106 = vunpack.c.h.b16 %v1085
  %v1107 = vunpack.c.l.b16 %v1086
  %v1108 = vunpack.c.h.b16 %v1086
  %v1109 = vunpack.c.l.b16 %v1087
  %v1110 = vunpack.c.h.b16 %v1087
  %v1111 = vunpack.c.l.b16 %v1088
  %v1112 = vunpack.c.h.b16 %v1088
  %v1113 = vpack.c.b16 %v1097, %v1097
  %v1114 = vpack.c.b16 %v1098, %v1098
  %v1115 = vpack.c.b16 %v1099, %v1099
  %v1116 = vpack.c.b16 %v1100, %v1100
  %v1117 = vpack.c.b16 %v1101, %v1101
  %v1118 = vpack.c.b16 %v1102, %v1102
  %v1119 = vpack.c.b16 %v1103, %v1103
  %v1120 = vpack.c.b16 %v1104, %v1104
  %v1121 = vpack.c.b16 %v1105, %v1105
  %v1122 = vpack.c.b16 %v1106, %v1106
  %v1123 = vpack.c.b16 %v1107, %v1107
  %v1124 = vpack.c.b16 %v1108, %v1108
  %v1125 = vpack.c.b16 %v1109, %v1109
  %v1126 = vpack.c.b16 %v1110, %v1110
  %v1127 = vpack.c.b16 %v1111, %v1111
  %v1128 = vpack.c.b16 %v1112, %v1112
  %1145 = vst [vmem:[%s4] sm:$0xf] %v1113
  %1146 = vst [vmem:[%s4 + $0x4] sm:$0xf] %v1114
  %1147 = vst [vmem:[%s4 + $0x8] sm:$0xf] %v1115
  %1148 = vst [vmem:[%s4 + $0xc] sm:$0xf] %v1116
  %1149 = vst [vmem:[%s4 + $0x10] sm:$0xf] %v1117
  %1150 = vst [vmem:[%s4 + $0x14] sm:$0xf] %v1118
  %1151 = vst [vmem:[%s4 + $0x18] sm:$0xf] %v1119
  %1152 = vst [vmem:[%s4 + $0x1c] sm:$0xf] %v1120
  %1153 = vst [vmem:[%s4 + $0x20] sm:$0xf] %v1121
  %1154 = vst [vmem:[%s4 + $0x24] sm:$0xf] %v1122
  %1155 = vst [vmem:[%s4 + $0x28] sm:$0xf] %v1123
  %1156 = vst [vmem:[%s4 + $0x2c] sm:$0xf] %v1124
  %1157 = vst [vmem:[%s4 + $0x30] sm:$0xf] %v1125
  %1158 = vst [vmem:[%s4 + $0x34] sm:$0xf] %v1126
  %1159 = vst [vmem:[%s4 + $0x38] sm:$0xf] %v1127
  %1160 = vst [vmem:[%s4 + $0x3c] sm:$0xf] %v1128
  // Predicated region
  $region18: #{fwd.4} parent=0 // pred_check
    _
  $region19: #{fwd.4} parent=0 // pred_check_branch
    %1162 = sbr.rel (0) target = $region21
  $region20: #{fwd.4} parent=0 // pred_region
    _
  $region21: #{fwd.4} parent=0 // pred_fallthru
    _
  // Predicated region
  $region22: #{fwd.4} parent=0 // pred_check
    _
  $region23: #{fwd.4} parent=0 // pred_check_branch
    %1164 = sbr.rel (0) target = $region25
  $region24: #{fwd.4} parent=0 // pred_region
    _
  $region25: #{fwd.4} parent=0 // pred_fallthru
    _

// kernel: fwd.5
$region0: #{fwd.5}
  #allocation0 [shape = 'u32[]', space=smem, size = 0x4, offset = 0x4, fixed_abs, tag = 'smem constant byte address 0x4 - core index']
  #allocation1 [shape = 'u32[144,128]{1,0:T(1,128)}', space=vmem, size = 0x12000, scoped, tag = 'internal scratch']
  %s0 = inlined_call_operand.vmem [shape: bf16[2,10,8,384], index: 0, kind: input, shape index: {}]
  %s1 = inlined_call_operand.vmem [shape: bf16[3,384,128], index: 1, kind: input, shape index: {}]
  %s2 = inlined_call_operand.vmem [shape: f32[1,128], index: 2, kind: input, shape index: {}]
  %s3 = inlined_call_operand.vmem [shape: f32[1,128], index: 3, kind: input, shape index: {}]
  %s4 = inlined_call_operand.vmem [shape: bf16[128,128], index: 4, kind: input, shape index: {}]
  %s5 = inlined_call_operand.vmem [shape: bf16[128,128], index: 5, kind: input, shape index: {}]
  %s6 = inlined_call_operand.vmem [shape: f32[1,128], index: 6, kind: input, shape index: {}]
  %s7 = inlined_call_operand.vmem [shape: f32[1,128], index: 7, kind: input, shape index: {}]
  %s8 = inlined_call_operand.vmem [shape: f32[128,128], index: 8, kind: output, shape index: {}]
  %s9 = sld [smem:[#allocation0]]
  $region42: #{fwd.5} parent=0
    _
  %s11 = ssub.s32 1, %s9
  %s12 = scalar_select 0, %s11, %s9
  // Predicated region
  $region2: #{fwd.5} parent=0 // pred_check
    _
  $region3: #{fwd.5} parent=0 // pred_check_branch
    %14 = sbr.rel (0) target = $region5
  $region4: #{fwd.5} parent=0 // pred_region
    _
  $region5: #{fwd.5} parent=0 // pred_fallthru
    _
  // Predicated region
  $region6: #{fwd.5} parent=0 // pred_check
    _
  $region7: #{fwd.5} parent=0 // pred_check_branch
    %16 = sbr.rel (0) target = $region9
  $region8: #{fwd.5} parent=0 // pred_region
    _
  $region9: #{fwd.5} parent=0 // pred_fallthru
    _
  // Predicated region
  $region10: #{fwd.5} parent=0 // pred_check
    _
  $region11: #{fwd.5} parent=0 // pred_check_branch
    %18 = sbr.rel (0) target = $region13
  $region12: #{fwd.5} parent=0 // pred_region
    _
  $region13: #{fwd.5} parent=0 // pred_fallthru
    _
  // Predicated region
  $region14: #{fwd.5} parent=0 // pred_check
    _
  $region15: #{fwd.5} parent=0 // pred_check_branch
    %20 = sbr.rel (0) target = $region17
  $region16: #{fwd.5} parent=0 // pred_region
    _
  $region17: #{fwd.5} parent=0 // pred_fallthru
    _
  // Predicated region
  $region18: #{fwd.5} parent=0 // pred_check
    _
  $region19: #{fwd.5} parent=0 // pred_check_branch
    %22 = sbr.rel (0) target = $region21
  $region20: #{fwd.5} parent=0 // pred_region
    _
  $region21: #{fwd.5} parent=0 // pred_fallthru
    _
  // Predicated region
  $region22: #{fwd.5} parent=0 // pred_check
    _
  $region23: #{fwd.5} parent=0 // pred_check_branch
    %24 = sbr.rel (0) target = $region25
  $region24: #{fwd.5} parent=0 // pred_region
    _
  $region25: #{fwd.5} parent=0 // pred_fallthru
    _
  // Predicated region
  $region26: #{fwd.5} parent=0 // pred_check
    _
  $region27: #{fwd.5} parent=0 // pred_check_branch
    %26 = sbr.rel (0) target = $region29
  $region28: #{fwd.5} parent=0 // pred_region
    _
  $region29: #{fwd.5} parent=0 // pred_fallthru
    _
  // Predicated region
  $region30: #{fwd.5} parent=0 // pred_check
    _
  $region31: #{fwd.5} parent=0 // pred_check_branch
    %28 = sbr.rel (0) target = $region33
  $region32: #{fwd.5} parent=0 // pred_region
    _
  $region33: #{fwd.5} parent=0 // pred_fallthru
    _
  %v30 = vld [vmem:[%s0] sm:$0xff]
  %v31 = vld [vmem:[%s0 + $0x8] sm:$0xf]
  %v32 = vld [vmem:[%s0 + $0xc] sm:$0xff]
  %v33 = vld [vmem:[%s0 + $0x14] sm:$0xf]
  %v34 = vld [vmem:[%s0 + $0x18] sm:$0xff]
  %v35 = vld [vmem:[%s0 + $0x20] sm:$0xf]
  %v36 = vld [vmem:[%s0 + $0x24] sm:$0xff]
  %v37 = vld [vmem:[%s0 + $0x2c] sm:$0xf]
  %v38 = vld [vmem:[%s0 + $0x30] sm:$0xff]
  %v39 = vld [vmem:[%s0 + $0x38] sm:$0xf]
  %v40 = vld [vmem:[%s0 + $0x3c] sm:$0xff]
  %v41 = vld [vmem:[%s0 + $0x44] sm:$0xf]
  %v42 = vld [vmem:[%s0 + $0x48] sm:$0xff]
  %v43 = vld [vmem:[%s0 + $0x50] sm:$0xf]
  %v44 = vld [vmem:[%s0 + $0x54] sm:$0xff]
  %v45 = vld [vmem:[%s0 + $0x5c] sm:$0xf]
  %v46 = vld [vmem:[%s0 + $0x78] sm:$0xff]
  %v47 = vld [vmem:[%s0 + $0x80] sm:$0xf]
  %v48 = vld [vmem:[%s0 + $0x84] sm:$0xff]
  %v49 = vld [vmem:[%s0 + $0x8c] sm:$0xf]
  %v50 = vld [vmem:[%s0 + $0x90] sm:$0xff]
  %v51 = vld [vmem:[%s0 + $0x98] sm:$0xf]
  %v52 = vld [vmem:[%s0 + $0x9c] sm:$0xff]
  %v53 = vld [vmem:[%s0 + $0xa4] sm:$0xf]
  %v54 = vld [vmem:[%s0 + $0xa8] sm:$0xff]
  %v55 = vld [vmem:[%s0 + $0xb0] sm:$0xf]
  %v56 = vld [vmem:[%s0 + $0xb4] sm:$0xff]
  %v57 = vld [vmem:[%s0 + $0xbc] sm:$0xf]
  %v58 = vld [vmem:[%s0 + $0xc0] sm:$0xff]
  %v59 = vld [vmem:[%s0 + $0xc8] sm:$0xf]
  %v60 = vld [vmem:[%s0 + $0xcc] sm:$0xff]
  %v61 = vld [vmem:[%s0 + $0xd4] sm:$0xf]
  %v62 = vld [vmem:[%s1] sm:$0xf]
  %v63 = vld [vmem:[%s1 + $0x4] sm:$0xf]
  %v64 = vld [vmem:[%s1 + $0x8] sm:$0xf]
  %v65 = vld [vmem:[%s1 + $0xc] sm:$0xf]
  %v66 = vld [vmem:[%s1 + $0x10] sm:$0xf]
  %v67 = vld [vmem:[%s1 + $0x14] sm:$0xf]
  %v68 = vld [vmem:[%s1 + $0x18] sm:$0xf]
  %v69 = vld [vmem:[%s1 + $0x1c] sm:$0xf]
  %v70 = vld [vmem:[%s1 + $0x20] sm:$0xf]
  %v71 = vld [vmem:[%s1 + $0x24] sm:$0xf]
  %v72 = vld [vmem:[%s1 + $0x28] sm:$0xf]
  %v73 = vld [vmem:[%s1 + $0x2c] sm:$0xf]
  %v74 = vld [vmem:[%s1 + $0x30] sm:$0xf]
  %v75 = vld [vmem:[%s1 + $0x34] sm:$0xf]
  %v76 = vld [vmem:[%s1 + $0x38] sm:$0xf]
  %v77 = vld [vmem:[%s1 + $0x3c] sm:$0xf]
  %v78 = vld [vmem:[%s1 + $0x40] sm:$0xf]
  %v79 = vld [vmem:[%s1 + $0x44] sm:$0xf]
  %v80 = vld [vmem:[%s1 + $0x48] sm:$0xf]
  %v81 = vld [vmem:[%s1 + $0x4c] sm:$0xf]
  %v82 = vld [vmem:[%s1 + $0x50] sm:$0xf]
  %v83 = vld [vmem:[%s1 + $0x54] sm:$0xf]
  %v84 = vld [vmem:[%s1 + $0x58] sm:$0xf]
  %v85 = vld [vmem:[%s1 + $0x5c] sm:$0xf]
  %v86 = vld [vmem:[%s1 + $0x60] sm:$0xf]
  %v87 = vld [vmem:[%s1 + $0x64] sm:$0xf]
  %v88 = vld [vmem:[%s1 + $0x68] sm:$0xf]
  %v89 = vld [vmem:[%s1 + $0x6c] sm:$0xf]
  %v90 = vld [vmem:[%s1 + $0x70] sm:$0xf]
  %v91 = vld [vmem:[%s1 + $0x74] sm:$0xf]
  %v92 = vld [vmem:[%s1 + $0x78] sm:$0xf]
  %v93 = vld [vmem:[%s1 + $0x7c] sm:$0xf]
  %v94 = vld [vmem:[%s1 + $0x80] sm:$0xf]
  %v95 = vld [vmem:[%s1 + $0x84] sm:$0xf]
  %v96 = vld [vmem:[%s1 + $0x88] sm:$0xf]
  %v97 = vld [vmem:[%s1 + $0x8c] sm:$0xf]
  %v98 = vld [vmem:[%s1 + $0x90] sm:$0xf]
  %v99 = vld [vmem:[%s1 + $0x94] sm:$0xf]
  %v100 = vld [vmem:[%s1 + $0x98] sm:$0xf]
  %v101 = vld [vmem:[%s1 + $0x9c] sm:$0xf]
  %v102 = vld [vmem:[%s1 + $0xa0] sm:$0xf]
  %v103 = vld [vmem:[%s1 + $0xa4] sm:$0xf]
  %v104 = vld [vmem:[%s1 + $0xa8] sm:$0xf]
  %v105 = vld [vmem:[%s1 + $0xac] sm:$0xf]
  %v106 = vld [vmem:[%s1 + $0xb0] sm:$0xf]
  %v107 = vld [vmem:[%s1 + $0xb4] sm:$0xf]
  %v108 = vld [vmem:[%s1 + $0xb8] sm:$0xf]
  %v109 = vld [vmem:[%s1 + $0xbc] sm:$0xf]
  %s110 = scalar_lea.vmem %s0, 12
  %v111 = vld [vmem:[%s110] sm:$0xff]
  %v112 = vld [vmem:[%s110 + $0x8] sm:$0xf]
  %v113 = vld [vmem:[%s110 + $0xc] sm:$0xff]
  %v114 = vld [vmem:[%s110 + $0x14] sm:$0xf]
  %v115 = vld [vmem:[%s110 + $0x18] sm:$0xff]
  %v116 = vld [vmem:[%s110 + $0x20] sm:$0xf]
  %v117 = vld [vmem:[%s110 + $0x24] sm:$0xff]
  %v118 = vld [vmem:[%s110 + $0x2c] sm:$0xf]
  %v119 = vld [vmem:[%s110 + $0x30] sm:$0xff]
  %v120 = vld [vmem:[%s110 + $0x38] sm:$0xf]
  %v121 = vld [vmem:[%s110 + $0x3c] sm:$0xff]
  %v122 = vld [vmem:[%s110 + $0x44] sm:$0xf]
  %v123 = vld [vmem:[%s110 + $0x48] sm:$0xff]
  %v124 = vld [vmem:[%s110 + $0x50] sm:$0xf]
  %v125 = vld [vmem:[%s110 + $0x54] sm:$0xff]
  %v126 = vld [vmem:[%s110 + $0x5c] sm:$0xf]
  %v127 = vld [vmem:[%s110 + $0x78] sm:$0xff]
  %v128 = vld [vmem:[%s110 + $0x80] sm:$0xf]
  %v129 = vld [vmem:[%s110 + $0x84] sm:$0xff]
  %v130 = vld [vmem:[%s110 + $0x8c] sm:$0xf]
  %v131 = vld [vmem:[%s110 + $0x90] sm:$0xff]
  %v132 = vld [vmem:[%s110 + $0x98] sm:$0xf]
  %v133 = vld [vmem:[%s110 + $0x9c] sm:$0xff]
  %v134 = vld [vmem:[%s110 + $0xa4] sm:$0xf]
  %v135 = vld [vmem:[%s110 + $0xa8] sm:$0xff]
  %v136 = vld [vmem:[%s110 + $0xb0] sm:$0xf]
  %v137 = vld [vmem:[%s110 + $0xb4] sm:$0xff]
  %v138 = vld [vmem:[%s110 + $0xbc] sm:$0xf]
  %v139 = vld [vmem:[%s110 + $0xc0] sm:$0xff]
  %v140 = vld [vmem:[%s110 + $0xc8] sm:$0xf]
  %v141 = vld [vmem:[%s110 + $0xcc] sm:$0xff]
  %v142 = vld [vmem:[%s110 + $0xd4] sm:$0xf]
  %s143 = scalar_lea.vmem %s1, 192
  %v144 = vld [vmem:[%s143] sm:$0xf]
  %v145 = vld [vmem:[%s143 + $0x4] sm:$0xf]
  %v146 = vld [vmem:[%s143 + $0x8] sm:$0xf]
  %v147 = vld [vmem:[%s143 + $0xc] sm:$0xf]
  %v148 = vld [vmem:[%s143 + $0x10] sm:$0xf]
  %v149 = vld [vmem:[%s143 + $0x14] sm:$0xf]
  %v150 = vld [vmem:[%s143 + $0x18] sm:$0xf]
  %v151 = vld [vmem:[%s143 + $0x1c] sm:$0xf]
  %v152 = vld [vmem:[%s143 + $0x20] sm:$0xf]
  %v153 = vld [vmem:[%s143 + $0x24] sm:$0xf]
  %v154 = vld [vmem:[%s143 + $0x28] sm:$0xf]
  %v155 = vld [vmem:[%s143 + $0x2c] sm:$0xf]
  %v156 = vld [vmem:[%s143 + $0x30] sm:$0xf]
  %v157 = vld [vmem:[%s143 + $0x34] sm:$0xf]
  %v158 = vld [vmem:[%s143 + $0x38] sm:$0xf]
  %v159 = vld [vmem:[%s143 + $0x3c] sm:$0xf]
  %v160 = vld [vmem:[%s143 + $0x40] sm:$0xf]
  %v161 = vld [vmem:[%s143 + $0x44] sm:$0xf]
  %v162 = vld [vmem:[%s143 + $0x48] sm:$0xf]
  %v163 = vld [vmem:[%s143 + $0x4c] sm:$0xf]
  %v164 = vld [vmem:[%s143 + $0x50] sm:$0xf]
  %v165 = vld [vmem:[%s143 + $0x54] sm:$0xf]
  %v166 = vld [vmem:[%s143 + $0x58] sm:$0xf]
  %v167 = vld [vmem:[%s143 + $0x5c] sm:$0xf]
  %v168 = vld [vmem:[%s143 + $0x60] sm:$0xf]
  %v169 = vld [vmem:[%s143 + $0x64] sm:$0xf]
  %v170 = vld [vmem:[%s143 + $0x68] sm:$0xf]
  %v171 = vld [vmem:[%s143 + $0x6c] sm:$0xf]
  %v172 = vld [vmem:[%s143 + $0x70] sm:$0xf]
  %v173 = vld [vmem:[%s143 + $0x74] sm:$0xf]
  %v174 = vld [vmem:[%s143 + $0x78] sm:$0xf]
  %v175 = vld [vmem:[%s143 + $0x7c] sm:$0xf]
  %v176 = vld [vmem:[%s143 + $0x80] sm:$0xf]
  %v177 = vld [vmem:[%s143 + $0x84] sm:$0xf]
  %v178 = vld [vmem:[%s143 + $0x88] sm:$0xf]
  %v179 = vld [vmem:[%s143 + $0x8c] sm:$0xf]
  %v180 = vld [vmem:[%s143 + $0x90] sm:$0xf]
  %v181 = vld [vmem:[%s143 + $0x94] sm:$0xf]
  %v182 = vld [vmem:[%s143 + $0x98] sm:$0xf]
  %v183 = vld [vmem:[%s143 + $0x9c] sm:$0xf]
  %v184 = vld [vmem:[%s143 + $0xa0] sm:$0xf]
  %v185 = vld [vmem:[%s143 + $0xa4] sm:$0xf]
  %v186 = vld [vmem:[%s143 + $0xa8] sm:$0xf]
  %v187 = vld [vmem:[%s143 + $0xac] sm:$0xf]
  %v188 = vld [vmem:[%s143 + $0xb0] sm:$0xf]
  %v189 = vld [vmem:[%s143 + $0xb4] sm:$0xf]
  %v190 = vld [vmem:[%s143 + $0xb8] sm:$0xf]
  %v191 = vld [vmem:[%s143 + $0xbc] sm:$0xf]
  %v224 = vunpack.c.l.b16 %v111
  %v225 = vunpack.c.h.b16 %v111
  %v226 = vunpack.c.l.b16 %v112
  %v227 = vunpack.c.l.b16 %v113
  %v228 = vunpack.c.h.b16 %v113
  %v229 = vunpack.c.l.b16 %v114
  %v230 = vunpack.c.l.b16 %v115
  %v231 = vunpack.c.h.b16 %v115
  %v232 = vunpack.c.l.b16 %v116
  %v233 = vunpack.c.l.b16 %v117
  %v234 = vunpack.c.h.b16 %v117
  %v235 = vunpack.c.l.b16 %v118
  %v236 = vunpack.c.l.b16 %v119
  %v237 = vunpack.c.h.b16 %v119
  %v238 = vunpack.c.l.b16 %v120
  %v239 = vunpack.c.l.b16 %v121
  %v240 = vunpack.c.h.b16 %v121
  %v241 = vunpack.c.l.b16 %v122
  %v242 = vunpack.c.l.b16 %v123
  %v243 = vunpack.c.h.b16 %v123
  %v244 = vunpack.c.l.b16 %v124
  %v245 = vunpack.c.l.b16 %v125
  %v246 = vunpack.c.h.b16 %v125
  %v247 = vunpack.c.l.b16 %v126
  %v248 = vunpack.c.l.b16 %v127
  %v249 = vunpack.c.h.b16 %v127
  %v250 = vunpack.c.l.b16 %v128
  %v251 = vunpack.c.l.b16 %v129
  %v252 = vunpack.c.h.b16 %v129
  %v253 = vunpack.c.l.b16 %v130
  %v254 = vunpack.c.l.b16 %v131
  %v255 = vunpack.c.h.b16 %v131
  %v256 = vunpack.c.l.b16 %v132
  %v257 = vunpack.c.l.b16 %v133
  %v258 = vunpack.c.h.b16 %v133
  %v259 = vunpack.c.l.b16 %v134
  %v260 = vunpack.c.l.b16 %v135
  %v261 = vunpack.c.h.b16 %v135
  %v262 = vunpack.c.l.b16 %v136
  %v263 = vunpack.c.l.b16 %v137
  %v264 = vunpack.c.h.b16 %v137
  %v265 = vunpack.c.l.b16 %v138
  %v266 = vunpack.c.l.b16 %v139
  %v267 = vunpack.c.h.b16 %v139
  %v268 = vunpack.c.l.b16 %v140
  %v269 = vunpack.c.l.b16 %v141
  %v270 = vunpack.c.h.b16 %v141
  %v271 = vunpack.c.l.b16 %v142
  %v272 = vpack.c.b16 %v227, %v224
  %v273 = vpack.c.b16 %v228, %v225
  %v274 = vpack.c.b16 %v229, %v226
  %v275 = vpack.c.b16 %v233, %v230
  %v276 = vpack.c.b16 %v234, %v231
  %v277 = vpack.c.b16 %v235, %v232
  %v278 = vpack.c.b16 %v239, %v236
  %v279 = vpack.c.b16 %v240, %v237
  %v280 = vpack.c.b16 %v241, %v238
  %v281 = vpack.c.b16 %v245, %v242
  %v282 = vpack.c.b16 %v246, %v243
  %v283 = vpack.c.b16 %v247, %v244
  %v284 = vpack.c.b16 %v251, %v248
  %v285 = vpack.c.b16 %v252, %v249
  %v286 = vpack.c.b16 %v253, %v250
  %v287 = vpack.c.b16 %v257, %v254
  %v288 = vpack.c.b16 %v258, %v255
  %v289 = vpack.c.b16 %v259, %v256
  %v290 = vpack.c.b16 %v263, %v260
  %v291 = vpack.c.b16 %v264, %v261
  %v292 = vpack.c.b16 %v265, %v262
  %v293 = vpack.c.b16 %v269, %v266
  %v294 = vpack.c.b16 %v270, %v267
  %v295 = vpack.c.b16 %v271, %v268
  %v368 = vunpack.c.l.b16 %v144
  %v369 = vunpack.c.l.b16 %v145
  %v370 = vunpack.c.l.b16 %v146
  %v371 = vunpack.c.l.b16 %v147
  %v372 = vunpack.c.l.b16 %v148
  %v373 = vunpack.c.l.b16 %v149
  %v374 = vunpack.c.l.b16 %v150
  %v375 = vunpack.c.l.b16 %v151
  %v376 = vunpack.c.l.b16 %v152
  %v377 = vunpack.c.l.b16 %v153
  %v378 = vunpack.c.l.b16 %v154
  %v379 = vunpack.c.l.b16 %v155
  %v380 = vunpack.c.l.b16 %v156
  %v381 = vunpack.c.l.b16 %v157
  %v382 = vunpack.c.l.b16 %v158
  %v383 = vunpack.c.l.b16 %v159
  %v384 = vunpack.c.l.b16 %v160
  %v385 = vunpack.c.l.b16 %v161
  %v386 = vunpack.c.l.b16 %v162
  %v387 = vunpack.c.l.b16 %v163
  %v388 = vunpack.c.l.b16 %v164
  %v389 = vunpack.c.l.b16 %v165
  %v390 = vunpack.c.l.b16 %v166
  %v391 = vunpack.c.l.b16 %v167
  %v392 = vunpack.c.l.b16 %v168
  %v393 = vunpack.c.l.b16 %v169
  %v394 = vunpack.c.l.b16 %v170
  %v395 = vunpack.c.l.b16 %v171
  %v396 = vunpack.c.l.b16 %v172
  %v397 = vunpack.c.l.b16 %v173
  %v398 = vunpack.c.l.b16 %v174
  %v399 = vunpack.c.l.b16 %v175
  %v400 = vunpack.c.l.b16 %v176
  %v401 = vunpack.c.l.b16 %v177
  %v402 = vunpack.c.l.b16 %v178
  %v403 = vunpack.c.l.b16 %v179
  %v404 = vunpack.c.l.b16 %v180
  %v405 = vunpack.c.l.b16 %v181
  %v406 = vunpack.c.l.b16 %v182
  %v407 = vunpack.c.l.b16 %v183
  %v408 = vunpack.c.l.b16 %v184
  %v409 = vunpack.c.l.b16 %v185
  %v410 = vunpack.c.l.b16 %v186
  %v411 = vunpack.c.l.b16 %v187
  %v412 = vunpack.c.l.b16 %v188
  %v413 = vunpack.c.l.b16 %v189
  %v414 = vunpack.c.l.b16 %v190
  %v415 = vunpack.c.l.b16 %v191
  %v416 = vpack.c.b16 %v369, %v368
  %v417 = vpack.c.b16 %v371, %v370
  %v418 = vpack.c.b16 %v373, %v372
  %v419 = vpack.c.b16 %v375, %v374
  %v420 = vpack.c.b16 %v377, %v376
  %v421 = vpack.c.b16 %v379, %v378
  %v422 = vpack.c.b16 %v381, %v380
  %v423 = vpack.c.b16 %v383, %v382
  %v424 = vpack.c.b16 %v385, %v384
  %v425 = vpack.c.b16 %v387, %v386
  %v426 = vpack.c.b16 %v389, %v388
  %v427 = vpack.c.b16 %v391, %v390
  %v428 = vpack.c.b16 %v393, %v392
  %v429 = vpack.c.b16 %v395, %v394
  %v430 = vpack.c.b16 %v397, %v396
  %v431 = vpack.c.b16 %v399, %v398
  %v432 = vpack.c.b16 %v401, %v400
  %v433 = vpack.c.b16 %v403, %v402
  %v434 = vpack.c.b16 %v405, %v404
  %v435 = vpack.c.b16 %v407, %v406
  %v436 = vpack.c.b16 %v409, %v408
  %v437 = vpack.c.b16 %v411, %v410
  %v438 = vpack.c.b16 %v413, %v412
  %v439 = vpack.c.b16 %v415, %v414
  %464 = vmatprep.subr.bf16.mxu0 0
  %465 = vmatpush1.bf16.msra.mxu0 %v416
  %466 = vmatprep.subr.bf16.mxu0 0
  %467 = vmatpush1.bf16.msra.mxu0 %v417
  %468 = vmatprep.subr.bf16.mxu0 0
  %469 = vmatpush1.bf16.msra.mxu0 %v418
  %470 = vmatprep.subr.bf16.mxu0 0
  %471 = vmatpush1.bf16.msra.mxu0 %v419
  %472 = vmatprep.subr.bf16.mxu0 0
  %473 = vmatpush1.bf16.msra.mxu0 %v420
  %474 = vmatprep.subr.bf16.mxu0 0
  %475 = vmatpush1.bf16.msra.mxu0 %v421
  %476 = vmatprep.subr.bf16.mxu0 0
  %477 = vmatpush1.bf16.msra.mxu0 %v422
  %478 = vmatprep.subr.bf16.mxu0 0
  %479 = vmatpush1.bf16.msra.mxu0 %v423
  %480 = vmatprep.subr.bf16.mxu0 0
  %481 = vmatpush1.bf16.msra.mxu0 %v424
  %482 = vmatprep.subr.bf16.mxu0 0
  %483 = vmatpush1.bf16.msra.mxu0 %v425
  %484 = vmatprep.subr.bf16.mxu0 0
  %485 = vmatpush1.bf16.msra.mxu0 %v426
  %486 = vmatprep.subr.bf16.mxu0 0
  %487 = vmatpush1.bf16.msra.mxu0 %v427
  %488 = vmatprep.subr.bf16.mxu0 0
  %489 = vmatpush1.bf16.msra.mxu0 %v428
  %490 = vmatprep.subr.bf16.mxu0 0
  %491 = vmatpush1.bf16.msra.mxu0 %v429
  %492 = vmatprep.subr.bf16.mxu0 0
  %493 = vmatpush1.bf16.msra.mxu0 %v430
  %494 = vmatprep.subr.bf16.mxu0 0
  %495 = vmatpush1.bf16.msra.mxu0 %v431
  %496 = vmatprep.mubr.bf16.mxu0 %v273
  %497 = vmatmul.mubr.bf16.gmra.mrb[0].mxu0 %v272
  %v498 = vpop.f32.mrb[0].mxu0
  %v499 = vadd.f32 0.0, %v498
  %v500 = vpop.f32.mrb[0].mxu0
  %v501 = vpop.f32.mrb[0].mxu0
  %v502 = vadd.f32 0.0, %v501
  %v503 = vpop.f32.mrb[0].mxu0
  %504 = vmatprep.mubr.bf16.mxu0 %v276
  %505 = vmatmul.mubr.bf16.gmra.mrb[0].mxu0 %v275
  %v506 = vpop.f32.mrb[0].mxu0
  %v507 = vadd.f32 0.0, %v506
  %v508 = vpop.f32.mrb[0].mxu0
  %v509 = vpop.f32.mrb[0].mxu0
  %v510 = vadd.f32 0.0, %v509
  %v511 = vpop.f32.mrb[0].mxu0
  %512 = vmatprep.mubr.bf16.mxu0 %v279
  %513 = vmatmul.mubr.bf16.gmra.mrb[0].mxu0 %v278
  %v514 = vpop.f32.mrb[0].mxu0
  %v515 = vadd.f32 0.0, %v514
  %v516 = vpop.f32.mrb[0].mxu0
  %v517 = vpop.f32.mrb[0].mxu0
  %v518 = vadd.f32 0.0, %v517
  %v519 = vpop.f32.mrb[0].mxu0
  %520 = vmatprep.mubr.bf16.mxu0 %v282
  %521 = vmatmul.mubr.bf16.gmra.mrb[0].mxu0 %v281
  %v522 = vpop.f32.mrb[0].mxu0
  %v523 = vadd.f32 0.0, %v522
  %v524 = vpop.f32.mrb[0].mxu0
  %v525 = vpop.f32.mrb[0].mxu0
  %v526 = vadd.f32 0.0, %v525
  %v527 = vpop.f32.mrb[0].mxu0
  %528 = vmatprep.mubr.bf16.mxu0 %v285
  %529 = vmatmul.mubr.bf16.gmra.mrb[0].mxu0 %v284
  %v530 = vpop.f32.mrb[0].mxu0
  %v531 = vadd.f32 0.0, %v530
  %v532 = vpop.f32.mrb[0].mxu0
  %v533 = vpop.f32.mrb[0].mxu0
  %v534 = vadd.f32 0.0, %v533
  %v535 = vpop.f32.mrb[0].mxu0
  %536 = vmatprep.mubr.bf16.mxu0 %v288
  %537 = vmatmul.mubr.bf16.gmra.mrb[0].mxu0 %v287
  %v538 = vpop.f32.mrb[0].mxu0
  %v539 = vadd.f32 0.0, %v538
  %v540 = vpop.f32.mrb[0].mxu0
  %v541 = vpop.f32.mrb[0].mxu0
  %v542 = vadd.f32 0.0, %v541
  %v543 = vpop.f32.mrb[0].mxu0
  %544 = vmatprep.mubr.bf16.mxu0 %v291
  %545 = vmatmul.mubr.bf16.gmra.mrb[0].mxu0 %v290
  %v546 = vpop.f32.mrb[0].mxu0
  %v547 = vadd.f32 0.0, %v546
  %v548 = vpop.f32.mrb[0].mxu0
  %v549 = vpop.f32.mrb[0].mxu0
  %v550 = vadd.f32 0.0, %v549
  %v551 = vpop.f32.mrb[0].mxu0
  %552 = vmatprep.mubr.bf16.mxu0 %v294
  %553 = vmatmul.mubr.bf16.gmra.mrb[0].mxu0 %v293
  %v554 = vpop.f32.mrb[0].mxu0
  %v555 = vadd.f32 0.0, %v554
  %v556 = vpop.f32.mrb[0].mxu0
  %v557 = vpop.f32.mrb[0].mxu0
  %v558 = vadd.f32 0.0, %v557
  %v559 = vpop.f32.mrb[0].mxu0
  %560 = vdwg.mxu0
  %561 = vmatprep.subr.bf16.mxu0 0
  %562 = vmatpush1.bf16.msra.mxu0 %v432
  %563 = vmatprep.subr.bf16.mxu0 0
  %564 = vmatpush1.bf16.msra.mxu0 %v433
  %565 = vmatprep.subr.bf16.mxu0 0
  %566 = vmatpush1.bf16.msra.mxu0 %v434
  %567 = vmatprep.subr.bf16.mxu0 0
  %568 = vmatpush1.bf16.msra.mxu0 %v435
  %569 = vmatprep.subr.bf16.mxu0 0
  %570 = vmatpush1.bf16.msra.mxu0 %v436
  %571 = vmatprep.subr.bf16.mxu0 0
  %572 = vmatpush1.bf16.msra.mxu0 %v437
  %573 = vmatprep.subr.bf16.mxu0 0
  %574 = vmatpush1.bf16.msra.mxu0 %v438
  %575 = vmatprep.subr.bf16.mxu0 0
  %576 = vmatpush1.bf16.msra.mxu0 %v439
  %577 = vmatprep.subr.bf16.mxu0 0
  %578 = vmatpush1.bf16.msra.mxu0 0
  %579 = vmatprep.subr.bf16.mxu0 0
  %580 = vmatpush1.bf16.msra.mxu0 0
  %581 = vmatprep.subr.bf16.mxu0 0
  %582 = vmatpush1.bf16.msra.mxu0 0
  %583 = vmatprep.subr.bf16.mxu0 0
  %584 = vmatpush1.bf16.msra.mxu0 0
  %585 = vmatprep.subr.bf16.mxu0 0
  %586 = vmatpush1.bf16.msra.mxu0 0
  %587 = vmatprep.subr.bf16.mxu0 0
  %588 = vmatpush1.bf16.msra.mxu0 0
  %589 = vmatprep.subr.bf16.mxu0 0
  %590 = vmatpush1.bf16.msra.mxu0 0
  %591 = vmatprep.subr.bf16.mxu0 0
  %592 = vmatpush1.bf16.msra.mxu0 0
  %593 = vmatprep.mubr.bf16.mxu0 0
  %594 = vmatmul.mubr.bf16.gmra.mrb[0].mxu0 %v274
  %v595 = vpop.f32.mrb[0].mxu0
  %v596 = vadd.f32 %v499, %v595
  %v597 = vpop.f32.mrb[0].mxu0
  %v598 = vpop.f32.mrb[0].mxu0
  %v599 = vadd.f32 %v502, %v598
  %v600 = vpop.f32.mrb[0].mxu0
  %601 = vmatprep.mubr.bf16.mxu0 0
  %602 = vmatmul.mubr.bf16.gmra.mrb[0].mxu0 %v277
  %v603 = vpop.f32.mrb[0].mxu0
  %v604 = vadd.f32 %v507, %v603
  %v605 = vpop.f32.mrb[0].mxu0
  %v606 = vpop.f32.mrb[0].mxu0
  %v607 = vadd.f32 %v510, %v606
  %v608 = vpop.f32.mrb[0].mxu0
  %609 = vmatprep.mubr.bf16.mxu0 0
  %610 = vmatmul.mubr.bf16.gmra.mrb[0].mxu0 %v280
  %v611 = vpop.f32.mrb[0].mxu0
  %v612 = vadd.f32 %v515, %v611
  %v613 = vpop.f32.mrb[0].mxu0
  %v614 = vpop.f32.mrb[0].mxu0
  %v615 = vadd.f32 %v518, %v614
  %v616 = vpop.f32.mrb[0].mxu0
  %617 = vmatprep.mubr.bf16.mxu0 0
  %618 = vmatmul.mubr.bf16.gmra.mrb[0].mxu0 %v283
  %v619 = vpop.f32.mrb[0].mxu0
  %v620 = vadd.f32 %v523, %v619
  %v621 = vpop.f32.mrb[0].mxu0
  %v622 = vpop.f32.mrb[0].mxu0
  %v623 = vadd.f32 %v526, %v622
  %v624 = vpop.f32.mrb[0].mxu0
  %625 = vmatprep.mubr.bf16.mxu0 0
  %626 = vmatmul.mubr.bf16.gmra.mrb[0].mxu0 %v286
  %v627 = vpop.f32.mrb[0].mxu0
  %v628 = vadd.f32 %v531, %v627
  %v629 = vpop.f32.mrb[0].mxu0
  %v630 = vpop.f32.mrb[0].mxu0
  %v631 = vadd.f32 %v534, %v630
  %v632 = vpop.f32.mrb[0].mxu0
  %633 = vmatprep.mubr.bf16.mxu0 0
  %634 = vmatmul.mubr.bf16.gmra.mrb[0].mxu0 %v289
  %v635 = vpop.f32.mrb[0].mxu0
  %v636 = vadd.f32 %v539, %v635
  %v637 = vpop.f32.mrb[0].mxu0
  %v638 = vpop.f32.mrb[0].mxu0
  %v639 = vadd.f32 %v542, %v638
  %v640 = vpop.f32.mrb[0].mxu0
  %641 = vmatprep.mubr.bf16.mxu0 0
  %642 = vmatmul.mubr.bf16.gmra.mrb[0].mxu0 %v292
  %v643 = vpop.f32.mrb[0].mxu0
  %v644 = vadd.f32 %v547, %v643
  %v645 = vpop.f32.mrb[0].mxu0
  %v646 = vpop.f32.mrb[0].mxu0
  %v647 = vadd.f32 %v550, %v646
  %v648 = vpop.f32.mrb[0].mxu0
  %649 = vmatprep.mubr.bf16.mxu0 0
  %650 = vmatmul.mubr.bf16.gmra.mrb[0].mxu0 %v295
  %v651 = vpop.f32.mrb[0].mxu0
  %v652 = vadd.f32 %v555, %v651
  %v653 = vpop.f32.mrb[0].mxu0
  %v654 = vpop.f32.mrb[0].mxu0
  %v655 = vadd.f32 %v558, %v654
  %v656 = vpop.f32.mrb[0].mxu0
  %657 = vdwg.mxu0
  %v690 = vunpack.c.l.b16 %v30
  %v691 = vunpack.c.h.b16 %v30
  %v692 = vunpack.c.l.b16 %v31
  %v693 = vunpack.c.l.b16 %v32
  %v694 = vunpack.c.h.b16 %v32
  %v695 = vunpack.c.l.b16 %v33
  %v696 = vunpack.c.l.b16 %v34
  %v697 = vunpack.c.h.b16 %v34
  %v698 = vunpack.c.l.b16 %v35
  %v699 = vunpack.c.l.b16 %v36
  %v700 = vunpack.c.h.b16 %v36
  %v701 = vunpack.c.l.b16 %v37
  %v702 = vunpack.c.l.b16 %v38
  %v703 = vunpack.c.h.b16 %v38
  %v704 = vunpack.c.l.b16 %v39
  %v705 = vunpack.c.l.b16 %v40
  %v706 = vunpack.c.h.b16 %v40
  %v707 = vunpack.c.l.b16 %v41
  %v708 = vunpack.c.l.b16 %v42
  %v709 = vunpack.c.h.b16 %v42
  %v710 = vunpack.c.l.b16 %v43
  %v711 = vunpack.c.l.b16 %v44
  %v712 = vunpack.c.h.b16 %v44
  %v713 = vunpack.c.l.b16 %v45
  %v714 = vunpack.c.l.b16 %v46
  %v715 = vunpack.c.h.b16 %v46
  %v716 = vunpack.c.l.b16 %v47
  %v717 = vunpack.c.l.b16 %v48
  %v718 = vunpack.c.h.b16 %v48
  %v719 = vunpack.c.l.b16 %v49
  %v720 = vunpack.c.l.b16 %v50
  %v721 = vunpack.c.h.b16 %v50
  %v722 = vunpack.c.l.b16 %v51
  %v723 = vunpack.c.l.b16 %v52
  %v724 = vunpack.c.h.b16 %v52
  %v725 = vunpack.c.l.b16 %v53
  %v726 = vunpack.c.l.b16 %v54
  %v727 = vunpack.c.h.b16 %v54
  %v728 = vunpack.c.l.b16 %v55
  %v729 = vunpack.c.l.b16 %v56
  %v730 = vunpack.c.h.b16 %v56
  %v731 = vunpack.c.l.b16 %v57
  %v732 = vunpack.c.l.b16 %v58
  %v733 = vunpack.c.h.b16 %v58
  %v734 = vunpack.c.l.b16 %v59
  %v735 = vunpack.c.l.b16 %v60
  %v736 = vunpack.c.h.b16 %v60
  %v737 = vunpack.c.l.b16 %v61
  %v738 = vpack.c.b16 %v693, %v690
  %v739 = vpack.c.b16 %v694, %v691
  %v740 = vpack.c.b16 %v695, %v692
  %v741 = vpack.c.b16 %v699, %v696
  %v742 = vpack.c.b16 %v700, %v697
  %v743 = vpack.c.b16 %v701, %v698
  %v744 = vpack.c.b16 %v705, %v702
  %v745 = vpack.c.b16 %v706, %v703
  %v746 = vpack.c.b16 %v707, %v704
  %v747 = vpack.c.b16 %v711, %v708
  %v748 = vpack.c.b16 %v712, %v709
  %v749 = vpack.c.b16 %v713, %v710
  %v750 = vpack.c.b16 %v717, %v714
  %v751 = vpack.c.b16 %v718, %v715
  %v752 = vpack.c.b16 %v719, %v716
  %v753 = vpack.c.b16 %v723, %v720
  %v754 = vpack.c.b16 %v724, %v721
  %v755 = vpack.c.b16 %v725, %v722
  %v756 = vpack.c.b16 %v729, %v726
  %v757 = vpack.c.b16 %v730, %v727
  %v758 = vpack.c.b16 %v731, %v728
  %v759 = vpack.c.b16 %v735, %v732
  %v760 = vpack.c.b16 %v736, %v733
  %v761 = vpack.c.b16 %v737, %v734
  %v834 = vunpack.c.l.b16 %v62
  %v835 = vunpack.c.l.b16 %v63
  %v836 = vunpack.c.l.b16 %v64
  %v837 = vunpack.c.l.b16 %v65
  %v838 = vunpack.c.l.b16 %v66
  %v839 = vunpack.c.l.b16 %v67
  %v840 = vunpack.c.l.b16 %v68
  %v841 = vunpack.c.l.b16 %v69
  %v842 = vunpack.c.l.b16 %v70
  %v843 = vunpack.c.l.b16 %v71
  %v844 = vunpack.c.l.b16 %v72
  %v845 = vunpack.c.l.b16 %v73
  %v846 = vunpack.c.l.b16 %v74
  %v847 = vunpack.c.l.b16 %v75
  %v848 = vunpack.c.l.b16 %v76
  %v849 = vunpack.c.l.b16 %v77
  %v850 = vunpack.c.l.b16 %v78
  %v851 = vunpack.c.l.b16 %v79
  %v852 = vunpack.c.l.b16 %v80
  %v853 = vunpack.c.l.b16 %v81
  %v854 = vunpack.c.l.b16 %v82
  %v855 = vunpack.c.l.b16 %v83
  %v856 = vunpack.c.l.b16 %v84
  %v857 = vunpack.c.l.b16 %v85
  %v858 = vunpack.c.l.b16 %v86
  %v859 = vunpack.c.l.b16 %v87
  %v860 = vunpack.c.l.b16 %v88
  %v861 = vunpack.c.l.b16 %v89
  %v862 = vunpack.c.l.b16 %v90
  %v863 = vunpack.c.l.b16 %v91
  %v864 = vunpack.c.l.b16 %v92
  %v865 = vunpack.c.l.b16 %v93
  %v866 = vunpack.c.l.b16 %v94
  %v867 = vunpack.c.l.b16 %v95
  %v868 = vunpack.c.l.b16 %v96
  %v869 = vunpack.c.l.b16 %v97
  %v870 = vunpack.c.l.b16 %v98
  %v871 = vunpack.c.l.b16 %v99
  %v872 = vunpack.c.l.b16 %v100
  %v873 = vunpack.c.l.b16 %v101
  %v874 = vunpack.c.l.b16 %v102
  %v875 = vunpack.c.l.b16 %v103
  %v876 = vunpack.c.l.b16 %v104
  %v877 = vunpack.c.l.b16 %v105
  %v878 = vunpack.c.l.b16 %v106
  %v879 = vunpack.c.l.b16 %v107
  %v880 = vunpack.c.l.b16 %v108
  %v881 = vunpack.c.l.b16 %v109
  %v882 = vpack.c.b16 %v835, %v834
  %v883 = vpack.c.b16 %v837, %v836
  %v884 = vpack.c.b16 %v839, %v838
  %v885 = vpack.c.b16 %v841, %v840
  %v886 = vpack.c.b16 %v843, %v842
  %v887 = vpack.c.b16 %v845, %v844
  %v888 = vpack.c.b16 %v847, %v846
  %v889 = vpack.c.b16 %v849, %v848
  %v890 = vpack.c.b16 %v851, %v850
  %v891 = vpack.c.b16 %v853, %v852
  %v892 = vpack.c.b16 %v855, %v854
  %v893 = vpack.c.b16 %v857, %v856
  %v894 = vpack.c.b16 %v859, %v858
  %v895 = vpack.c.b16 %v861, %v860
  %v896 = vpack.c.b16 %v863, %v862
  %v897 = vpack.c.b16 %v865, %v864
  %v898 = vpack.c.b16 %v867, %v866
  %v899 = vpack.c.b16 %v869, %v868
  %v900 = vpack.c.b16 %v871, %v870
  %v901 = vpack.c.b16 %v873, %v872
  %v902 = vpack.c.b16 %v875, %v874
  %v903 = vpack.c.b16 %v877, %v876
  %v904 = vpack.c.b16 %v879, %v878
  %v905 = vpack.c.b16 %v881, %v880
  %930 = vmatprep.subr.bf16.mxu0 0
  %931 = vmatpush1.bf16.msra.mxu0 %v882
  %932 = vmatprep.subr.bf16.mxu0 0
  %933 = vmatpush1.bf16.msra.mxu0 %v883
  %934 = vmatprep.subr.bf16.mxu0 0
  %935 = vmatpush1.bf16.msra.mxu0 %v884
  %936 = vmatprep.subr.bf16.mxu0 0
  %937 = vmatpush1.bf16.msra.mxu0 %v885
  %938 = vmatprep.subr.bf16.mxu0 0
  %939 = vmatpush1.bf16.msra.mxu0 %v886
  %940 = vmatprep.subr.bf16.mxu0 0
  %941 = vmatpush1.bf16.msra.mxu0 %v887
  %942 = vmatprep.subr.bf16.mxu0 0
  %943 = vmatpush1.bf16.msra.mxu0 %v888
  %944 = vmatprep.subr.bf16.mxu0 0
  %945 = vmatpush1.bf16.msra.mxu0 %v889
  %946 = vmatprep.subr.bf16.mxu0 0
  %947 = vmatpush1.bf16.msra.mxu0 %v890
  %948 = vmatprep.subr.bf16.mxu0 0
  %949 = vmatpush1.bf16.msra.mxu0 %v891
  %950 = vmatprep.subr.bf16.mxu0 0
  %951 = vmatpush1.bf16.msra.mxu0 %v892
  %952 = vmatprep.subr.bf16.mxu0 0
  %953 = vmatpush1.bf16.msra.mxu0 %v893
  %954 = vmatprep.subr.bf16.mxu0 0
  %955 = vmatpush1.bf16.msra.mxu0 %v894
  %956 = vmatprep.subr.bf16.mxu0 0
  %957 = vmatpush1.bf16.msra.mxu0 %v895
  %958 = vmatprep.subr.bf16.mxu0 0
  %959 = vmatpush1.bf16.msra.mxu0 %v896
  %960 = vmatprep.subr.bf16.mxu0 0
  %961 = vmatpush1.bf16.msra.mxu0 %v897
  %962 = vmatprep.mubr.bf16.mxu0 %v739
  %963 = vmatmul.mubr.bf16.gmra.mrb[0].mxu0 %v738
  %v964 = vpop.f32.mrb[0].mxu0
  %v965 = vadd.f32 %v596, %v964
  %v966 = vpop.f32.mrb[0].mxu0
  %v967 = vpop.f32.mrb[0].mxu0
  %v968 = vadd.f32 %v599, %v967
  %v969 = vpop.f32.mrb[0].mxu0
  %970 = vmatprep.mubr.bf16.mxu0 %v742
  %971 = vmatmul.mubr.bf16.gmra.mrb[0].mxu0 %v741
  %v972 = vpop.f32.mrb[0].mxu0
  %v973 = vadd.f32 %v604, %v972
  %v974 = vpop.f32.mrb[0].mxu0
  %v975 = vpop.f32.mrb[0].mxu0
  %v976 = vadd.f32 %v607, %v975
  %v977 = vpop.f32.mrb[0].mxu0
  %978 = vmatprep.mubr.bf16.mxu0 %v745
  %979 = vmatmul.mubr.bf16.gmra.mrb[0].mxu0 %v744
  %v980 = vpop.f32.mrb[0].mxu0
  %v981 = vadd.f32 %v612, %v980
  %v982 = vpop.f32.mrb[0].mxu0
  %v983 = vpop.f32.mrb[0].mxu0
  %v984 = vadd.f32 %v615, %v983
  %v985 = vpop.f32.mrb[0].mxu0
  %986 = vmatprep.mubr.bf16.mxu0 %v748
  %987 = vmatmul.mubr.bf16.gmra.mrb[0].mxu0 %v747
  %v988 = vpop.f32.mrb[0].mxu0
  %v989 = vadd.f32 %v620, %v988
  %v990 = vpop.f32.mrb[0].mxu0
  %v991 = vpop.f32.mrb[0].mxu0
  %v992 = vadd.f32 %v623, %v991
  %v993 = vpop.f32.mrb[0].mxu0
  %994 = vmatprep.mubr.bf16.mxu0 %v751
  %995 = vmatmul.mubr.bf16.gmra.mrb[0].mxu0 %v750
  %v996 = vpop.f32.mrb[0].mxu0
  %v997 = vadd.f32 %v628, %v996
  %v998 = vpop.f32.mrb[0].mxu0
  %v999 = vpop.f32.mrb[0].mxu0
  %v1000 = vadd.f32 %v631, %v999
  %v1001 = vpop.f32.mrb[0].mxu0
  %1002 = vmatprep.mubr.bf16.mxu0 %v754
  %1003 = vmatmul.mubr.bf16.gmra.mrb[0].mxu0 %v753
  %v1004 = vpop.f32.mrb[0].mxu0
  %v1005 = vadd.f32 %v636, %v1004
  %v1006 = vpop.f32.mrb[0].mxu0
  %v1007 = vpop.f32.mrb[0].mxu0
  %v1008 = vadd.f32 %v639, %v1007
  %v1009 = vpop.f32.mrb[0].mxu0
  %1010 = vmatprep.mubr.bf16.mxu0 %v757
  %1011 = vmatmul.mubr.bf16.gmra.mrb[0].mxu0 %v756
  %v1012 = vpop.f32.mrb[0].mxu0
  %v1013 = vadd.f32 %v644, %v1012
  %v1014 = vpop.f32.mrb[0].mxu0
  %v1015 = vpop.f32.mrb[0].mxu0
  %v1016 = vadd.f32 %v647, %v1015
  %v1017 = vpop.f32.mrb[0].mxu0
  %1018 = vmatprep.mubr.bf16.mxu0 %v760
  %1019 = vmatmul.mubr.bf16.gmra.mrb[0].mxu0 %v759
  %v1020 = vpop.f32.mrb[0].mxu0
  %v1021 = vadd.f32 %v652, %v1020
  %v1022 = vpop.f32.mrb[0].mxu0
  %v1023 = vpop.f32.mrb[0].mxu0
  %v1024 = vadd.f32 %v655, %v1023
  %v1025 = vpop.f32.mrb[0].mxu0
  %1026 = vdwg.mxu0
  %1027 = vmatprep.subr.bf16.mxu0 0
  %1028 = vmatpush1.bf16.msra.mxu0 %v898
  %1029 = vmatprep.subr.bf16.mxu0 0
  %1030 = vmatpush1.bf16.msra.mxu0 %v899
  %1031 = vmatprep.subr.bf16.mxu0 0
  %1032 = vmatpush1.bf16.msra.mxu0 %v900
  %1033 = vmatprep.subr.bf16.mxu0 0
  %1034 = vmatpush1.bf16.msra.mxu0 %v901
  %1035 = vmatprep.subr.bf16.mxu0 0
  %1036 = vmatpush1.bf16.msra.mxu0 %v902
  %1037 = vmatprep.subr.bf16.mxu0 0
  %1038 = vmatpush1.bf16.msra.mxu0 %v903
  %1039 = vmatprep.subr.bf16.mxu0 0
  %1040 = vmatpush1.bf16.msra.mxu0 %v904
  %1041 = vmatprep.subr.bf16.mxu0 0
  %1042 = vmatpush1.bf16.msra.mxu0 %v905
  %1043 = vmatprep.subr.bf16.mxu0 0
  %1044 = vmatpush1.bf16.msra.mxu0 0
  %1045 = vmatprep.subr.bf16.mxu0 0
  %1046 = vmatpush1.bf16.msra.mxu0 0
  %1047 = vmatprep.subr.bf16.mxu0 0
  %1048 = vmatpush1.bf16.msra.mxu0 0
  %1049 = vmatprep.subr.bf16.mxu0 0
  %1050 = vmatpush1.bf16.msra.mxu0 0
  %1051 = vmatprep.subr.bf16.mxu0 0
  %1052 = vmatpush1.bf16.msra.mxu0 0
  %1053 = vmatprep.subr.bf16.mxu0 0
  %1054 = vmatpush1.bf16.msra.mxu0 0
  %1055 = vmatprep.subr.bf16.mxu0 0
  %1056 = vmatpush1.bf16.msra.mxu0 0
  %1057 = vmatprep.subr.bf16.mxu0 0
  %1058 = vmatpush1.bf16.msra.mxu0 0
  %1059 = vmatprep.mubr.bf16.mxu0 0
  %1060 = vmatmul.mubr.bf16.gmra.mrb[0].mxu0 %v740
  %v1061 = vpop.f32.mrb[0].mxu0
  %v1062 = vadd.f32 %v965, %v1061
  %v1063 = vpop.f32.mrb[0].mxu0
  %v1064 = vpop.f32.mrb[0].mxu0
  %v1065 = vadd.f32 %v968, %v1064
  %v1066 = vpop.f32.mrb[0].mxu0
  %1067 = vmatprep.mubr.bf16.mxu0 0
  %1068 = vmatmul.mubr.bf16.gmra.mrb[0].mxu0 %v743
  %v1069 = vpop.f32.mrb[0].mxu0
  %v1070 = vadd.f32 %v973, %v1069
  %v1071 = vpop.f32.mrb[0].mxu0
  %v1072 = vpop.f32.mrb[0].mxu0
  %v1073 = vadd.f32 %v976, %v1072
  %v1074 = vpop.f32.mrb[0].mxu0
  %1075 = vmatprep.mubr.bf16.mxu0 0
  %1076 = vmatmul.mubr.bf16.gmra.mrb[0].mxu0 %v746
  %v1077 = vpop.f32.mrb[0].mxu0
  %v1078 = vadd.f32 %v981, %v1077
  %v1079 = vpop.f32.mrb[0].mxu0
  %v1080 = vpop.f32.mrb[0].mxu0
  %v1081 = vadd.f32 %v984, %v1080
  %v1082 = vpop.f32.mrb[0].mxu0
  %1083 = vmatprep.mubr.bf16.mxu0 0
  %1084 = vmatmul.mubr.bf16.gmra.mrb[0].mxu0 %v749
  %v1085 = vpop.f32.mrb[0].mxu0
  %v1086 = vadd.f32 %v989, %v1085
  %v1087 = vpop.f32.mrb[0].mxu0
  %v1088 = vpop.f32.mrb[0].mxu0
  %v1089 = vadd.f32 %v992, %v1088
  %v1090 = vpop.f32.mrb[0].mxu0
  %1091 = vmatprep.mubr.bf16.mxu0 0
  %1092 = vmatmul.mubr.bf16.gmra.mrb[0].mxu0 %v752
  %v1093 = vpop.f32.mrb[0].mxu0
  %v1094 = vadd.f32 %v997, %v1093
  %v1095 = vpop.f32.mrb[0].mxu0
  %v1096 = vpop.f32.mrb[0].mxu0
  %v1097 = vadd.f32 %v1000, %v1096
  %v1098 = vpop.f32.mrb[0].mxu0
  %1099 = vmatprep.mubr.bf16.mxu0 0
  %1100 = vmatmul.mubr.bf16.gmra.mrb[0].mxu0 %v755
  %v1101 = vpop.f32.mrb[0].mxu0
  %v1102 = vadd.f32 %v1005, %v1101
  %v1103 = vpop.f32.mrb[0].mxu0
  %v1104 = vpop.f32.mrb[0].mxu0
  %v1105 = vadd.f32 %v1008, %v1104
  %v1106 = vpop.f32.mrb[0].mxu0
  %1107 = vmatprep.mubr.bf16.mxu0 0
  %1108 = vmatmul.mubr.bf16.gmra.mrb[0].mxu0 %v758
  %v1109 = vpop.f32.mrb[0].mxu0
  %v1110 = vadd.f32 %v1013, %v1109
  %v1111 = vpop.f32.mrb[0].mxu0
  %v1112 = vpop.f32.mrb[0].mxu0
  %v1113 = vadd.f32 %v1016, %v1112
  %v1114 = vpop.f32.mrb[0].mxu0
  %1115 = vmatprep.mubr.bf16.mxu0 0
  %1116 = vmatmul.mubr.bf16.gmra.mrb[0].mxu0 %v761
  %v1117 = vpop.f32.mrb[0].mxu0
  %v1118 = vadd.f32 %v1021, %v1117
  %v1119 = vpop.f32.mrb[0].mxu0
  %v1120 = vpop.f32.mrb[0].mxu0
  %v1121 = vadd.f32 %v1024, %v1120
  %v1122 = vpop.f32.mrb[0].mxu0
  %1123 = vdwg.mxu0
  %s1124 = scalar_lea.vmem %s0, 24
  %v1125 = vld [vmem:[%s1124] sm:$0xff]
  %v1126 = vld [vmem:[%s1124 + $0x8] sm:$0xf]
  %v1127 = vld [vmem:[%s1124 + $0xc] sm:$0xff]
  %v1128 = vld [vmem:[%s1124 + $0x14] sm:$0xf]
  %v1129 = vld [vmem:[%s1124 + $0x18] sm:$0xff]
  %v1130 = vld [vmem:[%s1124 + $0x20] sm:$0xf]
  %v1131 = vld [vmem:[%s1124 + $0x24] sm:$0xff]
  %v1132 = vld [vmem:[%s1124 + $0x2c] sm:$0xf]
  %v1133 = vld [vmem:[%s1124 + $0x30] sm:$0xff]
  %v1134 = vld [vmem:[%s1124 + $0x38] sm:$0xf]
  %v1135 = vld [vmem:[%s1124 + $0x3c] sm:$0xff]
  %v1136 = vld [vmem:[%s1124 + $0x44] sm:$0xf]
  %v1137 = vld [vmem:[%s1124 + $0x48] sm:$0xff]
  %v1138 = vld [vmem:[%s1124 + $0x50] sm:$0xf]
  %v1139 = vld [vmem:[%s1124 + $0x54] sm:$0xff]
  %v1140 = vld [vmem:[%s1124 + $0x5c] sm:$0xf]
  %v1141 = vld [vmem:[%s1124 + $0x78] sm:$0xff]
  %v1142 = vld [vmem:[%s1124 + $0x80] sm:$0xf]
  %v1143 = vld [vmem:[%s1124 + $0x84] sm:$0xff]
  %v1144 = vld [vmem:[%s1124 + $0x8c] sm:$0xf]
  %v1145 = vld [vmem:[%s1124 + $0x90] sm:$0xff]
  %v1146 = vld [vmem:[%s1124 + $0x98] sm:$0xf]
  %v1147 = vld [vmem:[%s1124 + $0x9c] sm:$0xff]
  %v1148 = vld [vmem:[%s1124 + $0xa4] sm:$0xf]
  %v1149 = vld [vmem:[%s1124 + $0xa8] sm:$0xff]
  %v1150 = vld [vmem:[%s1124 + $0xb0] sm:$0xf]
  %v1151 = vld [vmem:[%s1124 + $0xb4] sm:$0xff]
  %v1152 = vld [vmem:[%s1124 + $0xbc] sm:$0xf]
  %v1153 = vld [vmem:[%s1124 + $0xc0] sm:$0xff]
  %v1154 = vld [vmem:[%s1124 + $0xc8] sm:$0xf]
  %v1155 = vld [vmem:[%s1124 + $0xcc] sm:$0xff]
  %v1156 = vld [vmem:[%s1124 + $0xd4] sm:$0xf]
  %s1157 = scalar_lea.vmem %s1, 384
  %v1158 = vld [vmem:[%s1157] sm:$0xf]
  %v1159 = vld [vmem:[%s1157 + $0x4] sm:$0xf]
  %v1160 = vld [vmem:[%s1157 + $0x8] sm:$0xf]
  %v1161 = vld [vmem:[%s1157 + $0xc] sm:$0xf]
  %v1162 = vld [vmem:[%s1157 + $0x10] sm:$0xf]
  %v1163 = vld [vmem:[%s1157 + $0x14] sm:$0xf]
  %v1164 = vld [vmem:[%s1157 + $0x18] sm:$0xf]
  %v1165 = vld [vmem:[%s1157 + $0x1c] sm:$0xf]
  %v1166 = vld [vmem:[%s1157 + $0x20] sm:$0xf]
  %v1167 = vld [vmem:[%s1157 + $0x24] sm:$0xf]
  %v1168 = vld [vmem:[%s1157 + $0x28] sm:$0xf]
  %v1169 = vld [vmem:[%s1157 + $0x2c] sm:$0xf]
  %v1170 = vld [vmem:[%s1157 + $0x30] sm:$0xf]
  %v1171 = vld [vmem:[%s1157 + $0x34] sm:$0xf]
  %v1172 = vld [vmem:[%s1157 + $0x38] sm:$0xf]
  %v1173 = vld [vmem:[%s1157 + $0x3c] sm:$0xf]
  %v1174 = vld [vmem:[%s1157 + $0x40] sm:$0xf]
  %v1175 = vld [vmem:[%s1157 + $0x44] sm:$0xf]
  %v1176 = vld [vmem:[%s1157 + $0x48] sm:$0xf]
  %v1177 = vld [vmem:[%s1157 + $0x4c] sm:$0xf]
  %v1178 = vld [vmem:[%s1157 + $0x50] sm:$0xf]
  %v1179 = vld [vmem:[%s1157 + $0x54] sm:$0xf]
  %v1180 = vld [vmem:[%s1157 + $0x58] sm:$0xf]
  %v1181 = vld [vmem:[%s1157 + $0x5c] sm:$0xf]
  %v1182 = vld [vmem:[%s1157 + $0x60] sm:$0xf]
  %v1183 = vld [vmem:[%s1157 + $0x64] sm:$0xf]
  %v1184 = vld [vmem:[%s1157 + $0x68] sm:$0xf]
  %v1185 = vld [vmem:[%s1157 + $0x6c] sm:$0xf]
  %v1186 = vld [vmem:[%s1157 + $0x70] sm:$0xf]
  %v1187 = vld [vmem:[%s1157 + $0x74] sm:$0xf]
  %v1188 = vld [vmem:[%s1157 + $0x78] sm:$0xf]
  %v1189 = vld [vmem:[%s1157 + $0x7c] sm:$0xf]
  %v1190 = vld [vmem:[%s1157 + $0x80] sm:$0xf]
  %v1191 = vld [vmem:[%s1157 + $0x84] sm:$0xf]
  %v1192 = vld [vmem:[%s1157 + $0x88] sm:$0xf]
  %v1193 = vld [vmem:[%s1157 + $0x8c] sm:$0xf]
  %v1194 = vld [vmem:[%s1157 + $0x90] sm:$0xf]
  %v1195 = vld [vmem:[%s1157 + $0x94] sm:$0xf]
  %v1196 = vld [vmem:[%s1157 + $0x98] sm:$0xf]
  %v1197 = vld [vmem:[%s1157 + $0x9c] sm:$0xf]
  %v1198 = vld [vmem:[%s1157 + $0xa0] sm:$0xf]
  %v1199 = vld [vmem:[%s1157 + $0xa4] sm:$0xf]
  %v1200 = vld [vmem:[%s1157 + $0xa8] sm:$0xf]
  %v1201 = vld [vmem:[%s1157 + $0xac] sm:$0xf]
  %v1202 = vld [vmem:[%s1157 + $0xb0] sm:$0xf]
  %v1203 = vld [vmem:[%s1157 + $0xb4] sm:$0xf]
  %v1204 = vld [vmem:[%s1157 + $0xb8] sm:$0xf]
  %v1205 = vld [vmem:[%s1157 + $0xbc] sm:$0xf]
  %v1238 = vunpack.c.l.b16 %v1125
  %v1239 = vunpack.c.h.b16 %v1125
  %v1240 = vunpack.c.l.b16 %v1126
  %v1241 = vunpack.c.l.b16 %v1127
  %v1242 = vunpack.c.h.b16 %v1127
  %v1243 = vunpack.c.l.b16 %v1128
  %v1244 = vunpack.c.l.b16 %v1129
  %v1245 = vunpack.c.h.b16 %v1129
  %v1246 = vunpack.c.l.b16 %v1130
  %v1247 = vunpack.c.l.b16 %v1131
  %v1248 = vunpack.c.h.b16 %v1131
  %v1249 = vunpack.c.l.b16 %v1132
  %v1250 = vunpack.c.l.b16 %v1133
  %v1251 = vunpack.c.h.b16 %v1133
  %v1252 = vunpack.c.l.b16 %v1134
  %v1253 = vunpack.c.l.b16 %v1135
  %v1254 = vunpack.c.h.b16 %v1135
  %v1255 = vunpack.c.l.b16 %v1136
  %v1256 = vunpack.c.l.b16 %v1137
  %v1257 = vunpack.c.h.b16 %v1137
  %v1258 = vunpack.c.l.b16 %v1138
  %v1259 = vunpack.c.l.b16 %v1139
  %v1260 = vunpack.c.h.b16 %v1139
  %v1261 = vunpack.c.l.b16 %v1140
  %v1262 = vunpack.c.l.b16 %v1141
  %v1263 = vunpack.c.h.b16 %v1141
  %v1264 = vunpack.c.l.b16 %v1142
  %v1265 = vunpack.c.l.b16 %v1143
  %v1266 = vunpack.c.h.b16 %v1143
  %v1267 = vunpack.c.l.b16 %v1144
  %v1268 = vunpack.c.l.b16 %v1145
  %v1269 = vunpack.c.h.b16 %v1145
  %v1270 = vunpack.c.l.b16 %v1146
  %v1271 = vunpack.c.l.b16 %v1147
  %v1272 = vunpack.c.h.b16 %v1147
  %v1273 = vunpack.c.l.b16 %v1148
  %v1274 = vunpack.c.l.b16 %v1149
  %v1275 = vunpack.c.h.b16 %v1149
  %v1276 = vunpack.c.l.b16 %v1150
  %v1277 = vunpack.c.l.b16 %v1151
  %v1278 = vunpack.c.h.b16 %v1151
  %v1279 = vunpack.c.l.b16 %v1152
  %v1280 = vunpack.c.l.b16 %v1153
  %v1281 = vunpack.c.h.b16 %v1153
  %v1282 = vunpack.c.l.b16 %v1154
  %v1283 = vunpack.c.l.b16 %v1155
  %v1284 = vunpack.c.h.b16 %v1155
  %v1285 = vunpack.c.l.b16 %v1156
  %v1286 = vpack.c.b16 %v1241, %v1238
  %v1287 = vpack.c.b16 %v1242, %v1239
  %v1288 = vpack.c.b16 %v1243, %v1240
  %v1289 = vpack.c.b16 %v1247, %v1244
  %v1290 = vpack.c.b16 %v1248, %v1245
  %v1291 = vpack.c.b16 %v1249, %v1246
  %v1292 = vpack.c.b16 %v1253, %v1250
  %v1293 = vpack.c.b16 %v1254, %v1251
  %v1294 = vpack.c.b16 %v1255, %v1252
  %v1295 = vpack.c.b16 %v1259, %v1256
  %v1296 = vpack.c.b16 %v1260, %v1257
  %v1297 = vpack.c.b16 %v1261, %v1258
  %v1298 = vpack.c.b16 %v1265, %v1262
  %v1299 = vpack.c.b16 %v1266, %v1263
  %v1300 = vpack.c.b16 %v1267, %v1264
  %v1301 = vpack.c.b16 %v1271, %v1268
  %v1302 = vpack.c.b16 %v1272, %v1269
  %v1303 = vpack.c.b16 %v1273, %v1270
  %v1304 = vpack.c.b16 %v1277, %v1274
  %v1305 = vpack.c.b16 %v1278, %v1275
  %v1306 = vpack.c.b16 %v1279, %v1276
  %v1307 = vpack.c.b16 %v1283, %v1280
  %v1308 = vpack.c.b16 %v1284, %v1281
  %v1309 = vpack.c.b16 %v1285, %v1282
  %v1382 = vunpack.c.l.b16 %v1158
  %v1383 = vunpack.c.l.b16 %v1159
  %v1384 = vunpack.c.l.b16 %v1160
  %v1385 = vunpack.c.l.b16 %v1161
  %v1386 = vunpack.c.l.b16 %v1162
  %v1387 = vunpack.c.l.b16 %v1163
  %v1388 = vunpack.c.l.b16 %v1164
  %v1389 = vunpack.c.l.b16 %v1165
  %v1390 = vunpack.c.l.b16 %v1166
  %v1391 = vunpack.c.l.b16 %v1167
  %v1392 = vunpack.c.l.b16 %v1168
  %v1393 = vunpack.c.l.b16 %v1169
  %v1394 = vunpack.c.l.b16 %v1170
  %v1395 = vunpack.c.l.b16 %v1171
  %v1396 = vunpack.c.l.b16 %v1172
  %v1397 = vunpack.c.l.b16 %v1173
  %v1398 = vunpack.c.l.b16 %v1174
  %v1399 = vunpack.c.l.b16 %v1175
  %v1400 = vunpack.c.l.b16 %v1176
  %v1401 = vunpack.c.l.b16 %v1177
  %v1402 = vunpack.c.l.b16 %v1178
  %v1403 = vunpack.c.l.b16 %v1179
  %v1404 = vunpack.c.l.b16 %v1180
  %v1405 = vunpack.c.l.b16 %v1181
  %v1406 = vunpack.c.l.b16 %v1182
  %v1407 = vunpack.c.l.b16 %v1183
  %v1408 = vunpack.c.l.b16 %v1184
  %v1409 = vunpack.c.l.b16 %v1185
  %v1410 = vunpack.c.l.b16 %v1186
  %v1411 = vunpack.c.l.b16 %v1187
  %v1412 = vunpack.c.l.b16 %v1188
  %v1413 = vunpack.c.l.b16 %v1189
  %v1414 = vunpack.c.l.b16 %v1190
  %v1415 = vunpack.c.l.b16 %v1191
  %v1416 = vunpack.c.l.b16 %v1192
  %v1417 = vunpack.c.l.b16 %v1193
  %v1418 = vunpack.c.l.b16 %v1194
  %v1419 = vunpack.c.l.b16 %v1195
  %v1420 = vunpack.c.l.b16 %v1196
  %v1421 = vunpack.c.l.b16 %v1197
  %v1422 = vunpack.c.l.b16 %v1198
  %v1423 = vunpack.c.l.b16 %v1199
  %v1424 = vunpack.c.l.b16 %v1200
  %v1425 = vunpack.c.l.b16 %v1201
  %v1426 = vunpack.c.l.b16 %v1202
  %v1427 = vunpack.c.l.b16 %v1203
  %v1428 = vunpack.c.l.b16 %v1204
  %v1429 = vunpack.c.l.b16 %v1205
  %v1430 = vpack.c.b16 %v1383, %v1382
  %v1431 = vpack.c.b16 %v1385, %v1384
  %v1432 = vpack.c.b16 %v1387, %v1386
  %v1433 = vpack.c.b16 %v1389, %v1388
  %v1434 = vpack.c.b16 %v1391, %v1390
  %v1435 = vpack.c.b16 %v1393, %v1392
  %v1436 = vpack.c.b16 %v1395, %v1394
  %v1437 = vpack.c.b16 %v1397, %v1396
  %v1438 = vpack.c.b16 %v1399, %v1398
  %v1439 = vpack.c.b16 %v1401, %v1400
  %v1440 = vpack.c.b16 %v1403, %v1402
  %v1441 = vpack.c.b16 %v1405, %v1404
  %v1442 = vpack.c.b16 %v1407, %v1406
  %v1443 = vpack.c.b16 %v1409, %v1408
  %v1444 = vpack.c.b16 %v1411, %v1410
  %v1445 = vpack.c.b16 %v1413, %v1412
  %v1446 = vpack.c.b16 %v1415, %v1414
  %v1447 = vpack.c.b16 %v1417, %v1416
  %v1448 = vpack.c.b16 %v1419, %v1418
  %v1449 = vpack.c.b16 %v1421, %v1420
  %v1450 = vpack.c.b16 %v1423, %v1422
  %v1451 = vpack.c.b16 %v1425, %v1424
  %v1452 = vpack.c.b16 %v1427, %v1426
  %v1453 = vpack.c.b16 %v1429, %v1428
  %1478 = vmatprep.subr.bf16.mxu0 0
  %1479 = vmatpush1.bf16.msra.mxu0 %v1430
  %1480 = vmatprep.subr.bf16.mxu0 0
  %1481 = vmatpush1.bf16.msra.mxu0 %v1431
  %1482 = vmatprep.subr.bf16.mxu0 0
  %1483 = vmatpush1.bf16.msra.mxu0 %v1432
  %1484 = vmatprep.subr.bf16.mxu0 0
  %1485 = vmatpush1.bf16.msra.mxu0 %v1433
  %1486 = vmatprep.subr.bf16.mxu0 0
  %1487 = vmatpush1.bf16.msra.mxu0 %v1434
  %1488 = vmatprep.subr.bf16.mxu0 0
  %1489 = vmatpush1.bf16.msra.mxu0 %v1435
  %1490 = vmatprep.subr.bf16.mxu0 0
  %1491 = vmatpush1.bf16.msra.mxu0 %v1436
  %1492 = vmatprep.subr.bf16.mxu0 0
  %1493 = vmatpush1.bf16.msra.mxu0 %v1437
  %1494 = vmatprep.subr.bf16.mxu0 0
  %1495 = vmatpush1.bf16.msra.mxu0 %v1438
  %1496 = vmatprep.subr.bf16.mxu0 0
  %1497 = vmatpush1.bf16.msra.mxu0 %v1439
  %1498 = vmatprep.subr.bf16.mxu0 0
  %1499 = vmatpush1.bf16.msra.mxu0 %v1440
  %1500 = vmatprep.subr.bf16.mxu0 0
  %1501 = vmatpush1.bf16.msra.mxu0 %v1441
  %1502 = vmatprep.subr.bf16.mxu0 0
  %1503 = vmatpush1.bf16.msra.mxu0 %v1442
  %1504 = vmatprep.subr.bf16.mxu0 0
  %1505 = vmatpush1.bf16.msra.mxu0 %v1443
  %1506 = vmatprep.subr.bf16.mxu0 0
  %1507 = vmatpush1.bf16.msra.mxu0 %v1444
  %1508 = vmatprep.subr.bf16.mxu0 0
  %1509 = vmatpush1.bf16.msra.mxu0 %v1445
  %1510 = vmatprep.mubr.bf16.mxu0 %v1287
  %1511 = vmatmul.mubr.bf16.gmra.mrb[0].mxu0 %v1286
  %v1512 = vpop.f32.mrb[0].mxu0
  %v1513 = vadd.f32 0.0, %v1512
  %v1514 = vpop.f32.mrb[0].mxu0
  %v1515 = vpop.f32.mrb[0].mxu0
  %v1516 = vadd.f32 0.0, %v1515
  %v1517 = vpop.f32.mrb[0].mxu0
  %1518 = vmatprep.mubr.bf16.mxu0 %v1290
  %1519 = vmatmul.mubr.bf16.gmra.mrb[0].mxu0 %v1289
  %v1520 = vpop.f32.mrb[0].mxu0
  %v1521 = vadd.f32 0.0, %v1520
  %v1522 = vpop.f32.mrb[0].mxu0
  %v1523 = vpop.f32.mrb[0].mxu0
  %v1524 = vadd.f32 0.0, %v1523
  %v1525 = vpop.f32.mrb[0].mxu0
  %1526 = vmatprep.mubr.bf16.mxu0 %v1293
  %1527 = vmatmul.mubr.bf16.gmra.mrb[0].mxu0 %v1292
  %v1528 = vpop.f32.mrb[0].mxu0
  %v1529 = vadd.f32 0.0, %v1528
  %v1530 = vpop.f32.mrb[0].mxu0
  %v1531 = vpop.f32.mrb[0].mxu0
  %v1532 = vadd.f32 0.0, %v1531
  %v1533 = vpop.f32.mrb[0].mxu0
  %1534 = vmatprep.mubr.bf16.mxu0 %v1296
  %1535 = vmatmul.mubr.bf16.gmra.mrb[0].mxu0 %v1295
  %v1536 = vpop.f32.mrb[0].mxu0
  %v1537 = vadd.f32 0.0, %v1536
  %v1538 = vpop.f32.mrb[0].mxu0
  %v1539 = vpop.f32.mrb[0].mxu0
  %v1540 = vadd.f32 0.0, %v1539
  %v1541 = vpop.f32.mrb[0].mxu0
  %1542 = vmatprep.mubr.bf16.mxu0 %v1299
  %1543 = vmatmul.mubr.bf16.gmra.mrb[0].mxu0 %v1298
  %v1544 = vpop.f32.mrb[0].mxu0
  %v1545 = vadd.f32 0.0, %v1544
  %v1546 = vpop.f32.mrb[0].mxu0
  %v1547 = vpop.f32.mrb[0].mxu0
  %v1548 = vadd.f32 0.0, %v1547
  %v1549 = vpop.f32.mrb[0].mxu0
  %1550 = vmatprep.mubr.bf16.mxu0 %v1302
  %1551 = vmatmul.mubr.bf16.gmra.mrb[0].mxu0 %v1301
  %v1552 = vpop.f32.mrb[0].mxu0
  %v1553 = vadd.f32 0.0, %v1552
  %v1554 = vpop.f32.mrb[0].mxu0
  %v1555 = vpop.f32.mrb[0].mxu0
  %v1556 = vadd.f32 0.0, %v1555
  %v1557 = vpop.f32.mrb[0].mxu0
  %1558 = vmatprep.mubr.bf16.mxu0 %v1305
  %1559 = vmatmul.mubr.bf16.gmra.mrb[0].mxu0 %v1304
  %v1560 = vpop.f32.mrb[0].mxu0
  %v1561 = vadd.f32 0.0, %v1560
  %v1562 = vpop.f32.mrb[0].mxu0
  %v1563 = vpop.f32.mrb[0].mxu0
  %v1564 = vadd.f32 0.0, %v1563
  %v1565 = vpop.f32.mrb[0].mxu0
  %1566 = vmatprep.mubr.bf16.mxu0 %v1308
  %1567 = vmatmul.mubr.bf16.gmra.mrb[0].mxu0 %v1307
  %v1568 = vpop.f32.mrb[0].mxu0
  %v1569 = vadd.f32 0.0, %v1568
  %v1570 = vpop.f32.mrb[0].mxu0
  %v1571 = vpop.f32.mrb[0].mxu0
  %v1572 = vadd.f32 0.0, %v1571
  %v1573 = vpop.f32.mrb[0].mxu0
  %1574 = vdwg.mxu0
  %1575 = vmatprep.subr.bf16.mxu0 0
  %1576 = vmatpush1.bf16.msra.mxu0 %v1446
  %1577 = vmatprep.subr.bf16.mxu0 0
  %1578 = vmatpush1.bf16.msra.mxu0 %v1447
  %1579 = vmatprep.subr.bf16.mxu0 0
  %1580 = vmatpush1.bf16.msra.mxu0 %v1448
  %1581 = vmatprep.subr.bf16.mxu0 0
  %1582 = vmatpush1.bf16.msra.mxu0 %v1449
  %1583 = vmatprep.subr.bf16.mxu0 0
  %1584 = vmatpush1.bf16.msra.mxu0 %v1450
  %1585 = vmatprep.subr.bf16.mxu0 0
  %1586 = vmatpush1.bf16.msra.mxu0 %v1451
  %1587 = vmatprep.subr.bf16.mxu0 0
  %1588 = vmatpush1.bf16.msra.mxu0 %v1452
  %1589 = vmatprep.subr.bf16.mxu0 0
  %1590 = vmatpush1.bf16.msra.mxu0 %v1453
  %1591 = vmatprep.subr.bf16.mxu0 0
  %1592 = vmatpush1.bf16.msra.mxu0 0
  %1593 = vmatprep.subr.bf16.mxu0 0
  %1594 = vmatpush1.bf16.msra.mxu0 0
  %1595 = vmatprep.subr.bf16.mxu0 0
  %1596 = vmatpush1.bf16.msra.mxu0 0
  %1597 = vmatprep.subr.bf16.mxu0 0
  %1598 = vmatpush1.bf16.msra.mxu0 0
  %1599 = vmatprep.subr.bf16.mxu0 0
  %1600 = vmatpush1.bf16.msra.mxu0 0
  %1601 = vmatprep.subr.bf16.mxu0 0
  %1602 = vmatpush1.bf16.msra.mxu0 0
  %1603 = vmatprep.subr.bf16.mxu0 0
  %1604 = vmatpush1.bf16.msra.mxu0 0
  %1605 = vmatprep.subr.bf16.mxu0 0
  %1606 = vmatpush1.bf16.msra.mxu0 0
  %1607 = vmatprep.mubr.bf16.mxu0 0
  %1608 = vmatmul.mubr.bf16.gmra.mrb[0].mxu0 %v1288
  %v1609 = vpop.f32.mrb[0].mxu0
  %v1610 = vadd.f32 %v1513, %v1609
  %v1611 = vpop.f32.mrb[0].mxu0
  %v1612 = vpop.f32.mrb[0].mxu0
  %v1613 = vadd.f32 %v1516, %v1612
  %v1614 = vpop.f32.mrb[0].mxu0
  %1615 = vmatprep.mubr.bf16.mxu0 0
  %1616 = vmatmul.mubr.bf16.gmra.mrb[0].mxu0 %v1291
  %v1617 = vpop.f32.mrb[0].mxu0
  %v1618 = vadd.f32 %v1521, %v1617
  %v1619 = vpop.f32.mrb[0].mxu0
  %v1620 = vpop.f32.mrb[0].mxu0
  %v1621 = vadd.f32 %v1524, %v1620
  %v1622 = vpop.f32.mrb[0].mxu0
  %1623 = vmatprep.mubr.bf16.mxu0 0
  %1624 = vmatmul.mubr.bf16.gmra.mrb[0].mxu0 %v1294
  %v1625 = vpop.f32.mrb[0].mxu0
  %v1626 = vadd.f32 %v1529, %v1625
  %v1627 = vpop.f32.mrb[0].mxu0
  %v1628 = vpop.f32.mrb[0].mxu0
  %v1629 = vadd.f32 %v1532, %v1628
  %v1630 = vpop.f32.mrb[0].mxu0
  %1631 = vmatprep.mubr.bf16.mxu0 0
  %1632 = vmatmul.mubr.bf16.gmra.mrb[0].mxu0 %v1297
  %v1633 = vpop.f32.mrb[0].mxu0
  %v1634 = vadd.f32 %v1537, %v1633
  %v1635 = vpop.f32.mrb[0].mxu0
  %v1636 = vpop.f32.mrb[0].mxu0
  %v1637 = vadd.f32 %v1540, %v1636
  %v1638 = vpop.f32.mrb[0].mxu0
  %1639 = vmatprep.mubr.bf16.mxu0 0
  %1640 = vmatmul.mubr.bf16.gmra.mrb[0].mxu0 %v1300
  %v1641 = vpop.f32.mrb[0].mxu0
  %v1642 = vadd.f32 %v1545, %v1641
  %v1643 = vpop.f32.mrb[0].mxu0
  %v1644 = vpop.f32.mrb[0].mxu0
  %v1645 = vadd.f32 %v1548, %v1644
  %v1646 = vpop.f32.mrb[0].mxu0
  %1647 = vmatprep.mubr.bf16.mxu0 0
  %1648 = vmatmul.mubr.bf16.gmra.mrb[0].mxu0 %v1303
  %v1649 = vpop.f32.mrb[0].mxu0
  %v1650 = vadd.f32 %v1553, %v1649
  %v1651 = vpop.f32.mrb[0].mxu0
  %v1652 = vpop.f32.mrb[0].mxu0
  %v1653 = vadd.f32 %v1556, %v1652
  %v1654 = vpop.f32.mrb[0].mxu0
  %1655 = vmatprep.mubr.bf16.mxu0 0
  %1656 = vmatmul.mubr.bf16.gmra.mrb[0].mxu0 %v1306
  %v1657 = vpop.f32.mrb[0].mxu0
  %v1658 = vadd.f32 %v1561, %v1657
  %v1659 = vpop.f32.mrb[0].mxu0
  %v1660 = vpop.f32.mrb[0].mxu0
  %v1661 = vadd.f32 %v1564, %v1660
  %v1662 = vpop.f32.mrb[0].mxu0
  %1663 = vmatprep.mubr.bf16.mxu0 0
  %1664 = vmatmul.mubr.bf16.gmra.mrb[0].mxu0 %v1309
  %v1665 = vpop.f32.mrb[0].mxu0
  %v1666 = vadd.f32 %v1569, %v1665
  %v1667 = vpop.f32.mrb[0].mxu0
  %v1668 = vpop.f32.mrb[0].mxu0
  %v1669 = vadd.f32 %v1572, %v1668
  %v1670 = vpop.f32.mrb[0].mxu0
  %1671 = vdwg.mxu0
  %v1672 = vadd.f32 %v1062, %v1610
  %v1673 = vadd.f32 %v1065, %v1613
  %v1674 = vadd.f32 %v1070, %v1618
  %v1675 = vadd.f32 %v1073, %v1621
  %v1676 = vadd.f32 %v1078, %v1626
  %v1677 = vadd.f32 %v1081, %v1629
  %v1678 = vadd.f32 %v1086, %v1634
  %v1679 = vadd.f32 %v1089, %v1637
  %v1680 = vadd.f32 %v1094, %v1642
  %v1681 = vadd.f32 %v1097, %v1645
  %v1682 = vadd.f32 %v1102, %v1650
  %v1683 = vadd.f32 %v1105, %v1653
  %v1684 = vadd.f32 %v1110, %v1658
  %v1685 = vadd.f32 %v1113, %v1661
  %v1686 = vadd.f32 %v1118, %v1666
  %v1687 = vadd.f32 %v1121, %v1669
  %v1688 = vadd.f32 %v1672, %v1673
  %v1689 = vadd.f32 %v1688, %v1674
  %v1690 = vadd.f32 %v1689, %v1675
  %v1691 = vadd.f32 %v1690, %v1676
  %v1692 = vadd.f32 %v1691, %v1677
  %v1693 = vadd.f32 %v1692, %v1678
  %v1694 = vadd.f32 %v1693, %v1679
  %v1695 = vadd.f32 %v1694, %v1680
  %v1696 = vadd.f32 %v1695, %v1681
  %v1697 = vadd.f32 %v1696, %v1682
  %v1698 = vadd.f32 %v1697, %v1683
  %v1699 = vadd.f32 %v1698, %v1684
  %v1700 = vadd.f32 %v1699, %v1685
  %v1701 = vadd.f32 %v1700, %v1686
  %v1702 = vadd.f32 %v1701, %v1687
  %v1703 = vrot.slane %v1702, 4
  %v1704 = vadd.f32 %v1702, %v1703
  %v1705 = vrot.slane %v1704, 2
  %v1706 = vadd.f32 %v1704, %v1705
  %v1707 = vrot.slane %v1706, 1
  %v1708 = vadd.f32 %v1706, %v1707
  %v1709 = vmul.f32 %v1708, 0.0078125
  %v1710 = vmul.f32 %v1672, %v1672
  %v1711 = vmul.f32 %v1673, %v1673
  %v1712 = vmul.f32 %v1674, %v1674
  %v1713 = vmul.f32 %v1675, %v1675
  %v1714 = vmul.f32 %v1676, %v1676
  %v1715 = vmul.f32 %v1677, %v1677
  %v1716 = vmul.f32 %v1678, %v1678
  %v1717 = vmul.f32 %v1679, %v1679
  %v1718 = vmul.f32 %v1680, %v1680
  %v1719 = vmul.f32 %v1681, %v1681
  %v1720 = vmul.f32 %v1682, %v1682
  %v1721 = vmul.f32 %v1683, %v1683
  %v1722 = vmul.f32 %v1684, %v1684
  %v1723 = vmul.f32 %v1685, %v1685
  %v1724 = vmul.f32 %v1686, %v1686
  %v1725 = vmul.f32 %v1687, %v1687
  %v1726 = vadd.f32 %v1710, %v1711
  %v1727 = vadd.f32 %v1726, %v1712
  %v1728 = vadd.f32 %v1727, %v1713
  %v1729 = vadd.f32 %v1728, %v1714
  %v1730 = vadd.f32 %v1729, %v1715
  %v1731 = vadd.f32 %v1730, %v1716
  %v1732 = vadd.f32 %v1731, %v1717
  %v1733 = vadd.f32 %v1732, %v1718
  %v1734 = vadd.f32 %v1733, %v1719
  %v1735 = vadd.f32 %v1734, %v1720
  %v1736 = vadd.f32 %v1735, %v1721
  %v1737 = vadd.f32 %v1736, %v1722
  %v1738 = vadd.f32 %v1737, %v1723
  %v1739 = vadd.f32 %v1738, %v1724
  %v1740 = vadd.f32 %v1739, %v1725
  %v1741 = vrot.slane %v1740, 4
  %v1742 = vadd.f32 %v1740, %v1741
  %v1743 = vrot.slane %v1742, 2
  %v1744 = vadd.f32 %v1742, %v1743
  %v1745 = vrot.slane %v1744, 1
  %v1746 = vadd.f32 %v1744, %v1745
  %v1747 = vmul.f32 %v1746, 0.0078125
  %v1748 = vmul.f32 %v1709, %v1709
  %v1749 = vsub.f32 %v1747, %v1748
  %v1750 = vadd.f32 %v1749, 1e-05
  %v1751 = vrsqrt.pop %v1750
  %v1752 = vld [vmem:[%s2] sm:$0x1]
  %v1753 = vmul.f32 %v1751, %v1752
  %v1754 = vld [vmem:[%s3] sm:$0x1]
  %v1755 = vmul.f32 %v1709, %v1753
  %v1756 = vsub.f32 %v1754, %v1755
  %v1757 = vlaneseq
  %v1758 = vshrl.u32 %v1757, 7
  %v1759 = vsub.s32 0, %v1758
  %v1760 = vrot.slane %v1753, %v1759
  %v1761 = vmul.f32 %v1672, %v1760
  %v1762 = vmul.f32 %v1673, %v1760
  %v1763 = vmul.f32 %v1674, %v1760
  %v1764 = vmul.f32 %v1675, %v1760
  %v1765 = vmul.f32 %v1676, %v1760
  %v1766 = vmul.f32 %v1677, %v1760
  %v1767 = vmul.f32 %v1678, %v1760
  %v1768 = vmul.f32 %v1679, %v1760
  %v1769 = vmul.f32 %v1680, %v1760
  %v1770 = vmul.f32 %v1681, %v1760
  %v1771 = vmul.f32 %v1682, %v1760
  %v1772 = vmul.f32 %v1683, %v1760
  %v1773 = vmul.f32 %v1684, %v1760
  %v1774 = vmul.f32 %v1685, %v1760
  %v1775 = vmul.f32 %v1686, %v1760
  %v1776 = vmul.f32 %v1687, %v1760
  %v1778 = vlaneseq
  %v1779 = vshrl.u32 %v1778, 7
  %v1780 = vsub.s32 0, %v1779
  %v1781 = vrot.slane %v1756, %v1780
  %v1783 = vadd.f32 %v1761, %v1781
  %v1784 = vadd.f32 %v1762, %v1781
  %v1785 = vadd.f32 %v1763, %v1781
  %v1786 = vadd.f32 %v1764, %v1781
  %v1787 = vadd.f32 %v1765, %v1781
  %v1788 = vadd.f32 %v1766, %v1781
  %v1789 = vadd.f32 %v1767, %v1781
  %v1790 = vadd.f32 %v1768, %v1781
  %v1791 = vadd.f32 %v1769, %v1781
  %v1792 = vadd.f32 %v1770, %v1781
  %v1793 = vadd.f32 %v1771, %v1781
  %v1794 = vadd.f32 %v1772, %v1781
  %v1795 = vadd.f32 %v1773, %v1781
  %v1796 = vadd.f32 %v1774, %v1781
  %v1797 = vadd.f32 %v1775, %v1781
  %v1798 = vadd.f32 %v1776, %v1781
  %v1799 = vld [vmem:[%s4] sm:$0xf]
  %v1800 = vld [vmem:[%s4 + $0x4] sm:$0xf]
  %v1801 = vld [vmem:[%s4 + $0x8] sm:$0xf]
  %v1802 = vld [vmem:[%s4 + $0xc] sm:$0xf]
  %v1803 = vld [vmem:[%s4 + $0x10] sm:$0xf]
  %v1804 = vld [vmem:[%s4 + $0x14] sm:$0xf]
  %v1805 = vld [vmem:[%s4 + $0x18] sm:$0xf]
  %v1806 = vld [vmem:[%s4 + $0x1c] sm:$0xf]
  %v1807 = vld [vmem:[%s4 + $0x20] sm:$0xf]
  %v1808 = vld [vmem:[%s4 + $0x24] sm:$0xf]
  %v1809 = vld [vmem:[%s4 + $0x28] sm:$0xf]
  %v1810 = vld [vmem:[%s4 + $0x2c] sm:$0xf]
  %v1811 = vld [vmem:[%s4 + $0x30] sm:$0xf]
  %v1812 = vld [vmem:[%s4 + $0x34] sm:$0xf]
  %v1813 = vld [vmem:[%s4 + $0x38] sm:$0xf]
  %v1814 = vld [vmem:[%s4 + $0x3c] sm:$0xf]
  %v1815 = vld [vmem:[%s5] sm:$0xf]
  %v1816 = vld [vmem:[%s5 + $0x4] sm:$0xf]
  %v1817 = vld [vmem:[%s5 + $0x8] sm:$0xf]
  %v1818 = vld [vmem:[%s5 + $0xc] sm:$0xf]
  %v1819 = vld [vmem:[%s5 + $0x10] sm:$0xf]
  %v1820 = vld [vmem:[%s5 + $0x14] sm:$0xf]
  %v1821 = vld [vmem:[%s5 + $0x18] sm:$0xf]
  %v1822 = vld [vmem:[%s5 + $0x1c] sm:$0xf]
  %v1823 = vld [vmem:[%s5 + $0x20] sm:$0xf]
  %v1824 = vld [vmem:[%s5 + $0x24] sm:$0xf]
  %v1825 = vld [vmem:[%s5 + $0x28] sm:$0xf]
  %v1826 = vld [vmem:[%s5 + $0x2c] sm:$0xf]
  %v1827 = vld [vmem:[%s5 + $0x30] sm:$0xf]
  %v1828 = vld [vmem:[%s5 + $0x34] sm:$0xf]
  %v1829 = vld [vmem:[%s5 + $0x38] sm:$0xf]
  %v1830 = vld [vmem:[%s5 + $0x3c] sm:$0xf]
  %v1847 = vunpack.c.l.b16 %v1799
  %v1848 = vunpack.c.l.b16 %v1800
  %v1849 = vunpack.c.l.b16 %v1801
  %v1850 = vunpack.c.l.b16 %v1802
  %v1851 = vunpack.c.l.b16 %v1803
  %v1852 = vunpack.c.l.b16 %v1804
  %v1853 = vunpack.c.l.b16 %v1805
  %v1854 = vunpack.c.l.b16 %v1806
  %v1855 = vunpack.c.l.b16 %v1807
  %v1856 = vunpack.c.l.b16 %v1808
  %v1857 = vunpack.c.l.b16 %v1809
  %v1858 = vunpack.c.l.b16 %v1810
  %v1859 = vunpack.c.l.b16 %v1811
  %v1860 = vunpack.c.l.b16 %v1812
  %v1861 = vunpack.c.l.b16 %v1813
  %v1862 = vunpack.c.l.b16 %v1814
  %v1863 = vpack.c.b16 %v1848, %v1847
  %v1864 = vpack.c.b16 %v1850, %v1849
  %v1865 = vpack.c.b16 %v1852, %v1851
  %v1866 = vpack.c.b16 %v1854, %v1853
  %v1867 = vpack.c.b16 %v1856, %v1855
  %v1868 = vpack.c.b16 %v1858, %v1857
  %v1869 = vpack.c.b16 %v1860, %v1859
  %v1870 = vpack.c.b16 %v1862, %v1861
  %v1895 = vunpack.c.l.b16 %v1815
  %v1896 = vunpack.c.l.b16 %v1816
  %v1897 = vunpack.c.l.b16 %v1817
  %v1898 = vunpack.c.l.b16 %v1818
  %v1899 = vunpack.c.l.b16 %v1819
  %v1900 = vunpack.c.l.b16 %v1820
  %v1901 = vunpack.c.l.b16 %v1821
  %v1902 = vunpack.c.l.b16 %v1822
  %v1903 = vunpack.c.l.b16 %v1823
  %v1904 = vunpack.c.l.b16 %v1824
  %v1905 = vunpack.c.l.b16 %v1825
  %v1906 = vunpack.c.l.b16 %v1826
  %v1907 = vunpack.c.l.b16 %v1827
  %v1908 = vunpack.c.l.b16 %v1828
  %v1909 = vunpack.c.l.b16 %v1829
  %v1910 = vunpack.c.l.b16 %v1830
  %v1911 = vpack.c.b16 %v1896, %v1895
  %v1912 = vpack.c.b16 %v1898, %v1897
  %v1913 = vpack.c.b16 %v1900, %v1899
  %v1914 = vpack.c.b16 %v1902, %v1901
  %v1915 = vpack.c.b16 %v1904, %v1903
  %v1916 = vpack.c.b16 %v1906, %v1905
  %v1917 = vpack.c.b16 %v1908, %v1907
  %v1918 = vpack.c.b16 %v1910, %v1909
  %1927 = vmatprep.subr.bf16.mxu0 0
  %1928 = vmatpush1.bf16.msra.mxu0 %v1911
  %1929 = vmatprep.subr.bf16.mxu0 0
  %1930 = vmatpush1.bf16.msra.mxu0 %v1912
  %1931 = vmatprep.subr.bf16.mxu0 0
  %1932 = vmatpush1.bf16.msra.mxu0 %v1913
  %1933 = vmatprep.subr.bf16.mxu0 0
  %1934 = vmatpush1.bf16.msra.mxu0 %v1914
  %1935 = vmatprep.subr.bf16.mxu0 0
  %1936 = vmatpush1.bf16.msra.mxu0 %v1915
  %1937 = vmatprep.subr.bf16.mxu0 0
  %1938 = vmatpush1.bf16.msra.mxu0 %v1916
  %1939 = vmatprep.subr.bf16.mxu0 0
  %1940 = vmatpush1.bf16.msra.mxu0 %v1917
  %1941 = vmatprep.subr.bf16.mxu0 0
  %1942 = vmatpush1.bf16.msra.mxu0 %v1918
  %1943 = vmatprep.subr.bf16.mxu0 0
  %1944 = vmatpush1.bf16.msra.mxu0 0
  %1945 = vmatprep.subr.bf16.mxu0 0
  %1946 = vmatpush1.bf16.msra.mxu0 0
  %1947 = vmatprep.subr.bf16.mxu0 0
  %1948 = vmatpush1.bf16.msra.mxu0 0
  %1949 = vmatprep.subr.bf16.mxu0 0
  %1950 = vmatpush1.bf16.msra.mxu0 0
  %1951 = vmatprep.subr.bf16.mxu0 0
  %1952 = vmatpush1.bf16.msra.mxu0 0
  %1953 = vmatprep.subr.bf16.mxu0 0
  %1954 = vmatpush1.bf16.msra.mxu0 0
  %1955 = vmatprep.subr.bf16.mxu0 0
  %1956 = vmatpush1.bf16.msra.mxu0 0
  %1957 = vmatprep.subr.bf16.mxu0 0
  %1958 = vmatpush1.bf16.msra.mxu0 0
  %1959 = vmatprep.mubr.bf16.mxu0 0
  %1960 = vmatmul.mubr.bf16.gmra.mrb[0].mxu0 %v1863
  %v1961 = vpop.f32.mrb[0].mxu0
  %v1962 = vadd.f32 0.0, %v1961
  %v1963 = vpop.f32.mrb[0].mxu0
  %v1964 = vpop.f32.mrb[0].mxu0
  %v1965 = vadd.f32 0.0, %v1964
  %v1966 = vpop.f32.mrb[0].mxu0
  %1967 = vmatprep.mubr.bf16.mxu0 0
  %1968 = vmatmul.mubr.bf16.gmra.mrb[0].mxu0 %v1864
  %v1969 = vpop.f32.mrb[0].mxu0
  %v1970 = vadd.f32 0.0, %v1969
  %v1971 = vpop.f32.mrb[0].mxu0
  %v1972 = vpop.f32.mrb[0].mxu0
  %v1973 = vadd.f32 0.0, %v1972
  %v1974 = vpop.f32.mrb[0].mxu0
  %1975 = vmatprep.mubr.bf16.mxu0 0
  %1976 = vmatmul.mubr.bf16.gmra.mrb[0].mxu0 %v1865
  %v1977 = vpop.f32.mrb[0].mxu0
  %v1978 = vadd.f32 0.0, %v1977
  %v1979 = vpop.f32.mrb[0].mxu0
  %v1980 = vpop.f32.mrb[0].mxu0
  %v1981 = vadd.f32 0.0, %v1980
  %v1982 = vpop.f32.mrb[0].mxu0
  %1983 = vmatprep.mubr.bf16.mxu0 0
  %1984 = vmatmul.mubr.bf16.gmra.mrb[0].mxu0 %v1866
  %v1985 = vpop.f32.mrb[0].mxu0
  %v1986 = vadd.f32 0.0, %v1985
  %v1987 = vpop.f32.mrb[0].mxu0
  %v1988 = vpop.f32.mrb[0].mxu0
  %v1989 = vadd.f32 0.0, %v1988
  %v1990 = vpop.f32.mrb[0].mxu0
  %1991 = vmatprep.mubr.bf16.mxu0 0
  %1992 = vmatmul.mubr.bf16.gmra.mrb[0].mxu0 %v1867
  %v1993 = vpop.f32.mrb[0].mxu0
  %v1994 = vadd.f32 0.0, %v1993
  %v1995 = vpop.f32.mrb[0].mxu0
  %v1996 = vpop.f32.mrb[0].mxu0
  %v1997 = vadd.f32 0.0, %v1996
  %v1998 = vpop.f32.mrb[0].mxu0
  %1999 = vmatprep.mubr.bf16.mxu0 0
  %2000 = vmatmul.mubr.bf16.gmra.mrb[0].mxu0 %v1868
  %v2001 = vpop.f32.mrb[0].mxu0
  %v2002 = vadd.f32 0.0, %v2001
  %v2003 = vpop.f32.mrb[0].mxu0
  %v2004 = vpop.f32.mrb[0].mxu0
  %v2005 = vadd.f32 0.0, %v2004
  %v2006 = vpop.f32.mrb[0].mxu0
  %2007 = vmatprep.mubr.bf16.mxu0 0
  %2008 = vmatmul.mubr.bf16.gmra.mrb[0].mxu0 %v1869
  %v2009 = vpop.f32.mrb[0].mxu0
  %v2010 = vadd.f32 0.0, %v2009
  %v2011 = vpop.f32.mrb[0].mxu0
  %v2012 = vpop.f32.mrb[0].mxu0
  %v2013 = vadd.f32 0.0, %v2012
  %v2014 = vpop.f32.mrb[0].mxu0
  %2015 = vmatprep.mubr.bf16.mxu0 0
  %2016 = vmatmul.mubr.bf16.gmra.mrb[0].mxu0 %v1870
  %v2017 = vpop.f32.mrb[0].mxu0
  %v2018 = vadd.f32 0.0, %v2017
  %v2019 = vpop.f32.mrb[0].mxu0
  %v2020 = vpop.f32.mrb[0].mxu0
  %v2021 = vadd.f32 0.0, %v2020
  %v2022 = vpop.f32.mrb[0].mxu0
  %2023 = vdwg.mxu0
  %v2024 = vadd.f32 %v1962, %v1965
  %v2025 = vadd.f32 %v2024, %v1970
  %v2026 = vadd.f32 %v2025, %v1973
  %v2027 = vadd.f32 %v2026, %v1978
  %v2028 = vadd.f32 %v2027, %v1981
  %v2029 = vadd.f32 %v2028, %v1986
  %v2030 = vadd.f32 %v2029, %v1989
  %v2031 = vadd.f32 %v2030, %v1994
  %v2032 = vadd.f32 %v2031, %v1997
  %v2033 = vadd.f32 %v2032, %v2002
  %v2034 = vadd.f32 %v2033, %v2005
  %v2035 = vadd.f32 %v2034, %v2010
  %v2036 = vadd.f32 %v2035, %v2013
  %v2037 = vadd.f32 %v2036, %v2018
  %v2038 = vadd.f32 %v2037, %v2021
  %v2039 = vrot.slane %v2038, 4
  %v2040 = vadd.f32 %v2038, %v2039
  %v2041 = vrot.slane %v2040, 2
  %v2042 = vadd.f32 %v2040, %v2041
  %v2043 = vrot.slane %v2042, 1
  %v2044 = vadd.f32 %v2042, %v2043
  %v2045 = vmul.f32 %v2044, 0.0078125
  %v2046 = vmul.f32 %v1962, %v1962
  %v2047 = vmul.f32 %v1965, %v1965
  %v2048 = vmul.f32 %v1970, %v1970
  %v2049 = vmul.f32 %v1973, %v1973
  %v2050 = vmul.f32 %v1978, %v1978
  %v2051 = vmul.f32 %v1981, %v1981
  %v2052 = vmul.f32 %v1986, %v1986
  %v2053 = vmul.f32 %v1989, %v1989
  %v2054 = vmul.f32 %v1994, %v1994
  %v2055 = vmul.f32 %v1997, %v1997
  %v2056 = vmul.f32 %v2002, %v2002
  %v2057 = vmul.f32 %v2005, %v2005
  %v2058 = vmul.f32 %v2010, %v2010
  %v2059 = vmul.f32 %v2013, %v2013
  %v2060 = vmul.f32 %v2018, %v2018
  %v2061 = vmul.f32 %v2021, %v2021
  %v2062 = vadd.f32 %v2046, %v2047
  %v2063 = vadd.f32 %v2062, %v2048
  %v2064 = vadd.f32 %v2063, %v2049
  %v2065 = vadd.f32 %v2064, %v2050
  %v2066 = vadd.f32 %v2065, %v2051
  %v2067 = vadd.f32 %v2066, %v2052
  %v2068 = vadd.f32 %v2067, %v2053
  %v2069 = vadd.f32 %v2068, %v2054
  %v2070 = vadd.f32 %v2069, %v2055
  %v2071 = vadd.f32 %v2070, %v2056
  %v2072 = vadd.f32 %v2071, %v2057
  %v2073 = vadd.f32 %v2072, %v2058
  %v2074 = vadd.f32 %v2073, %v2059
  %v2075 = vadd.f32 %v2074, %v2060
  %v2076 = vadd.f32 %v2075, %v2061
  %v2077 = vrot.slane %v2076, 4
  %v2078 = vadd.f32 %v2076, %v2077
  %v2079 = vrot.slane %v2078, 2
  %v2080 = vadd.f32 %v2078, %v2079
  %v2081 = vrot.slane %v2080, 1
  %v2082 = vadd.f32 %v2080, %v2081
  %v2083 = vmul.f32 %v2082, 0.0078125
  %v2084 = vmul.f32 %v2045, %v2045
  %v2085 = vsub.f32 %v2083, %v2084
  %v2086 = vadd.f32 %v2085, 1e-05
  %v2087 = vrsqrt.pop %v2086
  %v2088 = vld [vmem:[%s6] sm:$0x1]
  %v2089 = vmul.f32 %v2087, %v2088
  %v2090 = vld [vmem:[%s7] sm:$0x1]
  %v2091 = vmul.f32 %v2045, %v2089
  %v2092 = vsub.f32 %v2090, %v2091
  %v2093 = vlaneseq
  %v2094 = vshrl.u32 %v2093, 7
  %v2095 = vsub.s32 0, %v2094
  %v2096 = vrot.slane %v2089, %v2095
  %v2097 = vmul.f32 %v1962, %v2096
  %v2098 = vmul.f32 %v1965, %v2096
  %v2099 = vmul.f32 %v1970, %v2096
  %v2100 = vmul.f32 %v1973, %v2096
  %v2101 = vmul.f32 %v1978, %v2096
  %v2102 = vmul.f32 %v1981, %v2096
  %v2103 = vmul.f32 %v1986, %v2096
  %v2104 = vmul.f32 %v1989, %v2096
  %v2105 = vmul.f32 %v1994, %v2096
  %v2106 = vmul.f32 %v1997, %v2096
  %v2107 = vmul.f32 %v2002, %v2096
  %v2108 = vmul.f32 %v2005, %v2096
  %v2109 = vmul.f32 %v2010, %v2096
  %v2110 = vmul.f32 %v2013, %v2096
  %v2111 = vmul.f32 %v2018, %v2096
  %v2112 = vmul.f32 %v2021, %v2096
  %v2113 = vadd.f32 %v1783, %v2097
  %v2114 = vadd.f32 %v1784, %v2098
  %v2115 = vadd.f32 %v1785, %v2099
  %v2116 = vadd.f32 %v1786, %v2100
  %v2117 = vadd.f32 %v1787, %v2101
  %v2118 = vadd.f32 %v1788, %v2102
  %v2119 = vadd.f32 %v1789, %v2103
  %v2120 = vadd.f32 %v1790, %v2104
  %v2121 = vadd.f32 %v1791, %v2105
  %v2122 = vadd.f32 %v1792, %v2106
  %v2123 = vadd.f32 %v1793, %v2107
  %v2124 = vadd.f32 %v1794, %v2108
  %v2125 = vadd.f32 %v1795, %v2109
  %v2126 = vadd.f32 %v1796, %v2110
  %v2127 = vadd.f32 %v1797, %v2111
  %v2128 = vadd.f32 %v1798, %v2112
  %v2130 = vlaneseq
  %v2131 = vshrl.u32 %v2130, 7
  %v2132 = vsub.s32 0, %v2131
  %v2133 = vrot.slane %v2092, %v2132
  %v2135 = vadd.f32 %v2113, %v2133
  %v2136 = vadd.f32 %v2114, %v2133
  %v2137 = vadd.f32 %v2115, %v2133
  %v2138 = vadd.f32 %v2116, %v2133
  %v2139 = vadd.f32 %v2117, %v2133
  %v2140 = vadd.f32 %v2118, %v2133
  %v2141 = vadd.f32 %v2119, %v2133
  %v2142 = vadd.f32 %v2120, %v2133
  %v2143 = vadd.f32 %v2121, %v2133
  %v2144 = vadd.f32 %v2122, %v2133
  %v2145 = vadd.f32 %v2123, %v2133
  %v2146 = vadd.f32 %v2124, %v2133
  %v2147 = vadd.f32 %v2125, %v2133
  %v2148 = vadd.f32 %v2126, %v2133
  %v2149 = vadd.f32 %v2127, %v2133
  %v2150 = vadd.f32 %v2128, %v2133
  %v2151 = vmax.f32 %v2135, 0.0
  %v2152 = vmax.f32 %v2136, 0.0
  %v2153 = vmax.f32 %v2137, 0.0
  %v2154 = vmax.f32 %v2138, 0.0
  %v2155 = vmax.f32 %v2139, 0.0
  %v2156 = vmax.f32 %v2140, 0.0
  %v2157 = vmax.f32 %v2141, 0.0
  %v2158 = vmax.f32 %v2142, 0.0
  %v2159 = vmax.f32 %v2143, 0.0
  %v2160 = vmax.f32 %v2144, 0.0
  %v2161 = vmax.f32 %v2145, 0.0
  %v2162 = vmax.f32 %v2146, 0.0
  %v2163 = vmax.f32 %v2147, 0.0
  %v2164 = vmax.f32 %v2148, 0.0
  %v2165 = vmax.f32 %v2149, 0.0
  %v2166 = vmax.f32 %v2150, 0.0
  %2167 = vst [vmem:[%s8] sm:$0xff] %v2151
  %2168 = vst [vmem:[%s8 + $0x8] sm:$0xff] %v2152
  %2169 = vst [vmem:[%s8 + $0x10] sm:$0xff] %v2153
  %2170 = vst [vmem:[%s8 + $0x18] sm:$0xff] %v2154
  %2171 = vst [vmem:[%s8 + $0x20] sm:$0xff] %v2155
  %2172 = vst [vmem:[%s8 + $0x28] sm:$0xff] %v2156
  %2173 = vst [vmem:[%s8 + $0x30] sm:$0xff] %v2157
  %2174 = vst [vmem:[%s8 + $0x38] sm:$0xff] %v2158
  %2175 = vst [vmem:[%s8 + $0x40] sm:$0xff] %v2159
  %2176 = vst [vmem:[%s8 + $0x48] sm:$0xff] %v2160
  %2177 = vst [vmem:[%s8 + $0x50] sm:$0xff] %v2161
  %2178 = vst [vmem:[%s8 + $0x58] sm:$0xff] %v2162
  %2179 = vst [vmem:[%s8 + $0x60] sm:$0xff] %v2163
  %2180 = vst [vmem:[%s8 + $0x68] sm:$0xff] %v2164
  %2181 = vst [vmem:[%s8 + $0x70] sm:$0xff] %v2165
  %2182 = vst [vmem:[%s8 + $0x78] sm:$0xff] %v2166
  // Predicated region
  $region34: #{fwd.5} parent=0 // pred_check
    _
  $region35: #{fwd.5} parent=0 // pred_check_branch
    %2184 = sbr.rel (0) target = $region37
  $region36: #{fwd.5} parent=0 // pred_region
    _
  $region37: #{fwd.5} parent=0 // pred_fallthru
    _
  // Predicated region
  $region38: #{fwd.5} parent=0 // pred_check
    _
  $region39: #{fwd.5} parent=0 // pred_check_branch
    %2186 = sbr.rel (0) target = $region41
  $region40: #{fwd.5} parent=0 // pred_region
    _
  $region41: #{fwd.5} parent=0 // pred_fallthru
    _

// kernel: fwd.7
$region0: #{fwd.7}
  #allocation0 [shape = 'u32[]', space=smem, size = 0x4, offset = 0x4, fixed_abs, tag = 'smem constant byte address 0x4 - core index']
  #allocation1 [shape = 'u32[144,128]{1,0:T(1,128)}', space=vmem, size = 0x12000, scoped, tag = 'internal scratch']
  %s0 = inlined_call_operand.vmem [shape: bf16[2,10,8,384], index: 0, kind: input, shape index: {}]
  %s1 = inlined_call_operand.vmem [shape: bf16[3,384,128], index: 1, kind: input, shape index: {}]
  %s2 = inlined_call_operand.vmem [shape: f32[1,128], index: 2, kind: input, shape index: {}]
  %s3 = inlined_call_operand.vmem [shape: f32[1,128], index: 3, kind: input, shape index: {}]
  %s4 = inlined_call_operand.vmem [shape: f32[128,128], index: 4, kind: input, shape index: {}]
  %s5 = inlined_call_operand.hbm [shape: f32[128,128], index: 5, kind: output, shape index: {}]
  %s6 = sld [smem:[#allocation0]]
  $region30: #{fwd.7} parent=0
    _
  %s8 = ssub.s32 1, %s6
  %s9 = scalar_select 0, %s8, %s6
  $region1: #{fwd.7} parent=0
    #allocation2 [shape = 'u8[65536]{0}', space=vmem, size = 0x10000, scoped, tag = 'output window, operand 0, single buffered']
    #allocation3 [shape = 's32[1]{0}', space=sflag, size = 0x4, scoped, tag = 'scoped memory for fwd.7']
    %10 = vsyncpa [#allocation3], 0
    // Predicated region
    $region2: #{fwd.7} parent=1 // pred_check
      _
    $region3: #{fwd.7} parent=1 // pred_check_branch
      %12 = sbr.rel (0) target = $region5
    $region4: #{fwd.7} parent=1 // pred_region
      _
    $region5: #{fwd.7} parent=1 // pred_fallthru
      _
    // Predicated region
    $region6: #{fwd.7} parent=1 // pred_check
      _
    $region7: #{fwd.7} parent=1 // pred_check_branch
      %14 = sbr.rel (0) target = $region9
    $region8: #{fwd.7} parent=1 // pred_region
      _
    $region9: #{fwd.7} parent=1 // pred_fallthru
      _
    // Predicated region
    $region10: #{fwd.7} parent=1 // pred_check
      _
    $region11: #{fwd.7} parent=1 // pred_check_branch
      %16 = sbr.rel (0) target = $region13
    $region12: #{fwd.7} parent=1 // pred_region
      _
    $region13: #{fwd.7} parent=1 // pred_fallthru
      _
    // Predicated region
    $region14: #{fwd.7} parent=1 // pred_check
      _
    $region15: #{fwd.7} parent=1 // pred_check_branch
      %18 = sbr.rel (0) target = $region17
    $region16: #{fwd.7} parent=1 // pred_region
      _
    $region17: #{fwd.7} parent=1 // pred_fallthru
      _
    // Predicated region
    $region18: #{fwd.7} parent=1 // pred_check
      _
    $region19: #{fwd.7} parent=1 // pred_check_branch
      %20 = sbr.rel (0) target = $region21
    $region20: #{fwd.7} parent=1 // pred_region
      _
    $region21: #{fwd.7} parent=1 // pred_fallthru
      _
    %v22 = vld [vmem:[%s0] sm:$0xff]
    %v23 = vld [vmem:[%s0 + $0x8] sm:$0xf]
    %v24 = vld [vmem:[%s0 + $0xc] sm:$0xff]
    %v25 = vld [vmem:[%s0 + $0x14] sm:$0xf]
    %v26 = vld [vmem:[%s0 + $0x18] sm:$0xff]
    %v27 = vld [vmem:[%s0 + $0x20] sm:$0xf]
    %v28 = vld [vmem:[%s0 + $0x24] sm:$0xff]
    %v29 = vld [vmem:[%s0 + $0x2c] sm:$0xf]
    %v30 = vld [vmem:[%s0 + $0x30] sm:$0xff]
    %v31 = vld [vmem:[%s0 + $0x38] sm:$0xf]
    %v32 = vld [vmem:[%s0 + $0x3c] sm:$0xff]
    %v33 = vld [vmem:[%s0 + $0x44] sm:$0xf]
    %v34 = vld [vmem:[%s0 + $0x48] sm:$0xff]
    %v35 = vld [vmem:[%s0 + $0x50] sm:$0xf]
    %v36 = vld [vmem:[%s0 + $0x54] sm:$0xff]
    %v37 = vld [vmem:[%s0 + $0x5c] sm:$0xf]
    %v38 = vld [vmem:[%s0 + $0x78] sm:$0xff]
    %v39 = vld [vmem:[%s0 + $0x80] sm:$0xf]
    %v40 = vld [vmem:[%s0 + $0x84] sm:$0xff]
    %v41 = vld [vmem:[%s0 + $0x8c] sm:$0xf]
    %v42 = vld [vmem:[%s0 + $0x90] sm:$0xff]
    %v43 = vld [vmem:[%s0 + $0x98] sm:$0xf]
    %v44 = vld [vmem:[%s0 + $0x9c] sm:$0xff]
    %v45 = vld [vmem:[%s0 + $0xa4] sm:$0xf]
    %v46 = vld [vmem:[%s0 + $0xa8] sm:$0xff]
    %v47 = vld [vmem:[%s0 + $0xb0] sm:$0xf]
    %v48 = vld [vmem:[%s0 + $0xb4] sm:$0xff]
    %v49 = vld [vmem:[%s0 + $0xbc] sm:$0xf]
    %v50 = vld [vmem:[%s0 + $0xc0] sm:$0xff]
    %v51 = vld [vmem:[%s0 + $0xc8] sm:$0xf]
    %v52 = vld [vmem:[%s0 + $0xcc] sm:$0xff]
    %v53 = vld [vmem:[%s0 + $0xd4] sm:$0xf]
    %v54 = vld [vmem:[%s1] sm:$0xf]
    %v55 = vld [vmem:[%s1 + $0x4] sm:$0xf]
    %v56 = vld [vmem:[%s1 + $0x8] sm:$0xf]
    %v57 = vld [vmem:[%s1 + $0xc] sm:$0xf]
    %v58 = vld [vmem:[%s1 + $0x10] sm:$0xf]
    %v59 = vld [vmem:[%s1 + $0x14] sm:$0xf]
    %v60 = vld [vmem:[%s1 + $0x18] sm:$0xf]
    %v61 = vld [vmem:[%s1 + $0x1c] sm:$0xf]
    %v62 = vld [vmem:[%s1 + $0x20] sm:$0xf]
    %v63 = vld [vmem:[%s1 + $0x24] sm:$0xf]
    %v64 = vld [vmem:[%s1 + $0x28] sm:$0xf]
    %v65 = vld [vmem:[%s1 + $0x2c] sm:$0xf]
    %v66 = vld [vmem:[%s1 + $0x30] sm:$0xf]
    %v67 = vld [vmem:[%s1 + $0x34] sm:$0xf]
    %v68 = vld [vmem:[%s1 + $0x38] sm:$0xf]
    %v69 = vld [vmem:[%s1 + $0x3c] sm:$0xf]
    %v70 = vld [vmem:[%s1 + $0x40] sm:$0xf]
    %v71 = vld [vmem:[%s1 + $0x44] sm:$0xf]
    %v72 = vld [vmem:[%s1 + $0x48] sm:$0xf]
    %v73 = vld [vmem:[%s1 + $0x4c] sm:$0xf]
    %v74 = vld [vmem:[%s1 + $0x50] sm:$0xf]
    %v75 = vld [vmem:[%s1 + $0x54] sm:$0xf]
    %v76 = vld [vmem:[%s1 + $0x58] sm:$0xf]
    %v77 = vld [vmem:[%s1 + $0x5c] sm:$0xf]
    %v78 = vld [vmem:[%s1 + $0x60] sm:$0xf]
    %v79 = vld [vmem:[%s1 + $0x64] sm:$0xf]
    %v80 = vld [vmem:[%s1 + $0x68] sm:$0xf]
    %v81 = vld [vmem:[%s1 + $0x6c] sm:$0xf]
    %v82 = vld [vmem:[%s1 + $0x70] sm:$0xf]
    %v83 = vld [vmem:[%s1 + $0x74] sm:$0xf]
    %v84 = vld [vmem:[%s1 + $0x78] sm:$0xf]
    %v85 = vld [vmem:[%s1 + $0x7c] sm:$0xf]
    %v86 = vld [vmem:[%s1 + $0x80] sm:$0xf]
    %v87 = vld [vmem:[%s1 + $0x84] sm:$0xf]
    %v88 = vld [vmem:[%s1 + $0x88] sm:$0xf]
    %v89 = vld [vmem:[%s1 + $0x8c] sm:$0xf]
    %v90 = vld [vmem:[%s1 + $0x90] sm:$0xf]
    %v91 = vld [vmem:[%s1 + $0x94] sm:$0xf]
    %v92 = vld [vmem:[%s1 + $0x98] sm:$0xf]
    %v93 = vld [vmem:[%s1 + $0x9c] sm:$0xf]
    %v94 = vld [vmem:[%s1 + $0xa0] sm:$0xf]
    %v95 = vld [vmem:[%s1 + $0xa4] sm:$0xf]
    %v96 = vld [vmem:[%s1 + $0xa8] sm:$0xf]
    %v97 = vld [vmem:[%s1 + $0xac] sm:$0xf]
    %v98 = vld [vmem:[%s1 + $0xb0] sm:$0xf]
    %v99 = vld [vmem:[%s1 + $0xb4] sm:$0xf]
    %v100 = vld [vmem:[%s1 + $0xb8] sm:$0xf]
    %v101 = vld [vmem:[%s1 + $0xbc] sm:$0xf]
    %s102 = scalar_lea.vmem %s0, 12
    %v103 = vld [vmem:[%s102] sm:$0xff]
    %v104 = vld [vmem:[%s102 + $0x8] sm:$0xf]
    %v105 = vld [vmem:[%s102 + $0xc] sm:$0xff]
    %v106 = vld [vmem:[%s102 + $0x14] sm:$0xf]
    %v107 = vld [vmem:[%s102 + $0x18] sm:$0xff]
    %v108 = vld [vmem:[%s102 + $0x20] sm:$0xf]
    %v109 = vld [vmem:[%s102 + $0x24] sm:$0xff]
    %v110 = vld [vmem:[%s102 + $0x2c] sm:$0xf]
    %v111 = vld [vmem:[%s102 + $0x30] sm:$0xff]
    %v112 = vld [vmem:[%s102 + $0x38] sm:$0xf]
    %v113 = vld [vmem:[%s102 + $0x3c] sm:$0xff]
    %v114 = vld [vmem:[%s102 + $0x44] sm:$0xf]
    %v115 = vld [vmem:[%s102 + $0x48] sm:$0xff]
    %v116 = vld [vmem:[%s102 + $0x50] sm:$0xf]
    %v117 = vld [vmem:[%s102 + $0x54] sm:$0xff]
    %v118 = vld [vmem:[%s102 + $0x5c] sm:$0xf]
    %v119 = vld [vmem:[%s102 + $0x78] sm:$0xff]
    %v120 = vld [vmem:[%s102 + $0x80] sm:$0xf]
    %v121 = vld [vmem:[%s102 + $0x84] sm:$0xff]
    %v122 = vld [vmem:[%s102 + $0x8c] sm:$0xf]
    %v123 = vld [vmem:[%s102 + $0x90] sm:$0xff]
    %v124 = vld [vmem:[%s102 + $0x98] sm:$0xf]
    %v125 = vld [vmem:[%s102 + $0x9c] sm:$0xff]
    %v126 = vld [vmem:[%s102 + $0xa4] sm:$0xf]
    %v127 = vld [vmem:[%s102 + $0xa8] sm:$0xff]
    %v128 = vld [vmem:[%s102 + $0xb0] sm:$0xf]
    %v129 = vld [vmem:[%s102 + $0xb4] sm:$0xff]
    %v130 = vld [vmem:[%s102 + $0xbc] sm:$0xf]
    %v131 = vld [vmem:[%s102 + $0xc0] sm:$0xff]
    %v132 = vld [vmem:[%s102 + $0xc8] sm:$0xf]
    %v133 = vld [vmem:[%s102 + $0xcc] sm:$0xff]
    %v134 = vld [vmem:[%s102 + $0xd4] sm:$0xf]
    %s135 = scalar_lea.vmem %s1, 192
    %v136 = vld [vmem:[%s135] sm:$0xf]
    %v137 = vld [vmem:[%s135 + $0x4] sm:$0xf]
    %v138 = vld [vmem:[%s135 + $0x8] sm:$0xf]
    %v139 = vld [vmem:[%s135 + $0xc] sm:$0xf]
    %v140 = vld [vmem:[%s135 + $0x10] sm:$0xf]
    %v141 = vld [vmem:[%s135 + $0x14] sm:$0xf]
    %v142 = vld [vmem:[%s135 + $0x18] sm:$0xf]
    %v143 = vld [vmem:[%s135 + $0x1c] sm:$0xf]
    %v144 = vld [vmem:[%s135 + $0x20] sm:$0xf]
    %v145 = vld [vmem:[%s135 + $0x24] sm:$0xf]
    %v146 = vld [vmem:[%s135 + $0x28] sm:$0xf]
    %v147 = vld [vmem:[%s135 + $0x2c] sm:$0xf]
    %v148 = vld [vmem:[%s135 + $0x30] sm:$0xf]
    %v149 = vld [vmem:[%s135 + $0x34] sm:$0xf]
    %v150 = vld [vmem:[%s135 + $0x38] sm:$0xf]
    %v151 = vld [vmem:[%s135 + $0x3c] sm:$0xf]
    %v152 = vld [vmem:[%s135 + $0x40] sm:$0xf]
    %v153 = vld [vmem:[%s135 + $0x44] sm:$0xf]
    %v154 = vld [vmem:[%s135 + $0x48] sm:$0xf]
    %v155 = vld [vmem:[%s135 + $0x4c] sm:$0xf]
    %v156 = vld [vmem:[%s135 + $0x50] sm:$0xf]
    %v157 = vld [vmem:[%s135 + $0x54] sm:$0xf]
    %v158 = vld [vmem:[%s135 + $0x58] sm:$0xf]
    %v159 = vld [vmem:[%s135 + $0x5c] sm:$0xf]
    %v160 = vld [vmem:[%s135 + $0x60] sm:$0xf]
    %v161 = vld [vmem:[%s135 + $0x64] sm:$0xf]
    %v162 = vld [vmem:[%s135 + $0x68] sm:$0xf]
    %v163 = vld [vmem:[%s135 + $0x6c] sm:$0xf]
    %v164 = vld [vmem:[%s135 + $0x70] sm:$0xf]
    %v165 = vld [vmem:[%s135 + $0x74] sm:$0xf]
    %v166 = vld [vmem:[%s135 + $0x78] sm:$0xf]
    %v167 = vld [vmem:[%s135 + $0x7c] sm:$0xf]
    %v168 = vld [vmem:[%s135 + $0x80] sm:$0xf]
    %v169 = vld [vmem:[%s135 + $0x84] sm:$0xf]
    %v170 = vld [vmem:[%s135 + $0x88] sm:$0xf]
    %v171 = vld [vmem:[%s135 + $0x8c] sm:$0xf]
    %v172 = vld [vmem:[%s135 + $0x90] sm:$0xf]
    %v173 = vld [vmem:[%s135 + $0x94] sm:$0xf]
    %v174 = vld [vmem:[%s135 + $0x98] sm:$0xf]
    %v175 = vld [vmem:[%s135 + $0x9c] sm:$0xf]
    %v176 = vld [vmem:[%s135 + $0xa0] sm:$0xf]
    %v177 = vld [vmem:[%s135 + $0xa4] sm:$0xf]
    %v178 = vld [vmem:[%s135 + $0xa8] sm:$0xf]
    %v179 = vld [vmem:[%s135 + $0xac] sm:$0xf]
    %v180 = vld [vmem:[%s135 + $0xb0] sm:$0xf]
    %v181 = vld [vmem:[%s135 + $0xb4] sm:$0xf]
    %v182 = vld [vmem:[%s135 + $0xb8] sm:$0xf]
    %v183 = vld [vmem:[%s135 + $0xbc] sm:$0xf]
    %v216 = vunpack.c.l.b16 %v103
    %v217 = vunpack.c.h.b16 %v103
    %v218 = vunpack.c.l.b16 %v104
    %v219 = vunpack.c.l.b16 %v105
    %v220 = vunpack.c.h.b16 %v105
    %v221 = vunpack.c.l.b16 %v106
    %v222 = vunpack.c.l.b16 %v107
    %v223 = vunpack.c.h.b16 %v107
    %v224 = vunpack.c.l.b16 %v108
    %v225 = vunpack.c.l.b16 %v109
    %v226 = vunpack.c.h.b16 %v109
    %v227 = vunpack.c.l.b16 %v110
    %v228 = vunpack.c.l.b16 %v111
    %v229 = vunpack.c.h.b16 %v111
    %v230 = vunpack.c.l.b16 %v112
    %v231 = vunpack.c.l.b16 %v113
    %v232 = vunpack.c.h.b16 %v113
    %v233 = vunpack.c.l.b16 %v114
    %v234 = vunpack.c.l.b16 %v115
    %v235 = vunpack.c.h.b16 %v115
    %v236 = vunpack.c.l.b16 %v116
    %v237 = vunpack.c.l.b16 %v117
    %v238 = vunpack.c.h.b16 %v117
    %v239 = vunpack.c.l.b16 %v118
    %v240 = vunpack.c.l.b16 %v119
    %v241 = vunpack.c.h.b16 %v119
    %v242 = vunpack.c.l.b16 %v120
    %v243 = vunpack.c.l.b16 %v121
    %v244 = vunpack.c.h.b16 %v121
    %v245 = vunpack.c.l.b16 %v122
    %v246 = vunpack.c.l.b16 %v123
    %v247 = vunpack.c.h.b16 %v123
    %v248 = vunpack.c.l.b16 %v124
    %v249 = vunpack.c.l.b16 %v125
    %v250 = vunpack.c.h.b16 %v125
    %v251 = vunpack.c.l.b16 %v126
    %v252 = vunpack.c.l.b16 %v127
    %v253 = vunpack.c.h.b16 %v127
    %v254 = vunpack.c.l.b16 %v128
    %v255 = vunpack.c.l.b16 %v129
    %v256 = vunpack.c.h.b16 %v129
    %v257 = vunpack.c.l.b16 %v130
    %v258 = vunpack.c.l.b16 %v131
    %v259 = vunpack.c.h.b16 %v131
    %v260 = vunpack.c.l.b16 %v132
    %v261 = vunpack.c.l.b16 %v133
    %v262 = vunpack.c.h.b16 %v133
    %v263 = vunpack.c.l.b16 %v134
    %v264 = vpack.c.b16 %v219, %v216
    %v265 = vpack.c.b16 %v220, %v217
    %v266 = vpack.c.b16 %v221, %v218
    %v267 = vpack.c.b16 %v225, %v222
    %v268 = vpack.c.b16 %v226, %v223
    %v269 = vpack.c.b16 %v227, %v224
    %v270 = vpack.c.b16 %v231, %v228
    %v271 = vpack.c.b16 %v232, %v229
    %v272 = vpack.c.b16 %v233, %v230
    %v273 = vpack.c.b16 %v237, %v234
    %v274 = vpack.c.b16 %v238, %v235
    %v275 = vpack.c.b16 %v239, %v236
    %v276 = vpack.c.b16 %v243, %v240
    %v277 = vpack.c.b16 %v244, %v241
    %v278 = vpack.c.b16 %v245, %v242
    %v279 = vpack.c.b16 %v249, %v246
    %v280 = vpack.c.b16 %v250, %v247
    %v281 = vpack.c.b16 %v251, %v248
    %v282 = vpack.c.b16 %v255, %v252
    %v283 = vpack.c.b16 %v256, %v253
    %v284 = vpack.c.b16 %v257, %v254
    %v285 = vpack.c.b16 %v261, %v258
    %v286 = vpack.c.b16 %v262, %v259
    %v287 = vpack.c.b16 %v263, %v260
    %v360 = vunpack.c.l.b16 %v136
    %v361 = vunpack.c.l.b16 %v137
    %v362 = vunpack.c.l.b16 %v138
    %v363 = vunpack.c.l.b16 %v139
    %v364 = vunpack.c.l.b16 %v140
    %v365 = vunpack.c.l.b16 %v141
    %v366 = vunpack.c.l.b16 %v142
    %v367 = vunpack.c.l.b16 %v143
    %v368 = vunpack.c.l.b16 %v144
    %v369 = vunpack.c.l.b16 %v145
    %v370 = vunpack.c.l.b16 %v146
    %v371 = vunpack.c.l.b16 %v147
    %v372 = vunpack.c.l.b16 %v148
    %v373 = vunpack.c.l.b16 %v149
    %v374 = vunpack.c.l.b16 %v150
    %v375 = vunpack.c.l.b16 %v151
    %v376 = vunpack.c.l.b16 %v152
    %v377 = vunpack.c.l.b16 %v153
    %v378 = vunpack.c.l.b16 %v154
    %v379 = vunpack.c.l.b16 %v155
    %v380 = vunpack.c.l.b16 %v156
    %v381 = vunpack.c.l.b16 %v157
    %v382 = vunpack.c.l.b16 %v158
    %v383 = vunpack.c.l.b16 %v159
    %v384 = vunpack.c.l.b16 %v160
    %v385 = vunpack.c.l.b16 %v161
    %v386 = vunpack.c.l.b16 %v162
    %v387 = vunpack.c.l.b16 %v163
    %v388 = vunpack.c.l.b16 %v164
    %v389 = vunpack.c.l.b16 %v165
    %v390 = vunpack.c.l.b16 %v166
    %v391 = vunpack.c.l.b16 %v167
    %v392 = vunpack.c.l.b16 %v168
    %v393 = vunpack.c.l.b16 %v169
    %v394 = vunpack.c.l.b16 %v170
    %v395 = vunpack.c.l.b16 %v171
    %v396 = vunpack.c.l.b16 %v172
    %v397 = vunpack.c.l.b16 %v173
    %v398 = vunpack.c.l.b16 %v174
    %v399 = vunpack.c.l.b16 %v175
    %v400 = vunpack.c.l.b16 %v176
    %v401 = vunpack.c.l.b16 %v177
    %v402 = vunpack.c.l.b16 %v178
    %v403 = vunpack.c.l.b16 %v179
    %v404 = vunpack.c.l.b16 %v180
    %v405 = vunpack.c.l.b16 %v181
    %v406 = vunpack.c.l.b16 %v182
    %v407 = vunpack.c.l.b16 %v183
    %v408 = vpack.c.b16 %v361, %v360
    %v409 = vpack.c.b16 %v363, %v362
    %v410 = vpack.c.b16 %v365, %v364
    %v411 = vpack.c.b16 %v367, %v366
    %v412 = vpack.c.b16 %v369, %v368
    %v413 = vpack.c.b16 %v371, %v370
    %v414 = vpack.c.b16 %v373, %v372
    %v415 = vpack.c.b16 %v375, %v374
    %v416 = vpack.c.b16 %v377, %v376
    %v417 = vpack.c.b16 %v379, %v378
    %v418 = vpack.c.b16 %v381, %v380
    %v419 = vpack.c.b16 %v383, %v382
    %v420 = vpack.c.b16 %v385, %v384
    %v421 = vpack.c.b16 %v387, %v386
    %v422 = vpack.c.b16 %v389, %v388
    %v423 = vpack.c.b16 %v391, %v390
    %v424 = vpack.c.b16 %v393, %v392
    %v425 = vpack.c.b16 %v395, %v394
    %v426 = vpack.c.b16 %v397, %v396
    %v427 = vpack.c.b16 %v399, %v398
    %v428 = vpack.c.b16 %v401, %v400
    %v429 = vpack.c.b16 %v403, %v402
    %v430 = vpack.c.b16 %v405, %v404
    %v431 = vpack.c.b16 %v407, %v406
    %456 = vmatprep.subr.bf16.mxu0 0
    %457 = vmatpush1.bf16.msra.mxu0 %v408
    %458 = vmatprep.subr.bf16.mxu0 0
    %459 = vmatpush1.bf16.msra.mxu0 %v409
    %460 = vmatprep.subr.bf16.mxu0 0
    %461 = vmatpush1.bf16.msra.mxu0 %v410
    %462 = vmatprep.subr.bf16.mxu0 0
    %463 = vmatpush1.bf16.msra.mxu0 %v411
    %464 = vmatprep.subr.bf16.mxu0 0
    %465 = vmatpush1.bf16.msra.mxu0 %v412
    %466 = vmatprep.subr.bf16.mxu0 0
    %467 = vmatpush1.bf16.msra.mxu0 %v413
    %468 = vmatprep.subr.bf16.mxu0 0
    %469 = vmatpush1.bf16.msra.mxu0 %v414
    %470 = vmatprep.subr.bf16.mxu0 0
    %471 = vmatpush1.bf16.msra.mxu0 %v415
    %472 = vmatprep.subr.bf16.mxu0 0
    %473 = vmatpush1.bf16.msra.mxu0 %v416
    %474 = vmatprep.subr.bf16.mxu0 0
    %475 = vmatpush1.bf16.msra.mxu0 %v417
    %476 = vmatprep.subr.bf16.mxu0 0
    %477 = vmatpush1.bf16.msra.mxu0 %v418
    %478 = vmatprep.subr.bf16.mxu0 0
    %479 = vmatpush1.bf16.msra.mxu0 %v419
    %480 = vmatprep.subr.bf16.mxu0 0
    %481 = vmatpush1.bf16.msra.mxu0 %v420
    %482 = vmatprep.subr.bf16.mxu0 0
    %483 = vmatpush1.bf16.msra.mxu0 %v421
    %484 = vmatprep.subr.bf16.mxu0 0
    %485 = vmatpush1.bf16.msra.mxu0 %v422
    %486 = vmatprep.subr.bf16.mxu0 0
    %487 = vmatpush1.bf16.msra.mxu0 %v423
    %488 = vmatprep.mubr.bf16.mxu0 %v265
    %489 = vmatmul.mubr.bf16.gmra.mrb[0].mxu0 %v264
    %v490 = vpop.f32.mrb[0].mxu0
    %v491 = vadd.f32 0.0, %v490
    %v492 = vpop.f32.mrb[0].mxu0
    %v493 = vpop.f32.mrb[0].mxu0
    %v494 = vadd.f32 0.0, %v493
    %v495 = vpop.f32.mrb[0].mxu0
    %496 = vmatprep.mubr.bf16.mxu0 %v268
    %497 = vmatmul.mubr.bf16.gmra.mrb[0].mxu0 %v267
    %v498 = vpop.f32.mrb[0].mxu0
    %v499 = vadd.f32 0.0, %v498
    %v500 = vpop.f32.mrb[0].mxu0
    %v501 = vpop.f32.mrb[0].mxu0
    %v502 = vadd.f32 0.0, %v501
    %v503 = vpop.f32.mrb[0].mxu0
    %504 = vmatprep.mubr.bf16.mxu0 %v271
    %505 = vmatmul.mubr.bf16.gmra.mrb[0].mxu0 %v270
    %v506 = vpop.f32.mrb[0].mxu0
    %v507 = vadd.f32 0.0, %v506
    %v508 = vpop.f32.mrb[0].mxu0
    %v509 = vpop.f32.mrb[0].mxu0
    %v510 = vadd.f32 0.0, %v509
    %v511 = vpop.f32.mrb[0].mxu0
    %512 = vmatprep.mubr.bf16.mxu0 %v274
    %513 = vmatmul.mubr.bf16.gmra.mrb[0].mxu0 %v273
    %v514 = vpop.f32.mrb[0].mxu0
    %v515 = vadd.f32 0.0, %v514
    %v516 = vpop.f32.mrb[0].mxu0
    %v517 = vpop.f32.mrb[0].mxu0
    %v518 = vadd.f32 0.0, %v517
    %v519 = vpop.f32.mrb[0].mxu0
    %520 = vmatprep.mubr.bf16.mxu0 %v277
    %521 = vmatmul.mubr.bf16.gmra.mrb[0].mxu0 %v276
    %v522 = vpop.f32.mrb[0].mxu0
    %v523 = vadd.f32 0.0, %v522
    %v524 = vpop.f32.mrb[0].mxu0
    %v525 = vpop.f32.mrb[0].mxu0
    %v526 = vadd.f32 0.0, %v525
    %v527 = vpop.f32.mrb[0].mxu0
    %528 = vmatprep.mubr.bf16.mxu0 %v280
    %529 = vmatmul.mubr.bf16.gmra.mrb[0].mxu0 %v279
    %v530 = vpop.f32.mrb[0].mxu0
    %v531 = vadd.f32 0.0, %v530
    %v532 = vpop.f32.mrb[0].mxu0
    %v533 = vpop.f32.mrb[0].mxu0
    %v534 = vadd.f32 0.0, %v533
    %v535 = vpop.f32.mrb[0].mxu0
    %536 = vmatprep.mubr.bf16.mxu0 %v283
    %537 = vmatmul.mubr.bf16.gmra.mrb[0].mxu0 %v282
    %v538 = vpop.f32.mrb[0].mxu0
    %v539 = vadd.f32 0.0, %v538
    %v540 = vpop.f32.mrb[0].mxu0
    %v541 = vpop.f32.mrb[0].mxu0
    %v542 = vadd.f32 0.0, %v541
    %v543 = vpop.f32.mrb[0].mxu0
    %544 = vmatprep.mubr.bf16.mxu0 %v286
    %545 = vmatmul.mubr.bf16.gmra.mrb[0].mxu0 %v285
    %v546 = vpop.f32.mrb[0].mxu0
    %v547 = vadd.f32 0.0, %v546
    %v548 = vpop.f32.mrb[0].mxu0
    %v549 = vpop.f32.mrb[0].mxu0
    %v550 = vadd.f32 0.0, %v549
    %v551 = vpop.f32.mrb[0].mxu0
    %552 = vdwg.mxu0
    %553 = vmatprep.subr.bf16.mxu0 0
    %554 = vmatpush1.bf16.msra.mxu0 %v424
    %555 = vmatprep.subr.bf16.mxu0 0
    %556 = vmatpush1.bf16.msra.mxu0 %v425
    %557 = vmatprep.subr.bf16.mxu0 0
    %558 = vmatpush1.bf16.msra.mxu0 %v426
    %559 = vmatprep.subr.bf16.mxu0 0
    %560 = vmatpush1.bf16.msra.mxu0 %v427
    %561 = vmatprep.subr.bf16.mxu0 0
    %562 = vmatpush1.bf16.msra.mxu0 %v428
    %563 = vmatprep.subr.bf16.mxu0 0
    %564 = vmatpush1.bf16.msra.mxu0 %v429
    %565 = vmatprep.subr.bf16.mxu0 0
    %566 = vmatpush1.bf16.msra.mxu0 %v430
    %567 = vmatprep.subr.bf16.mxu0 0
    %568 = vmatpush1.bf16.msra.mxu0 %v431
    %569 = vmatprep.subr.bf16.mxu0 0
    %570 = vmatpush1.bf16.msra.mxu0 0
    %571 = vmatprep.subr.bf16.mxu0 0
    %572 = vmatpush1.bf16.msra.mxu0 0
    %573 = vmatprep.subr.bf16.mxu0 0
    %574 = vmatpush1.bf16.msra.mxu0 0
    %575 = vmatprep.subr.bf16.mxu0 0
    %576 = vmatpush1.bf16.msra.mxu0 0
    %577 = vmatprep.subr.bf16.mxu0 0
    %578 = vmatpush1.bf16.msra.mxu0 0
    %579 = vmatprep.subr.bf16.mxu0 0
    %580 = vmatpush1.bf16.msra.mxu0 0
    %581 = vmatprep.subr.bf16.mxu0 0
    %582 = vmatpush1.bf16.msra.mxu0 0
    %583 = vmatprep.subr.bf16.mxu0 0
    %584 = vmatpush1.bf16.msra.mxu0 0
    %585 = vmatprep.mubr.bf16.mxu0 0
    %586 = vmatmul.mubr.bf16.gmra.mrb[0].mxu0 %v266
    %v587 = vpop.f32.mrb[0].mxu0
    %v588 = vadd.f32 %v491, %v587
    %v589 = vpop.f32.mrb[0].mxu0
    %v590 = vpop.f32.mrb[0].mxu0
    %v591 = vadd.f32 %v494, %v590
    %v592 = vpop.f32.mrb[0].mxu0
    %593 = vmatprep.mubr.bf16.mxu0 0
    %594 = vmatmul.mubr.bf16.gmra.mrb[0].mxu0 %v269
    %v595 = vpop.f32.mrb[0].mxu0
    %v596 = vadd.f32 %v499, %v595
    %v597 = vpop.f32.mrb[0].mxu0
    %v598 = vpop.f32.mrb[0].mxu0
    %v599 = vadd.f32 %v502, %v598
    %v600 = vpop.f32.mrb[0].mxu0
    %601 = vmatprep.mubr.bf16.mxu0 0
    %602 = vmatmul.mubr.bf16.gmra.mrb[0].mxu0 %v272
    %v603 = vpop.f32.mrb[0].mxu0
    %v604 = vadd.f32 %v507, %v603
    %v605 = vpop.f32.mrb[0].mxu0
    %v606 = vpop.f32.mrb[0].mxu0
    %v607 = vadd.f32 %v510, %v606
    %v608 = vpop.f32.mrb[0].mxu0
    %609 = vmatprep.mubr.bf16.mxu0 0
    %610 = vmatmul.mubr.bf16.gmra.mrb[0].mxu0 %v275
    %v611 = vpop.f32.mrb[0].mxu0
    %v612 = vadd.f32 %v515, %v611
    %v613 = vpop.f32.mrb[0].mxu0
    %v614 = vpop.f32.mrb[0].mxu0
    %v615 = vadd.f32 %v518, %v614
    %v616 = vpop.f32.mrb[0].mxu0
    %617 = vmatprep.mubr.bf16.mxu0 0
    %618 = vmatmul.mubr.bf16.gmra.mrb[0].mxu0 %v278
    %v619 = vpop.f32.mrb[0].mxu0
    %v620 = vadd.f32 %v523, %v619
    %v621 = vpop.f32.mrb[0].mxu0
    %v622 = vpop.f32.mrb[0].mxu0
    %v623 = vadd.f32 %v526, %v622
    %v624 = vpop.f32.mrb[0].mxu0
    %625 = vmatprep.mubr.bf16.mxu0 0
    %626 = vmatmul.mubr.bf16.gmra.mrb[0].mxu0 %v281
    %v627 = vpop.f32.mrb[0].mxu0
    %v628 = vadd.f32 %v531, %v627
    %v629 = vpop.f32.mrb[0].mxu0
    %v630 = vpop.f32.mrb[0].mxu0
    %v631 = vadd.f32 %v534, %v630
    %v632 = vpop.f32.mrb[0].mxu0
    %633 = vmatprep.mubr.bf16.mxu0 0
    %634 = vmatmul.mubr.bf16.gmra.mrb[0].mxu0 %v284
    %v635 = vpop.f32.mrb[0].mxu0
    %v636 = vadd.f32 %v539, %v635
    %v637 = vpop.f32.mrb[0].mxu0
    %v638 = vpop.f32.mrb[0].mxu0
    %v639 = vadd.f32 %v542, %v638
    %v640 = vpop.f32.mrb[0].mxu0
    %641 = vmatprep.mubr.bf16.mxu0 0
    %642 = vmatmul.mubr.bf16.gmra.mrb[0].mxu0 %v287
    %v643 = vpop.f32.mrb[0].mxu0
    %v644 = vadd.f32 %v547, %v643
    %v645 = vpop.f32.mrb[0].mxu0
    %v646 = vpop.f32.mrb[0].mxu0
    %v647 = vadd.f32 %v550, %v646
    %v648 = vpop.f32.mrb[0].mxu0
    %649 = vdwg.mxu0
    %v682 = vunpack.c.l.b16 %v22
    %v683 = vunpack.c.h.b16 %v22
    %v684 = vunpack.c.l.b16 %v23
    %v685 = vunpack.c.l.b16 %v24
    %v686 = vunpack.c.h.b16 %v24
    %v687 = vunpack.c.l.b16 %v25
    %v688 = vunpack.c.l.b16 %v26
    %v689 = vunpack.c.h.b16 %v26
    %v690 = vunpack.c.l.b16 %v27
    %v691 = vunpack.c.l.b16 %v28
    %v692 = vunpack.c.h.b16 %v28
    %v693 = vunpack.c.l.b16 %v29
    %v694 = vunpack.c.l.b16 %v30
    %v695 = vunpack.c.h.b16 %v30
    %v696 = vunpack.c.l.b16 %v31
    %v697 = vunpack.c.l.b16 %v32
    %v698 = vunpack.c.h.b16 %v32
    %v699 = vunpack.c.l.b16 %v33
    %v700 = vunpack.c.l.b16 %v34
    %v701 = vunpack.c.h.b16 %v34
    %v702 = vunpack.c.l.b16 %v35
    %v703 = vunpack.c.l.b16 %v36
    %v704 = vunpack.c.h.b16 %v36
    %v705 = vunpack.c.l.b16 %v37
    %v706 = vunpack.c.l.b16 %v38
    %v707 = vunpack.c.h.b16 %v38
    %v708 = vunpack.c.l.b16 %v39
    %v709 = vunpack.c.l.b16 %v40
    %v710 = vunpack.c.h.b16 %v40
    %v711 = vunpack.c.l.b16 %v41
    %v712 = vunpack.c.l.b16 %v42
    %v713 = vunpack.c.h.b16 %v42
    %v714 = vunpack.c.l.b16 %v43
    %v715 = vunpack.c.l.b16 %v44
    %v716 = vunpack.c.h.b16 %v44
    %v717 = vunpack.c.l.b16 %v45
    %v718 = vunpack.c.l.b16 %v46
    %v719 = vunpack.c.h.b16 %v46
    %v720 = vunpack.c.l.b16 %v47
    %v721 = vunpack.c.l.b16 %v48
    %v722 = vunpack.c.h.b16 %v48
    %v723 = vunpack.c.l.b16 %v49
    %v724 = vunpack.c.l.b16 %v50
    %v725 = vunpack.c.h.b16 %v50
    %v726 = vunpack.c.l.b16 %v51
    %v727 = vunpack.c.l.b16 %v52
    %v728 = vunpack.c.h.b16 %v52
    %v729 = vunpack.c.l.b16 %v53
    %v730 = vpack.c.b16 %v685, %v682
    %v731 = vpack.c.b16 %v686, %v683
    %v732 = vpack.c.b16 %v687, %v684
    %v733 = vpack.c.b16 %v691, %v688
    %v734 = vpack.c.b16 %v692, %v689
    %v735 = vpack.c.b16 %v693, %v690
    %v736 = vpack.c.b16 %v697, %v694
    %v737 = vpack.c.b16 %v698, %v695
    %v738 = vpack.c.b16 %v699, %v696
    %v739 = vpack.c.b16 %v703, %v700
    %v740 = vpack.c.b16 %v704, %v701
    %v741 = vpack.c.b16 %v705, %v702
    %v742 = vpack.c.b16 %v709, %v706
    %v743 = vpack.c.b16 %v710, %v707
    %v744 = vpack.c.b16 %v711, %v708
    %v745 = vpack.c.b16 %v715, %v712
    %v746 = vpack.c.b16 %v716, %v713
    %v747 = vpack.c.b16 %v717, %v714
    %v748 = vpack.c.b16 %v721, %v718
    %v749 = vpack.c.b16 %v722, %v719
    %v750 = vpack.c.b16 %v723, %v720
    %v751 = vpack.c.b16 %v727, %v724
    %v752 = vpack.c.b16 %v728, %v725
    %v753 = vpack.c.b16 %v729, %v726
    %v826 = vunpack.c.l.b16 %v54
    %v827 = vunpack.c.l.b16 %v55
    %v828 = vunpack.c.l.b16 %v56
    %v829 = vunpack.c.l.b16 %v57
    %v830 = vunpack.c.l.b16 %v58
    %v831 = vunpack.c.l.b16 %v59
    %v832 = vunpack.c.l.b16 %v60
    %v833 = vunpack.c.l.b16 %v61
    %v834 = vunpack.c.l.b16 %v62
    %v835 = vunpack.c.l.b16 %v63
    %v836 = vunpack.c.l.b16 %v64
    %v837 = vunpack.c.l.b16 %v65
    %v838 = vunpack.c.l.b16 %v66
    %v839 = vunpack.c.l.b16 %v67
    %v840 = vunpack.c.l.b16 %v68
    %v841 = vunpack.c.l.b16 %v69
    %v842 = vunpack.c.l.b16 %v70
    %v843 = vunpack.c.l.b16 %v71
    %v844 = vunpack.c.l.b16 %v72
    %v845 = vunpack.c.l.b16 %v73
    %v846 = vunpack.c.l.b16 %v74
    %v847 = vunpack.c.l.b16 %v75
    %v848 = vunpack.c.l.b16 %v76
    %v849 = vunpack.c.l.b16 %v77
    %v850 = vunpack.c.l.b16 %v78
    %v851 = vunpack.c.l.b16 %v79
    %v852 = vunpack.c.l.b16 %v80
    %v853 = vunpack.c.l.b16 %v81
    %v854 = vunpack.c.l.b16 %v82
    %v855 = vunpack.c.l.b16 %v83
    %v856 = vunpack.c.l.b16 %v84
    %v857 = vunpack.c.l.b16 %v85
    %v858 = vunpack.c.l.b16 %v86
    %v859 = vunpack.c.l.b16 %v87
    %v860 = vunpack.c.l.b16 %v88
    %v861 = vunpack.c.l.b16 %v89
    %v862 = vunpack.c.l.b16 %v90
    %v863 = vunpack.c.l.b16 %v91
    %v864 = vunpack.c.l.b16 %v92
    %v865 = vunpack.c.l.b16 %v93
    %v866 = vunpack.c.l.b16 %v94
    %v867 = vunpack.c.l.b16 %v95
    %v868 = vunpack.c.l.b16 %v96
    %v869 = vunpack.c.l.b16 %v97
    %v870 = vunpack.c.l.b16 %v98
    %v871 = vunpack.c.l.b16 %v99
    %v872 = vunpack.c.l.b16 %v100
    %v873 = vunpack.c.l.b16 %v101
    %v874 = vpack.c.b16 %v827, %v826
    %v875 = vpack.c.b16 %v829, %v828
    %v876 = vpack.c.b16 %v831, %v830
    %v877 = vpack.c.b16 %v833, %v832
    %v878 = vpack.c.b16 %v835, %v834
    %v879 = vpack.c.b16 %v837, %v836
    %v880 = vpack.c.b16 %v839, %v838
    %v881 = vpack.c.b16 %v841, %v840
    %v882 = vpack.c.b16 %v843, %v842
    %v883 = vpack.c.b16 %v845, %v844
    %v884 = vpack.c.b16 %v847, %v846
    %v885 = vpack.c.b16 %v849, %v848
    %v886 = vpack.c.b16 %v851, %v850
    %v887 = vpack.c.b16 %v853, %v852
    %v888 = vpack.c.b16 %v855, %v854
    %v889 = vpack.c.b16 %v857, %v856
    %v890 = vpack.c.b16 %v859, %v858
    %v891 = vpack.c.b16 %v861, %v860
    %v892 = vpack.c.b16 %v863, %v862
    %v893 = vpack.c.b16 %v865, %v864
    %v894 = vpack.c.b16 %v867, %v866
    %v895 = vpack.c.b16 %v869, %v868
    %v896 = vpack.c.b16 %v871, %v870
    %v897 = vpack.c.b16 %v873, %v872
    %922 = vmatprep.subr.bf16.mxu0 0
    %923 = vmatpush1.bf16.msra.mxu0 %v874
    %924 = vmatprep.subr.bf16.mxu0 0
    %925 = vmatpush1.bf16.msra.mxu0 %v875
    %926 = vmatprep.subr.bf16.mxu0 0
    %927 = vmatpush1.bf16.msra.mxu0 %v876
    %928 = vmatprep.subr.bf16.mxu0 0
    %929 = vmatpush1.bf16.msra.mxu0 %v877
    %930 = vmatprep.subr.bf16.mxu0 0
    %931 = vmatpush1.bf16.msra.mxu0 %v878
    %932 = vmatprep.subr.bf16.mxu0 0
    %933 = vmatpush1.bf16.msra.mxu0 %v879
    %934 = vmatprep.subr.bf16.mxu0 0
    %935 = vmatpush1.bf16.msra.mxu0 %v880
    %936 = vmatprep.subr.bf16.mxu0 0
    %937 = vmatpush1.bf16.msra.mxu0 %v881
    %938 = vmatprep.subr.bf16.mxu0 0
    %939 = vmatpush1.bf16.msra.mxu0 %v882
    %940 = vmatprep.subr.bf16.mxu0 0
    %941 = vmatpush1.bf16.msra.mxu0 %v883
    %942 = vmatprep.subr.bf16.mxu0 0
    %943 = vmatpush1.bf16.msra.mxu0 %v884
    %944 = vmatprep.subr.bf16.mxu0 0
    %945 = vmatpush1.bf16.msra.mxu0 %v885
    %946 = vmatprep.subr.bf16.mxu0 0
    %947 = vmatpush1.bf16.msra.mxu0 %v886
    %948 = vmatprep.subr.bf16.mxu0 0
    %949 = vmatpush1.bf16.msra.mxu0 %v887
    %950 = vmatprep.subr.bf16.mxu0 0
    %951 = vmatpush1.bf16.msra.mxu0 %v888
    %952 = vmatprep.subr.bf16.mxu0 0
    %953 = vmatpush1.bf16.msra.mxu0 %v889
    %954 = vmatprep.mubr.bf16.mxu0 %v731
    %955 = vmatmul.mubr.bf16.gmra.mrb[0].mxu0 %v730
    %v956 = vpop.f32.mrb[0].mxu0
    %v957 = vadd.f32 %v588, %v956
    %v958 = vpop.f32.mrb[0].mxu0
    %v959 = vpop.f32.mrb[0].mxu0
    %v960 = vadd.f32 %v591, %v959
    %v961 = vpop.f32.mrb[0].mxu0
    %962 = vmatprep.mubr.bf16.mxu0 %v734
    %963 = vmatmul.mubr.bf16.gmra.mrb[0].mxu0 %v733
    %v964 = vpop.f32.mrb[0].mxu0
    %v965 = vadd.f32 %v596, %v964
    %v966 = vpop.f32.mrb[0].mxu0
    %v967 = vpop.f32.mrb[0].mxu0
    %v968 = vadd.f32 %v599, %v967
    %v969 = vpop.f32.mrb[0].mxu0
    %970 = vmatprep.mubr.bf16.mxu0 %v737
    %971 = vmatmul.mubr.bf16.gmra.mrb[0].mxu0 %v736
    %v972 = vpop.f32.mrb[0].mxu0
    %v973 = vadd.f32 %v604, %v972
    %v974 = vpop.f32.mrb[0].mxu0
    %v975 = vpop.f32.mrb[0].mxu0
    %v976 = vadd.f32 %v607, %v975
    %v977 = vpop.f32.mrb[0].mxu0
    %978 = vmatprep.mubr.bf16.mxu0 %v740
    %979 = vmatmul.mubr.bf16.gmra.mrb[0].mxu0 %v739
    %v980 = vpop.f32.mrb[0].mxu0
    %v981 = vadd.f32 %v612, %v980
    %v982 = vpop.f32.mrb[0].mxu0
    %v983 = vpop.f32.mrb[0].mxu0
    %v984 = vadd.f32 %v615, %v983
    %v985 = vpop.f32.mrb[0].mxu0
    %986 = vmatprep.mubr.bf16.mxu0 %v743
    %987 = vmatmul.mubr.bf16.gmra.mrb[0].mxu0 %v742
    %v988 = vpop.f32.mrb[0].mxu0
    %v989 = vadd.f32 %v620, %v988
    %v990 = vpop.f32.mrb[0].mxu0
    %v991 = vpop.f32.mrb[0].mxu0
    %v992 = vadd.f32 %v623, %v991
    %v993 = vpop.f32.mrb[0].mxu0
    %994 = vmatprep.mubr.bf16.mxu0 %v746
    %995 = vmatmul.mubr.bf16.gmra.mrb[0].mxu0 %v745
    %v996 = vpop.f32.mrb[0].mxu0
    %v997 = vadd.f32 %v628, %v996
    %v998 = vpop.f32.mrb[0].mxu0
    %v999 = vpop.f32.mrb[0].mxu0
    %v1000 = vadd.f32 %v631, %v999
    %v1001 = vpop.f32.mrb[0].mxu0
    %1002 = vmatprep.mubr.bf16.mxu0 %v749
    %1003 = vmatmul.mubr.bf16.gmra.mrb[0].mxu0 %v748
    %v1004 = vpop.f32.mrb[0].mxu0
    %v1005 = vadd.f32 %v636, %v1004
    %v1006 = vpop.f32.mrb[0].mxu0
    %v1007 = vpop.f32.mrb[0].mxu0
    %v1008 = vadd.f32 %v639, %v1007
    %v1009 = vpop.f32.mrb[0].mxu0
    %1010 = vmatprep.mubr.bf16.mxu0 %v752
    %1011 = vmatmul.mubr.bf16.gmra.mrb[0].mxu0 %v751
    %v1012 = vpop.f32.mrb[0].mxu0
    %v1013 = vadd.f32 %v644, %v1012
    %v1014 = vpop.f32.mrb[0].mxu0
    %v1015 = vpop.f32.mrb[0].mxu0
    %v1016 = vadd.f32 %v647, %v1015
    %v1017 = vpop.f32.mrb[0].mxu0
    %1018 = vdwg.mxu0
    %1019 = vmatprep.subr.bf16.mxu0 0
    %1020 = vmatpush1.bf16.msra.mxu0 %v890
    %1021 = vmatprep.subr.bf16.mxu0 0
    %1022 = vmatpush1.bf16.msra.mxu0 %v891
    %1023 = vmatprep.subr.bf16.mxu0 0
    %1024 = vmatpush1.bf16.msra.mxu0 %v892
    %1025 = vmatprep.subr.bf16.mxu0 0
    %1026 = vmatpush1.bf16.msra.mxu0 %v893
    %1027 = vmatprep.subr.bf16.mxu0 0
    %1028 = vmatpush1.bf16.msra.mxu0 %v894
    %1029 = vmatprep.subr.bf16.mxu0 0
    %1030 = vmatpush1.bf16.msra.mxu0 %v895
    %1031 = vmatprep.subr.bf16.mxu0 0
    %1032 = vmatpush1.bf16.msra.mxu0 %v896
    %1033 = vmatprep.subr.bf16.mxu0 0
    %1034 = vmatpush1.bf16.msra.mxu0 %v897
    %1035 = vmatprep.subr.bf16.mxu0 0
    %1036 = vmatpush1.bf16.msra.mxu0 0
    %1037 = vmatprep.subr.bf16.mxu0 0
    %1038 = vmatpush1.bf16.msra.mxu0 0
    %1039 = vmatprep.subr.bf16.mxu0 0
    %1040 = vmatpush1.bf16.msra.mxu0 0
    %1041 = vmatprep.subr.bf16.mxu0 0
    %1042 = vmatpush1.bf16.msra.mxu0 0
    %1043 = vmatprep.subr.bf16.mxu0 0
    %1044 = vmatpush1.bf16.msra.mxu0 0
    %1045 = vmatprep.subr.bf16.mxu0 0
    %1046 = vmatpush1.bf16.msra.mxu0 0
    %1047 = vmatprep.subr.bf16.mxu0 0
    %1048 = vmatpush1.bf16.msra.mxu0 0
    %1049 = vmatprep.subr.bf16.mxu0 0
    %1050 = vmatpush1.bf16.msra.mxu0 0
    %1051 = vmatprep.mubr.bf16.mxu0 0
    %1052 = vmatmul.mubr.bf16.gmra.mrb[0].mxu0 %v732
    %v1053 = vpop.f32.mrb[0].mxu0
    %v1054 = vadd.f32 %v957, %v1053
    %v1055 = vpop.f32.mrb[0].mxu0
    %v1056 = vpop.f32.mrb[0].mxu0
    %v1057 = vadd.f32 %v960, %v1056
    %v1058 = vpop.f32.mrb[0].mxu0
    %1059 = vmatprep.mubr.bf16.mxu0 0
    %1060 = vmatmul.mubr.bf16.gmra.mrb[0].mxu0 %v735
    %v1061 = vpop.f32.mrb[0].mxu0
    %v1062 = vadd.f32 %v965, %v1061
    %v1063 = vpop.f32.mrb[0].mxu0
    %v1064 = vpop.f32.mrb[0].mxu0
    %v1065 = vadd.f32 %v968, %v1064
    %v1066 = vpop.f32.mrb[0].mxu0
    %1067 = vmatprep.mubr.bf16.mxu0 0
    %1068 = vmatmul.mubr.bf16.gmra.mrb[0].mxu0 %v738
    %v1069 = vpop.f32.mrb[0].mxu0
    %v1070 = vadd.f32 %v973, %v1069
    %v1071 = vpop.f32.mrb[0].mxu0
    %v1072 = vpop.f32.mrb[0].mxu0
    %v1073 = vadd.f32 %v976, %v1072
    %v1074 = vpop.f32.mrb[0].mxu0
    %1075 = vmatprep.mubr.bf16.mxu0 0
    %1076 = vmatmul.mubr.bf16.gmra.mrb[0].mxu0 %v741
    %v1077 = vpop.f32.mrb[0].mxu0
    %v1078 = vadd.f32 %v981, %v1077
    %v1079 = vpop.f32.mrb[0].mxu0
    %v1080 = vpop.f32.mrb[0].mxu0
    %v1081 = vadd.f32 %v984, %v1080
    %v1082 = vpop.f32.mrb[0].mxu0
    %1083 = vmatprep.mubr.bf16.mxu0 0
    %1084 = vmatmul.mubr.bf16.gmra.mrb[0].mxu0 %v744
    %v1085 = vpop.f32.mrb[0].mxu0
    %v1086 = vadd.f32 %v989, %v1085
    %v1087 = vpop.f32.mrb[0].mxu0
    %v1088 = vpop.f32.mrb[0].mxu0
    %v1089 = vadd.f32 %v992, %v1088
    %v1090 = vpop.f32.mrb[0].mxu0
    %1091 = vmatprep.mubr.bf16.mxu0 0
    %1092 = vmatmul.mubr.bf16.gmra.mrb[0].mxu0 %v747
    %v1093 = vpop.f32.mrb[0].mxu0
    %v1094 = vadd.f32 %v997, %v1093
    %v1095 = vpop.f32.mrb[0].mxu0
    %v1096 = vpop.f32.mrb[0].mxu0
    %v1097 = vadd.f32 %v1000, %v1096
    %v1098 = vpop.f32.mrb[0].mxu0
    %1099 = vmatprep.mubr.bf16.mxu0 0
    %1100 = vmatmul.mubr.bf16.gmra.mrb[0].mxu0 %v750
    %v1101 = vpop.f32.mrb[0].mxu0
    %v1102 = vadd.f32 %v1005, %v1101
    %v1103 = vpop.f32.mrb[0].mxu0
    %v1104 = vpop.f32.mrb[0].mxu0
    %v1105 = vadd.f32 %v1008, %v1104
    %v1106 = vpop.f32.mrb[0].mxu0
    %1107 = vmatprep.mubr.bf16.mxu0 0
    %1108 = vmatmul.mubr.bf16.gmra.mrb[0].mxu0 %v753
    %v1109 = vpop.f32.mrb[0].mxu0
    %v1110 = vadd.f32 %v1013, %v1109
    %v1111 = vpop.f32.mrb[0].mxu0
    %v1112 = vpop.f32.mrb[0].mxu0
    %v1113 = vadd.f32 %v1016, %v1112
    %v1114 = vpop.f32.mrb[0].mxu0
    %1115 = vdwg.mxu0
    %s1116 = scalar_lea.vmem %s0, 24
    %v1117 = vld [vmem:[%s1116] sm:$0xff]
    %v1118 = vld [vmem:[%s1116 + $0x8] sm:$0xf]
    %v1119 = vld [vmem:[%s1116 + $0xc] sm:$0xff]
    %v1120 = vld [vmem:[%s1116 + $0x14] sm:$0xf]
    %v1121 = vld [vmem:[%s1116 + $0x18] sm:$0xff]
    %v1122 = vld [vmem:[%s1116 + $0x20] sm:$0xf]
    %v1123 = vld [vmem:[%s1116 + $0x24] sm:$0xff]
    %v1124 = vld [vmem:[%s1116 + $0x2c] sm:$0xf]
    %v1125 = vld [vmem:[%s1116 + $0x30] sm:$0xff]
    %v1126 = vld [vmem:[%s1116 + $0x38] sm:$0xf]
    %v1127 = vld [vmem:[%s1116 + $0x3c] sm:$0xff]
    %v1128 = vld [vmem:[%s1116 + $0x44] sm:$0xf]
    %v1129 = vld [vmem:[%s1116 + $0x48] sm:$0xff]
    %v1130 = vld [vmem:[%s1116 + $0x50] sm:$0xf]
    %v1131 = vld [vmem:[%s1116 + $0x54] sm:$0xff]
    %v1132 = vld [vmem:[%s1116 + $0x5c] sm:$0xf]
    %v1133 = vld [vmem:[%s1116 + $0x78] sm:$0xff]
    %v1134 = vld [vmem:[%s1116 + $0x80] sm:$0xf]
    %v1135 = vld [vmem:[%s1116 + $0x84] sm:$0xff]
    %v1136 = vld [vmem:[%s1116 + $0x8c] sm:$0xf]
    %v1137 = vld [vmem:[%s1116 + $0x90] sm:$0xff]
    %v1138 = vld [vmem:[%s1116 + $0x98] sm:$0xf]
    %v1139 = vld [vmem:[%s1116 + $0x9c] sm:$0xff]
    %v1140 = vld [vmem:[%s1116 + $0xa4] sm:$0xf]
    %v1141 = vld [vmem:[%s1116 + $0xa8] sm:$0xff]
    %v1142 = vld [vmem:[%s1116 + $0xb0] sm:$0xf]
    %v1143 = vld [vmem:[%s1116 + $0xb4] sm:$0xff]
    %v1144 = vld [vmem:[%s1116 + $0xbc] sm:$0xf]
    %v1145 = vld [vmem:[%s1116 + $0xc0] sm:$0xff]
    %v1146 = vld [vmem:[%s1116 + $0xc8] sm:$0xf]
    %v1147 = vld [vmem:[%s1116 + $0xcc] sm:$0xff]
    %v1148 = vld [vmem:[%s1116 + $0xd4] sm:$0xf]
    %s1149 = scalar_lea.vmem %s1, 384
    %v1150 = vld [vmem:[%s1149] sm:$0xf]
    %v1151 = vld [vmem:[%s1149 + $0x4] sm:$0xf]
    %v1152 = vld [vmem:[%s1149 + $0x8] sm:$0xf]
    %v1153 = vld [vmem:[%s1149 + $0xc] sm:$0xf]
    %v1154 = vld [vmem:[%s1149 + $0x10] sm:$0xf]
    %v1155 = vld [vmem:[%s1149 + $0x14] sm:$0xf]
    %v1156 = vld [vmem:[%s1149 + $0x18] sm:$0xf]
    %v1157 = vld [vmem:[%s1149 + $0x1c] sm:$0xf]
    %v1158 = vld [vmem:[%s1149 + $0x20] sm:$0xf]
    %v1159 = vld [vmem:[%s1149 + $0x24] sm:$0xf]
    %v1160 = vld [vmem:[%s1149 + $0x28] sm:$0xf]
    %v1161 = vld [vmem:[%s1149 + $0x2c] sm:$0xf]
    %v1162 = vld [vmem:[%s1149 + $0x30] sm:$0xf]
    %v1163 = vld [vmem:[%s1149 + $0x34] sm:$0xf]
    %v1164 = vld [vmem:[%s1149 + $0x38] sm:$0xf]
    %v1165 = vld [vmem:[%s1149 + $0x3c] sm:$0xf]
    %v1166 = vld [vmem:[%s1149 + $0x40] sm:$0xf]
    %v1167 = vld [vmem:[%s1149 + $0x44] sm:$0xf]
    %v1168 = vld [vmem:[%s1149 + $0x48] sm:$0xf]
    %v1169 = vld [vmem:[%s1149 + $0x4c] sm:$0xf]
    %v1170 = vld [vmem:[%s1149 + $0x50] sm:$0xf]
    %v1171 = vld [vmem:[%s1149 + $0x54] sm:$0xf]
    %v1172 = vld [vmem:[%s1149 + $0x58] sm:$0xf]
    %v1173 = vld [vmem:[%s1149 + $0x5c] sm:$0xf]
    %v1174 = vld [vmem:[%s1149 + $0x60] sm:$0xf]
    %v1175 = vld [vmem:[%s1149 + $0x64] sm:$0xf]
    %v1176 = vld [vmem:[%s1149 + $0x68] sm:$0xf]
    %v1177 = vld [vmem:[%s1149 + $0x6c] sm:$0xf]
    %v1178 = vld [vmem:[%s1149 + $0x70] sm:$0xf]
    %v1179 = vld [vmem:[%s1149 + $0x74] sm:$0xf]
    %v1180 = vld [vmem:[%s1149 + $0x78] sm:$0xf]
    %v1181 = vld [vmem:[%s1149 + $0x7c] sm:$0xf]
    %v1182 = vld [vmem:[%s1149 + $0x80] sm:$0xf]
    %v1183 = vld [vmem:[%s1149 + $0x84] sm:$0xf]
    %v1184 = vld [vmem:[%s1149 + $0x88] sm:$0xf]
    %v1185 = vld [vmem:[%s1149 + $0x8c] sm:$0xf]
    %v1186 = vld [vmem:[%s1149 + $0x90] sm:$0xf]
    %v1187 = vld [vmem:[%s1149 + $0x94] sm:$0xf]
    %v1188 = vld [vmem:[%s1149 + $0x98] sm:$0xf]
    %v1189 = vld [vmem:[%s1149 + $0x9c] sm:$0xf]
    %v1190 = vld [vmem:[%s1149 + $0xa0] sm:$0xf]
    %v1191 = vld [vmem:[%s1149 + $0xa4] sm:$0xf]
    %v1192 = vld [vmem:[%s1149 + $0xa8] sm:$0xf]
    %v1193 = vld [vmem:[%s1149 + $0xac] sm:$0xf]
    %v1194 = vld [vmem:[%s1149 + $0xb0] sm:$0xf]
    %v1195 = vld [vmem:[%s1149 + $0xb4] sm:$0xf]
    %v1196 = vld [vmem:[%s1149 + $0xb8] sm:$0xf]
    %v1197 = vld [vmem:[%s1149 + $0xbc] sm:$0xf]
    %v1230 = vunpack.c.l.b16 %v1117
    %v1231 = vunpack.c.h.b16 %v1117
    %v1232 = vunpack.c.l.b16 %v1118
    %v1233 = vunpack.c.l.b16 %v1119
    %v1234 = vunpack.c.h.b16 %v1119
    %v1235 = vunpack.c.l.b16 %v1120
    %v1236 = vunpack.c.l.b16 %v1121
    %v1237 = vunpack.c.h.b16 %v1121
    %v1238 = vunpack.c.l.b16 %v1122
    %v1239 = vunpack.c.l.b16 %v1123
    %v1240 = vunpack.c.h.b16 %v1123
    %v1241 = vunpack.c.l.b16 %v1124
    %v1242 = vunpack.c.l.b16 %v1125
    %v1243 = vunpack.c.h.b16 %v1125
    %v1244 = vunpack.c.l.b16 %v1126
    %v1245 = vunpack.c.l.b16 %v1127
    %v1246 = vunpack.c.h.b16 %v1127
    %v1247 = vunpack.c.l.b16 %v1128
    %v1248 = vunpack.c.l.b16 %v1129
    %v1249 = vunpack.c.h.b16 %v1129
    %v1250 = vunpack.c.l.b16 %v1130
    %v1251 = vunpack.c.l.b16 %v1131
    %v1252 = vunpack.c.h.b16 %v1131
    %v1253 = vunpack.c.l.b16 %v1132
    %v1254 = vunpack.c.l.b16 %v1133
    %v1255 = vunpack.c.h.b16 %v1133
    %v1256 = vunpack.c.l.b16 %v1134
    %v1257 = vunpack.c.l.b16 %v1135
    %v1258 = vunpack.c.h.b16 %v1135
    %v1259 = vunpack.c.l.b16 %v1136
    %v1260 = vunpack.c.l.b16 %v1137
    %v1261 = vunpack.c.h.b16 %v1137
    %v1262 = vunpack.c.l.b16 %v1138
    %v1263 = vunpack.c.l.b16 %v1139
    %v1264 = vunpack.c.h.b16 %v1139
    %v1265 = vunpack.c.l.b16 %v1140
    %v1266 = vunpack.c.l.b16 %v1141
    %v1267 = vunpack.c.h.b16 %v1141
    %v1268 = vunpack.c.l.b16 %v1142
    %v1269 = vunpack.c.l.b16 %v1143
    %v1270 = vunpack.c.h.b16 %v1143
    %v1271 = vunpack.c.l.b16 %v1144
    %v1272 = vunpack.c.l.b16 %v1145
    %v1273 = vunpack.c.h.b16 %v1145
    %v1274 = vunpack.c.l.b16 %v1146
    %v1275 = vunpack.c.l.b16 %v1147
    %v1276 = vunpack.c.h.b16 %v1147
    %v1277 = vunpack.c.l.b16 %v1148
    %v1278 = vpack.c.b16 %v1233, %v1230
    %v1279 = vpack.c.b16 %v1234, %v1231
    %v1280 = vpack.c.b16 %v1235, %v1232
    %v1281 = vpack.c.b16 %v1239, %v1236
    %v1282 = vpack.c.b16 %v1240, %v1237
    %v1283 = vpack.c.b16 %v1241, %v1238
    %v1284 = vpack.c.b16 %v1245, %v1242
    %v1285 = vpack.c.b16 %v1246, %v1243
    %v1286 = vpack.c.b16 %v1247, %v1244
    %v1287 = vpack.c.b16 %v1251, %v1248
    %v1288 = vpack.c.b16 %v1252, %v1249
    %v1289 = vpack.c.b16 %v1253, %v1250
    %v1290 = vpack.c.b16 %v1257, %v1254
    %v1291 = vpack.c.b16 %v1258, %v1255
    %v1292 = vpack.c.b16 %v1259, %v1256
    %v1293 = vpack.c.b16 %v1263, %v1260
    %v1294 = vpack.c.b16 %v1264, %v1261
    %v1295 = vpack.c.b16 %v1265, %v1262
    %v1296 = vpack.c.b16 %v1269, %v1266
    %v1297 = vpack.c.b16 %v1270, %v1267
    %v1298 = vpack.c.b16 %v1271, %v1268
    %v1299 = vpack.c.b16 %v1275, %v1272
    %v1300 = vpack.c.b16 %v1276, %v1273
    %v1301 = vpack.c.b16 %v1277, %v1274
    %v1374 = vunpack.c.l.b16 %v1150
    %v1375 = vunpack.c.l.b16 %v1151
    %v1376 = vunpack.c.l.b16 %v1152
    %v1377 = vunpack.c.l.b16 %v1153
    %v1378 = vunpack.c.l.b16 %v1154
    %v1379 = vunpack.c.l.b16 %v1155
    %v1380 = vunpack.c.l.b16 %v1156
    %v1381 = vunpack.c.l.b16 %v1157
    %v1382 = vunpack.c.l.b16 %v1158
    %v1383 = vunpack.c.l.b16 %v1159
    %v1384 = vunpack.c.l.b16 %v1160
    %v1385 = vunpack.c.l.b16 %v1161
    %v1386 = vunpack.c.l.b16 %v1162
    %v1387 = vunpack.c.l.b16 %v1163
    %v1388 = vunpack.c.l.b16 %v1164
    %v1389 = vunpack.c.l.b16 %v1165
    %v1390 = vunpack.c.l.b16 %v1166
    %v1391 = vunpack.c.l.b16 %v1167
    %v1392 = vunpack.c.l.b16 %v1168
    %v1393 = vunpack.c.l.b16 %v1169
    %v1394 = vunpack.c.l.b16 %v1170
    %v1395 = vunpack.c.l.b16 %v1171
    %v1396 = vunpack.c.l.b16 %v1172
    %v1397 = vunpack.c.l.b16 %v1173
    %v1398 = vunpack.c.l.b16 %v1174
    %v1399 = vunpack.c.l.b16 %v1175
    %v1400 = vunpack.c.l.b16 %v1176
    %v1401 = vunpack.c.l.b16 %v1177
    %v1402 = vunpack.c.l.b16 %v1178
    %v1403 = vunpack.c.l.b16 %v1179
    %v1404 = vunpack.c.l.b16 %v1180
    %v1405 = vunpack.c.l.b16 %v1181
    %v1406 = vunpack.c.l.b16 %v1182
    %v1407 = vunpack.c.l.b16 %v1183
    %v1408 = vunpack.c.l.b16 %v1184
    %v1409 = vunpack.c.l.b16 %v1185
    %v1410 = vunpack.c.l.b16 %v1186
    %v1411 = vunpack.c.l.b16 %v1187
    %v1412 = vunpack.c.l.b16 %v1188
    %v1413 = vunpack.c.l.b16 %v1189
    %v1414 = vunpack.c.l.b16 %v1190
    %v1415 = vunpack.c.l.b16 %v1191
    %v1416 = vunpack.c.l.b16 %v1192
    %v1417 = vunpack.c.l.b16 %v1193
    %v1418 = vunpack.c.l.b16 %v1194
    %v1419 = vunpack.c.l.b16 %v1195
    %v1420 = vunpack.c.l.b16 %v1196
    %v1421 = vunpack.c.l.b16 %v1197
    %v1422 = vpack.c.b16 %v1375, %v1374
    %v1423 = vpack.c.b16 %v1377, %v1376
    %v1424 = vpack.c.b16 %v1379, %v1378
    %v1425 = vpack.c.b16 %v1381, %v1380
    %v1426 = vpack.c.b16 %v1383, %v1382
    %v1427 = vpack.c.b16 %v1385, %v1384
    %v1428 = vpack.c.b16 %v1387, %v1386
    %v1429 = vpack.c.b16 %v1389, %v1388
    %v1430 = vpack.c.b16 %v1391, %v1390
    %v1431 = vpack.c.b16 %v1393, %v1392
    %v1432 = vpack.c.b16 %v1395, %v1394
    %v1433 = vpack.c.b16 %v1397, %v1396
    %v1434 = vpack.c.b16 %v1399, %v1398
    %v1435 = vpack.c.b16 %v1401, %v1400
    %v1436 = vpack.c.b16 %v1403, %v1402
    %v1437 = vpack.c.b16 %v1405, %v1404
    %v1438 = vpack.c.b16 %v1407, %v1406
    %v1439 = vpack.c.b16 %v1409, %v1408
    %v1440 = vpack.c.b16 %v1411, %v1410
    %v1441 = vpack.c.b16 %v1413, %v1412
    %v1442 = vpack.c.b16 %v1415, %v1414
    %v1443 = vpack.c.b16 %v1417, %v1416
    %v1444 = vpack.c.b16 %v1419, %v1418
    %v1445 = vpack.c.b16 %v1421, %v1420
    %1470 = vmatprep.subr.bf16.mxu0 0
    %1471 = vmatpush1.bf16.msra.mxu0 %v1422
    %1472 = vmatprep.subr.bf16.mxu0 0
    %1473 = vmatpush1.bf16.msra.mxu0 %v1423
    %1474 = vmatprep.subr.bf16.mxu0 0
    %1475 = vmatpush1.bf16.msra.mxu0 %v1424
    %1476 = vmatprep.subr.bf16.mxu0 0
    %1477 = vmatpush1.bf16.msra.mxu0 %v1425
    %1478 = vmatprep.subr.bf16.mxu0 0
    %1479 = vmatpush1.bf16.msra.mxu0 %v1426
    %1480 = vmatprep.subr.bf16.mxu0 0
    %1481 = vmatpush1.bf16.msra.mxu0 %v1427
    %1482 = vmatprep.subr.bf16.mxu0 0
    %1483 = vmatpush1.bf16.msra.mxu0 %v1428
    %1484 = vmatprep.subr.bf16.mxu0 0
    %1485 = vmatpush1.bf16.msra.mxu0 %v1429
    %1486 = vmatprep.subr.bf16.mxu0 0
    %1487 = vmatpush1.bf16.msra.mxu0 %v1430
    %1488 = vmatprep.subr.bf16.mxu0 0
    %1489 = vmatpush1.bf16.msra.mxu0 %v1431
    %1490 = vmatprep.subr.bf16.mxu0 0
    %1491 = vmatpush1.bf16.msra.mxu0 %v1432
    %1492 = vmatprep.subr.bf16.mxu0 0
    %1493 = vmatpush1.bf16.msra.mxu0 %v1433
    %1494 = vmatprep.subr.bf16.mxu0 0
    %1495 = vmatpush1.bf16.msra.mxu0 %v1434
    %1496 = vmatprep.subr.bf16.mxu0 0
    %1497 = vmatpush1.bf16.msra.mxu0 %v1435
    %1498 = vmatprep.subr.bf16.mxu0 0
    %1499 = vmatpush1.bf16.msra.mxu0 %v1436
    %1500 = vmatprep.subr.bf16.mxu0 0
    %1501 = vmatpush1.bf16.msra.mxu0 %v1437
    %1502 = vmatprep.mubr.bf16.mxu0 %v1279
    %1503 = vmatmul.mubr.bf16.gmra.mrb[0].mxu0 %v1278
    %v1504 = vpop.f32.mrb[0].mxu0
    %v1505 = vadd.f32 0.0, %v1504
    %v1506 = vpop.f32.mrb[0].mxu0
    %v1507 = vpop.f32.mrb[0].mxu0
    %v1508 = vadd.f32 0.0, %v1507
    %v1509 = vpop.f32.mrb[0].mxu0
    %1510 = vmatprep.mubr.bf16.mxu0 %v1282
    %1511 = vmatmul.mubr.bf16.gmra.mrb[0].mxu0 %v1281
    %v1512 = vpop.f32.mrb[0].mxu0
    %v1513 = vadd.f32 0.0, %v1512
    %v1514 = vpop.f32.mrb[0].mxu0
    %v1515 = vpop.f32.mrb[0].mxu0
    %v1516 = vadd.f32 0.0, %v1515
    %v1517 = vpop.f32.mrb[0].mxu0
    %1518 = vmatprep.mubr.bf16.mxu0 %v1285
    %1519 = vmatmul.mubr.bf16.gmra.mrb[0].mxu0 %v1284
    %v1520 = vpop.f32.mrb[0].mxu0
    %v1521 = vadd.f32 0.0, %v1520
    %v1522 = vpop.f32.mrb[0].mxu0
    %v1523 = vpop.f32.mrb[0].mxu0
    %v1524 = vadd.f32 0.0, %v1523
    %v1525 = vpop.f32.mrb[0].mxu0
    %1526 = vmatprep.mubr.bf16.mxu0 %v1288
    %1527 = vmatmul.mubr.bf16.gmra.mrb[0].mxu0 %v1287
    %v1528 = vpop.f32.mrb[0].mxu0
    %v1529 = vadd.f32 0.0, %v1528
    %v1530 = vpop.f32.mrb[0].mxu0
    %v1531 = vpop.f32.mrb[0].mxu0
    %v1532 = vadd.f32 0.0, %v1531
    %v1533 = vpop.f32.mrb[0].mxu0
    %1534 = vmatprep.mubr.bf16.mxu0 %v1291
    %1535 = vmatmul.mubr.bf16.gmra.mrb[0].mxu0 %v1290
    %v1536 = vpop.f32.mrb[0].mxu0
    %v1537 = vadd.f32 0.0, %v1536
    %v1538 = vpop.f32.mrb[0].mxu0
    %v1539 = vpop.f32.mrb[0].mxu0
    %v1540 = vadd.f32 0.0, %v1539
    %v1541 = vpop.f32.mrb[0].mxu0
    %1542 = vmatprep.mubr.bf16.mxu0 %v1294
    %1543 = vmatmul.mubr.bf16.gmra.mrb[0].mxu0 %v1293
    %v1544 = vpop.f32.mrb[0].mxu0
    %v1545 = vadd.f32 0.0, %v1544
    %v1546 = vpop.f32.mrb[0].mxu0
    %v1547 = vpop.f32.mrb[0].mxu0
    %v1548 = vadd.f32 0.0, %v1547
    %v1549 = vpop.f32.mrb[0].mxu0
    %1550 = vmatprep.mubr.bf16.mxu0 %v1297
    %1551 = vmatmul.mubr.bf16.gmra.mrb[0].mxu0 %v1296
    %v1552 = vpop.f32.mrb[0].mxu0
    %v1553 = vadd.f32 0.0, %v1552
    %v1554 = vpop.f32.mrb[0].mxu0
    %v1555 = vpop.f32.mrb[0].mxu0
    %v1556 = vadd.f32 0.0, %v1555
    %v1557 = vpop.f32.mrb[0].mxu0
    %1558 = vmatprep.mubr.bf16.mxu0 %v1300
    %1559 = vmatmul.mubr.bf16.gmra.mrb[0].mxu0 %v1299
    %v1560 = vpop.f32.mrb[0].mxu0
    %v1561 = vadd.f32 0.0, %v1560
    %v1562 = vpop.f32.mrb[0].mxu0
    %v1563 = vpop.f32.mrb[0].mxu0
    %v1564 = vadd.f32 0.0, %v1563
    %v1565 = vpop.f32.mrb[0].mxu0
    %1566 = vdwg.mxu0
    %1567 = vmatprep.subr.bf16.mxu0 0
    %1568 = vmatpush1.bf16.msra.mxu0 %v1438
    %1569 = vmatprep.subr.bf16.mxu0 0
    %1570 = vmatpush1.bf16.msra.mxu0 %v1439
    %1571 = vmatprep.subr.bf16.mxu0 0
    %1572 = vmatpush1.bf16.msra.mxu0 %v1440
    %1573 = vmatprep.subr.bf16.mxu0 0
    %1574 = vmatpush1.bf16.msra.mxu0 %v1441
    %1575 = vmatprep.subr.bf16.mxu0 0
    %1576 = vmatpush1.bf16.msra.mxu0 %v1442
    %1577 = vmatprep.subr.bf16.mxu0 0
    %1578 = vmatpush1.bf16.msra.mxu0 %v1443
    %1579 = vmatprep.subr.bf16.mxu0 0
    %1580 = vmatpush1.bf16.msra.mxu0 %v1444
    %1581 = vmatprep.subr.bf16.mxu0 0
    %1582 = vmatpush1.bf16.msra.mxu0 %v1445
    %1583 = vmatprep.subr.bf16.mxu0 0
    %1584 = vmatpush1.bf16.msra.mxu0 0
    %1585 = vmatprep.subr.bf16.mxu0 0
    %1586 = vmatpush1.bf16.msra.mxu0 0
    %1587 = vmatprep.subr.bf16.mxu0 0
    %1588 = vmatpush1.bf16.msra.mxu0 0
    %1589 = vmatprep.subr.bf16.mxu0 0
    %1590 = vmatpush1.bf16.msra.mxu0 0
    %1591 = vmatprep.subr.bf16.mxu0 0
    %1592 = vmatpush1.bf16.msra.mxu0 0
    %1593 = vmatprep.subr.bf16.mxu0 0
    %1594 = vmatpush1.bf16.msra.mxu0 0
    %1595 = vmatprep.subr.bf16.mxu0 0
    %1596 = vmatpush1.bf16.msra.mxu0 0
    %1597 = vmatprep.subr.bf16.mxu0 0
    %1598 = vmatpush1.bf16.msra.mxu0 0
    %1599 = vmatprep.mubr.bf16.mxu0 0
    %1600 = vmatmul.mubr.bf16.gmra.mrb[0].mxu0 %v1280
    %v1601 = vpop.f32.mrb[0].mxu0
    %v1602 = vadd.f32 %v1505, %v1601
    %v1603 = vpop.f32.mrb[0].mxu0
    %v1604 = vpop.f32.mrb[0].mxu0
    %v1605 = vadd.f32 %v1508, %v1604
    %v1606 = vpop.f32.mrb[0].mxu0
    %1607 = vmatprep.mubr.bf16.mxu0 0
    %1608 = vmatmul.mubr.bf16.gmra.mrb[0].mxu0 %v1283
    %v1609 = vpop.f32.mrb[0].mxu0
    %v1610 = vadd.f32 %v1513, %v1609
    %v1611 = vpop.f32.mrb[0].mxu0
    %v1612 = vpop.f32.mrb[0].mxu0
    %v1613 = vadd.f32 %v1516, %v1612
    %v1614 = vpop.f32.mrb[0].mxu0
    %1615 = vmatprep.mubr.bf16.mxu0 0
    %1616 = vmatmul.mubr.bf16.gmra.mrb[0].mxu0 %v1286
    %v1617 = vpop.f32.mrb[0].mxu0
    %v1618 = vadd.f32 %v1521, %v1617
    %v1619 = vpop.f32.mrb[0].mxu0
    %v1620 = vpop.f32.mrb[0].mxu0
    %v1621 = vadd.f32 %v1524, %v1620
    %v1622 = vpop.f32.mrb[0].mxu0
    %1623 = vmatprep.mubr.bf16.mxu0 0
    %1624 = vmatmul.mubr.bf16.gmra.mrb[0].mxu0 %v1289
    %v1625 = vpop.f32.mrb[0].mxu0
    %v1626 = vadd.f32 %v1529, %v1625
    %v1627 = vpop.f32.mrb[0].mxu0
    %v1628 = vpop.f32.mrb[0].mxu0
    %v1629 = vadd.f32 %v1532, %v1628
    %v1630 = vpop.f32.mrb[0].mxu0
    %1631 = vmatprep.mubr.bf16.mxu0 0
    %1632 = vmatmul.mubr.bf16.gmra.mrb[0].mxu0 %v1292
    %v1633 = vpop.f32.mrb[0].mxu0
    %v1634 = vadd.f32 %v1537, %v1633
    %v1635 = vpop.f32.mrb[0].mxu0
    %v1636 = vpop.f32.mrb[0].mxu0
    %v1637 = vadd.f32 %v1540, %v1636
    %v1638 = vpop.f32.mrb[0].mxu0
    %1639 = vmatprep.mubr.bf16.mxu0 0
    %1640 = vmatmul.mubr.bf16.gmra.mrb[0].mxu0 %v1295
    %v1641 = vpop.f32.mrb[0].mxu0
    %v1642 = vadd.f32 %v1545, %v1641
    %v1643 = vpop.f32.mrb[0].mxu0
    %v1644 = vpop.f32.mrb[0].mxu0
    %v1645 = vadd.f32 %v1548, %v1644
    %v1646 = vpop.f32.mrb[0].mxu0
    %1647 = vmatprep.mubr.bf16.mxu0 0
    %1648 = vmatmul.mubr.bf16.gmra.mrb[0].mxu0 %v1298
    %v1649 = vpop.f32.mrb[0].mxu0
    %v1650 = vadd.f32 %v1553, %v1649
    %v1651 = vpop.f32.mrb[0].mxu0
    %v1652 = vpop.f32.mrb[0].mxu0
    %v1653 = vadd.f32 %v1556, %v1652
    %v1654 = vpop.f32.mrb[0].mxu0
    %1655 = vmatprep.mubr.bf16.mxu0 0
    %1656 = vmatmul.mubr.bf16.gmra.mrb[0].mxu0 %v1301
    %v1657 = vpop.f32.mrb[0].mxu0
    %v1658 = vadd.f32 %v1561, %v1657
    %v1659 = vpop.f32.mrb[0].mxu0
    %v1660 = vpop.f32.mrb[0].mxu0
    %v1661 = vadd.f32 %v1564, %v1660
    %v1662 = vpop.f32.mrb[0].mxu0
    %1663 = vdwg.mxu0
    %v1664 = vadd.f32 %v1054, %v1602
    %v1665 = vadd.f32 %v1057, %v1605
    %v1666 = vadd.f32 %v1062, %v1610
    %v1667 = vadd.f32 %v1065, %v1613
    %v1668 = vadd.f32 %v1070, %v1618
    %v1669 = vadd.f32 %v1073, %v1621
    %v1670 = vadd.f32 %v1078, %v1626
    %v1671 = vadd.f32 %v1081, %v1629
    %v1672 = vadd.f32 %v1086, %v1634
    %v1673 = vadd.f32 %v1089, %v1637
    %v1674 = vadd.f32 %v1094, %v1642
    %v1675 = vadd.f32 %v1097, %v1645
    %v1676 = vadd.f32 %v1102, %v1650
    %v1677 = vadd.f32 %v1105, %v1653
    %v1678 = vadd.f32 %v1110, %v1658
    %v1679 = vadd.f32 %v1113, %v1661
    %v1680 = vadd.f32 %v1664, %v1665
    %v1681 = vadd.f32 %v1680, %v1666
    %v1682 = vadd.f32 %v1681, %v1667
    %v1683 = vadd.f32 %v1682, %v1668
    %v1684 = vadd.f32 %v1683, %v1669
    %v1685 = vadd.f32 %v1684, %v1670
    %v1686 = vadd.f32 %v1685, %v1671
    %v1687 = vadd.f32 %v1686, %v1672
    %v1688 = vadd.f32 %v1687, %v1673
    %v1689 = vadd.f32 %v1688, %v1674
    %v1690 = vadd.f32 %v1689, %v1675
    %v1691 = vadd.f32 %v1690, %v1676
    %v1692 = vadd.f32 %v1691, %v1677
    %v1693 = vadd.f32 %v1692, %v1678
    %v1694 = vadd.f32 %v1693, %v1679
    %v1695 = vrot.slane %v1694, 4
    %v1696 = vadd.f32 %v1694, %v1695
    %v1697 = vrot.slane %v1696, 2
    %v1698 = vadd.f32 %v1696, %v1697
    %v1699 = vrot.slane %v1698, 1
    %v1700 = vadd.f32 %v1698, %v1699
    %v1701 = vmul.f32 %v1700, 0.0078125
    %v1702 = vmul.f32 %v1664, %v1664
    %v1703 = vmul.f32 %v1665, %v1665
    %v1704 = vmul.f32 %v1666, %v1666
    %v1705 = vmul.f32 %v1667, %v1667
    %v1706 = vmul.f32 %v1668, %v1668
    %v1707 = vmul.f32 %v1669, %v1669
    %v1708 = vmul.f32 %v1670, %v1670
    %v1709 = vmul.f32 %v1671, %v1671
    %v1710 = vmul.f32 %v1672, %v1672
    %v1711 = vmul.f32 %v1673, %v1673
    %v1712 = vmul.f32 %v1674, %v1674
    %v1713 = vmul.f32 %v1675, %v1675
    %v1714 = vmul.f32 %v1676, %v1676
    %v1715 = vmul.f32 %v1677, %v1677
    %v1716 = vmul.f32 %v1678, %v1678
    %v1717 = vmul.f32 %v1679, %v1679
    %v1718 = vadd.f32 %v1702, %v1703
    %v1719 = vadd.f32 %v1718, %v1704
    %v1720 = vadd.f32 %v1719, %v1705
    %v1721 = vadd.f32 %v1720, %v1706
    %v1722 = vadd.f32 %v1721, %v1707
    %v1723 = vadd.f32 %v1722, %v1708
    %v1724 = vadd.f32 %v1723, %v1709
    %v1725 = vadd.f32 %v1724, %v1710
    %v1726 = vadd.f32 %v1725, %v1711
    %v1727 = vadd.f32 %v1726, %v1712
    %v1728 = vadd.f32 %v1727, %v1713
    %v1729 = vadd.f32 %v1728, %v1714
    %v1730 = vadd.f32 %v1729, %v1715
    %v1731 = vadd.f32 %v1730, %v1716
    %v1732 = vadd.f32 %v1731, %v1717
    %v1733 = vrot.slane %v1732, 4
    %v1734 = vadd.f32 %v1732, %v1733
    %v1735 = vrot.slane %v1734, 2
    %v1736 = vadd.f32 %v1734, %v1735
    %v1737 = vrot.slane %v1736, 1
    %v1738 = vadd.f32 %v1736, %v1737
    %v1739 = vmul.f32 %v1738, 0.0078125
    %v1740 = vmul.f32 %v1701, %v1701
    %v1741 = vsub.f32 %v1739, %v1740
    %v1742 = vadd.f32 %v1741, 1e-05
    %v1743 = vrsqrt.pop %v1742
    %v1744 = vld [vmem:[%s2] sm:$0x1]
    %v1745 = vmul.f32 %v1743, %v1744
    %v1746 = vld [vmem:[%s3] sm:$0x1]
    %v1747 = vmul.f32 %v1701, %v1745
    %v1748 = vsub.f32 %v1746, %v1747
    %v1749 = vlaneseq
    %v1750 = vshrl.u32 %v1749, 7
    %v1751 = vsub.s32 0, %v1750
    %v1752 = vrot.slane %v1745, %v1751
    %v1753 = vmul.f32 %v1664, %v1752
    %v1754 = vmul.f32 %v1665, %v1752
    %v1755 = vmul.f32 %v1666, %v1752
    %v1756 = vmul.f32 %v1667, %v1752
    %v1757 = vmul.f32 %v1668, %v1752
    %v1758 = vmul.f32 %v1669, %v1752
    %v1759 = vmul.f32 %v1670, %v1752
    %v1760 = vmul.f32 %v1671, %v1752
    %v1761 = vmul.f32 %v1672, %v1752
    %v1762 = vmul.f32 %v1673, %v1752
    %v1763 = vmul.f32 %v1674, %v1752
    %v1764 = vmul.f32 %v1675, %v1752
    %v1765 = vmul.f32 %v1676, %v1752
    %v1766 = vmul.f32 %v1677, %v1752
    %v1767 = vmul.f32 %v1678, %v1752
    %v1768 = vmul.f32 %v1679, %v1752
    %v1770 = vlaneseq
    %v1771 = vshrl.u32 %v1770, 7
    %v1772 = vsub.s32 0, %v1771
    %v1773 = vrot.slane %v1748, %v1772
    %v1775 = vadd.f32 %v1753, %v1773
    %v1776 = vadd.f32 %v1754, %v1773
    %v1777 = vadd.f32 %v1755, %v1773
    %v1778 = vadd.f32 %v1756, %v1773
    %v1779 = vadd.f32 %v1757, %v1773
    %v1780 = vadd.f32 %v1758, %v1773
    %v1781 = vadd.f32 %v1759, %v1773
    %v1782 = vadd.f32 %v1760, %v1773
    %v1783 = vadd.f32 %v1761, %v1773
    %v1784 = vadd.f32 %v1762, %v1773
    %v1785 = vadd.f32 %v1763, %v1773
    %v1786 = vadd.f32 %v1764, %v1773
    %v1787 = vadd.f32 %v1765, %v1773
    %v1788 = vadd.f32 %v1766, %v1773
    %v1789 = vadd.f32 %v1767, %v1773
    %v1790 = vadd.f32 %v1768, %v1773
    %v1791 = vld [vmem:[%s4] sm:$0xff]
    %v1792 = vld [vmem:[%s4 + $0x8] sm:$0xff]
    %v1793 = vld [vmem:[%s4 + $0x10] sm:$0xff]
    %v1794 = vld [vmem:[%s4 + $0x18] sm:$0xff]
    %v1795 = vld [vmem:[%s4 + $0x20] sm:$0xff]
    %v1796 = vld [vmem:[%s4 + $0x28] sm:$0xff]
    %v1797 = vld [vmem:[%s4 + $0x30] sm:$0xff]
    %v1798 = vld [vmem:[%s4 + $0x38] sm:$0xff]
    %v1799 = vld [vmem:[%s4 + $0x40] sm:$0xff]
    %v1800 = vld [vmem:[%s4 + $0x48] sm:$0xff]
    %v1801 = vld [vmem:[%s4 + $0x50] sm:$0xff]
    %v1802 = vld [vmem:[%s4 + $0x58] sm:$0xff]
    %v1803 = vld [vmem:[%s4 + $0x60] sm:$0xff]
    %v1804 = vld [vmem:[%s4 + $0x68] sm:$0xff]
    %v1805 = vld [vmem:[%s4 + $0x70] sm:$0xff]
    %v1806 = vld [vmem:[%s4 + $0x78] sm:$0xff]
    %v1807 = vadd.f32 %v1775, %v1791
    %v1808 = vadd.f32 %v1776, %v1792
    %v1809 = vadd.f32 %v1777, %v1793
    %v1810 = vadd.f32 %v1778, %v1794
    %v1811 = vadd.f32 %v1779, %v1795
    %v1812 = vadd.f32 %v1780, %v1796
    %v1813 = vadd.f32 %v1781, %v1797
    %v1814 = vadd.f32 %v1782, %v1798
    %v1815 = vadd.f32 %v1783, %v1799
    %v1816 = vadd.f32 %v1784, %v1800
    %v1817 = vadd.f32 %v1785, %v1801
    %v1818 = vadd.f32 %v1786, %v1802
    %v1819 = vadd.f32 %v1787, %v1803
    %v1820 = vadd.f32 %v1788, %v1804
    %v1821 = vadd.f32 %v1789, %v1805
    %v1822 = vadd.f32 %v1790, %v1806
    %v1823 = vmax.f32 %v1807, 0.0
    %v1824 = vmax.f32 %v1808, 0.0
    %v1825 = vmax.f32 %v1809, 0.0
    %v1826 = vmax.f32 %v1810, 0.0
    %v1827 = vmax.f32 %v1811, 0.0
    %v1828 = vmax.f32 %v1812, 0.0
    %v1829 = vmax.f32 %v1813, 0.0
    %v1830 = vmax.f32 %v1814, 0.0
    %v1831 = vmax.f32 %v1815, 0.0
    %v1832 = vmax.f32 %v1816, 0.0
    %v1833 = vmax.f32 %v1817, 0.0
    %v1834 = vmax.f32 %v1818, 0.0
    %v1835 = vmax.f32 %v1819, 0.0
    %v1836 = vmax.f32 %v1820, 0.0
    %v1837 = vmax.f32 %v1821, 0.0
    %v1838 = vmax.f32 %v1822, 0.0
    %1839 = vst [vmem:[#allocation2] sm:$0xff] %v1823
    %1840 = vst [vmem:[#allocation2 + $0x8] sm:$0xff] %v1824
    %1841 = vst [vmem:[#allocation2 + $0x10] sm:$0xff] %v1825
    %1842 = vst [vmem:[#allocation2 + $0x18] sm:$0xff] %v1826
    %1843 = vst [vmem:[#allocation2 + $0x20] sm:$0xff] %v1827
    %1844 = vst [vmem:[#allocation2 + $0x28] sm:$0xff] %v1828
    %1845 = vst [vmem:[#allocation2 + $0x30] sm:$0xff] %v1829
    %1846 = vst [vmem:[#allocation2 + $0x38] sm:$0xff] %v1830
    %1847 = vst [vmem:[#allocation2 + $0x40] sm:$0xff] %v1831
    %1848 = vst [vmem:[#allocation2 + $0x48] sm:$0xff] %v1832
    %1849 = vst [vmem:[#allocation2 + $0x50] sm:$0xff] %v1833
    %1850 = vst [vmem:[#allocation2 + $0x58] sm:$0xff] %v1834
    %1851 = vst [vmem:[#allocation2 + $0x60] sm:$0xff] %v1835
    %1852 = vst [vmem:[#allocation2 + $0x68] sm:$0xff] %v1836
    %1853 = vst [vmem:[#allocation2 + $0x70] sm:$0xff] %v1837
    %1854 = vst [vmem:[#allocation2 + $0x78] sm:$0xff] %v1838
    // Predicated region
    $region22: #{fwd.7} parent=1 // pred_check
      _
    $region23: #{fwd.7} parent=1 // pred_check_branch
      %1856 = sbr.rel (0) target = $region25
    $region24: #{fwd.7} parent=1 // pred_region
      %s1858 = ssub.s32 2048, 2048
      %1859 = vsyncadd [#allocation3], %s1858
      %s1860 = sshll.u32 [#allocation2], 4
      %s1861 = int_to_ptr.vmem [resolvable:$true] %s1860
      %1866 = dma.vmem_to_hbm [thread:$0]  %s1861, 2048, %s5, [#allocation3], 128, 128, 8
    $region25: #{fwd.7} parent=1 // pred_fallthru
      _
    // Predicated region
    $region26: #{fwd.7} parent=1 // pred_check
      _
    $region27: #{fwd.7} parent=1 // pred_check_branch
      %1868 = sbr.rel (0) target = $region29
    $region28: #{fwd.7} parent=1 // pred_region
      %1869 = dma.done [#allocation3], 2048
    $region29: #{fwd.7} parent=1 // pred_fallthru
      _
    %1870 = vsyncpa [#allocation3], 1

// kernel: fwd.6
$region0: #{fwd.6}
  #allocation0 [shape = 'u32[]', space=smem, size = 0x4, offset = 0x4, fixed_abs, tag = 'smem constant byte address 0x4 - core index']
  #allocation1 [shape = 'u32[144,128]{1,0:T(1,128)}', space=vmem, size = 0x12000, scoped, tag = 'internal scratch']
  %s0 = inlined_call_operand.vmem [shape: bf16[2,10,8,384], index: 0, kind: input, shape index: {}]
  %s1 = inlined_call_operand.vmem [shape: bf16[3,384,128], index: 1, kind: input, shape index: {}]
  %s2 = inlined_call_operand.vmem [shape: f32[1,128], index: 2, kind: input, shape index: {}]
  %s3 = inlined_call_operand.vmem [shape: f32[1,128], index: 3, kind: input, shape index: {}]
  %s4 = inlined_call_operand.vmem [shape: bf16[128,128], index: 4, kind: output, shape index: {}]
  %s5 = sld [smem:[#allocation0]]
  $region26: #{fwd.6} parent=0
    _
  %s7 = ssub.s32 1, %s5
  %s8 = scalar_select 0, %s7, %s5
  // Predicated region
  $region2: #{fwd.6} parent=0 // pred_check
    _
  $region3: #{fwd.6} parent=0 // pred_check_branch
    %10 = sbr.rel (0) target = $region5
  $region4: #{fwd.6} parent=0 // pred_region
    _
  $region5: #{fwd.6} parent=0 // pred_fallthru
    _
  // Predicated region
  $region6: #{fwd.6} parent=0 // pred_check
    _
  $region7: #{fwd.6} parent=0 // pred_check_branch
    %12 = sbr.rel (0) target = $region9
  $region8: #{fwd.6} parent=0 // pred_region
    _
  $region9: #{fwd.6} parent=0 // pred_fallthru
    _
  // Predicated region
  $region10: #{fwd.6} parent=0 // pred_check
    _
  $region11: #{fwd.6} parent=0 // pred_check_branch
    %14 = sbr.rel (0) target = $region13
  $region12: #{fwd.6} parent=0 // pred_region
    _
  $region13: #{fwd.6} parent=0 // pred_fallthru
    _
  // Predicated region
  $region14: #{fwd.6} parent=0 // pred_check
    _
  $region15: #{fwd.6} parent=0 // pred_check_branch
    %16 = sbr.rel (0) target = $region17
  $region16: #{fwd.6} parent=0 // pred_region
    _
  $region17: #{fwd.6} parent=0 // pred_fallthru
    _
  %v18 = vld [vmem:[%s0] sm:$0xff]
  %v19 = vld [vmem:[%s0 + $0x8] sm:$0xf]
  %v20 = vld [vmem:[%s0 + $0xc] sm:$0xff]
  %v21 = vld [vmem:[%s0 + $0x14] sm:$0xf]
  %v22 = vld [vmem:[%s0 + $0x18] sm:$0xff]
  %v23 = vld [vmem:[%s0 + $0x20] sm:$0xf]
  %v24 = vld [vmem:[%s0 + $0x24] sm:$0xff]
  %v25 = vld [vmem:[%s0 + $0x2c] sm:$0xf]
  %v26 = vld [vmem:[%s0 + $0x30] sm:$0xff]
  %v27 = vld [vmem:[%s0 + $0x38] sm:$0xf]
  %v28 = vld [vmem:[%s0 + $0x3c] sm:$0xff]
  %v29 = vld [vmem:[%s0 + $0x44] sm:$0xf]
  %v30 = vld [vmem:[%s0 + $0x48] sm:$0xff]
  %v31 = vld [vmem:[%s0 + $0x50] sm:$0xf]
  %v32 = vld [vmem:[%s0 + $0x54] sm:$0xff]
  %v33 = vld [vmem:[%s0 + $0x5c] sm:$0xf]
  %v34 = vld [vmem:[%s0 + $0x78] sm:$0xff]
  %v35 = vld [vmem:[%s0 + $0x80] sm:$0xf]
  %v36 = vld [vmem:[%s0 + $0x84] sm:$0xff]
  %v37 = vld [vmem:[%s0 + $0x8c] sm:$0xf]
  %v38 = vld [vmem:[%s0 + $0x90] sm:$0xff]
  %v39 = vld [vmem:[%s0 + $0x98] sm:$0xf]
  %v40 = vld [vmem:[%s0 + $0x9c] sm:$0xff]
  %v41 = vld [vmem:[%s0 + $0xa4] sm:$0xf]
  %v42 = vld [vmem:[%s0 + $0xa8] sm:$0xff]
  %v43 = vld [vmem:[%s0 + $0xb0] sm:$0xf]
  %v44 = vld [vmem:[%s0 + $0xb4] sm:$0xff]
  %v45 = vld [vmem:[%s0 + $0xbc] sm:$0xf]
  %v46 = vld [vmem:[%s0 + $0xc0] sm:$0xff]
  %v47 = vld [vmem:[%s0 + $0xc8] sm:$0xf]
  %v48 = vld [vmem:[%s0 + $0xcc] sm:$0xff]
  %v49 = vld [vmem:[%s0 + $0xd4] sm:$0xf]
  %v50 = vld [vmem:[%s1] sm:$0xf]
  %v51 = vld [vmem:[%s1 + $0x4] sm:$0xf]
  %v52 = vld [vmem:[%s1 + $0x8] sm:$0xf]
  %v53 = vld [vmem:[%s1 + $0xc] sm:$0xf]
  %v54 = vld [vmem:[%s1 + $0x10] sm:$0xf]
  %v55 = vld [vmem:[%s1 + $0x14] sm:$0xf]
  %v56 = vld [vmem:[%s1 + $0x18] sm:$0xf]
  %v57 = vld [vmem:[%s1 + $0x1c] sm:$0xf]
  %v58 = vld [vmem:[%s1 + $0x20] sm:$0xf]
  %v59 = vld [vmem:[%s1 + $0x24] sm:$0xf]
  %v60 = vld [vmem:[%s1 + $0x28] sm:$0xf]
  %v61 = vld [vmem:[%s1 + $0x2c] sm:$0xf]
  %v62 = vld [vmem:[%s1 + $0x30] sm:$0xf]
  %v63 = vld [vmem:[%s1 + $0x34] sm:$0xf]
  %v64 = vld [vmem:[%s1 + $0x38] sm:$0xf]
  %v65 = vld [vmem:[%s1 + $0x3c] sm:$0xf]
  %v66 = vld [vmem:[%s1 + $0x40] sm:$0xf]
  %v67 = vld [vmem:[%s1 + $0x44] sm:$0xf]
  %v68 = vld [vmem:[%s1 + $0x48] sm:$0xf]
  %v69 = vld [vmem:[%s1 + $0x4c] sm:$0xf]
  %v70 = vld [vmem:[%s1 + $0x50] sm:$0xf]
  %v71 = vld [vmem:[%s1 + $0x54] sm:$0xf]
  %v72 = vld [vmem:[%s1 + $0x58] sm:$0xf]
  %v73 = vld [vmem:[%s1 + $0x5c] sm:$0xf]
  %v74 = vld [vmem:[%s1 + $0x60] sm:$0xf]
  %v75 = vld [vmem:[%s1 + $0x64] sm:$0xf]
  %v76 = vld [vmem:[%s1 + $0x68] sm:$0xf]
  %v77 = vld [vmem:[%s1 + $0x6c] sm:$0xf]
  %v78 = vld [vmem:[%s1 + $0x70] sm:$0xf]
  %v79 = vld [vmem:[%s1 + $0x74] sm:$0xf]
  %v80 = vld [vmem:[%s1 + $0x78] sm:$0xf]
  %v81 = vld [vmem:[%s1 + $0x7c] sm:$0xf]
  %v82 = vld [vmem:[%s1 + $0x80] sm:$0xf]
  %v83 = vld [vmem:[%s1 + $0x84] sm:$0xf]
  %v84 = vld [vmem:[%s1 + $0x88] sm:$0xf]
  %v85 = vld [vmem:[%s1 + $0x8c] sm:$0xf]
  %v86 = vld [vmem:[%s1 + $0x90] sm:$0xf]
  %v87 = vld [vmem:[%s1 + $0x94] sm:$0xf]
  %v88 = vld [vmem:[%s1 + $0x98] sm:$0xf]
  %v89 = vld [vmem:[%s1 + $0x9c] sm:$0xf]
  %v90 = vld [vmem:[%s1 + $0xa0] sm:$0xf]
  %v91 = vld [vmem:[%s1 + $0xa4] sm:$0xf]
  %v92 = vld [vmem:[%s1 + $0xa8] sm:$0xf]
  %v93 = vld [vmem:[%s1 + $0xac] sm:$0xf]
  %v94 = vld [vmem:[%s1 + $0xb0] sm:$0xf]
  %v95 = vld [vmem:[%s1 + $0xb4] sm:$0xf]
  %v96 = vld [vmem:[%s1 + $0xb8] sm:$0xf]
  %v97 = vld [vmem:[%s1 + $0xbc] sm:$0xf]
  %s98 = scalar_lea.vmem %s0, 12
  %v99 = vld [vmem:[%s98] sm:$0xff]
  %v100 = vld [vmem:[%s98 + $0x8] sm:$0xf]
  %v101 = vld [vmem:[%s98 + $0xc] sm:$0xff]
  %v102 = vld [vmem:[%s98 + $0x14] sm:$0xf]
  %v103 = vld [vmem:[%s98 + $0x18] sm:$0xff]
  %v104 = vld [vmem:[%s98 + $0x20] sm:$0xf]
  %v105 = vld [vmem:[%s98 + $0x24] sm:$0xff]
  %v106 = vld [vmem:[%s98 + $0x2c] sm:$0xf]
  %v107 = vld [vmem:[%s98 + $0x30] sm:$0xff]
  %v108 = vld [vmem:[%s98 + $0x38] sm:$0xf]
  %v109 = vld [vmem:[%s98 + $0x3c] sm:$0xff]
  %v110 = vld [vmem:[%s98 + $0x44] sm:$0xf]
  %v111 = vld [vmem:[%s98 + $0x48] sm:$0xff]
  %v112 = vld [vmem:[%s98 + $0x50] sm:$0xf]
  %v113 = vld [vmem:[%s98 + $0x54] sm:$0xff]
  %v114 = vld [vmem:[%s98 + $0x5c] sm:$0xf]
  %v115 = vld [vmem:[%s98 + $0x78] sm:$0xff]
  %v116 = vld [vmem:[%s98 + $0x80] sm:$0xf]
  %v117 = vld [vmem:[%s98 + $0x84] sm:$0xff]
  %v118 = vld [vmem:[%s98 + $0x8c] sm:$0xf]
  %v119 = vld [vmem:[%s98 + $0x90] sm:$0xff]
  %v120 = vld [vmem:[%s98 + $0x98] sm:$0xf]
  %v121 = vld [vmem:[%s98 + $0x9c] sm:$0xff]
  %v122 = vld [vmem:[%s98 + $0xa4] sm:$0xf]
  %v123 = vld [vmem:[%s98 + $0xa8] sm:$0xff]
  %v124 = vld [vmem:[%s98 + $0xb0] sm:$0xf]
  %v125 = vld [vmem:[%s98 + $0xb4] sm:$0xff]
  %v126 = vld [vmem:[%s98 + $0xbc] sm:$0xf]
  %v127 = vld [vmem:[%s98 + $0xc0] sm:$0xff]
  %v128 = vld [vmem:[%s98 + $0xc8] sm:$0xf]
  %v129 = vld [vmem:[%s98 + $0xcc] sm:$0xff]
  %v130 = vld [vmem:[%s98 + $0xd4] sm:$0xf]
  %s131 = scalar_lea.vmem %s1, 192
  %v132 = vld [vmem:[%s131] sm:$0xf]
  %v133 = vld [vmem:[%s131 + $0x4] sm:$0xf]
  %v134 = vld [vmem:[%s131 + $0x8] sm:$0xf]
  %v135 = vld [vmem:[%s131 + $0xc] sm:$0xf]
  %v136 = vld [vmem:[%s131 + $0x10] sm:$0xf]
  %v137 = vld [vmem:[%s131 + $0x14] sm:$0xf]
  %v138 = vld [vmem:[%s131 + $0x18] sm:$0xf]
  %v139 = vld [vmem:[%s131 + $0x1c] sm:$0xf]
  %v140 = vld [vmem:[%s131 + $0x20] sm:$0xf]
  %v141 = vld [vmem:[%s131 + $0x24] sm:$0xf]
  %v142 = vld [vmem:[%s131 + $0x28] sm:$0xf]
  %v143 = vld [vmem:[%s131 + $0x2c] sm:$0xf]
  %v144 = vld [vmem:[%s131 + $0x30] sm:$0xf]
  %v145 = vld [vmem:[%s131 + $0x34] sm:$0xf]
  %v146 = vld [vmem:[%s131 + $0x38] sm:$0xf]
  %v147 = vld [vmem:[%s131 + $0x3c] sm:$0xf]
  %v148 = vld [vmem:[%s131 + $0x40] sm:$0xf]
  %v149 = vld [vmem:[%s131 + $0x44] sm:$0xf]
  %v150 = vld [vmem:[%s131 + $0x48] sm:$0xf]
  %v151 = vld [vmem:[%s131 + $0x4c] sm:$0xf]
  %v152 = vld [vmem:[%s131 + $0x50] sm:$0xf]
  %v153 = vld [vmem:[%s131 + $0x54] sm:$0xf]
  %v154 = vld [vmem:[%s131 + $0x58] sm:$0xf]
  %v155 = vld [vmem:[%s131 + $0x5c] sm:$0xf]
  %v156 = vld [vmem:[%s131 + $0x60] sm:$0xf]
  %v157 = vld [vmem:[%s131 + $0x64] sm:$0xf]
  %v158 = vld [vmem:[%s131 + $0x68] sm:$0xf]
  %v159 = vld [vmem:[%s131 + $0x6c] sm:$0xf]
  %v160 = vld [vmem:[%s131 + $0x70] sm:$0xf]
  %v161 = vld [vmem:[%s131 + $0x74] sm:$0xf]
  %v162 = vld [vmem:[%s131 + $0x78] sm:$0xf]
  %v163 = vld [vmem:[%s131 + $0x7c] sm:$0xf]
  %v164 = vld [vmem:[%s131 + $0x80] sm:$0xf]
  %v165 = vld [vmem:[%s131 + $0x84] sm:$0xf]
  %v166 = vld [vmem:[%s131 + $0x88] sm:$0xf]
  %v167 = vld [vmem:[%s131 + $0x8c] sm:$0xf]
  %v168 = vld [vmem:[%s131 + $0x90] sm:$0xf]
  %v169 = vld [vmem:[%s131 + $0x94] sm:$0xf]
  %v170 = vld [vmem:[%s131 + $0x98] sm:$0xf]
  %v171 = vld [vmem:[%s131 + $0x9c] sm:$0xf]
  %v172 = vld [vmem:[%s131 + $0xa0] sm:$0xf]
  %v173 = vld [vmem:[%s131 + $0xa4] sm:$0xf]
  %v174 = vld [vmem:[%s131 + $0xa8] sm:$0xf]
  %v175 = vld [vmem:[%s131 + $0xac] sm:$0xf]
  %v176 = vld [vmem:[%s131 + $0xb0] sm:$0xf]
  %v177 = vld [vmem:[%s131 + $0xb4] sm:$0xf]
  %v178 = vld [vmem:[%s131 + $0xb8] sm:$0xf]
  %v179 = vld [vmem:[%s131 + $0xbc] sm:$0xf]
  %v212 = vunpack.c.l.b16 %v99
  %v213 = vunpack.c.h.b16 %v99
  %v214 = vunpack.c.l.b16 %v100
  %v215 = vunpack.c.l.b16 %v101
  %v216 = vunpack.c.h.b16 %v101
  %v217 = vunpack.c.l.b16 %v102
  %v218 = vunpack.c.l.b16 %v103
  %v219 = vunpack.c.h.b16 %v103
  %v220 = vunpack.c.l.b16 %v104
  %v221 = vunpack.c.l.b16 %v105
  %v222 = vunpack.c.h.b16 %v105
  %v223 = vunpack.c.l.b16 %v106
  %v224 = vunpack.c.l.b16 %v107
  %v225 = vunpack.c.h.b16 %v107
  %v226 = vunpack.c.l.b16 %v108
  %v227 = vunpack.c.l.b16 %v109
  %v228 = vunpack.c.h.b16 %v109
  %v229 = vunpack.c.l.b16 %v110
  %v230 = vunpack.c.l.b16 %v111
  %v231 = vunpack.c.h.b16 %v111
  %v232 = vunpack.c.l.b16 %v112
  %v233 = vunpack.c.l.b16 %v113
  %v234 = vunpack.c.h.b16 %v113
  %v235 = vunpack.c.l.b16 %v114
  %v236 = vunpack.c.l.b16 %v115
  %v237 = vunpack.c.h.b16 %v115
  %v238 = vunpack.c.l.b16 %v116
  %v239 = vunpack.c.l.b16 %v117
  %v240 = vunpack.c.h.b16 %v117
  %v241 = vunpack.c.l.b16 %v118
  %v242 = vunpack.c.l.b16 %v119
  %v243 = vunpack.c.h.b16 %v119
  %v244 = vunpack.c.l.b16 %v120
  %v245 = vunpack.c.l.b16 %v121
  %v246 = vunpack.c.h.b16 %v121
  %v247 = vunpack.c.l.b16 %v122
  %v248 = vunpack.c.l.b16 %v123
  %v249 = vunpack.c.h.b16 %v123
  %v250 = vunpack.c.l.b16 %v124
  %v251 = vunpack.c.l.b16 %v125
  %v252 = vunpack.c.h.b16 %v125
  %v253 = vunpack.c.l.b16 %v126
  %v254 = vunpack.c.l.b16 %v127
  %v255 = vunpack.c.h.b16 %v127
  %v256 = vunpack.c.l.b16 %v128
  %v257 = vunpack.c.l.b16 %v129
  %v258 = vunpack.c.h.b16 %v129
  %v259 = vunpack.c.l.b16 %v130
  %v260 = vpack.c.b16 %v215, %v212
  %v261 = vpack.c.b16 %v216, %v213
  %v262 = vpack.c.b16 %v217, %v214
  %v263 = vpack.c.b16 %v221, %v218
  %v264 = vpack.c.b16 %v222, %v219
  %v265 = vpack.c.b16 %v223, %v220
  %v266 = vpack.c.b16 %v227, %v224
  %v267 = vpack.c.b16 %v228, %v225
  %v268 = vpack.c.b16 %v229, %v226
  %v269 = vpack.c.b16 %v233, %v230
  %v270 = vpack.c.b16 %v234, %v231
  %v271 = vpack.c.b16 %v235, %v232
  %v272 = vpack.c.b16 %v239, %v236
  %v273 = vpack.c.b16 %v240, %v237
  %v274 = vpack.c.b16 %v241, %v238
  %v275 = vpack.c.b16 %v245, %v242
  %v276 = vpack.c.b16 %v246, %v243
  %v277 = vpack.c.b16 %v247, %v244
  %v278 = vpack.c.b16 %v251, %v248
  %v279 = vpack.c.b16 %v252, %v249
  %v280 = vpack.c.b16 %v253, %v250
  %v281 = vpack.c.b16 %v257, %v254
  %v282 = vpack.c.b16 %v258, %v255
  %v283 = vpack.c.b16 %v259, %v256
  %v356 = vunpack.c.l.b16 %v132
  %v357 = vunpack.c.l.b16 %v133
  %v358 = vunpack.c.l.b16 %v134
  %v359 = vunpack.c.l.b16 %v135
  %v360 = vunpack.c.l.b16 %v136
  %v361 = vunpack.c.l.b16 %v137
  %v362 = vunpack.c.l.b16 %v138
  %v363 = vunpack.c.l.b16 %v139
  %v364 = vunpack.c.l.b16 %v140
  %v365 = vunpack.c.l.b16 %v141
  %v366 = vunpack.c.l.b16 %v142
  %v367 = vunpack.c.l.b16 %v143
  %v368 = vunpack.c.l.b16 %v144
  %v369 = vunpack.c.l.b16 %v145
  %v370 = vunpack.c.l.b16 %v146
  %v371 = vunpack.c.l.b16 %v147
  %v372 = vunpack.c.l.b16 %v148
  %v373 = vunpack.c.l.b16 %v149
  %v374 = vunpack.c.l.b16 %v150
  %v375 = vunpack.c.l.b16 %v151
  %v376 = vunpack.c.l.b16 %v152
  %v377 = vunpack.c.l.b16 %v153
  %v378 = vunpack.c.l.b16 %v154
  %v379 = vunpack.c.l.b16 %v155
  %v380 = vunpack.c.l.b16 %v156
  %v381 = vunpack.c.l.b16 %v157
  %v382 = vunpack.c.l.b16 %v158
  %v383 = vunpack.c.l.b16 %v159
  %v384 = vunpack.c.l.b16 %v160
  %v385 = vunpack.c.l.b16 %v161
  %v386 = vunpack.c.l.b16 %v162
  %v387 = vunpack.c.l.b16 %v163
  %v388 = vunpack.c.l.b16 %v164
  %v389 = vunpack.c.l.b16 %v165
  %v390 = vunpack.c.l.b16 %v166
  %v391 = vunpack.c.l.b16 %v167
  %v392 = vunpack.c.l.b16 %v168
  %v393 = vunpack.c.l.b16 %v169
  %v394 = vunpack.c.l.b16 %v170
  %v395 = vunpack.c.l.b16 %v171
  %v396 = vunpack.c.l.b16 %v172
  %v397 = vunpack.c.l.b16 %v173
  %v398 = vunpack.c.l.b16 %v174
  %v399 = vunpack.c.l.b16 %v175
  %v400 = vunpack.c.l.b16 %v176
  %v401 = vunpack.c.l.b16 %v177
  %v402 = vunpack.c.l.b16 %v178
  %v403 = vunpack.c.l.b16 %v179
  %v404 = vpack.c.b16 %v357, %v356
  %v405 = vpack.c.b16 %v359, %v358
  %v406 = vpack.c.b16 %v361, %v360
  %v407 = vpack.c.b16 %v363, %v362
  %v408 = vpack.c.b16 %v365, %v364
  %v409 = vpack.c.b16 %v367, %v366
  %v410 = vpack.c.b16 %v369, %v368
  %v411 = vpack.c.b16 %v371, %v370
  %v412 = vpack.c.b16 %v373, %v372
  %v413 = vpack.c.b16 %v375, %v374
  %v414 = vpack.c.b16 %v377, %v376
  %v415 = vpack.c.b16 %v379, %v378
  %v416 = vpack.c.b16 %v381, %v380
  %v417 = vpack.c.b16 %v383, %v382
  %v418 = vpack.c.b16 %v385, %v384
  %v419 = vpack.c.b16 %v387, %v386
  %v420 = vpack.c.b16 %v389, %v388
  %v421 = vpack.c.b16 %v391, %v390
  %v422 = vpack.c.b16 %v393, %v392
  %v423 = vpack.c.b16 %v395, %v394
  %v424 = vpack.c.b16 %v397, %v396
  %v425 = vpack.c.b16 %v399, %v398
  %v426 = vpack.c.b16 %v401, %v400
  %v427 = vpack.c.b16 %v403, %v402
  %452 = vmatprep.subr.bf16.mxu0 0
  %453 = vmatpush1.bf16.msra.mxu0 %v404
  %454 = vmatprep.subr.bf16.mxu0 0
  %455 = vmatpush1.bf16.msra.mxu0 %v405
  %456 = vmatprep.subr.bf16.mxu0 0
  %457 = vmatpush1.bf16.msra.mxu0 %v406
  %458 = vmatprep.subr.bf16.mxu0 0
  %459 = vmatpush1.bf16.msra.mxu0 %v407
  %460 = vmatprep.subr.bf16.mxu0 0
  %461 = vmatpush1.bf16.msra.mxu0 %v408
  %462 = vmatprep.subr.bf16.mxu0 0
  %463 = vmatpush1.bf16.msra.mxu0 %v409
  %464 = vmatprep.subr.bf16.mxu0 0
  %465 = vmatpush1.bf16.msra.mxu0 %v410
  %466 = vmatprep.subr.bf16.mxu0 0
  %467 = vmatpush1.bf16.msra.mxu0 %v411
  %468 = vmatprep.subr.bf16.mxu0 0
  %469 = vmatpush1.bf16.msra.mxu0 %v412
  %470 = vmatprep.subr.bf16.mxu0 0
  %471 = vmatpush1.bf16.msra.mxu0 %v413
  %472 = vmatprep.subr.bf16.mxu0 0
  %473 = vmatpush1.bf16.msra.mxu0 %v414
  %474 = vmatprep.subr.bf16.mxu0 0
  %475 = vmatpush1.bf16.msra.mxu0 %v415
  %476 = vmatprep.subr.bf16.mxu0 0
  %477 = vmatpush1.bf16.msra.mxu0 %v416
  %478 = vmatprep.subr.bf16.mxu0 0
  %479 = vmatpush1.bf16.msra.mxu0 %v417
  %480 = vmatprep.subr.bf16.mxu0 0
  %481 = vmatpush1.bf16.msra.mxu0 %v418
  %482 = vmatprep.subr.bf16.mxu0 0
  %483 = vmatpush1.bf16.msra.mxu0 %v419
  %484 = vmatprep.mubr.bf16.mxu0 %v261
  %485 = vmatmul.mubr.bf16.gmra.mrb[0].mxu0 %v260
  %v486 = vpop.f32.mrb[0].mxu0
  %v487 = vadd.f32 0.0, %v486
  %v488 = vpop.f32.mrb[0].mxu0
  %v489 = vpop.f32.mrb[0].mxu0
  %v490 = vadd.f32 0.0, %v489
  %v491 = vpop.f32.mrb[0].mxu0
  %492 = vmatprep.mubr.bf16.mxu0 %v264
  %493 = vmatmul.mubr.bf16.gmra.mrb[0].mxu0 %v263
  %v494 = vpop.f32.mrb[0].mxu0
  %v495 = vadd.f32 0.0, %v494
  %v496 = vpop.f32.mrb[0].mxu0
  %v497 = vpop.f32.mrb[0].mxu0
  %v498 = vadd.f32 0.0, %v497
  %v499 = vpop.f32.mrb[0].mxu0
  %500 = vmatprep.mubr.bf16.mxu0 %v267
  %501 = vmatmul.mubr.bf16.gmra.mrb[0].mxu0 %v266
  %v502 = vpop.f32.mrb[0].mxu0
  %v503 = vadd.f32 0.0, %v502
  %v504 = vpop.f32.mrb[0].mxu0
  %v505 = vpop.f32.mrb[0].mxu0
  %v506 = vadd.f32 0.0, %v505
  %v507 = vpop.f32.mrb[0].mxu0
  %508 = vmatprep.mubr.bf16.mxu0 %v270
  %509 = vmatmul.mubr.bf16.gmra.mrb[0].mxu0 %v269
  %v510 = vpop.f32.mrb[0].mxu0
  %v511 = vadd.f32 0.0, %v510
  %v512 = vpop.f32.mrb[0].mxu0
  %v513 = vpop.f32.mrb[0].mxu0
  %v514 = vadd.f32 0.0, %v513
  %v515 = vpop.f32.mrb[0].mxu0
  %516 = vmatprep.mubr.bf16.mxu0 %v273
  %517 = vmatmul.mubr.bf16.gmra.mrb[0].mxu0 %v272
  %v518 = vpop.f32.mrb[0].mxu0
  %v519 = vadd.f32 0.0, %v518
  %v520 = vpop.f32.mrb[0].mxu0
  %v521 = vpop.f32.mrb[0].mxu0
  %v522 = vadd.f32 0.0, %v521
  %v523 = vpop.f32.mrb[0].mxu0
  %524 = vmatprep.mubr.bf16.mxu0 %v276
  %525 = vmatmul.mubr.bf16.gmra.mrb[0].mxu0 %v275
  %v526 = vpop.f32.mrb[0].mxu0
  %v527 = vadd.f32 0.0, %v526
  %v528 = vpop.f32.mrb[0].mxu0
  %v529 = vpop.f32.mrb[0].mxu0
  %v530 = vadd.f32 0.0, %v529
  %v531 = vpop.f32.mrb[0].mxu0
  %532 = vmatprep.mubr.bf16.mxu0 %v279
  %533 = vmatmul.mubr.bf16.gmra.mrb[0].mxu0 %v278
  %v534 = vpop.f32.mrb[0].mxu0
  %v535 = vadd.f32 0.0, %v534
  %v536 = vpop.f32.mrb[0].mxu0
  %v537 = vpop.f32.mrb[0].mxu0
  %v538 = vadd.f32 0.0, %v537
  %v539 = vpop.f32.mrb[0].mxu0
  %540 = vmatprep.mubr.bf16.mxu0 %v282
  %541 = vmatmul.mubr.bf16.gmra.mrb[0].mxu0 %v281
  %v542 = vpop.f32.mrb[0].mxu0
  %v543 = vadd.f32 0.0, %v542
  %v544 = vpop.f32.mrb[0].mxu0
  %v545 = vpop.f32.mrb[0].mxu0
  %v546 = vadd.f32 0.0, %v545
  %v547 = vpop.f32.mrb[0].mxu0
  %548 = vdwg.mxu0
  %549 = vmatprep.subr.bf16.mxu0 0
  %550 = vmatpush1.bf16.msra.mxu0 %v420
  %551 = vmatprep.subr.bf16.mxu0 0
  %552 = vmatpush1.bf16.msra.mxu0 %v421
  %553 = vmatprep.subr.bf16.mxu0 0
  %554 = vmatpush1.bf16.msra.mxu0 %v422
  %555 = vmatprep.subr.bf16.mxu0 0
  %556 = vmatpush1.bf16.msra.mxu0 %v423
  %557 = vmatprep.subr.bf16.mxu0 0
  %558 = vmatpush1.bf16.msra.mxu0 %v424
  %559 = vmatprep.subr.bf16.mxu0 0
  %560 = vmatpush1.bf16.msra.mxu0 %v425
  %561 = vmatprep.subr.bf16.mxu0 0
  %562 = vmatpush1.bf16.msra.mxu0 %v426
  %563 = vmatprep.subr.bf16.mxu0 0
  %564 = vmatpush1.bf16.msra.mxu0 %v427
  %565 = vmatprep.subr.bf16.mxu0 0
  %566 = vmatpush1.bf16.msra.mxu0 0
  %567 = vmatprep.subr.bf16.mxu0 0
  %568 = vmatpush1.bf16.msra.mxu0 0
  %569 = vmatprep.subr.bf16.mxu0 0
  %570 = vmatpush1.bf16.msra.mxu0 0
  %571 = vmatprep.subr.bf16.mxu0 0
  %572 = vmatpush1.bf16.msra.mxu0 0
  %573 = vmatprep.subr.bf16.mxu0 0
  %574 = vmatpush1.bf16.msra.mxu0 0
  %575 = vmatprep.subr.bf16.mxu0 0
  %576 = vmatpush1.bf16.msra.mxu0 0
  %577 = vmatprep.subr.bf16.mxu0 0
  %578 = vmatpush1.bf16.msra.mxu0 0
  %579 = vmatprep.subr.bf16.mxu0 0
  %580 = vmatpush1.bf16.msra.mxu0 0
  %581 = vmatprep.mubr.bf16.mxu0 0
  %582 = vmatmul.mubr.bf16.gmra.mrb[0].mxu0 %v262
  %v583 = vpop.f32.mrb[0].mxu0
  %v584 = vadd.f32 %v487, %v583
  %v585 = vpop.f32.mrb[0].mxu0
  %v586 = vpop.f32.mrb[0].mxu0
  %v587 = vadd.f32 %v490, %v586
  %v588 = vpop.f32.mrb[0].mxu0
  %589 = vmatprep.mubr.bf16.mxu0 0
  %590 = vmatmul.mubr.bf16.gmra.mrb[0].mxu0 %v265
  %v591 = vpop.f32.mrb[0].mxu0
  %v592 = vadd.f32 %v495, %v591
  %v593 = vpop.f32.mrb[0].mxu0
  %v594 = vpop.f32.mrb[0].mxu0
  %v595 = vadd.f32 %v498, %v594
  %v596 = vpop.f32.mrb[0].mxu0
  %597 = vmatprep.mubr.bf16.mxu0 0
  %598 = vmatmul.mubr.bf16.gmra.mrb[0].mxu0 %v268
  %v599 = vpop.f32.mrb[0].mxu0
  %v600 = vadd.f32 %v503, %v599
  %v601 = vpop.f32.mrb[0].mxu0
  %v602 = vpop.f32.mrb[0].mxu0
  %v603 = vadd.f32 %v506, %v602
  %v604 = vpop.f32.mrb[0].mxu0
  %605 = vmatprep.mubr.bf16.mxu0 0
  %606 = vmatmul.mubr.bf16.gmra.mrb[0].mxu0 %v271
  %v607 = vpop.f32.mrb[0].mxu0
  %v608 = vadd.f32 %v511, %v607
  %v609 = vpop.f32.mrb[0].mxu0
  %v610 = vpop.f32.mrb[0].mxu0
  %v611 = vadd.f32 %v514, %v610
  %v612 = vpop.f32.mrb[0].mxu0
  %613 = vmatprep.mubr.bf16.mxu0 0
  %614 = vmatmul.mubr.bf16.gmra.mrb[0].mxu0 %v274
  %v615 = vpop.f32.mrb[0].mxu0
  %v616 = vadd.f32 %v519, %v615
  %v617 = vpop.f32.mrb[0].mxu0
  %v618 = vpop.f32.mrb[0].mxu0
  %v619 = vadd.f32 %v522, %v618
  %v620 = vpop.f32.mrb[0].mxu0
  %621 = vmatprep.mubr.bf16.mxu0 0
  %622 = vmatmul.mubr.bf16.gmra.mrb[0].mxu0 %v277
  %v623 = vpop.f32.mrb[0].mxu0
  %v624 = vadd.f32 %v527, %v623
  %v625 = vpop.f32.mrb[0].mxu0
  %v626 = vpop.f32.mrb[0].mxu0
  %v627 = vadd.f32 %v530, %v626
  %v628 = vpop.f32.mrb[0].mxu0
  %629 = vmatprep.mubr.bf16.mxu0 0
  %630 = vmatmul.mubr.bf16.gmra.mrb[0].mxu0 %v280
  %v631 = vpop.f32.mrb[0].mxu0
  %v632 = vadd.f32 %v535, %v631
  %v633 = vpop.f32.mrb[0].mxu0
  %v634 = vpop.f32.mrb[0].mxu0
  %v635 = vadd.f32 %v538, %v634
  %v636 = vpop.f32.mrb[0].mxu0
  %637 = vmatprep.mubr.bf16.mxu0 0
  %638 = vmatmul.mubr.bf16.gmra.mrb[0].mxu0 %v283
  %v639 = vpop.f32.mrb[0].mxu0
  %v640 = vadd.f32 %v543, %v639
  %v641 = vpop.f32.mrb[0].mxu0
  %v642 = vpop.f32.mrb[0].mxu0
  %v643 = vadd.f32 %v546, %v642
  %v644 = vpop.f32.mrb[0].mxu0
  %645 = vdwg.mxu0
  %v678 = vunpack.c.l.b16 %v18
  %v679 = vunpack.c.h.b16 %v18
  %v680 = vunpack.c.l.b16 %v19
  %v681 = vunpack.c.l.b16 %v20
  %v682 = vunpack.c.h.b16 %v20
  %v683 = vunpack.c.l.b16 %v21
  %v684 = vunpack.c.l.b16 %v22
  %v685 = vunpack.c.h.b16 %v22
  %v686 = vunpack.c.l.b16 %v23
  %v687 = vunpack.c.l.b16 %v24
  %v688 = vunpack.c.h.b16 %v24
  %v689 = vunpack.c.l.b16 %v25
  %v690 = vunpack.c.l.b16 %v26
  %v691 = vunpack.c.h.b16 %v26
  %v692 = vunpack.c.l.b16 %v27
  %v693 = vunpack.c.l.b16 %v28
  %v694 = vunpack.c.h.b16 %v28
  %v695 = vunpack.c.l.b16 %v29
  %v696 = vunpack.c.l.b16 %v30
  %v697 = vunpack.c.h.b16 %v30
  %v698 = vunpack.c.l.b16 %v31
  %v699 = vunpack.c.l.b16 %v32
  %v700 = vunpack.c.h.b16 %v32
  %v701 = vunpack.c.l.b16 %v33
  %v702 = vunpack.c.l.b16 %v34
  %v703 = vunpack.c.h.b16 %v34
  %v704 = vunpack.c.l.b16 %v35
  %v705 = vunpack.c.l.b16 %v36
  %v706 = vunpack.c.h.b16 %v36
  %v707 = vunpack.c.l.b16 %v37
  %v708 = vunpack.c.l.b16 %v38
  %v709 = vunpack.c.h.b16 %v38
  %v710 = vunpack.c.l.b16 %v39
  %v711 = vunpack.c.l.b16 %v40
  %v712 = vunpack.c.h.b16 %v40
  %v713 = vunpack.c.l.b16 %v41
  %v714 = vunpack.c.l.b16 %v42
  %v715 = vunpack.c.h.b16 %v42
  %v716 = vunpack.c.l.b16 %v43
  %v717 = vunpack.c.l.b16 %v44
  %v718 = vunpack.c.h.b16 %v44
  %v719 = vunpack.c.l.b16 %v45
  %v720 = vunpack.c.l.b16 %v46
  %v721 = vunpack.c.h.b16 %v46
  %v722 = vunpack.c.l.b16 %v47
  %v723 = vunpack.c.l.b16 %v48
  %v724 = vunpack.c.h.b16 %v48
  %v725 = vunpack.c.l.b16 %v49
  %v726 = vpack.c.b16 %v681, %v678
  %v727 = vpack.c.b16 %v682, %v679
  %v728 = vpack.c.b16 %v683, %v680
  %v729 = vpack.c.b16 %v687, %v684
  %v730 = vpack.c.b16 %v688, %v685
  %v731 = vpack.c.b16 %v689, %v686
  %v732 = vpack.c.b16 %v693, %v690
  %v733 = vpack.c.b16 %v694, %v691
  %v734 = vpack.c.b16 %v695, %v692
  %v735 = vpack.c.b16 %v699, %v696
  %v736 = vpack.c.b16 %v700, %v697
  %v737 = vpack.c.b16 %v701, %v698
  %v738 = vpack.c.b16 %v705, %v702
  %v739 = vpack.c.b16 %v706, %v703
  %v740 = vpack.c.b16 %v707, %v704
  %v741 = vpack.c.b16 %v711, %v708
  %v742 = vpack.c.b16 %v712, %v709
  %v743 = vpack.c.b16 %v713, %v710
  %v744 = vpack.c.b16 %v717, %v714
  %v745 = vpack.c.b16 %v718, %v715
  %v746 = vpack.c.b16 %v719, %v716
  %v747 = vpack.c.b16 %v723, %v720
  %v748 = vpack.c.b16 %v724, %v721
  %v749 = vpack.c.b16 %v725, %v722
  %v822 = vunpack.c.l.b16 %v50
  %v823 = vunpack.c.l.b16 %v51
  %v824 = vunpack.c.l.b16 %v52
  %v825 = vunpack.c.l.b16 %v53
  %v826 = vunpack.c.l.b16 %v54
  %v827 = vunpack.c.l.b16 %v55
  %v828 = vunpack.c.l.b16 %v56
  %v829 = vunpack.c.l.b16 %v57
  %v830 = vunpack.c.l.b16 %v58
  %v831 = vunpack.c.l.b16 %v59
  %v832 = vunpack.c.l.b16 %v60
  %v833 = vunpack.c.l.b16 %v61
  %v834 = vunpack.c.l.b16 %v62
  %v835 = vunpack.c.l.b16 %v63
  %v836 = vunpack.c.l.b16 %v64
  %v837 = vunpack.c.l.b16 %v65
  %v838 = vunpack.c.l.b16 %v66
  %v839 = vunpack.c.l.b16 %v67
  %v840 = vunpack.c.l.b16 %v68
  %v841 = vunpack.c.l.b16 %v69
  %v842 = vunpack.c.l.b16 %v70
  %v843 = vunpack.c.l.b16 %v71
  %v844 = vunpack.c.l.b16 %v72
  %v845 = vunpack.c.l.b16 %v73
  %v846 = vunpack.c.l.b16 %v74
  %v847 = vunpack.c.l.b16 %v75
  %v848 = vunpack.c.l.b16 %v76
  %v849 = vunpack.c.l.b16 %v77
  %v850 = vunpack.c.l.b16 %v78
  %v851 = vunpack.c.l.b16 %v79
  %v852 = vunpack.c.l.b16 %v80
  %v853 = vunpack.c.l.b16 %v81
  %v854 = vunpack.c.l.b16 %v82
  %v855 = vunpack.c.l.b16 %v83
  %v856 = vunpack.c.l.b16 %v84
  %v857 = vunpack.c.l.b16 %v85
  %v858 = vunpack.c.l.b16 %v86
  %v859 = vunpack.c.l.b16 %v87
  %v860 = vunpack.c.l.b16 %v88
  %v861 = vunpack.c.l.b16 %v89
  %v862 = vunpack.c.l.b16 %v90
  %v863 = vunpack.c.l.b16 %v91
  %v864 = vunpack.c.l.b16 %v92
  %v865 = vunpack.c.l.b16 %v93
  %v866 = vunpack.c.l.b16 %v94
  %v867 = vunpack.c.l.b16 %v95
  %v868 = vunpack.c.l.b16 %v96
  %v869 = vunpack.c.l.b16 %v97
  %v870 = vpack.c.b16 %v823, %v822
  %v871 = vpack.c.b16 %v825, %v824
  %v872 = vpack.c.b16 %v827, %v826
  %v873 = vpack.c.b16 %v829, %v828
  %v874 = vpack.c.b16 %v831, %v830
  %v875 = vpack.c.b16 %v833, %v832
  %v876 = vpack.c.b16 %v835, %v834
  %v877 = vpack.c.b16 %v837, %v836
  %v878 = vpack.c.b16 %v839, %v838
  %v879 = vpack.c.b16 %v841, %v840
  %v880 = vpack.c.b16 %v843, %v842
  %v881 = vpack.c.b16 %v845, %v844
  %v882 = vpack.c.b16 %v847, %v846
  %v883 = vpack.c.b16 %v849, %v848
  %v884 = vpack.c.b16 %v851, %v850
  %v885 = vpack.c.b16 %v853, %v852
  %v886 = vpack.c.b16 %v855, %v854
  %v887 = vpack.c.b16 %v857, %v856
  %v888 = vpack.c.b16 %v859, %v858
  %v889 = vpack.c.b16 %v861, %v860
  %v890 = vpack.c.b16 %v863, %v862
  %v891 = vpack.c.b16 %v865, %v864
  %v892 = vpack.c.b16 %v867, %v866
  %v893 = vpack.c.b16 %v869, %v868
  %918 = vmatprep.subr.bf16.mxu0 0
  %919 = vmatpush1.bf16.msra.mxu0 %v870
  %920 = vmatprep.subr.bf16.mxu0 0
  %921 = vmatpush1.bf16.msra.mxu0 %v871
  %922 = vmatprep.subr.bf16.mxu0 0
  %923 = vmatpush1.bf16.msra.mxu0 %v872
  %924 = vmatprep.subr.bf16.mxu0 0
  %925 = vmatpush1.bf16.msra.mxu0 %v873
  %926 = vmatprep.subr.bf16.mxu0 0
  %927 = vmatpush1.bf16.msra.mxu0 %v874
  %928 = vmatprep.subr.bf16.mxu0 0
  %929 = vmatpush1.bf16.msra.mxu0 %v875
  %930 = vmatprep.subr.bf16.mxu0 0
  %931 = vmatpush1.bf16.msra.mxu0 %v876
  %932 = vmatprep.subr.bf16.mxu0 0
  %933 = vmatpush1.bf16.msra.mxu0 %v877
  %934 = vmatprep.subr.bf16.mxu0 0
  %935 = vmatpush1.bf16.msra.mxu0 %v878
  %936 = vmatprep.subr.bf16.mxu0 0
  %937 = vmatpush1.bf16.msra.mxu0 %v879
  %938 = vmatprep.subr.bf16.mxu0 0
  %939 = vmatpush1.bf16.msra.mxu0 %v880
  %940 = vmatprep.subr.bf16.mxu0 0
  %941 = vmatpush1.bf16.msra.mxu0 %v881
  %942 = vmatprep.subr.bf16.mxu0 0
  %943 = vmatpush1.bf16.msra.mxu0 %v882
  %944 = vmatprep.subr.bf16.mxu0 0
  %945 = vmatpush1.bf16.msra.mxu0 %v883
  %946 = vmatprep.subr.bf16.mxu0 0
  %947 = vmatpush1.bf16.msra.mxu0 %v884
  %948 = vmatprep.subr.bf16.mxu0 0
  %949 = vmatpush1.bf16.msra.mxu0 %v885
  %950 = vmatprep.mubr.bf16.mxu0 %v727
  %951 = vmatmul.mubr.bf16.gmra.mrb[0].mxu0 %v726
  %v952 = vpop.f32.mrb[0].mxu0
  %v953 = vadd.f32 %v584, %v952
  %v954 = vpop.f32.mrb[0].mxu0
  %v955 = vpop.f32.mrb[0].mxu0
  %v956 = vadd.f32 %v587, %v955
  %v957 = vpop.f32.mrb[0].mxu0
  %958 = vmatprep.mubr.bf16.mxu0 %v730
  %959 = vmatmul.mubr.bf16.gmra.mrb[0].mxu0 %v729
  %v960 = vpop.f32.mrb[0].mxu0
  %v961 = vadd.f32 %v592, %v960
  %v962 = vpop.f32.mrb[0].mxu0
  %v963 = vpop.f32.mrb[0].mxu0
  %v964 = vadd.f32 %v595, %v963
  %v965 = vpop.f32.mrb[0].mxu0
  %966 = vmatprep.mubr.bf16.mxu0 %v733
  %967 = vmatmul.mubr.bf16.gmra.mrb[0].mxu0 %v732
  %v968 = vpop.f32.mrb[0].mxu0
  %v969 = vadd.f32 %v600, %v968
  %v970 = vpop.f32.mrb[0].mxu0
  %v971 = vpop.f32.mrb[0].mxu0
  %v972 = vadd.f32 %v603, %v971
  %v973 = vpop.f32.mrb[0].mxu0
  %974 = vmatprep.mubr.bf16.mxu0 %v736
  %975 = vmatmul.mubr.bf16.gmra.mrb[0].mxu0 %v735
  %v976 = vpop.f32.mrb[0].mxu0
  %v977 = vadd.f32 %v608, %v976
  %v978 = vpop.f32.mrb[0].mxu0
  %v979 = vpop.f32.mrb[0].mxu0
  %v980 = vadd.f32 %v611, %v979
  %v981 = vpop.f32.mrb[0].mxu0
  %982 = vmatprep.mubr.bf16.mxu0 %v739
  %983 = vmatmul.mubr.bf16.gmra.mrb[0].mxu0 %v738
  %v984 = vpop.f32.mrb[0].mxu0
  %v985 = vadd.f32 %v616, %v984
  %v986 = vpop.f32.mrb[0].mxu0
  %v987 = vpop.f32.mrb[0].mxu0
  %v988 = vadd.f32 %v619, %v987
  %v989 = vpop.f32.mrb[0].mxu0
  %990 = vmatprep.mubr.bf16.mxu0 %v742
  %991 = vmatmul.mubr.bf16.gmra.mrb[0].mxu0 %v741
  %v992 = vpop.f32.mrb[0].mxu0
  %v993 = vadd.f32 %v624, %v992
  %v994 = vpop.f32.mrb[0].mxu0
  %v995 = vpop.f32.mrb[0].mxu0
  %v996 = vadd.f32 %v627, %v995
  %v997 = vpop.f32.mrb[0].mxu0
  %998 = vmatprep.mubr.bf16.mxu0 %v745
  %999 = vmatmul.mubr.bf16.gmra.mrb[0].mxu0 %v744
  %v1000 = vpop.f32.mrb[0].mxu0
  %v1001 = vadd.f32 %v632, %v1000
  %v1002 = vpop.f32.mrb[0].mxu0
  %v1003 = vpop.f32.mrb[0].mxu0
  %v1004 = vadd.f32 %v635, %v1003
  %v1005 = vpop.f32.mrb[0].mxu0
  %1006 = vmatprep.mubr.bf16.mxu0 %v748
  %1007 = vmatmul.mubr.bf16.gmra.mrb[0].mxu0 %v747
  %v1008 = vpop.f32.mrb[0].mxu0
  %v1009 = vadd.f32 %v640, %v1008
  %v1010 = vpop.f32.mrb[0].mxu0
  %v1011 = vpop.f32.mrb[0].mxu0
  %v1012 = vadd.f32 %v643, %v1011
  %v1013 = vpop.f32.mrb[0].mxu0
  %1014 = vdwg.mxu0
  %1015 = vmatprep.subr.bf16.mxu0 0
  %1016 = vmatpush1.bf16.msra.mxu0 %v886
  %1017 = vmatprep.subr.bf16.mxu0 0
  %1018 = vmatpush1.bf16.msra.mxu0 %v887
  %1019 = vmatprep.subr.bf16.mxu0 0
  %1020 = vmatpush1.bf16.msra.mxu0 %v888
  %1021 = vmatprep.subr.bf16.mxu0 0
  %1022 = vmatpush1.bf16.msra.mxu0 %v889
  %1023 = vmatprep.subr.bf16.mxu0 0
  %1024 = vmatpush1.bf16.msra.mxu0 %v890
  %1025 = vmatprep.subr.bf16.mxu0 0
  %1026 = vmatpush1.bf16.msra.mxu0 %v891
  %1027 = vmatprep.subr.bf16.mxu0 0
  %1028 = vmatpush1.bf16.msra.mxu0 %v892
  %1029 = vmatprep.subr.bf16.mxu0 0
  %1030 = vmatpush1.bf16.msra.mxu0 %v893
  %1031 = vmatprep.subr.bf16.mxu0 0
  %1032 = vmatpush1.bf16.msra.mxu0 0
  %1033 = vmatprep.subr.bf16.mxu0 0
  %1034 = vmatpush1.bf16.msra.mxu0 0
  %1035 = vmatprep.subr.bf16.mxu0 0
  %1036 = vmatpush1.bf16.msra.mxu0 0
  %1037 = vmatprep.subr.bf16.mxu0 0
  %1038 = vmatpush1.bf16.msra.mxu0 0
  %1039 = vmatprep.subr.bf16.mxu0 0
  %1040 = vmatpush1.bf16.msra.mxu0 0
  %1041 = vmatprep.subr.bf16.mxu0 0
  %1042 = vmatpush1.bf16.msra.mxu0 0
  %1043 = vmatprep.subr.bf16.mxu0 0
  %1044 = vmatpush1.bf16.msra.mxu0 0
  %1045 = vmatprep.subr.bf16.mxu0 0
  %1046 = vmatpush1.bf16.msra.mxu0 0
  %1047 = vmatprep.mubr.bf16.mxu0 0
  %1048 = vmatmul.mubr.bf16.gmra.mrb[0].mxu0 %v728
  %v1049 = vpop.f32.mrb[0].mxu0
  %v1050 = vadd.f32 %v953, %v1049
  %v1051 = vpop.f32.mrb[0].mxu0
  %v1052 = vpop.f32.mrb[0].mxu0
  %v1053 = vadd.f32 %v956, %v1052
  %v1054 = vpop.f32.mrb[0].mxu0
  %1055 = vmatprep.mubr.bf16.mxu0 0
  %1056 = vmatmul.mubr.bf16.gmra.mrb[0].mxu0 %v731
  %v1057 = vpop.f32.mrb[0].mxu0
  %v1058 = vadd.f32 %v961, %v1057
  %v1059 = vpop.f32.mrb[0].mxu0
  %v1060 = vpop.f32.mrb[0].mxu0
  %v1061 = vadd.f32 %v964, %v1060
  %v1062 = vpop.f32.mrb[0].mxu0
  %1063 = vmatprep.mubr.bf16.mxu0 0
  %1064 = vmatmul.mubr.bf16.gmra.mrb[0].mxu0 %v734
  %v1065 = vpop.f32.mrb[0].mxu0
  %v1066 = vadd.f32 %v969, %v1065
  %v1067 = vpop.f32.mrb[0].mxu0
  %v1068 = vpop.f32.mrb[0].mxu0
  %v1069 = vadd.f32 %v972, %v1068
  %v1070 = vpop.f32.mrb[0].mxu0
  %1071 = vmatprep.mubr.bf16.mxu0 0
  %1072 = vmatmul.mubr.bf16.gmra.mrb[0].mxu0 %v737
  %v1073 = vpop.f32.mrb[0].mxu0
  %v1074 = vadd.f32 %v977, %v1073
  %v1075 = vpop.f32.mrb[0].mxu0
  %v1076 = vpop.f32.mrb[0].mxu0
  %v1077 = vadd.f32 %v980, %v1076
  %v1078 = vpop.f32.mrb[0].mxu0
  %1079 = vmatprep.mubr.bf16.mxu0 0
  %1080 = vmatmul.mubr.bf16.gmra.mrb[0].mxu0 %v740
  %v1081 = vpop.f32.mrb[0].mxu0
  %v1082 = vadd.f32 %v985, %v1081
  %v1083 = vpop.f32.mrb[0].mxu0
  %v1084 = vpop.f32.mrb[0].mxu0
  %v1085 = vadd.f32 %v988, %v1084
  %v1086 = vpop.f32.mrb[0].mxu0
  %1087 = vmatprep.mubr.bf16.mxu0 0
  %1088 = vmatmul.mubr.bf16.gmra.mrb[0].mxu0 %v743
  %v1089 = vpop.f32.mrb[0].mxu0
  %v1090 = vadd.f32 %v993, %v1089
  %v1091 = vpop.f32.mrb[0].mxu0
  %v1092 = vpop.f32.mrb[0].mxu0
  %v1093 = vadd.f32 %v996, %v1092
  %v1094 = vpop.f32.mrb[0].mxu0
  %1095 = vmatprep.mubr.bf16.mxu0 0
  %1096 = vmatmul.mubr.bf16.gmra.mrb[0].mxu0 %v746
  %v1097 = vpop.f32.mrb[0].mxu0
  %v1098 = vadd.f32 %v1001, %v1097
  %v1099 = vpop.f32.mrb[0].mxu0
  %v1100 = vpop.f32.mrb[0].mxu0
  %v1101 = vadd.f32 %v1004, %v1100
  %v1102 = vpop.f32.mrb[0].mxu0
  %1103 = vmatprep.mubr.bf16.mxu0 0
  %1104 = vmatmul.mubr.bf16.gmra.mrb[0].mxu0 %v749
  %v1105 = vpop.f32.mrb[0].mxu0
  %v1106 = vadd.f32 %v1009, %v1105
  %v1107 = vpop.f32.mrb[0].mxu0
  %v1108 = vpop.f32.mrb[0].mxu0
  %v1109 = vadd.f32 %v1012, %v1108
  %v1110 = vpop.f32.mrb[0].mxu0
  %1111 = vdwg.mxu0
  %s1112 = scalar_lea.vmem %s0, 24
  %v1113 = vld [vmem:[%s1112] sm:$0xff]
  %v1114 = vld [vmem:[%s1112 + $0x8] sm:$0xf]
  %v1115 = vld [vmem:[%s1112 + $0xc] sm:$0xff]
  %v1116 = vld [vmem:[%s1112 + $0x14] sm:$0xf]
  %v1117 = vld [vmem:[%s1112 + $0x18] sm:$0xff]
  %v1118 = vld [vmem:[%s1112 + $0x20] sm:$0xf]
  %v1119 = vld [vmem:[%s1112 + $0x24] sm:$0xff]
  %v1120 = vld [vmem:[%s1112 + $0x2c] sm:$0xf]
  %v1121 = vld [vmem:[%s1112 + $0x30] sm:$0xff]
  %v1122 = vld [vmem:[%s1112 + $0x38] sm:$0xf]
  %v1123 = vld [vmem:[%s1112 + $0x3c] sm:$0xff]
  %v1124 = vld [vmem:[%s1112 + $0x44] sm:$0xf]
  %v1125 = vld [vmem:[%s1112 + $0x48] sm:$0xff]
  %v1126 = vld [vmem:[%s1112 + $0x50] sm:$0xf]
  %v1127 = vld [vmem:[%s1112 + $0x54] sm:$0xff]
  %v1128 = vld [vmem:[%s1112 + $0x5c] sm:$0xf]
  %v1129 = vld [vmem:[%s1112 + $0x78] sm:$0xff]
  %v1130 = vld [vmem:[%s1112 + $0x80] sm:$0xf]
  %v1131 = vld [vmem:[%s1112 + $0x84] sm:$0xff]
  %v1132 = vld [vmem:[%s1112 + $0x8c] sm:$0xf]
  %v1133 = vld [vmem:[%s1112 + $0x90] sm:$0xff]
  %v1134 = vld [vmem:[%s1112 + $0x98] sm:$0xf]
  %v1135 = vld [vmem:[%s1112 + $0x9c] sm:$0xff]
  %v1136 = vld [vmem:[%s1112 + $0xa4] sm:$0xf]
  %v1137 = vld [vmem:[%s1112 + $0xa8] sm:$0xff]
  %v1138 = vld [vmem:[%s1112 + $0xb0] sm:$0xf]
  %v1139 = vld [vmem:[%s1112 + $0xb4] sm:$0xff]
  %v1140 = vld [vmem:[%s1112 + $0xbc] sm:$0xf]
  %v1141 = vld [vmem:[%s1112 + $0xc0] sm:$0xff]
  %v1142 = vld [vmem:[%s1112 + $0xc8] sm:$0xf]
  %v1143 = vld [vmem:[%s1112 + $0xcc] sm:$0xff]
  %v1144 = vld [vmem:[%s1112 + $0xd4] sm:$0xf]
  %s1145 = scalar_lea.vmem %s1, 384
  %v1146 = vld [vmem:[%s1145] sm:$0xf]
  %v1147 = vld [vmem:[%s1145 + $0x4] sm:$0xf]
  %v1148 = vld [vmem:[%s1145 + $0x8] sm:$0xf]
  %v1149 = vld [vmem:[%s1145 + $0xc] sm:$0xf]
  %v1150 = vld [vmem:[%s1145 + $0x10] sm:$0xf]
  %v1151 = vld [vmem:[%s1145 + $0x14] sm:$0xf]
  %v1152 = vld [vmem:[%s1145 + $0x18] sm:$0xf]
  %v1153 = vld [vmem:[%s1145 + $0x1c] sm:$0xf]
  %v1154 = vld [vmem:[%s1145 + $0x20] sm:$0xf]
  %v1155 = vld [vmem:[%s1145 + $0x24] sm:$0xf]
  %v1156 = vld [vmem:[%s1145 + $0x28] sm:$0xf]
  %v1157 = vld [vmem:[%s1145 + $0x2c] sm:$0xf]
  %v1158 = vld [vmem:[%s1145 + $0x30] sm:$0xf]
  %v1159 = vld [vmem:[%s1145 + $0x34] sm:$0xf]
  %v1160 = vld [vmem:[%s1145 + $0x38] sm:$0xf]
  %v1161 = vld [vmem:[%s1145 + $0x3c] sm:$0xf]
  %v1162 = vld [vmem:[%s1145 + $0x40] sm:$0xf]
  %v1163 = vld [vmem:[%s1145 + $0x44] sm:$0xf]
  %v1164 = vld [vmem:[%s1145 + $0x48] sm:$0xf]
  %v1165 = vld [vmem:[%s1145 + $0x4c] sm:$0xf]
  %v1166 = vld [vmem:[%s1145 + $0x50] sm:$0xf]
  %v1167 = vld [vmem:[%s1145 + $0x54] sm:$0xf]
  %v1168 = vld [vmem:[%s1145 + $0x58] sm:$0xf]
  %v1169 = vld [vmem:[%s1145 + $0x5c] sm:$0xf]
  %v1170 = vld [vmem:[%s1145 + $0x60] sm:$0xf]
  %v1171 = vld [vmem:[%s1145 + $0x64] sm:$0xf]
  %v1172 = vld [vmem:[%s1145 + $0x68] sm:$0xf]
  %v1173 = vld [vmem:[%s1145 + $0x6c] sm:$0xf]
  %v1174 = vld [vmem:[%s1145 + $0x70] sm:$0xf]
  %v1175 = vld [vmem:[%s1145 + $0x74] sm:$0xf]
  %v1176 = vld [vmem:[%s1145 + $0x78] sm:$0xf]
  %v1177 = vld [vmem:[%s1145 + $0x7c] sm:$0xf]
  %v1178 = vld [vmem:[%s1145 + $0x80] sm:$0xf]
  %v1179 = vld [vmem:[%s1145 + $0x84] sm:$0xf]
  %v1180 = vld [vmem:[%s1145 + $0x88] sm:$0xf]
  %v1181 = vld [vmem:[%s1145 + $0x8c] sm:$0xf]
  %v1182 = vld [vmem:[%s1145 + $0x90] sm:$0xf]
  %v1183 = vld [vmem:[%s1145 + $0x94] sm:$0xf]
  %v1184 = vld [vmem:[%s1145 + $0x98] sm:$0xf]
  %v1185 = vld [vmem:[%s1145 + $0x9c] sm:$0xf]
  %v1186 = vld [vmem:[%s1145 + $0xa0] sm:$0xf]
  %v1187 = vld [vmem:[%s1145 + $0xa4] sm:$0xf]
  %v1188 = vld [vmem:[%s1145 + $0xa8] sm:$0xf]
  %v1189 = vld [vmem:[%s1145 + $0xac] sm:$0xf]
  %v1190 = vld [vmem:[%s1145 + $0xb0] sm:$0xf]
  %v1191 = vld [vmem:[%s1145 + $0xb4] sm:$0xf]
  %v1192 = vld [vmem:[%s1145 + $0xb8] sm:$0xf]
  %v1193 = vld [vmem:[%s1145 + $0xbc] sm:$0xf]
  %v1226 = vunpack.c.l.b16 %v1113
  %v1227 = vunpack.c.h.b16 %v1113
  %v1228 = vunpack.c.l.b16 %v1114
  %v1229 = vunpack.c.l.b16 %v1115
  %v1230 = vunpack.c.h.b16 %v1115
  %v1231 = vunpack.c.l.b16 %v1116
  %v1232 = vunpack.c.l.b16 %v1117
  %v1233 = vunpack.c.h.b16 %v1117
  %v1234 = vunpack.c.l.b16 %v1118
  %v1235 = vunpack.c.l.b16 %v1119
  %v1236 = vunpack.c.h.b16 %v1119
  %v1237 = vunpack.c.l.b16 %v1120
  %v1238 = vunpack.c.l.b16 %v1121
  %v1239 = vunpack.c.h.b16 %v1121
  %v1240 = vunpack.c.l.b16 %v1122
  %v1241 = vunpack.c.l.b16 %v1123
  %v1242 = vunpack.c.h.b16 %v1123
  %v1243 = vunpack.c.l.b16 %v1124
  %v1244 = vunpack.c.l.b16 %v1125
  %v1245 = vunpack.c.h.b16 %v1125
  %v1246 = vunpack.c.l.b16 %v1126
  %v1247 = vunpack.c.l.b16 %v1127
  %v1248 = vunpack.c.h.b16 %v1127
  %v1249 = vunpack.c.l.b16 %v1128
  %v1250 = vunpack.c.l.b16 %v1129
  %v1251 = vunpack.c.h.b16 %v1129
  %v1252 = vunpack.c.l.b16 %v1130
  %v1253 = vunpack.c.l.b16 %v1131
  %v1254 = vunpack.c.h.b16 %v1131
  %v1255 = vunpack.c.l.b16 %v1132
  %v1256 = vunpack.c.l.b16 %v1133
  %v1257 = vunpack.c.h.b16 %v1133
  %v1258 = vunpack.c.l.b16 %v1134
  %v1259 = vunpack.c.l.b16 %v1135
  %v1260 = vunpack.c.h.b16 %v1135
  %v1261 = vunpack.c.l.b16 %v1136
  %v1262 = vunpack.c.l.b16 %v1137
  %v1263 = vunpack.c.h.b16 %v1137
  %v1264 = vunpack.c.l.b16 %v1138
  %v1265 = vunpack.c.l.b16 %v1139
  %v1266 = vunpack.c.h.b16 %v1139
  %v1267 = vunpack.c.l.b16 %v1140
  %v1268 = vunpack.c.l.b16 %v1141
  %v1269 = vunpack.c.h.b16 %v1141
  %v1270 = vunpack.c.l.b16 %v1142
  %v1271 = vunpack.c.l.b16 %v1143
  %v1272 = vunpack.c.h.b16 %v1143
  %v1273 = vunpack.c.l.b16 %v1144
  %v1274 = vpack.c.b16 %v1229, %v1226
  %v1275 = vpack.c.b16 %v1230, %v1227
  %v1276 = vpack.c.b16 %v1231, %v1228
  %v1277 = vpack.c.b16 %v1235, %v1232
  %v1278 = vpack.c.b16 %v1236, %v1233
  %v1279 = vpack.c.b16 %v1237, %v1234
  %v1280 = vpack.c.b16 %v1241, %v1238
  %v1281 = vpack.c.b16 %v1242, %v1239
  %v1282 = vpack.c.b16 %v1243, %v1240
  %v1283 = vpack.c.b16 %v1247, %v1244
  %v1284 = vpack.c.b16 %v1248, %v1245
  %v1285 = vpack.c.b16 %v1249, %v1246
  %v1286 = vpack.c.b16 %v1253, %v1250
  %v1287 = vpack.c.b16 %v1254, %v1251
  %v1288 = vpack.c.b16 %v1255, %v1252
  %v1289 = vpack.c.b16 %v1259, %v1256
  %v1290 = vpack.c.b16 %v1260, %v1257
  %v1291 = vpack.c.b16 %v1261, %v1258
  %v1292 = vpack.c.b16 %v1265, %v1262
  %v1293 = vpack.c.b16 %v1266, %v1263
  %v1294 = vpack.c.b16 %v1267, %v1264
  %v1295 = vpack.c.b16 %v1271, %v1268
  %v1296 = vpack.c.b16 %v1272, %v1269
  %v1297 = vpack.c.b16 %v1273, %v1270
  %v1370 = vunpack.c.l.b16 %v1146
  %v1371 = vunpack.c.l.b16 %v1147
  %v1372 = vunpack.c.l.b16 %v1148
  %v1373 = vunpack.c.l.b16 %v1149
  %v1374 = vunpack.c.l.b16 %v1150
  %v1375 = vunpack.c.l.b16 %v1151
  %v1376 = vunpack.c.l.b16 %v1152
  %v1377 = vunpack.c.l.b16 %v1153
  %v1378 = vunpack.c.l.b16 %v1154
  %v1379 = vunpack.c.l.b16 %v1155
  %v1380 = vunpack.c.l.b16 %v1156
  %v1381 = vunpack.c.l.b16 %v1157
  %v1382 = vunpack.c.l.b16 %v1158
  %v1383 = vunpack.c.l.b16 %v1159
  %v1384 = vunpack.c.l.b16 %v1160
  %v1385 = vunpack.c.l.b16 %v1161
  %v1386 = vunpack.c.l.b16 %v1162
  %v1387 = vunpack.c.l.b16 %v1163
  %v1388 = vunpack.c.l.b16 %v1164
  %v1389 = vunpack.c.l.b16 %v1165
  %v1390 = vunpack.c.l.b16 %v1166
  %v1391 = vunpack.c.l.b16 %v1167
  %v1392 = vunpack.c.l.b16 %v1168
  %v1393 = vunpack.c.l.b16 %v1169
  %v1394 = vunpack.c.l.b16 %v1170
  %v1395 = vunpack.c.l.b16 %v1171
  %v1396 = vunpack.c.l.b16 %v1172
  %v1397 = vunpack.c.l.b16 %v1173
  %v1398 = vunpack.c.l.b16 %v1174
  %v1399 = vunpack.c.l.b16 %v1175
  %v1400 = vunpack.c.l.b16 %v1176
  %v1401 = vunpack.c.l.b16 %v1177
  %v1402 = vunpack.c.l.b16 %v1178
  %v1403 = vunpack.c.l.b16 %v1179
  %v1404 = vunpack.c.l.b16 %v1180
  %v1405 = vunpack.c.l.b16 %v1181
  %v1406 = vunpack.c.l.b16 %v1182
  %v1407 = vunpack.c.l.b16 %v1183
  %v1408 = vunpack.c.l.b16 %v1184
  %v1409 = vunpack.c.l.b16 %v1185
  %v1410 = vunpack.c.l.b16 %v1186
  %v1411 = vunpack.c.l.b16 %v1187
  %v1412 = vunpack.c.l.b16 %v1188
  %v1413 = vunpack.c.l.b16 %v1189
  %v1414 = vunpack.c.l.b16 %v1190
  %v1415 = vunpack.c.l.b16 %v1191
  %v1416 = vunpack.c.l.b16 %v1192
  %v1417 = vunpack.c.l.b16 %v1193
  %v1418 = vpack.c.b16 %v1371, %v1370
  %v1419 = vpack.c.b16 %v1373, %v1372
  %v1420 = vpack.c.b16 %v1375, %v1374
  %v1421 = vpack.c.b16 %v1377, %v1376
  %v1422 = vpack.c.b16 %v1379, %v1378
  %v1423 = vpack.c.b16 %v1381, %v1380
  %v1424 = vpack.c.b16 %v1383, %v1382
  %v1425 = vpack.c.b16 %v1385, %v1384
  %v1426 = vpack.c.b16 %v1387, %v1386
  %v1427 = vpack.c.b16 %v1389, %v1388
  %v1428 = vpack.c.b16 %v1391, %v1390
  %v1429 = vpack.c.b16 %v1393, %v1392
  %v1430 = vpack.c.b16 %v1395, %v1394
  %v1431 = vpack.c.b16 %v1397, %v1396
  %v1432 = vpack.c.b16 %v1399, %v1398
  %v1433 = vpack.c.b16 %v1401, %v1400
  %v1434 = vpack.c.b16 %v1403, %v1402
  %v1435 = vpack.c.b16 %v1405, %v1404
  %v1436 = vpack.c.b16 %v1407, %v1406
  %v1437 = vpack.c.b16 %v1409, %v1408
  %v1438 = vpack.c.b16 %v1411, %v1410
  %v1439 = vpack.c.b16 %v1413, %v1412
  %v1440 = vpack.c.b16 %v1415, %v1414
  %v1441 = vpack.c.b16 %v1417, %v1416
  %1466 = vmatprep.subr.bf16.mxu0 0
  %1467 = vmatpush1.bf16.msra.mxu0 %v1418
  %1468 = vmatprep.subr.bf16.mxu0 0
  %1469 = vmatpush1.bf16.msra.mxu0 %v1419
  %1470 = vmatprep.subr.bf16.mxu0 0
  %1471 = vmatpush1.bf16.msra.mxu0 %v1420
  %1472 = vmatprep.subr.bf16.mxu0 0
  %1473 = vmatpush1.bf16.msra.mxu0 %v1421
  %1474 = vmatprep.subr.bf16.mxu0 0
  %1475 = vmatpush1.bf16.msra.mxu0 %v1422
  %1476 = vmatprep.subr.bf16.mxu0 0
  %1477 = vmatpush1.bf16.msra.mxu0 %v1423
  %1478 = vmatprep.subr.bf16.mxu0 0
  %1479 = vmatpush1.bf16.msra.mxu0 %v1424
  %1480 = vmatprep.subr.bf16.mxu0 0
  %1481 = vmatpush1.bf16.msra.mxu0 %v1425
  %1482 = vmatprep.subr.bf16.mxu0 0
  %1483 = vmatpush1.bf16.msra.mxu0 %v1426
  %1484 = vmatprep.subr.bf16.mxu0 0
  %1485 = vmatpush1.bf16.msra.mxu0 %v1427
  %1486 = vmatprep.subr.bf16.mxu0 0
  %1487 = vmatpush1.bf16.msra.mxu0 %v1428
  %1488 = vmatprep.subr.bf16.mxu0 0
  %1489 = vmatpush1.bf16.msra.mxu0 %v1429
  %1490 = vmatprep.subr.bf16.mxu0 0
  %1491 = vmatpush1.bf16.msra.mxu0 %v1430
  %1492 = vmatprep.subr.bf16.mxu0 0
  %1493 = vmatpush1.bf16.msra.mxu0 %v1431
  %1494 = vmatprep.subr.bf16.mxu0 0
  %1495 = vmatpush1.bf16.msra.mxu0 %v1432
  %1496 = vmatprep.subr.bf16.mxu0 0
  %1497 = vmatpush1.bf16.msra.mxu0 %v1433
  %1498 = vmatprep.mubr.bf16.mxu0 %v1275
  %1499 = vmatmul.mubr.bf16.gmra.mrb[0].mxu0 %v1274
  %v1500 = vpop.f32.mrb[0].mxu0
  %v1501 = vadd.f32 0.0, %v1500
  %v1502 = vpop.f32.mrb[0].mxu0
  %v1503 = vpop.f32.mrb[0].mxu0
  %v1504 = vadd.f32 0.0, %v1503
  %v1505 = vpop.f32.mrb[0].mxu0
  %1506 = vmatprep.mubr.bf16.mxu0 %v1278
  %1507 = vmatmul.mubr.bf16.gmra.mrb[0].mxu0 %v1277
  %v1508 = vpop.f32.mrb[0].mxu0
  %v1509 = vadd.f32 0.0, %v1508
  %v1510 = vpop.f32.mrb[0].mxu0
  %v1511 = vpop.f32.mrb[0].mxu0
  %v1512 = vadd.f32 0.0, %v1511
  %v1513 = vpop.f32.mrb[0].mxu0
  %1514 = vmatprep.mubr.bf16.mxu0 %v1281
  %1515 = vmatmul.mubr.bf16.gmra.mrb[0].mxu0 %v1280
  %v1516 = vpop.f32.mrb[0].mxu0
  %v1517 = vadd.f32 0.0, %v1516
  %v1518 = vpop.f32.mrb[0].mxu0
  %v1519 = vpop.f32.mrb[0].mxu0
  %v1520 = vadd.f32 0.0, %v1519
  %v1521 = vpop.f32.mrb[0].mxu0
  %1522 = vmatprep.mubr.bf16.mxu0 %v1284
  %1523 = vmatmul.mubr.bf16.gmra.mrb[0].mxu0 %v1283
  %v1524 = vpop.f32.mrb[0].mxu0
  %v1525 = vadd.f32 0.0, %v1524
  %v1526 = vpop.f32.mrb[0].mxu0
  %v1527 = vpop.f32.mrb[0].mxu0
  %v1528 = vadd.f32 0.0, %v1527
  %v1529 = vpop.f32.mrb[0].mxu0
  %1530 = vmatprep.mubr.bf16.mxu0 %v1287
  %1531 = vmatmul.mubr.bf16.gmra.mrb[0].mxu0 %v1286
  %v1532 = vpop.f32.mrb[0].mxu0
  %v1533 = vadd.f32 0.0, %v1532
  %v1534 = vpop.f32.mrb[0].mxu0
  %v1535 = vpop.f32.mrb[0].mxu0
  %v1536 = vadd.f32 0.0, %v1535
  %v1537 = vpop.f32.mrb[0].mxu0
  %1538 = vmatprep.mubr.bf16.mxu0 %v1290
  %1539 = vmatmul.mubr.bf16.gmra.mrb[0].mxu0 %v1289
  %v1540 = vpop.f32.mrb[0].mxu0
  %v1541 = vadd.f32 0.0, %v1540
  %v1542 = vpop.f32.mrb[0].mxu0
  %v1543 = vpop.f32.mrb[0].mxu0
  %v1544 = vadd.f32 0.0, %v1543
  %v1545 = vpop.f32.mrb[0].mxu0
  %1546 = vmatprep.mubr.bf16.mxu0 %v1293
  %1547 = vmatmul.mubr.bf16.gmra.mrb[0].mxu0 %v1292
  %v1548 = vpop.f32.mrb[0].mxu0
  %v1549 = vadd.f32 0.0, %v1548
  %v1550 = vpop.f32.mrb[0].mxu0
  %v1551 = vpop.f32.mrb[0].mxu0
  %v1552 = vadd.f32 0.0, %v1551
  %v1553 = vpop.f32.mrb[0].mxu0
  %1554 = vmatprep.mubr.bf16.mxu0 %v1296
  %1555 = vmatmul.mubr.bf16.gmra.mrb[0].mxu0 %v1295
  %v1556 = vpop.f32.mrb[0].mxu0
  %v1557 = vadd.f32 0.0, %v1556
  %v1558 = vpop.f32.mrb[0].mxu0
  %v1559 = vpop.f32.mrb[0].mxu0
  %v1560 = vadd.f32 0.0, %v1559
  %v1561 = vpop.f32.mrb[0].mxu0
  %1562 = vdwg.mxu0
  %1563 = vmatprep.subr.bf16.mxu0 0
  %1564 = vmatpush1.bf16.msra.mxu0 %v1434
  %1565 = vmatprep.subr.bf16.mxu0 0
  %1566 = vmatpush1.bf16.msra.mxu0 %v1435
  %1567 = vmatprep.subr.bf16.mxu0 0
  %1568 = vmatpush1.bf16.msra.mxu0 %v1436
  %1569 = vmatprep.subr.bf16.mxu0 0
  %1570 = vmatpush1.bf16.msra.mxu0 %v1437
  %1571 = vmatprep.subr.bf16.mxu0 0
  %1572 = vmatpush1.bf16.msra.mxu0 %v1438
  %1573 = vmatprep.subr.bf16.mxu0 0
  %1574 = vmatpush1.bf16.msra.mxu0 %v1439
  %1575 = vmatprep.subr.bf16.mxu0 0
  %1576 = vmatpush1.bf16.msra.mxu0 %v1440
  %1577 = vmatprep.subr.bf16.mxu0 0
  %1578 = vmatpush1.bf16.msra.mxu0 %v1441
  %1579 = vmatprep.subr.bf16.mxu0 0
  %1580 = vmatpush1.bf16.msra.mxu0 0
  %1581 = vmatprep.subr.bf16.mxu0 0
  %1582 = vmatpush1.bf16.msra.mxu0 0
  %1583 = vmatprep.subr.bf16.mxu0 0
  %1584 = vmatpush1.bf16.msra.mxu0 0
  %1585 = vmatprep.subr.bf16.mxu0 0
  %1586 = vmatpush1.bf16.msra.mxu0 0
  %1587 = vmatprep.subr.bf16.mxu0 0
  %1588 = vmatpush1.bf16.msra.mxu0 0
  %1589 = vmatprep.subr.bf16.mxu0 0
  %1590 = vmatpush1.bf16.msra.mxu0 0
  %1591 = vmatprep.subr.bf16.mxu0 0
  %1592 = vmatpush1.bf16.msra.mxu0 0
  %1593 = vmatprep.subr.bf16.mxu0 0
  %1594 = vmatpush1.bf16.msra.mxu0 0
  %1595 = vmatprep.mubr.bf16.mxu0 0
  %1596 = vmatmul.mubr.bf16.gmra.mrb[0].mxu0 %v1276
  %v1597 = vpop.f32.mrb[0].mxu0
  %v1598 = vadd.f32 %v1501, %v1597
  %v1599 = vpop.f32.mrb[0].mxu0
  %v1600 = vpop.f32.mrb[0].mxu0
  %v1601 = vadd.f32 %v1504, %v1600
  %v1602 = vpop.f32.mrb[0].mxu0
  %1603 = vmatprep.mubr.bf16.mxu0 0
  %1604 = vmatmul.mubr.bf16.gmra.mrb[0].mxu0 %v1279
  %v1605 = vpop.f32.mrb[0].mxu0
  %v1606 = vadd.f32 %v1509, %v1605
  %v1607 = vpop.f32.mrb[0].mxu0
  %v1608 = vpop.f32.mrb[0].mxu0
  %v1609 = vadd.f32 %v1512, %v1608
  %v1610 = vpop.f32.mrb[0].mxu0
  %1611 = vmatprep.mubr.bf16.mxu0 0
  %1612 = vmatmul.mubr.bf16.gmra.mrb[0].mxu0 %v1282
  %v1613 = vpop.f32.mrb[0].mxu0
  %v1614 = vadd.f32 %v1517, %v1613
  %v1615 = vpop.f32.mrb[0].mxu0
  %v1616 = vpop.f32.mrb[0].mxu0
  %v1617 = vadd.f32 %v1520, %v1616
  %v1618 = vpop.f32.mrb[0].mxu0
  %1619 = vmatprep.mubr.bf16.mxu0 0
  %1620 = vmatmul.mubr.bf16.gmra.mrb[0].mxu0 %v1285
  %v1621 = vpop.f32.mrb[0].mxu0
  %v1622 = vadd.f32 %v1525, %v1621
  %v1623 = vpop.f32.mrb[0].mxu0
  %v1624 = vpop.f32.mrb[0].mxu0
  %v1625 = vadd.f32 %v1528, %v1624
  %v1626 = vpop.f32.mrb[0].mxu0
  %1627 = vmatprep.mubr.bf16.mxu0 0
  %1628 = vmatmul.mubr.bf16.gmra.mrb[0].mxu0 %v1288
  %v1629 = vpop.f32.mrb[0].mxu0
  %v1630 = vadd.f32 %v1533, %v1629
  %v1631 = vpop.f32.mrb[0].mxu0
  %v1632 = vpop.f32.mrb[0].mxu0
  %v1633 = vadd.f32 %v1536, %v1632
  %v1634 = vpop.f32.mrb[0].mxu0
  %1635 = vmatprep.mubr.bf16.mxu0 0
  %1636 = vmatmul.mubr.bf16.gmra.mrb[0].mxu0 %v1291
  %v1637 = vpop.f32.mrb[0].mxu0
  %v1638 = vadd.f32 %v1541, %v1637
  %v1639 = vpop.f32.mrb[0].mxu0
  %v1640 = vpop.f32.mrb[0].mxu0
  %v1641 = vadd.f32 %v1544, %v1640
  %v1642 = vpop.f32.mrb[0].mxu0
  %1643 = vmatprep.mubr.bf16.mxu0 0
  %1644 = vmatmul.mubr.bf16.gmra.mrb[0].mxu0 %v1294
  %v1645 = vpop.f32.mrb[0].mxu0
  %v1646 = vadd.f32 %v1549, %v1645
  %v1647 = vpop.f32.mrb[0].mxu0
  %v1648 = vpop.f32.mrb[0].mxu0
  %v1649 = vadd.f32 %v1552, %v1648
  %v1650 = vpop.f32.mrb[0].mxu0
  %1651 = vmatprep.mubr.bf16.mxu0 0
  %1652 = vmatmul.mubr.bf16.gmra.mrb[0].mxu0 %v1297
  %v1653 = vpop.f32.mrb[0].mxu0
  %v1654 = vadd.f32 %v1557, %v1653
  %v1655 = vpop.f32.mrb[0].mxu0
  %v1656 = vpop.f32.mrb[0].mxu0
  %v1657 = vadd.f32 %v1560, %v1656
  %v1658 = vpop.f32.mrb[0].mxu0
  %1659 = vdwg.mxu0
  %v1660 = vadd.f32 %v1050, %v1598
  %v1661 = vadd.f32 %v1053, %v1601
  %v1662 = vadd.f32 %v1058, %v1606
  %v1663 = vadd.f32 %v1061, %v1609
  %v1664 = vadd.f32 %v1066, %v1614
  %v1665 = vadd.f32 %v1069, %v1617
  %v1666 = vadd.f32 %v1074, %v1622
  %v1667 = vadd.f32 %v1077, %v1625
  %v1668 = vadd.f32 %v1082, %v1630
  %v1669 = vadd.f32 %v1085, %v1633
  %v1670 = vadd.f32 %v1090, %v1638
  %v1671 = vadd.f32 %v1093, %v1641
  %v1672 = vadd.f32 %v1098, %v1646
  %v1673 = vadd.f32 %v1101, %v1649
  %v1674 = vadd.f32 %v1106, %v1654
  %v1675 = vadd.f32 %v1109, %v1657
  %v1676 = vadd.f32 %v1660, %v1661
  %v1677 = vadd.f32 %v1676, %v1662
  %v1678 = vadd.f32 %v1677, %v1663
  %v1679 = vadd.f32 %v1678, %v1664
  %v1680 = vadd.f32 %v1679, %v1665
  %v1681 = vadd.f32 %v1680, %v1666
  %v1682 = vadd.f32 %v1681, %v1667
  %v1683 = vadd.f32 %v1682, %v1668
  %v1684 = vadd.f32 %v1683, %v1669
  %v1685 = vadd.f32 %v1684, %v1670
  %v1686 = vadd.f32 %v1685, %v1671
  %v1687 = vadd.f32 %v1686, %v1672
  %v1688 = vadd.f32 %v1687, %v1673
  %v1689 = vadd.f32 %v1688, %v1674
  %v1690 = vadd.f32 %v1689, %v1675
  %v1691 = vrot.slane %v1690, 4
  %v1692 = vadd.f32 %v1690, %v1691
  %v1693 = vrot.slane %v1692, 2
  %v1694 = vadd.f32 %v1692, %v1693
  %v1695 = vrot.slane %v1694, 1
  %v1696 = vadd.f32 %v1694, %v1695
  %v1697 = vmul.f32 %v1696, 0.0078125
  %v1698 = vmul.f32 %v1660, %v1660
  %v1699 = vmul.f32 %v1661, %v1661
  %v1700 = vmul.f32 %v1662, %v1662
  %v1701 = vmul.f32 %v1663, %v1663
  %v1702 = vmul.f32 %v1664, %v1664
  %v1703 = vmul.f32 %v1665, %v1665
  %v1704 = vmul.f32 %v1666, %v1666
  %v1705 = vmul.f32 %v1667, %v1667
  %v1706 = vmul.f32 %v1668, %v1668
  %v1707 = vmul.f32 %v1669, %v1669
  %v1708 = vmul.f32 %v1670, %v1670
  %v1709 = vmul.f32 %v1671, %v1671
  %v1710 = vmul.f32 %v1672, %v1672
  %v1711 = vmul.f32 %v1673, %v1673
  %v1712 = vmul.f32 %v1674, %v1674
  %v1713 = vmul.f32 %v1675, %v1675
  %v1714 = vadd.f32 %v1698, %v1699
  %v1715 = vadd.f32 %v1714, %v1700
  %v1716 = vadd.f32 %v1715, %v1701
  %v1717 = vadd.f32 %v1716, %v1702
  %v1718 = vadd.f32 %v1717, %v1703
  %v1719 = vadd.f32 %v1718, %v1704
  %v1720 = vadd.f32 %v1719, %v1705
  %v1721 = vadd.f32 %v1720, %v1706
  %v1722 = vadd.f32 %v1721, %v1707
  %v1723 = vadd.f32 %v1722, %v1708
  %v1724 = vadd.f32 %v1723, %v1709
  %v1725 = vadd.f32 %v1724, %v1710
  %v1726 = vadd.f32 %v1725, %v1711
  %v1727 = vadd.f32 %v1726, %v1712
  %v1728 = vadd.f32 %v1727, %v1713
  %v1729 = vrot.slane %v1728, 4
  %v1730 = vadd.f32 %v1728, %v1729
  %v1731 = vrot.slane %v1730, 2
  %v1732 = vadd.f32 %v1730, %v1731
  %v1733 = vrot.slane %v1732, 1
  %v1734 = vadd.f32 %v1732, %v1733
  %v1735 = vmul.f32 %v1734, 0.0078125
  %v1736 = vmul.f32 %v1697, %v1697
  %v1737 = vsub.f32 %v1735, %v1736
  %v1738 = vadd.f32 %v1737, 1e-05
  %v1739 = vrsqrt.pop %v1738
  %v1740 = vld [vmem:[%s2] sm:$0x1]
  %v1741 = vmul.f32 %v1739, %v1740
  %v1742 = vld [vmem:[%s3] sm:$0x1]
  %v1743 = vmul.f32 %v1697, %v1741
  %v1744 = vsub.f32 %v1742, %v1743
  %v1745 = vlaneseq
  %v1746 = vshrl.u32 %v1745, 7
  %v1747 = vsub.s32 0, %v1746
  %v1748 = vrot.slane %v1741, %v1747
  %v1749 = vmul.f32 %v1660, %v1748
  %v1750 = vmul.f32 %v1661, %v1748
  %v1751 = vmul.f32 %v1662, %v1748
  %v1752 = vmul.f32 %v1663, %v1748
  %v1753 = vmul.f32 %v1664, %v1748
  %v1754 = vmul.f32 %v1665, %v1748
  %v1755 = vmul.f32 %v1666, %v1748
  %v1756 = vmul.f32 %v1667, %v1748
  %v1757 = vmul.f32 %v1668, %v1748
  %v1758 = vmul.f32 %v1669, %v1748
  %v1759 = vmul.f32 %v1670, %v1748
  %v1760 = vmul.f32 %v1671, %v1748
  %v1761 = vmul.f32 %v1672, %v1748
  %v1762 = vmul.f32 %v1673, %v1748
  %v1763 = vmul.f32 %v1674, %v1748
  %v1764 = vmul.f32 %v1675, %v1748
  %v1766 = vlaneseq
  %v1767 = vshrl.u32 %v1766, 7
  %v1768 = vsub.s32 0, %v1767
  %v1769 = vrot.slane %v1744, %v1768
  %v1771 = vadd.f32 %v1749, %v1769
  %v1772 = vadd.f32 %v1750, %v1769
  %v1773 = vadd.f32 %v1751, %v1769
  %v1774 = vadd.f32 %v1752, %v1769
  %v1775 = vadd.f32 %v1753, %v1769
  %v1776 = vadd.f32 %v1754, %v1769
  %v1777 = vadd.f32 %v1755, %v1769
  %v1778 = vadd.f32 %v1756, %v1769
  %v1779 = vadd.f32 %v1757, %v1769
  %v1780 = vadd.f32 %v1758, %v1769
  %v1781 = vadd.f32 %v1759, %v1769
  %v1782 = vadd.f32 %v1760, %v1769
  %v1783 = vadd.f32 %v1761, %v1769
  %v1784 = vadd.f32 %v1762, %v1769
  %v1785 = vadd.f32 %v1763, %v1769
  %v1786 = vadd.f32 %v1764, %v1769
  %v1787 = vmax.f32 %v1771, 0.0
  %v1788 = vmax.f32 %v1772, 0.0
  %v1789 = vmax.f32 %v1773, 0.0
  %v1790 = vmax.f32 %v1774, 0.0
  %v1791 = vmax.f32 %v1775, 0.0
  %v1792 = vmax.f32 %v1776, 0.0
  %v1793 = vmax.f32 %v1777, 0.0
  %v1794 = vmax.f32 %v1778, 0.0
  %v1795 = vmax.f32 %v1779, 0.0
  %v1796 = vmax.f32 %v1780, 0.0
  %v1797 = vmax.f32 %v1781, 0.0
  %v1798 = vmax.f32 %v1782, 0.0
  %v1799 = vmax.f32 %v1783, 0.0
  %v1800 = vmax.f32 %v1784, 0.0
  %v1801 = vmax.f32 %v1785, 0.0
  %v1802 = vmax.f32 %v1786, 0.0
  %v1803 = vpack.c.bf16 %v1788, %v1787
  %v1804 = vpack.c.bf16 %v1790, %v1789
  %v1805 = vpack.c.bf16 %v1792, %v1791
  %v1806 = vpack.c.bf16 %v1794, %v1793
  %v1807 = vpack.c.bf16 %v1796, %v1795
  %v1808 = vpack.c.bf16 %v1798, %v1797
  %v1809 = vpack.c.bf16 %v1800, %v1799
  %v1810 = vpack.c.bf16 %v1802, %v1801
  %v1819 = vunpack.c.l.b16 %v1803
  %v1820 = vunpack.c.h.b16 %v1803
  %v1821 = vunpack.c.l.b16 %v1804
  %v1822 = vunpack.c.h.b16 %v1804
  %v1823 = vunpack.c.l.b16 %v1805
  %v1824 = vunpack.c.h.b16 %v1805
  %v1825 = vunpack.c.l.b16 %v1806
  %v1826 = vunpack.c.h.b16 %v1806
  %v1827 = vunpack.c.l.b16 %v1807
  %v1828 = vunpack.c.h.b16 %v1807
  %v1829 = vunpack.c.l.b16 %v1808
  %v1830 = vunpack.c.h.b16 %v1808
  %v1831 = vunpack.c.l.b16 %v1809
  %v1832 = vunpack.c.h.b16 %v1809
  %v1833 = vunpack.c.l.b16 %v1810
  %v1834 = vunpack.c.h.b16 %v1810
  %v1835 = vpack.c.b16 %v1819, %v1819
  %v1836 = vpack.c.b16 %v1820, %v1820
  %v1837 = vpack.c.b16 %v1821, %v1821
  %v1838 = vpack.c.b16 %v1822, %v1822
  %v1839 = vpack.c.b16 %v1823, %v1823
  %v1840 = vpack.c.b16 %v1824, %v1824
  %v1841 = vpack.c.b16 %v1825, %v1825
  %v1842 = vpack.c.b16 %v1826, %v1826
  %v1843 = vpack.c.b16 %v1827, %v1827
  %v1844 = vpack.c.b16 %v1828, %v1828
  %v1845 = vpack.c.b16 %v1829, %v1829
  %v1846 = vpack.c.b16 %v1830, %v1830
  %v1847 = vpack.c.b16 %v1831, %v1831
  %v1848 = vpack.c.b16 %v1832, %v1832
  %v1849 = vpack.c.b16 %v1833, %v1833
  %v1850 = vpack.c.b16 %v1834, %v1834
  %1867 = vst [vmem:[%s4] sm:$0xf] %v1835
  %1868 = vst [vmem:[%s4 + $0x4] sm:$0xf] %v1836
  %1869 = vst [vmem:[%s4 + $0x8] sm:$0xf] %v1837
  %1870 = vst [vmem:[%s4 + $0xc] sm:$0xf] %v1838
  %1871 = vst [vmem:[%s4 + $0x10] sm:$0xf] %v1839
  %1872 = vst [vmem:[%s4 + $0x14] sm:$0xf] %v1840
  %1873 = vst [vmem:[%s4 + $0x18] sm:$0xf] %v1841
  %1874 = vst [vmem:[%s4 + $0x1c] sm:$0xf] %v1842
  %1875 = vst [vmem:[%s4 + $0x20] sm:$0xf] %v1843
  %1876 = vst [vmem:[%s4 + $0x24] sm:$0xf] %v1844
  %1877 = vst [vmem:[%s4 + $0x28] sm:$0xf] %v1845
  %1878 = vst [vmem:[%s4 + $0x2c] sm:$0xf] %v1846
  %1879 = vst [vmem:[%s4 + $0x30] sm:$0xf] %v1847
  %1880 = vst [vmem:[%s4 + $0x34] sm:$0xf] %v1848
  %1881 = vst [vmem:[%s4 + $0x38] sm:$0xf] %v1849
  %1882 = vst [vmem:[%s4 + $0x3c] sm:$0xf] %v1850
  // Predicated region
  $region18: #{fwd.6} parent=0 // pred_check
    _
  $region19: #{fwd.6} parent=0 // pred_check_branch
    %1884 = sbr.rel (0) target = $region21
  $region20: #{fwd.6} parent=0 // pred_region
    _
  $region21: #{fwd.6} parent=0 // pred_fallthru
    _
  // Predicated region
  $region22: #{fwd.6} parent=0 // pred_check
    _
  $region23: #{fwd.6} parent=0 // pred_check_branch
    %1886 = sbr.rel (0) target = $region25
  $region24: #{fwd.6} parent=0 // pred_region
    _
  $region25: #{fwd.6} parent=0 // pred_fallthru
    _

</llo_original>
